<compile_context>
chip_gen: v6e
topology: v6e:2x2x1
jax: 0.10.0
libtpu: 0.0.40
codegen_flags: <defaults>
</compile_context>

<pallas_src>
import jax
import jax.numpy as jnp
from jax.experimental import pallas as pl
from jax.experimental.pallas import tpu as pltpu

EPS = 1e-5

# Logical dims of the module and their lane-dense (multiple-of-128) paddings.
K_IN, HID, OUT = 100, 1200, 784
K_P, HID_P, OUT_P = 128, 1280, 896


def _generator_kernel(x_ref, w1_ref, g1_ref, be1_ref,
                      g2_ref, be2_ref, b3_ref,
                      w2_hbm, w3_hbm,
                      o_ref,
                      w2_vmem, w3_vmem, sem):
    # Kick off the two big weight DMAs immediately so HBM->VMEM transfer of
    # w2 (block2) and w3 (linear3) overlaps with earlier-layer compute.
    cp_w2 = pltpu.make_async_copy(w2_hbm, w2_vmem, sem.at[0])
    cp_w3 = pltpu.make_async_copy(w3_hbm, w3_vmem, sem.at[1])
    cp_w2.start()
    cp_w3.start()

    inv_b = 1.0 / x_ref.shape[0]

    def bn_relu(h, g, be):
        # Fused training-mode BatchNorm1d (biased variance) + ReLU.
        # One traversal for the stats, one FMA-shaped op to normalize.
        mean = jnp.sum(h, axis=0, keepdims=True) * inv_b
        var = jnp.maximum(
            jnp.sum(h * h, axis=0, keepdims=True) * inv_b - mean * mean, 0.0)
        scale = g * jax.lax.rsqrt(var + EPS)
        shift = be - mean * scale
        return jnp.maximum(h * scale + shift, 0.0)

    # ---- block1: Linear (bias dropped: cancels in BN) + BN + ReLU ----
    x = x_ref[...].astype(jnp.bfloat16)                       # (B, 128)
    h = jnp.dot(x, w1_ref[...], preferred_element_type=jnp.float32)  # (B, 1280) f32
    h = bn_relu(h, g1_ref[...], be1_ref[...])

    # ---- block2: Linear (bias dropped) + BN + ReLU ----
    cp_w2.wait()
    h = jnp.dot(h.astype(jnp.bfloat16), w2_vmem[...],
                preferred_element_type=jnp.float32)
    h = bn_relu(h, g2_ref[...], be2_ref[...])

    # ---- linear3 + sigmoid ----
    cp_w3.wait()
    z = jnp.dot(h.astype(jnp.bfloat16), w3_vmem[...],
                preferred_element_type=jnp.float32) + b3_ref[...]
    o_ref[...] = jax.nn.sigmoid(z)


def _pad2(a, rows, cols, dtype=None):
    a = jnp.pad(a, ((0, rows - a.shape[0]), (0, cols - a.shape[1])))
    return a if dtype is None else a.astype(dtype)


def generator_forward(x, params):
    """x: (B, 100) float32 with B > 1 and B % 8 == 0.  params: see init_params."""
    B = x.shape[0]
    assert B > 1 and B % 8 == 0, (
        "training-mode BatchNorm needs B>1; keep B a multiple of 8 (sublane tile)")

    bf16 = jnp.bfloat16
    xp   = _pad2(x, B, K_P)                          # (B, 128)     f32
    w1p  = _pad2(params["w1"], K_P, HID_P, bf16)     # (128, 1280)  bf16
    g1p  = _pad2(params["g1"], 1, HID_P)             # (1, 1280)    f32
    be1p = _pad2(params["be1"], 1, HID_P)
    w2p  = _pad2(params["w2"], HID_P, HID_P, bf16)   # (1280, 1280) bf16, streamed
    g2p  = _pad2(params["g2"], 1, HID_P)
    be2p = _pad2(params["be2"], 1, HID_P)
    w3p  = _pad2(params["w3"], HID_P, OUT_P, bf16)   # (1280, 896)  bf16, streamed
    b3p  = _pad2(params["b3"], 1, OUT_P)
    # b1 / b2 intentionally not passed: constants added before a training-mode
    # BatchNorm cancel exactly with the batch-mean subtraction.

    vmem = pl.BlockSpec(memory_space=pltpu.MemorySpace.VMEM)
    hbm = pl.BlockSpec(memory_space=pl.ANY)

    out = pl.pallas_call(
        _generator_kernel,
        out_shape=jax.ShapeDtypeStruct((B, OUT_P), jnp.float32),
        in_specs=[vmem] * 7 + [hbm, hbm],
        out_specs=vmem,
        scratch_shapes=[
            pltpu.VMEM((HID_P, HID_P), bf16),        # w2 landing buffer
            pltpu.VMEM((HID_P, OUT_P), bf16),        # w3 landing buffer
            pltpu.SemaphoreType.DMA((2,)),
        ],
        compiler_params=pltpu.CompilerParams(vmem_limit_bytes=32 << 20),
    )(xp, w1p, g1p, be1p, g2p, be2p, b3p, w2p, w3p)
    return out[:, :OUT]


def init_params(key):
    """Deterministic synthetic parameters matching the module's shapes (f32)."""
    ks = jax.random.split(key, 6)

    def lin(kw, kb, fan_in, fan_out):
        # PyTorch default Linear init: U(-1/sqrt(fan_in), 1/sqrt(fan_in))
        bound = 1.0 / (fan_in ** 0.5)
        w = jax.random.uniform(kw, (fan_in, fan_out), jnp.float32, -bound, bound)
        b = jax.random.uniform(kb, (1, fan_out), jnp.float32, -bound, bound)
        return w, b

    w1, b1 = lin(ks[0], ks[1], 100, 1200)
    w2, b2 = lin(ks[2], ks[3], 1200, 1200)
    w3, b3 = lin(ks[4], ks[5], 1200, 784)
    return {
        "w1": w1, "b1": b1,
        "g1": jnp.ones((1, 1200), jnp.float32), "be1": jnp.zeros((1, 1200), jnp.float32),
        "w2": w2, "b2": b2,
        "g2": jnp.ones((1, 1200), jnp.float32), "be2": jnp.zeros((1, 1200), jnp.float32),
        "w3": w3, "b3": b3,
    }


def _reference(x, p):
    """Pure-JAX reference with the same numerics choices as the kernel
    (bf16 weights + bf16 activation operands, f32 accumulation / BN math),
    but keeping the b1/b2 biases and the two-pass BatchNorm formula to verify
    the kernel's bias-cancellation and fused-stats rewrites are exact."""
    bf16 = jnp.bfloat16

    def mm(a, w):
        return jnp.dot(a.astype(bf16), w.astype(bf16),
                       preferred_element_type=jnp.float32)

    def bn(h, g, be):
        mean = jnp.mean(h, axis=0, keepdims=True)
        var = jnp.mean((h - mean) ** 2, axis=0, keepdims=True)   # biased var
        return (h - mean) * jax.lax.rsqrt(var + EPS) * g + be

    h = jnp.maximum(bn(mm(x, p["w1"]) + p["b1"], p["g1"], p["be1"]), 0.0)
    h = jnp.maximum(bn(mm(h, p["w2"]) + p["b2"], p["g2"], p["be2"]), 0.0)
    return jax.nn.sigmoid(mm(h, p["w3"]) + p["b3"])


if __name__ == "__main__":
    key = jax.random.PRNGKey(0)
    k_x, k_p = jax.random.split(key)

    B = 8                              # BatchNorm1d (training) needs B > 1
    x = jax.random.normal(k_x, (B, K_IN), jnp.float32)
    params = init_params(k_p)

    out = generator_forward(x, params)
    out = jax.block_until_ready(out)

    ref = _reference(x, params)
    assert out.shape == (B, OUT)
    err = float(jnp.max(jnp.abs(out - ref)))
    assert err < 1e-4, f"mismatch vs reference: {err}"

    print("KERNEL_OK")
</pallas_src>

<mosaic_0001>
module attributes {stable_mosaic.version = 11 : i64} {
  func.func @_generator_kernel(%arg0: memref<8x128xf32, #tpu.memory_space<vmem>>, %arg1: memref<128x1280xbf16, #tpu.memory_space<vmem>>, %arg2: memref<1x1280xf32, #tpu.memory_space<vmem>>, %arg3: memref<1x1280xf32, #tpu.memory_space<vmem>>, %arg4: memref<1x1280xf32, #tpu.memory_space<vmem>>, %arg5: memref<1x1280xf32, #tpu.memory_space<vmem>>, %arg6: memref<1x896xf32, #tpu.memory_space<vmem>>, %arg7: memref<1280x1280xbf16, #tpu.memory_space<any>>, %arg8: memref<1280x896xbf16, #tpu.memory_space<any>>, %arg9: memref<8x896xf32, #tpu.memory_space<vmem>>, %arg10: memref<1280x1280xbf16, #tpu.memory_space<vmem>>, %arg11: memref<1280x896xbf16, #tpu.memory_space<vmem>>, %arg12: memref<2x!tpu.dma_semaphore, #tpu.memory_space<semaphore_mem>>) attributes {dimension_semantics = [], scalar_prefetch = 0 : i64, scratch_operands = 3 : i64, tpu.core_type = #tpu.core_type<tc>} {
    %c0_i32 = arith.constant 0 : i32
    %0 = tpu.memref_slice %arg12[%c0_i32] : memref<2x!tpu.dma_semaphore, #tpu.memory_space<semaphore_mem>> -> memref<1x!tpu.dma_semaphore, #tpu.memory_space<semaphore_mem>>
    %1 = tpu.memref_squeeze %0 : memref<1x!tpu.dma_semaphore, #tpu.memory_space<semaphore_mem>> -> memref<!tpu.dma_semaphore, #tpu.memory_space<semaphore_mem>>
    tpu.enqueue_dma source(%arg7 : memref<1280x1280xbf16, #tpu.memory_space<any>>) target(%arg10 : memref<1280x1280xbf16, #tpu.memory_space<vmem>>) target_semaphore(%1 : memref<!tpu.dma_semaphore, #tpu.memory_space<semaphore_mem>>)
    %c1_i32 = arith.constant 1 : i32
    %2 = tpu.memref_slice %arg12[%c1_i32] : memref<2x!tpu.dma_semaphore, #tpu.memory_space<semaphore_mem>> -> memref<1x!tpu.dma_semaphore, #tpu.memory_space<semaphore_mem>>
    %3 = tpu.memref_squeeze %2 : memref<1x!tpu.dma_semaphore, #tpu.memory_space<semaphore_mem>> -> memref<!tpu.dma_semaphore, #tpu.memory_space<semaphore_mem>>
    tpu.enqueue_dma source(%arg8 : memref<1280x896xbf16, #tpu.memory_space<any>>) target(%arg11 : memref<1280x896xbf16, #tpu.memory_space<vmem>>) target_semaphore(%3 : memref<!tpu.dma_semaphore, #tpu.memory_space<semaphore_mem>>)
    %c0 = arith.constant 0 : index
    %c0_0 = arith.constant 0 : index
    %4 = vector.load %arg0[%c0, %c0_0] : memref<8x128xf32, #tpu.memory_space<vmem>>, vector<8x128xf32>
    %5 = arith.truncf %4 : vector<8x128xf32> to vector<8x128xbf16>
    %c0_1 = arith.constant 0 : index
    %c0_2 = arith.constant 0 : index
    %6 = vector.load %arg1[%c0_1, %c0_2] : memref<128x1280xbf16, #tpu.memory_space<vmem>>, vector<128x1280xbf16>
    %cst = arith.constant dense<0.000000e+00> : vector<8x1280xf32>
    %7 = tpu.matmul %5, %6, %cst {dimension_numbers = #tpu.dot_dimension_numbers<[1], [0], [0], [1], [0, 0, 1, 1], [], []>} : vector<8x128xbf16>, vector<128x1280xbf16>, vector<8x1280xf32> -> vector<8x1280xf32>
    %c0_3 = arith.constant 0 : index
    %c0_4 = arith.constant 0 : index
    %8 = vector.load %arg2[%c0_3, %c0_4] : memref<1x1280xf32, #tpu.memory_space<vmem>>, vector<1x1280xf32>
    %c0_5 = arith.constant 0 : index
    %c0_6 = arith.constant 0 : index
    %9 = vector.load %arg3[%c0_5, %c0_6] : memref<1x1280xf32, #tpu.memory_space<vmem>>, vector<1x1280xf32>
    %cst_7 = arith.constant dense<0.000000e+00> : vector<1280xf32>
    %10 = vector.multi_reduction <add>, %7, %cst_7 [0] : vector<8x1280xf32> to vector<1280xf32>
    %11 = vector.shape_cast %10 : vector<1280xf32> to vector<1x1280xf32>
    %cst_8 = arith.constant 1.250000e-01 : f32
    %12 = vector.broadcast %cst_8 : f32 to vector<1x1280xf32>
    %13 = arith.mulf %11, %12 : vector<1x1280xf32>
    %14 = arith.mulf %7, %7 : vector<8x1280xf32>
    %cst_9 = arith.constant dense<0.000000e+00> : vector<1280xf32>
    %15 = vector.multi_reduction <add>, %14, %cst_9 [0] : vector<8x1280xf32> to vector<1280xf32>
    %16 = vector.shape_cast %15 : vector<1280xf32> to vector<1x1280xf32>
    %cst_10 = arith.constant 1.250000e-01 : f32
    %17 = vector.broadcast %cst_10 : f32 to vector<1x1280xf32>
    %18 = arith.mulf %16, %17 : vector<1x1280xf32>
    %19 = arith.mulf %13, %13 : vector<1x1280xf32>
    %20 = arith.subf %18, %19 : vector<1x1280xf32>
    %cst_11 = arith.constant 0.000000e+00 : f32
    %21 = vector.broadcast %cst_11 : f32 to vector<1x1280xf32>
    %22 = arith.maximumf %20, %21 : vector<1x1280xf32>
    %cst_12 = arith.constant 9.99999974E-6 : f32
    %23 = vector.broadcast %cst_12 : f32 to vector<1x1280xf32>
    %24 = arith.addf %22, %23 : vector<1x1280xf32>
    %25 = math.rsqrt %24 : vector<1x1280xf32>
    %26 = arith.mulf %8, %25 : vector<1x1280xf32>
    %27 = arith.mulf %13, %26 : vector<1x1280xf32>
    %28 = arith.subf %9, %27 : vector<1x1280xf32>
    %29 = vector.broadcast %26 : vector<1x1280xf32> to vector<8x1280xf32>
    %30 = arith.mulf %7, %29 : vector<8x1280xf32>
    %31 = vector.broadcast %28 : vector<1x1280xf32> to vector<8x1280xf32>
    %32 = arith.addf %30, %31 : vector<8x1280xf32>
    %cst_13 = arith.constant 0.000000e+00 : f32
    %33 = vector.broadcast %cst_13 : f32 to vector<8x1280xf32>
    %34 = arith.maximumf %32, %33 : vector<8x1280xf32>
    %c0_i32_14 = arith.constant 0 : i32
    %35 = tpu.memref_slice %arg12[%c0_i32_14] : memref<2x!tpu.dma_semaphore, #tpu.memory_space<semaphore_mem>> -> memref<1x!tpu.dma_semaphore, #tpu.memory_space<semaphore_mem>>
    %36 = tpu.memref_squeeze %35 : memref<1x!tpu.dma_semaphore, #tpu.memory_space<semaphore_mem>> -> memref<!tpu.dma_semaphore, #tpu.memory_space<semaphore_mem>>
    tpu.wait_dma2 semaphore(%36 : memref<!tpu.dma_semaphore, #tpu.memory_space<semaphore_mem>>) src(%arg7 : memref<1280x1280xbf16, #tpu.memory_space<any>>) dst(%arg10 : memref<1280x1280xbf16, #tpu.memory_space<vmem>>)
    %37 = arith.truncf %34 : vector<8x1280xf32> to vector<8x1280xbf16>
    %c0_15 = arith.constant 0 : index
    %c0_16 = arith.constant 0 : index
    %38 = vector.load %arg10[%c0_15, %c0_16] : memref<1280x1280xbf16, #tpu.memory_space<vmem>>, vector<1280x1280xbf16>
    %cst_17 = arith.constant dense<0.000000e+00> : vector<8x1280xf32>
    %39 = tpu.matmul %37, %38, %cst_17 {dimension_numbers = #tpu.dot_dimension_numbers<[1], [0], [0], [1], [0, 0, 1, 1], [], []>} : vector<8x1280xbf16>, vector<1280x1280xbf16>, vector<8x1280xf32> -> vector<8x1280xf32>
    %c0_18 = arith.constant 0 : index
    %c0_19 = arith.constant 0 : index
    %40 = vector.load %arg4[%c0_18, %c0_19] : memref<1x1280xf32, #tpu.memory_space<vmem>>, vector<1x1280xf32>
    %c0_20 = arith.constant 0 : index
    %c0_21 = arith.constant 0 : index
    %41 = vector.load %arg5[%c0_20, %c0_21] : memref<1x1280xf32, #tpu.memory_space<vmem>>, vector<1x1280xf32>
    %cst_22 = arith.constant dense<0.000000e+00> : vector<1280xf32>
    %42 = vector.multi_reduction <add>, %39, %cst_22 [0] : vector<8x1280xf32> to vector<1280xf32>
    %43 = vector.shape_cast %42 : vector<1280xf32> to vector<1x1280xf32>
    %cst_23 = arith.constant 1.250000e-01 : f32
    %44 = vector.broadcast %cst_23 : f32 to vector<1x1280xf32>
    %45 = arith.mulf %43, %44 : vector<1x1280xf32>
    %46 = arith.mulf %39, %39 : vector<8x1280xf32>
    %cst_24 = arith.constant dense<0.000000e+00> : vector<1280xf32>
    %47 = vector.multi_reduction <add>, %46, %cst_24 [0] : vector<8x1280xf32> to vector<1280xf32>
    %48 = vector.shape_cast %47 : vector<1280xf32> to vector<1x1280xf32>
    %cst_25 = arith.constant 1.250000e-01 : f32
    %49 = vector.broadcast %cst_25 : f32 to vector<1x1280xf32>
    %50 = arith.mulf %48, %49 : vector<1x1280xf32>
    %51 = arith.mulf %45, %45 : vector<1x1280xf32>
    %52 = arith.subf %50, %51 : vector<1x1280xf32>
    %cst_26 = arith.constant 0.000000e+00 : f32
    %53 = vector.broadcast %cst_26 : f32 to vector<1x1280xf32>
    %54 = arith.maximumf %52, %53 : vector<1x1280xf32>
    %cst_27 = arith.constant 9.99999974E-6 : f32
    %55 = vector.broadcast %cst_27 : f32 to vector<1x1280xf32>
    %56 = arith.addf %54, %55 : vector<1x1280xf32>
    %57 = math.rsqrt %56 : vector<1x1280xf32>
    %58 = arith.mulf %40, %57 : vector<1x1280xf32>
    %59 = arith.mulf %45, %58 : vector<1x1280xf32>
    %60 = arith.subf %41, %59 : vector<1x1280xf32>
    %61 = vector.broadcast %58 : vector<1x1280xf32> to vector<8x1280xf32>
    %62 = arith.mulf %39, %61 : vector<8x1280xf32>
    %63 = vector.broadcast %60 : vector<1x1280xf32> to vector<8x1280xf32>
    %64 = arith.addf %62, %63 : vector<8x1280xf32>
    %cst_28 = arith.constant 0.000000e+00 : f32
    %65 = vector.broadcast %cst_28 : f32 to vector<8x1280xf32>
    %66 = arith.maximumf %64, %65 : vector<8x1280xf32>
    %c1_i32_29 = arith.constant 1 : i32
    %67 = tpu.memref_slice %arg12[%c1_i32_29] : memref<2x!tpu.dma_semaphore, #tpu.memory_space<semaphore_mem>> -> memref<1x!tpu.dma_semaphore, #tpu.memory_space<semaphore_mem>>
    %68 = tpu.memref_squeeze %67 : memref<1x!tpu.dma_semaphore, #tpu.memory_space<semaphore_mem>> -> memref<!tpu.dma_semaphore, #tpu.memory_space<semaphore_mem>>
    tpu.wait_dma2 semaphore(%68 : memref<!tpu.dma_semaphore, #tpu.memory_space<semaphore_mem>>) src(%arg8 : memref<1280x896xbf16, #tpu.memory_space<any>>) dst(%arg11 : memref<1280x896xbf16, #tpu.memory_space<vmem>>)
    %69 = arith.truncf %66 : vector<8x1280xf32> to vector<8x1280xbf16>
    %c0_30 = arith.constant 0 : index
    %c0_31 = arith.constant 0 : index
    %70 = vector.load %arg11[%c0_30, %c0_31] : memref<1280x896xbf16, #tpu.memory_space<vmem>>, vector<1280x896xbf16>
    %cst_32 = arith.constant dense<0.000000e+00> : vector<8x896xf32>
    %71 = tpu.matmul %69, %70, %cst_32 {dimension_numbers = #tpu.dot_dimension_numbers<[1], [0], [0], [1], [0, 0, 1, 1], [], []>} : vector<8x1280xbf16>, vector<1280x896xbf16>, vector<8x896xf32> -> vector<8x896xf32>
    %c0_33 = arith.constant 0 : index
    %c0_34 = arith.constant 0 : index
    %72 = vector.load %arg6[%c0_33, %c0_34] : memref<1x896xf32, #tpu.memory_space<vmem>>, vector<1x896xf32>
    %73 = vector.broadcast %72 : vector<1x896xf32> to vector<8x896xf32>
    %74 = arith.addf %71, %73 : vector<8x896xf32>
    %75 = arith.negf %74 : vector<8x896xf32>
    %76 = math.exp %75 : vector<8x896xf32>
    %cst_35 = arith.constant 1.000000e+00 : f32
    %77 = vector.broadcast %cst_35 : f32 to vector<8x896xf32>
    %78 = arith.addf %77, %76 : vector<8x896xf32>
    %79 = arith.divf %77, %78 : vector<8x896xf32>
    %c0_36 = arith.constant 0 : index
    %c0_37 = arith.constant 0 : index
    %80 = vector.load %arg9[%c0_36, %c0_37] : memref<8x896xf32, #tpu.memory_space<vmem>>, vector<8x896xf32>
    tpu.vector_store %arg9[%c0_36, %c0_37], %79 {strides = array<i32>} : memref<8x896xf32, #tpu.memory_space<vmem>>, vector<8x896xf32>,
    return
  }
}

</mosaic_0001>

<llo_original>
// kernel: tpu_custom_call.1
$region0: #{tpu_custom_call.1}
  #allocation0 [shape = 'u32[]', space=smem, size = 0x4, offset = 0x4, fixed_abs, tag = 'smem constant byte address 0x4 - core index']
  #allocation1 [shape = 'u32[144,128]{1,0:T(1,128)}', space=vmem, size = 0x12000, scoped, tag = 'internal scratch']
  #allocation2 [shape = 'bf16[1280,1280]{1,0:T(8,128)(2,1)}', space=vmem, size = 0x320000, scoped, tag = 'scratch operand']
  #allocation3 [shape = 'bf16[1280,896]{1,0:T(8,128)(2,1)}', space=vmem, size = 0x230000, scoped, tag = 'scratch operand']
  #allocation4 [shape = 's32[2]{0}', space=sflag, size = 0x8, scoped, tag = 'scratch operand']
  #allocation18 [shape = 's32[]', space=sflag, size = 0x4, offset = 0, fixed_abs, tag = 'sflag constant byte address 0x0 - dummy sync flag']
  #allocation19 [shape = 's32[]', space=sflag, size = 0x4, offset = 0, fixed_abs, tag = 'sflag constant byte address 0x0 - dummy sync flag']
  #allocation20 [shape = 'u32[]', space=smem, size = 0x4, offset = 0x44, fixed_abs, tag = 'smem constant byte address 0x44 - assertion arg 0']
  #allocation21 [shape = 'u32[]', space=smem, size = 0x4, offset = 0x48, fixed_abs, tag = 'smem constant byte address 0x48 - assertion arg 1']
  #allocation22 [shape = 's32[]', space=sflag, size = 0x4, offset = 0, fixed_abs, tag = 'sflag constant byte address 0x0 - dummy sync flag']
  #allocation23 [shape = 's32[]', space=sflag, size = 0x4, offset = 0, fixed_abs, tag = 'sflag constant byte address 0x0 - dummy sync flag']
  %s0 = inlined_call_operand.hbm [shape: f32[8,128], index: 0, kind: input, shape index: {}]
  %s1 = inlined_call_operand.hbm [shape: bf16[128,1280], index: 1, kind: input, shape index: {}]
  %s2 = inlined_call_operand.hbm [shape: f32[1,1280], index: 2, kind: input, shape index: {}]
  %s3 = inlined_call_operand.hbm [shape: f32[1,1280], index: 3, kind: input, shape index: {}]
  %s4 = inlined_call_operand.hbm [shape: f32[1,1280], index: 4, kind: input, shape index: {}]
  %s5 = inlined_call_operand.hbm [shape: f32[1,1280], index: 5, kind: input, shape index: {}]
  %s6 = inlined_call_operand.hbm [shape: f32[1,896], index: 6, kind: input, shape index: {}]
  %s7 = inlined_call_operand.hbm [shape: bf16[1280,1280], index: 7, kind: input, shape index: {}]
  %s8 = inlined_call_operand.hbm [shape: bf16[1280,896], index: 8, kind: input, shape index: {}]
  %s9 = inlined_call_operand.hbm [shape: f32[8,896], index: 9, kind: output, shape index: {}]
  %s10 = sld [smem:[#allocation0]]
  $region74: #{tpu_custom_call.1} parent=0
    _
  %s12 = ssub.s32 1, %s10
  %s13 = scalar_select 0, %s12, %s10
  $region1: #{tpu_custom_call.1} parent=0
    #allocation5 [shape = 'u8[4096]{0}', space=vmem, size = 0x1000, scoped, tag = 'input window, operand 0, single buffered']
    #allocation6 [shape = 's32[1]{0}', space=sflag, size = 0x4, scoped, tag = 'scoped memory for tpu_custom_call.1']
    #allocation7 [shape = 's32[1]{0}', space=sflag, size = 0x4, scoped, tag = 'scoped memory for tpu_custom_call.1']
    #allocation8 [shape = 'u8[327680]{0}', space=vmem, size = 0x50000, scoped, tag = 'input window, operand 1, single buffered']
    #allocation9 [shape = 's32[1]{0}', space=sflag, size = 0x4, scoped, tag = 'scoped memory for tpu_custom_call.1']
    #allocation10 [shape = 'u8[5120]{0}', space=vmem, size = 0x1400, scoped, tag = 'input window, operand 2, single buffered']
    #allocation11 [shape = 'u8[5120]{0}', space=vmem, size = 0x1400, scoped, tag = 'input window, operand 3, single buffered']
    #allocation12 [shape = 's32[1]{0}', space=sflag, size = 0x4, scoped, tag = 'scoped memory for tpu_custom_call.1']
    #allocation13 [shape = 'u8[5120]{0}', space=vmem, size = 0x1400, scoped, tag = 'input window, operand 4, single buffered']
    #allocation14 [shape = 'u8[5120]{0}', space=vmem, size = 0x1400, scoped, tag = 'input window, operand 5, single buffered']
    #allocation15 [shape = 's32[1]{0}', space=sflag, size = 0x4, scoped, tag = 'scoped memory for tpu_custom_call.1']
    #allocation16 [shape = 'u8[3584]{0}', space=vmem, size = 0x1000, scoped, tag = 'input window, operand 6, single buffered']
    #allocation17 [shape = 'u8[28672]{0}', space=vmem, size = 0x7000, scoped, tag = 'output window, operand 0, single buffered']
    %14 = vsyncpa [#allocation6], 0
    %15 = vsyncpa [#allocation9], 0
    %16 = vsyncpa [#allocation12], 0
    %17 = vsyncpa [#allocation15], 0
    %18 = vsyncpa [#allocation7], 0
    // Predicated region
    $region2: #{tpu_custom_call.1} parent=1 // pred_check
      _
    $region3: #{tpu_custom_call.1} parent=1 // pred_check_branch
      %20 = sbr.rel (0) target = $region5
    $region4: #{tpu_custom_call.1} parent=1 // pred_region
      %s22 = ssub.s32 128, 128
      %23 = vsyncadd [#allocation6], %s22
      %s25 = sshll.u32 [#allocation5], 4
      %s26 = int_to_ptr.vmem [resolvable:$true] %s25
      %28 = dma.hbm_to_vmem [thread:$0]  %s0, 128, %s26, [#allocation6]
    $region5: #{tpu_custom_call.1} parent=1 // pred_fallthru
      _
    // Predicated region
    $region6: #{tpu_custom_call.1} parent=1 // pred_check
      _
    $region7: #{tpu_custom_call.1} parent=1 // pred_check_branch
      %30 = sbr.rel (0) target = $region9
    $region8: #{tpu_custom_call.1} parent=1 // pred_region
      %s32 = ssub.s32 10240, 10240
      %33 = vsyncadd [#allocation9], %s32
      %s34 = sshll.u32 [#allocation8], 4
      %s35 = int_to_ptr.vmem [resolvable:$true] %s34
      %40 = dma.hbm_to_vmem [thread:$0]  %s1, 10240, %s35, [#allocation9], 640, 640, 40
    $region9: #{tpu_custom_call.1} parent=1 // pred_fallthru
      _
    // Predicated region
    $region10: #{tpu_custom_call.1} parent=1 // pred_check
      _
    $region11: #{tpu_custom_call.1} parent=1 // pred_check_branch
      %42 = sbr.rel (0) target = $region13
    $region12: #{tpu_custom_call.1} parent=1 // pred_region
      %s44 = ssub.s32 160, 160
      %45 = vsyncadd [#allocation9], %s44
      %s47 = sshll.u32 [#allocation10], 4
      %s48 = int_to_ptr.vmem [resolvable:$true] %s47
      %50 = dma.hbm_to_vmem [thread:$0]  %s2, 160, %s48, [#allocation9]
    $region13: #{tpu_custom_call.1} parent=1 // pred_fallthru
      _
    // Predicated region
    $region14: #{tpu_custom_call.1} parent=1 // pred_check
      _
    $region15: #{tpu_custom_call.1} parent=1 // pred_check_branch
      %52 = sbr.rel (0) target = $region17
    $region16: #{tpu_custom_call.1} parent=1 // pred_region
      %s54 = ssub.s32 160, 160
      %55 = vsyncadd [#allocation12], %s54
      %s57 = sshll.u32 [#allocation11], 4
      %s58 = int_to_ptr.vmem [resolvable:$true] %s57
      %60 = dma.hbm_to_vmem [thread:$0]  %s3, 160, %s58, [#allocation12]
    $region17: #{tpu_custom_call.1} parent=1 // pred_fallthru
      _
    // Predicated region
    $region18: #{tpu_custom_call.1} parent=1 // pred_check
      _
    $region19: #{tpu_custom_call.1} parent=1 // pred_check_branch
      %62 = sbr.rel (0) target = $region21
    $region20: #{tpu_custom_call.1} parent=1 // pred_region
      %s64 = ssub.s32 160, 160
      %65 = vsyncadd [#allocation12], %s64
      %s67 = sshll.u32 [#allocation13], 4
      %s68 = int_to_ptr.vmem [resolvable:$true] %s67
      %70 = dma.hbm_to_vmem [thread:$0]  %s4, 160, %s68, [#allocation12]
    $region21: #{tpu_custom_call.1} parent=1 // pred_fallthru
      _
    // Predicated region
    $region22: #{tpu_custom_call.1} parent=1 // pred_check
      _
    $region23: #{tpu_custom_call.1} parent=1 // pred_check_branch
      %72 = sbr.rel (0) target = $region25
    $region24: #{tpu_custom_call.1} parent=1 // pred_region
      %s74 = ssub.s32 160, 160
      %75 = vsyncadd [#allocation15], %s74
      %s77 = sshll.u32 [#allocation14], 4
      %s78 = int_to_ptr.vmem [resolvable:$true] %s77
      %80 = dma.hbm_to_vmem [thread:$0]  %s5, 160, %s78, [#allocation15]
    $region25: #{tpu_custom_call.1} parent=1 // pred_fallthru
      _
    // Predicated region
    $region26: #{tpu_custom_call.1} parent=1 // pred_check
      _
    $region27: #{tpu_custom_call.1} parent=1 // pred_check_branch
      %82 = sbr.rel (0) target = $region29
    $region28: #{tpu_custom_call.1} parent=1 // pred_region
      %s84 = ssub.s32 112, 112
      %85 = vsyncadd [#allocation15], %s84
      %s87 = sshll.u32 [#allocation16], 4
      %s88 = int_to_ptr.vmem [resolvable:$true] %s87
      %90 = dma.hbm_to_vmem [thread:$0]  %s6, 112, %s88, [#allocation15]
    $region29: #{tpu_custom_call.1} parent=1 // pred_fallthru
      _
    // Predicated region
    $region30: #{tpu_custom_call.1} parent=1 // pred_check
      _
    $region31: #{tpu_custom_call.1} parent=1 // pred_check_branch
      %92 = sbr.rel (0) target = $region33
    $region32: #{tpu_custom_call.1} parent=1 // pred_region
      %93 = dma.done [#allocation6], 128
    $region33: #{tpu_custom_call.1} parent=1 // pred_fallthru
      _
    // Predicated region
    $region34: #{tpu_custom_call.1} parent=1 // pred_check
      _
    $region35: #{tpu_custom_call.1} parent=1 // pred_check_branch
      %95 = sbr.rel (0) target = $region37
    $region36: #{tpu_custom_call.1} parent=1 // pred_region
      %96 = dma.done [#allocation9], 10240
    $region37: #{tpu_custom_call.1} parent=1 // pred_fallthru
      _
    // Predicated region
    $region38: #{tpu_custom_call.1} parent=1 // pred_check
      _
    $region39: #{tpu_custom_call.1} parent=1 // pred_check_branch
      %98 = sbr.rel (0) target = $region41
    $region40: #{tpu_custom_call.1} parent=1 // pred_region
      %99 = dma.done [#allocation9], 160
    $region41: #{tpu_custom_call.1} parent=1 // pred_fallthru
      _
    // Predicated region
    $region42: #{tpu_custom_call.1} parent=1 // pred_check
      _
    $region43: #{tpu_custom_call.1} parent=1 // pred_check_branch
      %101 = sbr.rel (0) target = $region45
    $region44: #{tpu_custom_call.1} parent=1 // pred_region
      %102 = dma.done [#allocation12], 160
    $region45: #{tpu_custom_call.1} parent=1 // pred_fallthru
      _
    // Predicated region
    $region46: #{tpu_custom_call.1} parent=1 // pred_check
      _
    $region47: #{tpu_custom_call.1} parent=1 // pred_check_branch
      %104 = sbr.rel (0) target = $region49
    $region48: #{tpu_custom_call.1} parent=1 // pred_region
      %105 = dma.done [#allocation12], 160
    $region49: #{tpu_custom_call.1} parent=1 // pred_fallthru
      _
    // Predicated region
    $region50: #{tpu_custom_call.1} parent=1 // pred_check
      _
    $region51: #{tpu_custom_call.1} parent=1 // pred_check_branch
      %107 = sbr.rel (0) target = $region53
    $region52: #{tpu_custom_call.1} parent=1 // pred_region
      %108 = dma.done [#allocation15], 160
    $region53: #{tpu_custom_call.1} parent=1 // pred_fallthru
      _
    // Predicated region
    $region54: #{tpu_custom_call.1} parent=1 // pred_check
      _
    $region55: #{tpu_custom_call.1} parent=1 // pred_check_branch
      %110 = sbr.rel (0) target = $region57
    $region56: #{tpu_custom_call.1} parent=1 // pred_region
      %111 = dma.done [#allocation15], 112
    $region57: #{tpu_custom_call.1} parent=1 // pred_fallthru
      _
    // Predicated region
    $region58: #{tpu_custom_call.1} parent=1 // pred_check
      _
    $region59: #{tpu_custom_call.1} parent=1 // pred_check_branch
      %114 = sbr.rel target = $region61
    $region60: #{tpu_custom_call.1} parent=1 // pred_region
      %115 = sst [smem:[#allocation20]] [#allocation19]
      %116 = sst [smem:[#allocation21]] [#allocation18]
    $region61: #{tpu_custom_call.1} parent=1 // pred_fallthru
      _
    %118 = shalt.err (0)
    %s120 = sshll.u32 [#allocation2], 4
    %s121 = int_to_ptr.vmem [resolvable:$true] %s120
    %123 = dma.hbm_to_vmem [thread:$0]  %s7, 102400, %s121, [#allocation4]
    %s124 = scalar_lea.sflag [#allocation4], 1
    // Predicated region
    $region62: #{tpu_custom_call.1} parent=1 // pred_check
      _
    $region63: #{tpu_custom_call.1} parent=1 // pred_check_branch
      %126 = sbr.rel target = $region65
    $region64: #{tpu_custom_call.1} parent=1 // pred_region
      %127 = sst [smem:[#allocation20]] [#allocation23]
      %128 = sst [smem:[#allocation21]] [#allocation22]
    $region65: #{tpu_custom_call.1} parent=1 // pred_fallthru
      _
    %130 = shalt.err (0)
    %s132 = sshll.u32 [#allocation3], 4
    %s133 = int_to_ptr.vmem [resolvable:$true] %s132
    %135 = dma.hbm_to_vmem [thread:$0]  %s8, 71680, %s133, %s124
    %v136 = vld [vmem:[#allocation5] sm:$0xff]
    %v137 = vpack.c.bf16 %v136, %v136
    %v138 = vld [vmem:[#allocation8] sm:$0xff]
    %v139 = vld [vmem:[#allocation8 + $0x8] sm:$0xff]
    %v140 = vld [vmem:[#allocation8 + $0x10] sm:$0xff]
    %v141 = vld [vmem:[#allocation8 + $0x18] sm:$0xff]
    %v142 = vld [vmem:[#allocation8 + $0x20] sm:$0xff]
    %v143 = vld [vmem:[#allocation8 + $0x28] sm:$0xff]
    %v144 = vld [vmem:[#allocation8 + $0x30] sm:$0xff]
    %v145 = vld [vmem:[#allocation8 + $0x38] sm:$0xff]
    %v146 = vld [vmem:[#allocation8 + $0x40] sm:$0xff]
    %v147 = vld [vmem:[#allocation8 + $0x48] sm:$0xff]
    %v148 = vld [vmem:[#allocation8 + $0x50] sm:$0xff]
    %v149 = vld [vmem:[#allocation8 + $0x58] sm:$0xff]
    %v150 = vld [vmem:[#allocation8 + $0x60] sm:$0xff]
    %v151 = vld [vmem:[#allocation8 + $0x68] sm:$0xff]
    %v152 = vld [vmem:[#allocation8 + $0x70] sm:$0xff]
    %v153 = vld [vmem:[#allocation8 + $0x78] sm:$0xff]
    %v154 = vld [vmem:[#allocation8 + $0x80] sm:$0xff]
    %v155 = vld [vmem:[#allocation8 + $0x88] sm:$0xff]
    %v156 = vld [vmem:[#allocation8 + $0x90] sm:$0xff]
    %v157 = vld [vmem:[#allocation8 + $0x98] sm:$0xff]
    %v158 = vld [vmem:[#allocation8 + $0xa0] sm:$0xff]
    %v159 = vld [vmem:[#allocation8 + $0xa8] sm:$0xff]
    %v160 = vld [vmem:[#allocation8 + $0xb0] sm:$0xff]
    %v161 = vld [vmem:[#allocation8 + $0xb8] sm:$0xff]
    %v162 = vld [vmem:[#allocation8 + $0xc0] sm:$0xff]
    %v163 = vld [vmem:[#allocation8 + $0xc8] sm:$0xff]
    %v164 = vld [vmem:[#allocation8 + $0xd0] sm:$0xff]
    %v165 = vld [vmem:[#allocation8 + $0xd8] sm:$0xff]
    %v166 = vld [vmem:[#allocation8 + $0xe0] sm:$0xff]
    %v167 = vld [vmem:[#allocation8 + $0xe8] sm:$0xff]
    %v168 = vld [vmem:[#allocation8 + $0xf0] sm:$0xff]
    %v169 = vld [vmem:[#allocation8 + $0xf8] sm:$0xff]
    %v170 = vld [vmem:[#allocation8 + $0x100] sm:$0xff]
    %v171 = vld [vmem:[#allocation8 + $0x108] sm:$0xff]
    %v172 = vld [vmem:[#allocation8 + $0x110] sm:$0xff]
    %v173 = vld [vmem:[#allocation8 + $0x118] sm:$0xff]
    %v174 = vld [vmem:[#allocation8 + $0x120] sm:$0xff]
    %v175 = vld [vmem:[#allocation8 + $0x128] sm:$0xff]
    %v176 = vld [vmem:[#allocation8 + $0x130] sm:$0xff]
    %v177 = vld [vmem:[#allocation8 + $0x138] sm:$0xff]
    %v178 = vld [vmem:[#allocation8 + $0x140] sm:$0xff]
    %v179 = vld [vmem:[#allocation8 + $0x148] sm:$0xff]
    %v180 = vld [vmem:[#allocation8 + $0x150] sm:$0xff]
    %v181 = vld [vmem:[#allocation8 + $0x158] sm:$0xff]
    %v182 = vld [vmem:[#allocation8 + $0x160] sm:$0xff]
    %v183 = vld [vmem:[#allocation8 + $0x168] sm:$0xff]
    %v184 = vld [vmem:[#allocation8 + $0x170] sm:$0xff]
    %v185 = vld [vmem:[#allocation8 + $0x178] sm:$0xff]
    %v186 = vld [vmem:[#allocation8 + $0x180] sm:$0xff]
    %v187 = vld [vmem:[#allocation8 + $0x188] sm:$0xff]
    %v188 = vld [vmem:[#allocation8 + $0x190] sm:$0xff]
    %v189 = vld [vmem:[#allocation8 + $0x198] sm:$0xff]
    %v190 = vld [vmem:[#allocation8 + $0x1a0] sm:$0xff]
    %v191 = vld [vmem:[#allocation8 + $0x1a8] sm:$0xff]
    %v192 = vld [vmem:[#allocation8 + $0x1b0] sm:$0xff]
    %v193 = vld [vmem:[#allocation8 + $0x1b8] sm:$0xff]
    %v194 = vld [vmem:[#allocation8 + $0x1c0] sm:$0xff]
    %v195 = vld [vmem:[#allocation8 + $0x1c8] sm:$0xff]
    %v196 = vld [vmem:[#allocation8 + $0x1d0] sm:$0xff]
    %v197 = vld [vmem:[#allocation8 + $0x1d8] sm:$0xff]
    %v198 = vld [vmem:[#allocation8 + $0x1e0] sm:$0xff]
    %v199 = vld [vmem:[#allocation8 + $0x1e8] sm:$0xff]
    %v200 = vld [vmem:[#allocation8 + $0x1f0] sm:$0xff]
    %v201 = vld [vmem:[#allocation8 + $0x1f8] sm:$0xff]
    %v202 = vld [vmem:[#allocation8 + $0x200] sm:$0xff]
    %v203 = vld [vmem:[#allocation8 + $0x208] sm:$0xff]
    %v204 = vld [vmem:[#allocation8 + $0x210] sm:$0xff]
    %v205 = vld [vmem:[#allocation8 + $0x218] sm:$0xff]
    %v206 = vld [vmem:[#allocation8 + $0x220] sm:$0xff]
    %v207 = vld [vmem:[#allocation8 + $0x228] sm:$0xff]
    %v208 = vld [vmem:[#allocation8 + $0x230] sm:$0xff]
    %v209 = vld [vmem:[#allocation8 + $0x238] sm:$0xff]
    %v210 = vld [vmem:[#allocation8 + $0x240] sm:$0xff]
    %v211 = vld [vmem:[#allocation8 + $0x248] sm:$0xff]
    %v212 = vld [vmem:[#allocation8 + $0x250] sm:$0xff]
    %v213 = vld [vmem:[#allocation8 + $0x258] sm:$0xff]
    %v214 = vld [vmem:[#allocation8 + $0x260] sm:$0xff]
    %v215 = vld [vmem:[#allocation8 + $0x268] sm:$0xff]
    %v216 = vld [vmem:[#allocation8 + $0x270] sm:$0xff]
    %v217 = vld [vmem:[#allocation8 + $0x278] sm:$0xff]
    %v298 = vunpack.c.l.b16 %v138
    %v299 = vunpack.c.h.b16 %v138
    %v300 = vunpack.c.l.b16 %v139
    %v301 = vunpack.c.h.b16 %v139
    %v302 = vunpack.c.l.b16 %v140
    %v303 = vunpack.c.h.b16 %v140
    %v304 = vunpack.c.l.b16 %v141
    %v305 = vunpack.c.h.b16 %v141
    %v306 = vunpack.c.l.b16 %v142
    %v307 = vunpack.c.h.b16 %v142
    %v308 = vunpack.c.l.b16 %v143
    %v309 = vunpack.c.h.b16 %v143
    %v310 = vunpack.c.l.b16 %v144
    %v311 = vunpack.c.h.b16 %v144
    %v312 = vunpack.c.l.b16 %v145
    %v313 = vunpack.c.h.b16 %v145
    %v314 = vunpack.c.l.b16 %v146
    %v315 = vunpack.c.h.b16 %v146
    %v316 = vunpack.c.l.b16 %v147
    %v317 = vunpack.c.h.b16 %v147
    %v318 = vunpack.c.l.b16 %v148
    %v319 = vunpack.c.h.b16 %v148
    %v320 = vunpack.c.l.b16 %v149
    %v321 = vunpack.c.h.b16 %v149
    %v322 = vunpack.c.l.b16 %v150
    %v323 = vunpack.c.h.b16 %v150
    %v324 = vunpack.c.l.b16 %v151
    %v325 = vunpack.c.h.b16 %v151
    %v326 = vunpack.c.l.b16 %v152
    %v327 = vunpack.c.h.b16 %v152
    %v328 = vunpack.c.l.b16 %v153
    %v329 = vunpack.c.h.b16 %v153
    %v330 = vunpack.c.l.b16 %v154
    %v331 = vunpack.c.h.b16 %v154
    %v332 = vunpack.c.l.b16 %v155
    %v333 = vunpack.c.h.b16 %v155
    %v334 = vunpack.c.l.b16 %v156
    %v335 = vunpack.c.h.b16 %v156
    %v336 = vunpack.c.l.b16 %v157
    %v337 = vunpack.c.h.b16 %v157
    %v338 = vunpack.c.l.b16 %v158
    %v339 = vunpack.c.h.b16 %v158
    %v340 = vunpack.c.l.b16 %v159
    %v341 = vunpack.c.h.b16 %v159
    %v342 = vunpack.c.l.b16 %v160
    %v343 = vunpack.c.h.b16 %v160
    %v344 = vunpack.c.l.b16 %v161
    %v345 = vunpack.c.h.b16 %v161
    %v346 = vunpack.c.l.b16 %v162
    %v347 = vunpack.c.h.b16 %v162
    %v348 = vunpack.c.l.b16 %v163
    %v349 = vunpack.c.h.b16 %v163
    %v350 = vunpack.c.l.b16 %v164
    %v351 = vunpack.c.h.b16 %v164
    %v352 = vunpack.c.l.b16 %v165
    %v353 = vunpack.c.h.b16 %v165
    %v354 = vunpack.c.l.b16 %v166
    %v355 = vunpack.c.h.b16 %v166
    %v356 = vunpack.c.l.b16 %v167
    %v357 = vunpack.c.h.b16 %v167
    %v358 = vunpack.c.l.b16 %v168
    %v359 = vunpack.c.h.b16 %v168
    %v360 = vunpack.c.l.b16 %v169
    %v361 = vunpack.c.h.b16 %v169
    %v362 = vunpack.c.l.b16 %v170
    %v363 = vunpack.c.h.b16 %v170
    %v364 = vunpack.c.l.b16 %v171
    %v365 = vunpack.c.h.b16 %v171
    %v366 = vunpack.c.l.b16 %v172
    %v367 = vunpack.c.h.b16 %v172
    %v368 = vunpack.c.l.b16 %v173
    %v369 = vunpack.c.h.b16 %v173
    %v370 = vunpack.c.l.b16 %v174
    %v371 = vunpack.c.h.b16 %v174
    %v372 = vunpack.c.l.b16 %v175
    %v373 = vunpack.c.h.b16 %v175
    %v374 = vunpack.c.l.b16 %v176
    %v375 = vunpack.c.h.b16 %v176
    %v376 = vunpack.c.l.b16 %v177
    %v377 = vunpack.c.h.b16 %v177
    %v378 = vunpack.c.l.b16 %v178
    %v379 = vunpack.c.h.b16 %v178
    %v380 = vunpack.c.l.b16 %v179
    %v381 = vunpack.c.h.b16 %v179
    %v382 = vunpack.c.l.b16 %v180
    %v383 = vunpack.c.h.b16 %v180
    %v384 = vunpack.c.l.b16 %v181
    %v385 = vunpack.c.h.b16 %v181
    %v386 = vunpack.c.l.b16 %v182
    %v387 = vunpack.c.h.b16 %v182
    %v388 = vunpack.c.l.b16 %v183
    %v389 = vunpack.c.h.b16 %v183
    %v390 = vunpack.c.l.b16 %v184
    %v391 = vunpack.c.h.b16 %v184
    %v392 = vunpack.c.l.b16 %v185
    %v393 = vunpack.c.h.b16 %v185
    %v394 = vunpack.c.l.b16 %v186
    %v395 = vunpack.c.h.b16 %v186
    %v396 = vunpack.c.l.b16 %v187
    %v397 = vunpack.c.h.b16 %v187
    %v398 = vunpack.c.l.b16 %v188
    %v399 = vunpack.c.h.b16 %v188
    %v400 = vunpack.c.l.b16 %v189
    %v401 = vunpack.c.h.b16 %v189
    %v402 = vunpack.c.l.b16 %v190
    %v403 = vunpack.c.h.b16 %v190
    %v404 = vunpack.c.l.b16 %v191
    %v405 = vunpack.c.h.b16 %v191
    %v406 = vunpack.c.l.b16 %v192
    %v407 = vunpack.c.h.b16 %v192
    %v408 = vunpack.c.l.b16 %v193
    %v409 = vunpack.c.h.b16 %v193
    %v410 = vunpack.c.l.b16 %v194
    %v411 = vunpack.c.h.b16 %v194
    %v412 = vunpack.c.l.b16 %v195
    %v413 = vunpack.c.h.b16 %v195
    %v414 = vunpack.c.l.b16 %v196
    %v415 = vunpack.c.h.b16 %v196
    %v416 = vunpack.c.l.b16 %v197
    %v417 = vunpack.c.h.b16 %v197
    %v418 = vunpack.c.l.b16 %v198
    %v419 = vunpack.c.h.b16 %v198
    %v420 = vunpack.c.l.b16 %v199
    %v421 = vunpack.c.h.b16 %v199
    %v422 = vunpack.c.l.b16 %v200
    %v423 = vunpack.c.h.b16 %v200
    %v424 = vunpack.c.l.b16 %v201
    %v425 = vunpack.c.h.b16 %v201
    %v426 = vunpack.c.l.b16 %v202
    %v427 = vunpack.c.h.b16 %v202
    %v428 = vunpack.c.l.b16 %v203
    %v429 = vunpack.c.h.b16 %v203
    %v430 = vunpack.c.l.b16 %v204
    %v431 = vunpack.c.h.b16 %v204
    %v432 = vunpack.c.l.b16 %v205
    %v433 = vunpack.c.h.b16 %v205
    %v434 = vunpack.c.l.b16 %v206
    %v435 = vunpack.c.h.b16 %v206
    %v436 = vunpack.c.l.b16 %v207
    %v437 = vunpack.c.h.b16 %v207
    %v438 = vunpack.c.l.b16 %v208
    %v439 = vunpack.c.h.b16 %v208
    %v440 = vunpack.c.l.b16 %v209
    %v441 = vunpack.c.h.b16 %v209
    %v442 = vunpack.c.l.b16 %v210
    %v443 = vunpack.c.h.b16 %v210
    %v444 = vunpack.c.l.b16 %v211
    %v445 = vunpack.c.h.b16 %v211
    %v446 = vunpack.c.l.b16 %v212
    %v447 = vunpack.c.h.b16 %v212
    %v448 = vunpack.c.l.b16 %v213
    %v449 = vunpack.c.h.b16 %v213
    %v450 = vunpack.c.l.b16 %v214
    %v451 = vunpack.c.h.b16 %v214
    %v452 = vunpack.c.l.b16 %v215
    %v453 = vunpack.c.h.b16 %v215
    %v454 = vunpack.c.l.b16 %v216
    %v455 = vunpack.c.h.b16 %v216
    %v456 = vunpack.c.l.b16 %v217
    %v457 = vunpack.c.h.b16 %v217
    %v458 = vpack.c.b16 %v308, %v298
    %v459 = vpack.c.b16 %v309, %v299
    %v460 = vpack.c.b16 %v310, %v300
    %v461 = vpack.c.b16 %v311, %v301
    %v462 = vpack.c.b16 %v312, %v302
    %v463 = vpack.c.b16 %v313, %v303
    %v464 = vpack.c.b16 %v314, %v304
    %v465 = vpack.c.b16 %v315, %v305
    %v466 = vpack.c.b16 %v316, %v306
    %v467 = vpack.c.b16 %v317, %v307
    %v468 = vpack.c.b16 %v328, %v318
    %v469 = vpack.c.b16 %v329, %v319
    %v470 = vpack.c.b16 %v330, %v320
    %v471 = vpack.c.b16 %v331, %v321
    %v472 = vpack.c.b16 %v332, %v322
    %v473 = vpack.c.b16 %v333, %v323
    %v474 = vpack.c.b16 %v334, %v324
    %v475 = vpack.c.b16 %v335, %v325
    %v476 = vpack.c.b16 %v336, %v326
    %v477 = vpack.c.b16 %v337, %v327
    %v478 = vpack.c.b16 %v348, %v338
    %v479 = vpack.c.b16 %v349, %v339
    %v480 = vpack.c.b16 %v350, %v340
    %v481 = vpack.c.b16 %v351, %v341
    %v482 = vpack.c.b16 %v352, %v342
    %v483 = vpack.c.b16 %v353, %v343
    %v484 = vpack.c.b16 %v354, %v344
    %v485 = vpack.c.b16 %v355, %v345
    %v486 = vpack.c.b16 %v356, %v346
    %v487 = vpack.c.b16 %v357, %v347
    %v488 = vpack.c.b16 %v368, %v358
    %v489 = vpack.c.b16 %v369, %v359
    %v490 = vpack.c.b16 %v370, %v360
    %v491 = vpack.c.b16 %v371, %v361
    %v492 = vpack.c.b16 %v372, %v362
    %v493 = vpack.c.b16 %v373, %v363
    %v494 = vpack.c.b16 %v374, %v364
    %v495 = vpack.c.b16 %v375, %v365
    %v496 = vpack.c.b16 %v376, %v366
    %v497 = vpack.c.b16 %v377, %v367
    %v498 = vpack.c.b16 %v388, %v378
    %v499 = vpack.c.b16 %v389, %v379
    %v500 = vpack.c.b16 %v390, %v380
    %v501 = vpack.c.b16 %v391, %v381
    %v502 = vpack.c.b16 %v392, %v382
    %v503 = vpack.c.b16 %v393, %v383
    %v504 = vpack.c.b16 %v394, %v384
    %v505 = vpack.c.b16 %v395, %v385
    %v506 = vpack.c.b16 %v396, %v386
    %v507 = vpack.c.b16 %v397, %v387
    %v508 = vpack.c.b16 %v408, %v398
    %v509 = vpack.c.b16 %v409, %v399
    %v510 = vpack.c.b16 %v410, %v400
    %v511 = vpack.c.b16 %v411, %v401
    %v512 = vpack.c.b16 %v412, %v402
    %v513 = vpack.c.b16 %v413, %v403
    %v514 = vpack.c.b16 %v414, %v404
    %v515 = vpack.c.b16 %v415, %v405
    %v516 = vpack.c.b16 %v416, %v406
    %v517 = vpack.c.b16 %v417, %v407
    %v518 = vpack.c.b16 %v428, %v418
    %v519 = vpack.c.b16 %v429, %v419
    %v520 = vpack.c.b16 %v430, %v420
    %v521 = vpack.c.b16 %v431, %v421
    %v522 = vpack.c.b16 %v432, %v422
    %v523 = vpack.c.b16 %v433, %v423
    %v524 = vpack.c.b16 %v434, %v424
    %v525 = vpack.c.b16 %v435, %v425
    %v526 = vpack.c.b16 %v436, %v426
    %v527 = vpack.c.b16 %v437, %v427
    %v528 = vpack.c.b16 %v448, %v438
    %v529 = vpack.c.b16 %v449, %v439
    %v530 = vpack.c.b16 %v450, %v440
    %v531 = vpack.c.b16 %v451, %v441
    %v532 = vpack.c.b16 %v452, %v442
    %v533 = vpack.c.b16 %v453, %v443
    %v534 = vpack.c.b16 %v454, %v444
    %v535 = vpack.c.b16 %v455, %v445
    %v536 = vpack.c.b16 %v456, %v446
    %v537 = vpack.c.b16 %v457, %v447
    %618 = vmatprep.subr.bf16.mxu0 %v529
    %619 = vmatpush1.bf16.msra.mxu0 %v528
    %620 = vmatprep.subr.bf16.mxu0 %v519
    %621 = vmatpush1.bf16.msra.mxu0 %v518
    %622 = vmatprep.subr.bf16.mxu0 %v509
    %623 = vmatpush1.bf16.msra.mxu0 %v508
    %624 = vmatprep.subr.bf16.mxu0 %v499
    %625 = vmatpush1.bf16.msra.mxu0 %v498
    %626 = vmatprep.subr.bf16.mxu0 %v489
    %627 = vmatpush1.bf16.msra.mxu0 %v488
    %628 = vmatprep.subr.bf16.mxu0 %v479
    %629 = vmatpush1.bf16.msra.mxu0 %v478
    %630 = vmatprep.subr.bf16.mxu0 %v469
    %631 = vmatpush1.bf16.msra.mxu0 %v468
    %632 = vmatprep.subr.bf16.mxu0 %v459
    %633 = vmatpush1.bf16.msra.mxu0 %v458
    %634 = vmatprep.subr.bf16.mxu0 0
    %635 = vmatpush2.bf16.msra.mxu0 0
    %636 = vmatprep.subr.bf16.mxu0 0
    %637 = vmatpush2.bf16.msra.mxu0 0
    %638 = vmatprep.subr.bf16.mxu0 0
    %639 = vmatpush2.bf16.msra.mxu0 0
    %640 = vmatprep.subr.bf16.mxu0 0
    %641 = vmatpush2.bf16.msra.mxu0 0
    %642 = vmatprep.subr.bf16.mxu0 0
    %643 = vmatpush2.bf16.msra.mxu0 0
    %644 = vmatprep.subr.bf16.mxu0 0
    %645 = vmatpush2.bf16.msra.mxu0 0
    %646 = vmatprep.subr.bf16.mxu0 0
    %647 = vmatpush2.bf16.msra.mxu0 0
    %648 = vmatprep.subr.bf16.mxu0 0
    %649 = vmatpush2.bf16.msra.mxu0 0
    %650 = vmatprep.mubr.bf16.mxu0 0
    %651 = vmatmul.mubr.bf16.gmra.mxu0 %v137
    %v652 = vpop.f32.mrf.mxu0
    %v653 = vadd.f32 0.0, %v652
    %v654 = vpop.f32.mrf.mxu0
    %v655 = vadd.f32 0.0, %v654
    %v656 = vpop.f32.mrf.mxu0
    %v657 = vpop.f32.mrf.mxu0
    %658 = vdwg.mxu0
    %659 = vmatprep.subr.bf16.mxu0 %v531
    %660 = vmatpush1.bf16.msra.mxu0 %v530
    %661 = vmatprep.subr.bf16.mxu0 %v521
    %662 = vmatpush1.bf16.msra.mxu0 %v520
    %663 = vmatprep.subr.bf16.mxu0 %v511
    %664 = vmatpush1.bf16.msra.mxu0 %v510
    %665 = vmatprep.subr.bf16.mxu0 %v501
    %666 = vmatpush1.bf16.msra.mxu0 %v500
    %667 = vmatprep.subr.bf16.mxu0 %v491
    %668 = vmatpush1.bf16.msra.mxu0 %v490
    %669 = vmatprep.subr.bf16.mxu0 %v481
    %670 = vmatpush1.bf16.msra.mxu0 %v480
    %671 = vmatprep.subr.bf16.mxu0 %v471
    %672 = vmatpush1.bf16.msra.mxu0 %v470
    %673 = vmatprep.subr.bf16.mxu0 %v461
    %674 = vmatpush1.bf16.msra.mxu0 %v460
    %675 = vmatprep.subr.bf16.mxu0 0
    %676 = vmatpush2.bf16.msra.mxu0 0
    %677 = vmatprep.subr.bf16.mxu0 0
    %678 = vmatpush2.bf16.msra.mxu0 0
    %679 = vmatprep.subr.bf16.mxu0 0
    %680 = vmatpush2.bf16.msra.mxu0 0
    %681 = vmatprep.subr.bf16.mxu0 0
    %682 = vmatpush2.bf16.msra.mxu0 0
    %683 = vmatprep.subr.bf16.mxu0 0
    %684 = vmatpush2.bf16.msra.mxu0 0
    %685 = vmatprep.subr.bf16.mxu0 0
    %686 = vmatpush2.bf16.msra.mxu0 0
    %687 = vmatprep.subr.bf16.mxu0 0
    %688 = vmatpush2.bf16.msra.mxu0 0
    %689 = vmatprep.subr.bf16.mxu0 0
    %690 = vmatpush2.bf16.msra.mxu0 0
    %691 = vmatprep.mubr.bf16.mxu0 0
    %692 = vmatmul.mubr.bf16.gmra.mxu0 %v137
    %v693 = vpop.f32.mrf.mxu0
    %v694 = vadd.f32 0.0, %v693
    %v695 = vpop.f32.mrf.mxu0
    %v696 = vadd.f32 0.0, %v695
    %v697 = vpop.f32.mrf.mxu0
    %v698 = vpop.f32.mrf.mxu0
    %699 = vdwg.mxu0
    %700 = vmatprep.subr.bf16.mxu0 %v533
    %701 = vmatpush1.bf16.msra.mxu0 %v532
    %702 = vmatprep.subr.bf16.mxu0 %v523
    %703 = vmatpush1.bf16.msra.mxu0 %v522
    %704 = vmatprep.subr.bf16.mxu0 %v513
    %705 = vmatpush1.bf16.msra.mxu0 %v512
    %706 = vmatprep.subr.bf16.mxu0 %v503
    %707 = vmatpush1.bf16.msra.mxu0 %v502
    %708 = vmatprep.subr.bf16.mxu0 %v493
    %709 = vmatpush1.bf16.msra.mxu0 %v492
    %710 = vmatprep.subr.bf16.mxu0 %v483
    %711 = vmatpush1.bf16.msra.mxu0 %v482
    %712 = vmatprep.subr.bf16.mxu0 %v473
    %713 = vmatpush1.bf16.msra.mxu0 %v472
    %714 = vmatprep.subr.bf16.mxu0 %v463
    %715 = vmatpush1.bf16.msra.mxu0 %v462
    %716 = vmatprep.subr.bf16.mxu0 0
    %717 = vmatpush2.bf16.msra.mxu0 0
    %718 = vmatprep.subr.bf16.mxu0 0
    %719 = vmatpush2.bf16.msra.mxu0 0
    %720 = vmatprep.subr.bf16.mxu0 0
    %721 = vmatpush2.bf16.msra.mxu0 0
    %722 = vmatprep.subr.bf16.mxu0 0
    %723 = vmatpush2.bf16.msra.mxu0 0
    %724 = vmatprep.subr.bf16.mxu0 0
    %725 = vmatpush2.bf16.msra.mxu0 0
    %726 = vmatprep.subr.bf16.mxu0 0
    %727 = vmatpush2.bf16.msra.mxu0 0
    %728 = vmatprep.subr.bf16.mxu0 0
    %729 = vmatpush2.bf16.msra.mxu0 0
    %730 = vmatprep.subr.bf16.mxu0 0
    %731 = vmatpush2.bf16.msra.mxu0 0
    %732 = vmatprep.mubr.bf16.mxu0 0
    %733 = vmatmul.mubr.bf16.gmra.mxu0 %v137
    %v734 = vpop.f32.mrf.mxu0
    %v735 = vadd.f32 0.0, %v734
    %v736 = vpop.f32.mrf.mxu0
    %v737 = vadd.f32 0.0, %v736
    %v738 = vpop.f32.mrf.mxu0
    %v739 = vpop.f32.mrf.mxu0
    %740 = vdwg.mxu0
    %741 = vmatprep.subr.bf16.mxu0 %v535
    %742 = vmatpush1.bf16.msra.mxu0 %v534
    %743 = vmatprep.subr.bf16.mxu0 %v525
    %744 = vmatpush1.bf16.msra.mxu0 %v524
    %745 = vmatprep.subr.bf16.mxu0 %v515
    %746 = vmatpush1.bf16.msra.mxu0 %v514
    %747 = vmatprep.subr.bf16.mxu0 %v505
    %748 = vmatpush1.bf16.msra.mxu0 %v504
    %749 = vmatprep.subr.bf16.mxu0 %v495
    %750 = vmatpush1.bf16.msra.mxu0 %v494
    %751 = vmatprep.subr.bf16.mxu0 %v485
    %752 = vmatpush1.bf16.msra.mxu0 %v484
    %753 = vmatprep.subr.bf16.mxu0 %v475
    %754 = vmatpush1.bf16.msra.mxu0 %v474
    %755 = vmatprep.subr.bf16.mxu0 %v465
    %756 = vmatpush1.bf16.msra.mxu0 %v464
    %757 = vmatprep.subr.bf16.mxu0 0
    %758 = vmatpush2.bf16.msra.mxu0 0
    %759 = vmatprep.subr.bf16.mxu0 0
    %760 = vmatpush2.bf16.msra.mxu0 0
    %761 = vmatprep.subr.bf16.mxu0 0
    %762 = vmatpush2.bf16.msra.mxu0 0
    %763 = vmatprep.subr.bf16.mxu0 0
    %764 = vmatpush2.bf16.msra.mxu0 0
    %765 = vmatprep.subr.bf16.mxu0 0
    %766 = vmatpush2.bf16.msra.mxu0 0
    %767 = vmatprep.subr.bf16.mxu0 0
    %768 = vmatpush2.bf16.msra.mxu0 0
    %769 = vmatprep.subr.bf16.mxu0 0
    %770 = vmatpush2.bf16.msra.mxu0 0
    %771 = vmatprep.subr.bf16.mxu0 0
    %772 = vmatpush2.bf16.msra.mxu0 0
    %773 = vmatprep.mubr.bf16.mxu0 0
    %774 = vmatmul.mubr.bf16.gmra.mxu0 %v137
    %v775 = vpop.f32.mrf.mxu0
    %v776 = vadd.f32 0.0, %v775
    %v777 = vpop.f32.mrf.mxu0
    %v778 = vadd.f32 0.0, %v777
    %v779 = vpop.f32.mrf.mxu0
    %v780 = vpop.f32.mrf.mxu0
    %781 = vdwg.mxu0
    %782 = vmatprep.subr.bf16.mxu0 %v537
    %783 = vmatpush1.bf16.msra.mxu0 %v536
    %784 = vmatprep.subr.bf16.mxu0 %v527
    %785 = vmatpush1.bf16.msra.mxu0 %v526
    %786 = vmatprep.subr.bf16.mxu0 %v517
    %787 = vmatpush1.bf16.msra.mxu0 %v516
    %788 = vmatprep.subr.bf16.mxu0 %v507
    %789 = vmatpush1.bf16.msra.mxu0 %v506
    %790 = vmatprep.subr.bf16.mxu0 %v497
    %791 = vmatpush1.bf16.msra.mxu0 %v496
    %792 = vmatprep.subr.bf16.mxu0 %v487
    %793 = vmatpush1.bf16.msra.mxu0 %v486
    %794 = vmatprep.subr.bf16.mxu0 %v477
    %795 = vmatpush1.bf16.msra.mxu0 %v476
    %796 = vmatprep.subr.bf16.mxu0 %v467
    %797 = vmatpush1.bf16.msra.mxu0 %v466
    %798 = vmatprep.subr.bf16.mxu0 0
    %799 = vmatpush2.bf16.msra.mxu0 0
    %800 = vmatprep.subr.bf16.mxu0 0
    %801 = vmatpush2.bf16.msra.mxu0 0
    %802 = vmatprep.subr.bf16.mxu0 0
    %803 = vmatpush2.bf16.msra.mxu0 0
    %804 = vmatprep.subr.bf16.mxu0 0
    %805 = vmatpush2.bf16.msra.mxu0 0
    %806 = vmatprep.subr.bf16.mxu0 0
    %807 = vmatpush2.bf16.msra.mxu0 0
    %808 = vmatprep.subr.bf16.mxu0 0
    %809 = vmatpush2.bf16.msra.mxu0 0
    %810 = vmatprep.subr.bf16.mxu0 0
    %811 = vmatpush2.bf16.msra.mxu0 0
    %812 = vmatprep.subr.bf16.mxu0 0
    %813 = vmatpush2.bf16.msra.mxu0 0
    %814 = vmatprep.mubr.bf16.mxu0 0
    %815 = vmatmul.mubr.bf16.gmra.mxu0 %v137
    %v816 = vpop.f32.mrf.mxu0
    %v817 = vadd.f32 0.0, %v816
    %v818 = vpop.f32.mrf.mxu0
    %v819 = vadd.f32 0.0, %v818
    %v820 = vpop.f32.mrf.mxu0
    %v821 = vpop.f32.mrf.mxu0
    %822 = vdwg.mxu0
    %v823 = vld [vmem:[#allocation10] sm:$0xff]
    %v824 = vld [vmem:[#allocation10 + $0x8] sm:$0x3]
    %v825 = vld [vmem:[#allocation11] sm:$0xff]
    %v826 = vld [vmem:[#allocation11 + $0x8] sm:$0x3]
    %v827 = vrot.slane %v653, 4
    %v828 = vadd.f32 %v653, %v827
    %v829 = vrot.slane %v828, 2
    %v830 = vadd.f32 %v828, %v829
    %v831 = vrot.slane %v830, 1
    %v832 = vadd.f32 %v830, %v831
    %v833 = vrot.slane %v655, 4
    %v834 = vadd.f32 %v655, %v833
    %v835 = vrot.slane %v834, 2
    %v836 = vadd.f32 %v834, %v835
    %v837 = vrot.slane %v836, 1
    %v838 = vadd.f32 %v836, %v837
    %v839 = vrot.slane %v694, 4
    %v840 = vadd.f32 %v694, %v839
    %v841 = vrot.slane %v840, 2
    %v842 = vadd.f32 %v840, %v841
    %v843 = vrot.slane %v842, 1
    %v844 = vadd.f32 %v842, %v843
    %v845 = vrot.slane %v696, 4
    %v846 = vadd.f32 %v696, %v845
    %v847 = vrot.slane %v846, 2
    %v848 = vadd.f32 %v846, %v847
    %v849 = vrot.slane %v848, 1
    %v850 = vadd.f32 %v848, %v849
    %v851 = vrot.slane %v735, 4
    %v852 = vadd.f32 %v735, %v851
    %v853 = vrot.slane %v852, 2
    %v854 = vadd.f32 %v852, %v853
    %v855 = vrot.slane %v854, 1
    %v856 = vadd.f32 %v854, %v855
    %v857 = vrot.slane %v737, 4
    %v858 = vadd.f32 %v737, %v857
    %v859 = vrot.slane %v858, 2
    %v860 = vadd.f32 %v858, %v859
    %v861 = vrot.slane %v860, 1
    %v862 = vadd.f32 %v860, %v861
    %v863 = vrot.slane %v776, 4
    %v864 = vadd.f32 %v776, %v863
    %v865 = vrot.slane %v864, 2
    %v866 = vadd.f32 %v864, %v865
    %v867 = vrot.slane %v866, 1
    %v868 = vadd.f32 %v866, %v867
    %v869 = vrot.slane %v778, 4
    %v870 = vadd.f32 %v778, %v869
    %v871 = vrot.slane %v870, 2
    %v872 = vadd.f32 %v870, %v871
    %v873 = vrot.slane %v872, 1
    %v874 = vadd.f32 %v872, %v873
    %v875 = vrot.slane %v817, 4
    %v876 = vadd.f32 %v817, %v875
    %v877 = vrot.slane %v876, 2
    %v878 = vadd.f32 %v876, %v877
    %v879 = vrot.slane %v878, 1
    %v880 = vadd.f32 %v878, %v879
    %v881 = vrot.slane %v819, 4
    %v882 = vadd.f32 %v819, %v881
    %v883 = vrot.slane %v882, 2
    %v884 = vadd.f32 %v882, %v883
    %v885 = vrot.slane %v884, 1
    %v886 = vadd.f32 %v884, %v885
    %v887 = vmul.f32 %v832, 0.125
    %v888 = vmul.f32 %v838, 0.125
    %v889 = vmul.f32 %v844, 0.125
    %v890 = vmul.f32 %v850, 0.125
    %v891 = vmul.f32 %v856, 0.125
    %v892 = vmul.f32 %v862, 0.125
    %v893 = vmul.f32 %v868, 0.125
    %v894 = vmul.f32 %v874, 0.125
    %v895 = vmul.f32 %v880, 0.125
    %v896 = vmul.f32 %v886, 0.125
    %v897 = vmul.f32 %v653, %v653
    %v898 = vmul.f32 %v655, %v655
    %v899 = vmul.f32 %v694, %v694
    %v900 = vmul.f32 %v696, %v696
    %v901 = vmul.f32 %v735, %v735
    %v902 = vmul.f32 %v737, %v737
    %v903 = vmul.f32 %v776, %v776
    %v904 = vmul.f32 %v778, %v778
    %v905 = vmul.f32 %v817, %v817
    %v906 = vmul.f32 %v819, %v819
    %v907 = vrot.slane %v897, 4
    %v908 = vadd.f32 %v897, %v907
    %v909 = vrot.slane %v908, 2
    %v910 = vadd.f32 %v908, %v909
    %v911 = vrot.slane %v910, 1
    %v912 = vadd.f32 %v910, %v911
    %v913 = vrot.slane %v898, 4
    %v914 = vadd.f32 %v898, %v913
    %v915 = vrot.slane %v914, 2
    %v916 = vadd.f32 %v914, %v915
    %v917 = vrot.slane %v916, 1
    %v918 = vadd.f32 %v916, %v917
    %v919 = vrot.slane %v899, 4
    %v920 = vadd.f32 %v899, %v919
    %v921 = vrot.slane %v920, 2
    %v922 = vadd.f32 %v920, %v921
    %v923 = vrot.slane %v922, 1
    %v924 = vadd.f32 %v922, %v923
    %v925 = vrot.slane %v900, 4
    %v926 = vadd.f32 %v900, %v925
    %v927 = vrot.slane %v926, 2
    %v928 = vadd.f32 %v926, %v927
    %v929 = vrot.slane %v928, 1
    %v930 = vadd.f32 %v928, %v929
    %v931 = vrot.slane %v901, 4
    %v932 = vadd.f32 %v901, %v931
    %v933 = vrot.slane %v932, 2
    %v934 = vadd.f32 %v932, %v933
    %v935 = vrot.slane %v934, 1
    %v936 = vadd.f32 %v934, %v935
    %v937 = vrot.slane %v902, 4
    %v938 = vadd.f32 %v902, %v937
    %v939 = vrot.slane %v938, 2
    %v940 = vadd.f32 %v938, %v939
    %v941 = vrot.slane %v940, 1
    %v942 = vadd.f32 %v940, %v941
    %v943 = vrot.slane %v903, 4
    %v944 = vadd.f32 %v903, %v943
    %v945 = vrot.slane %v944, 2
    %v946 = vadd.f32 %v944, %v945
    %v947 = vrot.slane %v946, 1
    %v948 = vadd.f32 %v946, %v947
    %v949 = vrot.slane %v904, 4
    %v950 = vadd.f32 %v904, %v949
    %v951 = vrot.slane %v950, 2
    %v952 = vadd.f32 %v950, %v951
    %v953 = vrot.slane %v952, 1
    %v954 = vadd.f32 %v952, %v953
    %v955 = vrot.slane %v905, 4
    %v956 = vadd.f32 %v905, %v955
    %v957 = vrot.slane %v956, 2
    %v958 = vadd.f32 %v956, %v957
    %v959 = vrot.slane %v958, 1
    %v960 = vadd.f32 %v958, %v959
    %v961 = vrot.slane %v906, 4
    %v962 = vadd.f32 %v906, %v961
    %v963 = vrot.slane %v962, 2
    %v964 = vadd.f32 %v962, %v963
    %v965 = vrot.slane %v964, 1
    %v966 = vadd.f32 %v964, %v965
    %v967 = vmul.f32 %v912, 0.125
    %v968 = vmul.f32 %v918, 0.125
    %v969 = vmul.f32 %v924, 0.125
    %v970 = vmul.f32 %v930, 0.125
    %v971 = vmul.f32 %v936, 0.125
    %v972 = vmul.f32 %v942, 0.125
    %v973 = vmul.f32 %v948, 0.125
    %v974 = vmul.f32 %v954, 0.125
    %v975 = vmul.f32 %v960, 0.125
    %v976 = vmul.f32 %v966, 0.125
    %v977 = vmul.f32 %v887, %v887
    %v978 = vmul.f32 %v888, %v888
    %v979 = vmul.f32 %v889, %v889
    %v980 = vmul.f32 %v890, %v890
    %v981 = vmul.f32 %v891, %v891
    %v982 = vmul.f32 %v892, %v892
    %v983 = vmul.f32 %v893, %v893
    %v984 = vmul.f32 %v894, %v894
    %v985 = vmul.f32 %v895, %v895
    %v986 = vmul.f32 %v896, %v896
    %v987 = vsub.f32 %v967, %v977
    %v988 = vsub.f32 %v968, %v978
    %v989 = vsub.f32 %v969, %v979
    %v990 = vsub.f32 %v970, %v980
    %v991 = vsub.f32 %v971, %v981
    %v992 = vsub.f32 %v972, %v982
    %v993 = vsub.f32 %v973, %v983
    %v994 = vsub.f32 %v974, %v984
    %v995 = vsub.f32 %v975, %v985
    %v996 = vsub.f32 %v976, %v986
    %v997 = vmax.f32 %v987, 0.0
    %v998 = vmax.f32 %v988, 0.0
    %v999 = vmax.f32 %v989, 0.0
    %v1000 = vmax.f32 %v990, 0.0
    %v1001 = vmax.f32 %v991, 0.0
    %v1002 = vmax.f32 %v992, 0.0
    %v1003 = vmax.f32 %v993, 0.0
    %v1004 = vmax.f32 %v994, 0.0
    %v1005 = vmax.f32 %v995, 0.0
    %v1006 = vmax.f32 %v996, 0.0
    %v1007 = vadd.f32 %v997, 1e-05
    %v1008 = vadd.f32 %v998, 1e-05
    %v1009 = vadd.f32 %v999, 1e-05
    %v1010 = vadd.f32 %v1000, 1e-05
    %v1011 = vadd.f32 %v1001, 1e-05
    %v1012 = vadd.f32 %v1002, 1e-05
    %v1013 = vadd.f32 %v1003, 1e-05
    %v1014 = vadd.f32 %v1004, 1e-05
    %v1015 = vadd.f32 %v1005, 1e-05
    %v1016 = vadd.f32 %v1006, 1e-05
    %v1017 = vrsqrt.pop %v1007
    %v1018 = vrsqrt.pop %v1008
    %v1019 = vrsqrt.pop %v1009
    %v1020 = vrsqrt.pop %v1010
    %v1021 = vrsqrt.pop %v1011
    %v1022 = vrsqrt.pop %v1012
    %v1023 = vrsqrt.pop %v1013
    %v1024 = vrsqrt.pop %v1014
    %v1025 = vrsqrt.pop %v1015
    %v1026 = vrsqrt.pop %v1016
    %v1037 = vcombine.low %v1017, %v1018
    %v1038 = vcombine.low %v1019, %v1020
    %v1039 = vcombine.low %v1021, %v1022
    %v1040 = vcombine.low %v1023, %v1024
    %v1042 = vunpack.c.l.s4 1966171168
    %v1043 = vunpack.c.0.s8 %v1042
    %v1044 = vlaneseq
    %v1045 = vshrl.u32 %v1044, 7
    %v1046 = vsub.s32 %v1043, %v1045
    %v1047 = vrot.slane %v1037, %v1046
    %v1049 = vunpack.c.l.s4 1966171168
    %v1050 = vunpack.c.0.s8 %v1049
    %v1051 = vlaneseq
    %v1052 = vshrl.u32 %v1051, 7
    %v1053 = vsub.s32 %v1050, %v1052
    %v1054 = vrot.slane %v1038, %v1053
    %v1056 = vunpack.c.l.s4 1966171168
    %v1057 = vunpack.c.0.s8 %v1056
    %v1058 = vlaneseq
    %v1059 = vshrl.u32 %v1058, 7
    %v1060 = vsub.s32 %v1057, %v1059
    %v1061 = vrot.slane %v1039, %v1060
    %v1063 = vunpack.c.l.s4 1966171168
    %v1064 = vunpack.c.0.s8 %v1063
    %v1065 = vlaneseq
    %v1066 = vshrl.u32 %v1065, 7
    %v1067 = vsub.s32 %v1064, %v1066
    %v1068 = vrot.slane %v1040, %v1067
    %v1069 = vcombine.low %v1047, %v1054
    %v1070 = vcombine.low %v1061, %v1068
    %v1072 = vunpack.c.l.s4 1966171168
    %v1073 = vunpack.c.0.s8 %v1072
    %v1074 = vlaneseq
    %v1075 = vshrl.u32 %v1074, 7
    %v1076 = vsub.s32 %v1073, %v1075
    %v1077 = vrot.slane %v1069, %v1076
    %v1079 = vunpack.c.l.s4 1966171168
    %v1080 = vunpack.c.0.s8 %v1079
    %v1081 = vlaneseq
    %v1082 = vshrl.u32 %v1081, 7
    %v1083 = vsub.s32 %v1080, %v1082
    %v1084 = vrot.slane %v1070, %v1083
    %v1085 = vcombine.low %v1077, %v1084
    %v1086 = vcombine.low %v1025, %v1026
    %v1088 = vunpack.c.l.s4 1966171168
    %v1089 = vunpack.c.0.s8 %v1088
    %v1090 = vlaneseq
    %v1091 = vshrl.u32 %v1090, 7
    %v1092 = vsub.s32 %v1089, %v1091
    %v1093 = vrot.slane %v1086, %v1092
    %v1095 = vunpack.c.l.s4 1966171168
    %v1096 = vunpack.c.0.s8 %v1095
    %v1097 = vlaneseq
    %v1098 = vshrl.u32 %v1097, 7
    %v1099 = vsub.s32 %v1096, %v1098
    %v1100 = vrot.slane %v1093, %v1099
    %v1103 = vmul.f32 %v823, %v1085
    %v1104 = vmul.f32 %v824, %v1100
    %v1107 = vlaneseq
    %v1108 = vshrl.u32 %v1107, 7
    %v1109 = vsub.s32 0, %v1108
    %v1110 = vrot.slane %v1103, %v1109
    %v1111 = vlaneseq
    %v1112 = vshrl.u32 %v1111, 7
    %v1113 = vsub.s32 1, %v1112
    %v1114 = vrot.slane %v1103, %v1113
    %v1115 = vlaneseq
    %v1116 = vshrl.u32 %v1115, 7
    %v1117 = vsub.s32 2, %v1116
    %v1118 = vrot.slane %v1103, %v1117
    %v1119 = vlaneseq
    %v1120 = vshrl.u32 %v1119, 7
    %v1121 = vsub.s32 3, %v1120
    %v1122 = vrot.slane %v1103, %v1121
    %v1123 = vlaneseq
    %v1124 = vshrl.u32 %v1123, 7
    %v1125 = vsub.s32 4, %v1124
    %v1126 = vrot.slane %v1103, %v1125
    %v1127 = vlaneseq
    %v1128 = vshrl.u32 %v1127, 7
    %v1129 = vsub.s32 5, %v1128
    %v1130 = vrot.slane %v1103, %v1129
    %v1131 = vlaneseq
    %v1132 = vshrl.u32 %v1131, 7
    %v1133 = vsub.s32 6, %v1132
    %v1134 = vrot.slane %v1103, %v1133
    %v1135 = vlaneseq
    %v1136 = vshrl.u32 %v1135, 7
    %v1137 = vsub.s32 7, %v1136
    %v1138 = vrot.slane %v1103, %v1137
    %v1139 = vlaneseq
    %v1140 = vshrl.u32 %v1139, 7
    %v1141 = vsub.s32 0, %v1140
    %v1142 = vrot.slane %v1104, %v1141
    %v1143 = vlaneseq
    %v1144 = vshrl.u32 %v1143, 7
    %v1145 = vsub.s32 1, %v1144
    %v1146 = vrot.slane %v1104, %v1145
    %v1157 = vmul.f32 %v887, %v1110
    %v1158 = vmul.f32 %v888, %v1114
    %v1159 = vmul.f32 %v889, %v1118
    %v1160 = vmul.f32 %v890, %v1122
    %v1161 = vmul.f32 %v891, %v1126
    %v1162 = vmul.f32 %v892, %v1130
    %v1163 = vmul.f32 %v893, %v1134
    %v1164 = vmul.f32 %v894, %v1138
    %v1165 = vmul.f32 %v895, %v1142
    %v1166 = vmul.f32 %v896, %v1146
    %v1177 = vcombine.low %v1157, %v1158
    %v1178 = vcombine.low %v1159, %v1160
    %v1179 = vcombine.low %v1161, %v1162
    %v1180 = vcombine.low %v1163, %v1164
    %v1182 = vunpack.c.l.s4 1966171168
    %v1183 = vunpack.c.0.s8 %v1182
    %v1184 = vlaneseq
    %v1185 = vshrl.u32 %v1184, 7
    %v1186 = vsub.s32 %v1183, %v1185
    %v1187 = vrot.slane %v1177, %v1186
    %v1189 = vunpack.c.l.s4 1966171168
    %v1190 = vunpack.c.0.s8 %v1189
    %v1191 = vlaneseq
    %v1192 = vshrl.u32 %v1191, 7
    %v1193 = vsub.s32 %v1190, %v1192
    %v1194 = vrot.slane %v1178, %v1193
    %v1196 = vunpack.c.l.s4 1966171168
    %v1197 = vunpack.c.0.s8 %v1196
    %v1198 = vlaneseq
    %v1199 = vshrl.u32 %v1198, 7
    %v1200 = vsub.s32 %v1197, %v1199
    %v1201 = vrot.slane %v1179, %v1200
    %v1203 = vunpack.c.l.s4 1966171168
    %v1204 = vunpack.c.0.s8 %v1203
    %v1205 = vlaneseq
    %v1206 = vshrl.u32 %v1205, 7
    %v1207 = vsub.s32 %v1204, %v1206
    %v1208 = vrot.slane %v1180, %v1207
    %v1209 = vcombine.low %v1187, %v1194
    %v1210 = vcombine.low %v1201, %v1208
    %v1212 = vunpack.c.l.s4 1966171168
    %v1213 = vunpack.c.0.s8 %v1212
    %v1214 = vlaneseq
    %v1215 = vshrl.u32 %v1214, 7
    %v1216 = vsub.s32 %v1213, %v1215
    %v1217 = vrot.slane %v1209, %v1216
    %v1219 = vunpack.c.l.s4 1966171168
    %v1220 = vunpack.c.0.s8 %v1219
    %v1221 = vlaneseq
    %v1222 = vshrl.u32 %v1221, 7
    %v1223 = vsub.s32 %v1220, %v1222
    %v1224 = vrot.slane %v1210, %v1223
    %v1225 = vcombine.low %v1217, %v1224
    %v1226 = vcombine.low %v1165, %v1166
    %v1228 = vunpack.c.l.s4 1966171168
    %v1229 = vunpack.c.0.s8 %v1228
    %v1230 = vlaneseq
    %v1231 = vshrl.u32 %v1230, 7
    %v1232 = vsub.s32 %v1229, %v1231
    %v1233 = vrot.slane %v1226, %v1232
    %v1235 = vunpack.c.l.s4 1966171168
    %v1236 = vunpack.c.0.s8 %v1235
    %v1237 = vlaneseq
    %v1238 = vshrl.u32 %v1237, 7
    %v1239 = vsub.s32 %v1236, %v1238
    %v1240 = vrot.slane %v1233, %v1239
    %v1243 = vsub.f32 %v825, %v1225
    %v1244 = vsub.f32 %v826, %v1240
    %v1245 = vmul.f32 %v653, %v1110
    %v1246 = vmul.f32 %v655, %v1114
    %v1247 = vmul.f32 %v694, %v1118
    %v1248 = vmul.f32 %v696, %v1122
    %v1249 = vmul.f32 %v735, %v1126
    %v1250 = vmul.f32 %v737, %v1130
    %v1251 = vmul.f32 %v776, %v1134
    %v1252 = vmul.f32 %v778, %v1138
    %v1253 = vmul.f32 %v817, %v1142
    %v1254 = vmul.f32 %v819, %v1146
    %v1257 = vlaneseq
    %v1258 = vshrl.u32 %v1257, 7
    %v1259 = vsub.s32 0, %v1258
    %v1260 = vrot.slane %v1243, %v1259
    %v1261 = vlaneseq
    %v1262 = vshrl.u32 %v1261, 7
    %v1263 = vsub.s32 1, %v1262
    %v1264 = vrot.slane %v1243, %v1263
    %v1265 = vlaneseq
    %v1266 = vshrl.u32 %v1265, 7
    %v1267 = vsub.s32 2, %v1266
    %v1268 = vrot.slane %v1243, %v1267
    %v1269 = vlaneseq
    %v1270 = vshrl.u32 %v1269, 7
    %v1271 = vsub.s32 3, %v1270
    %v1272 = vrot.slane %v1243, %v1271
    %v1273 = vlaneseq
    %v1274 = vshrl.u32 %v1273, 7
    %v1275 = vsub.s32 4, %v1274
    %v1276 = vrot.slane %v1243, %v1275
    %v1277 = vlaneseq
    %v1278 = vshrl.u32 %v1277, 7
    %v1279 = vsub.s32 5, %v1278
    %v1280 = vrot.slane %v1243, %v1279
    %v1281 = vlaneseq
    %v1282 = vshrl.u32 %v1281, 7
    %v1283 = vsub.s32 6, %v1282
    %v1284 = vrot.slane %v1243, %v1283
    %v1285 = vlaneseq
    %v1286 = vshrl.u32 %v1285, 7
    %v1287 = vsub.s32 7, %v1286
    %v1288 = vrot.slane %v1243, %v1287
    %v1289 = vlaneseq
    %v1290 = vshrl.u32 %v1289, 7
    %v1291 = vsub.s32 0, %v1290
    %v1292 = vrot.slane %v1244, %v1291
    %v1293 = vlaneseq
    %v1294 = vshrl.u32 %v1293, 7
    %v1295 = vsub.s32 1, %v1294
    %v1296 = vrot.slane %v1244, %v1295
    %v1307 = vadd.f32 %v1245, %v1260
    %v1308 = vadd.f32 %v1246, %v1264
    %v1309 = vadd.f32 %v1247, %v1268
    %v1310 = vadd.f32 %v1248, %v1272
    %v1311 = vadd.f32 %v1249, %v1276
    %v1312 = vadd.f32 %v1250, %v1280
    %v1313 = vadd.f32 %v1251, %v1284
    %v1314 = vadd.f32 %v1252, %v1288
    %v1315 = vadd.f32 %v1253, %v1292
    %v1316 = vadd.f32 %v1254, %v1296
    %v1317 = vmax.f32 %v1307, 0.0
    %v1318 = vmax.f32 %v1308, 0.0
    %v1319 = vmax.f32 %v1309, 0.0
    %v1320 = vmax.f32 %v1310, 0.0
    %v1321 = vmax.f32 %v1311, 0.0
    %v1322 = vmax.f32 %v1312, 0.0
    %v1323 = vmax.f32 %v1313, 0.0
    %v1324 = vmax.f32 %v1314, 0.0
    %v1325 = vmax.f32 %v1315, 0.0
    %v1326 = vmax.f32 %v1316, 0.0
    %s1327 = smul.u32 4, 160
    %s1328 = smul.u32 %s1327, 10
    %s1329 = sshll.u32 %s1328, 4
    %1330 = dma.done [#allocation4], %s1329
    %v1331 = vpack.c.bf16 %v1317, %v1317
    %v1332 = vpack.c.bf16 %v1318, %v1318
    %v1333 = vpack.c.bf16 %v1319, %v1319
    %v1334 = vpack.c.bf16 %v1320, %v1320
    %v1335 = vpack.c.bf16 %v1321, %v1321
    %v1336 = vpack.c.bf16 %v1322, %v1322
    %v1337 = vpack.c.bf16 %v1323, %v1323
    %v1338 = vpack.c.bf16 %v1324, %v1324
    %v1339 = vpack.c.bf16 %v1325, %v1325
    %v1340 = vpack.c.bf16 %v1326, %v1326
    %v1341 = vld [vmem:[#allocation2] sm:$0xff]
    %v1342 = vld [vmem:[#allocation2 + $0x8] sm:$0xff]
    %v1343 = vld [vmem:[#allocation2 + $0x10] sm:$0xff]
    %v1344 = vld [vmem:[#allocation2 + $0x18] sm:$0xff]
    %v1345 = vld [vmem:[#allocation2 + $0x20] sm:$0xff]
    %v1346 = vld [vmem:[#allocation2 + $0x28] sm:$0xff]
    %v1347 = vld [vmem:[#allocation2 + $0x30] sm:$0xff]
    %v1348 = vld [vmem:[#allocation2 + $0x38] sm:$0xff]
    %v1349 = vld [vmem:[#allocation2 + $0x40] sm:$0xff]
    %v1350 = vld [vmem:[#allocation2 + $0x48] sm:$0xff]
    %v1351 = vld [vmem:[#allocation2 + $0x50] sm:$0xff]
    %v1352 = vld [vmem:[#allocation2 + $0x58] sm:$0xff]
    %v1353 = vld [vmem:[#allocation2 + $0x60] sm:$0xff]
    %v1354 = vld [vmem:[#allocation2 + $0x68] sm:$0xff]
    %v1355 = vld [vmem:[#allocation2 + $0x70] sm:$0xff]
    %v1356 = vld [vmem:[#allocation2 + $0x78] sm:$0xff]
    %v1357 = vld [vmem:[#allocation2 + $0x80] sm:$0xff]
    %v1358 = vld [vmem:[#allocation2 + $0x88] sm:$0xff]
    %v1359 = vld [vmem:[#allocation2 + $0x90] sm:$0xff]
    %v1360 = vld [vmem:[#allocation2 + $0x98] sm:$0xff]
    %v1361 = vld [vmem:[#allocation2 + $0xa0] sm:$0xff]
    %v1362 = vld [vmem:[#allocation2 + $0xa8] sm:$0xff]
    %v1363 = vld [vmem:[#allocation2 + $0xb0] sm:$0xff]
    %v1364 = vld [vmem:[#allocation2 + $0xb8] sm:$0xff]
    %v1365 = vld [vmem:[#allocation2 + $0xc0] sm:$0xff]
    %v1366 = vld [vmem:[#allocation2 + $0xc8] sm:$0xff]
    %v1367 = vld [vmem:[#allocation2 + $0xd0] sm:$0xff]
    %v1368 = vld [vmem:[#allocation2 + $0xd8] sm:$0xff]
    %v1369 = vld [vmem:[#allocation2 + $0xe0] sm:$0xff]
    %v1370 = vld [vmem:[#allocation2 + $0xe8] sm:$0xff]
    %v1371 = vld [vmem:[#allocation2 + $0xf0] sm:$0xff]
    %v1372 = vld [vmem:[#allocation2 + $0xf8] sm:$0xff]
    %v1373 = vld [vmem:[#allocation2 + $0x100] sm:$0xff]
    %v1374 = vld [vmem:[#allocation2 + $0x108] sm:$0xff]
    %v1375 = vld [vmem:[#allocation2 + $0x110] sm:$0xff]
    %v1376 = vld [vmem:[#allocation2 + $0x118] sm:$0xff]
    %v1377 = vld [vmem:[#allocation2 + $0x120] sm:$0xff]
    %v1378 = vld [vmem:[#allocation2 + $0x128] sm:$0xff]
    %v1379 = vld [vmem:[#allocation2 + $0x130] sm:$0xff]
    %v1380 = vld [vmem:[#allocation2 + $0x138] sm:$0xff]
    %v1381 = vld [vmem:[#allocation2 + $0x140] sm:$0xff]
    %v1382 = vld [vmem:[#allocation2 + $0x148] sm:$0xff]
    %v1383 = vld [vmem:[#allocation2 + $0x150] sm:$0xff]
    %v1384 = vld [vmem:[#allocation2 + $0x158] sm:$0xff]
    %v1385 = vld [vmem:[#allocation2 + $0x160] sm:$0xff]
    %v1386 = vld [vmem:[#allocation2 + $0x168] sm:$0xff]
    %v1387 = vld [vmem:[#allocation2 + $0x170] sm:$0xff]
    %v1388 = vld [vmem:[#allocation2 + $0x178] sm:$0xff]
    %v1389 = vld [vmem:[#allocation2 + $0x180] sm:$0xff]
    %v1390 = vld [vmem:[#allocation2 + $0x188] sm:$0xff]
    %v1391 = vld [vmem:[#allocation2 + $0x190] sm:$0xff]
    %v1392 = vld [vmem:[#allocation2 + $0x198] sm:$0xff]
    %v1393 = vld [vmem:[#allocation2 + $0x1a0] sm:$0xff]
    %v1394 = vld [vmem:[#allocation2 + $0x1a8] sm:$0xff]
    %v1395 = vld [vmem:[#allocation2 + $0x1b0] sm:$0xff]
    %v1396 = vld [vmem:[#allocation2 + $0x1b8] sm:$0xff]
    %v1397 = vld [vmem:[#allocation2 + $0x1c0] sm:$0xff]
    %v1398 = vld [vmem:[#allocation2 + $0x1c8] sm:$0xff]
    %v1399 = vld [vmem:[#allocation2 + $0x1d0] sm:$0xff]
    %v1400 = vld [vmem:[#allocation2 + $0x1d8] sm:$0xff]
    %v1401 = vld [vmem:[#allocation2 + $0x1e0] sm:$0xff]
    %v1402 = vld [vmem:[#allocation2 + $0x1e8] sm:$0xff]
    %v1403 = vld [vmem:[#allocation2 + $0x1f0] sm:$0xff]
    %v1404 = vld [vmem:[#allocation2 + $0x1f8] sm:$0xff]
    %v1405 = vld [vmem:[#allocation2 + $0x200] sm:$0xff]
    %v1406 = vld [vmem:[#allocation2 + $0x208] sm:$0xff]
    %v1407 = vld [vmem:[#allocation2 + $0x210] sm:$0xff]
    %v1408 = vld [vmem:[#allocation2 + $0x218] sm:$0xff]
    %v1409 = vld [vmem:[#allocation2 + $0x220] sm:$0xff]
    %v1410 = vld [vmem:[#allocation2 + $0x228] sm:$0xff]
    %v1411 = vld [vmem:[#allocation2 + $0x230] sm:$0xff]
    %v1412 = vld [vmem:[#allocation2 + $0x238] sm:$0xff]
    %v1413 = vld [vmem:[#allocation2 + $0x240] sm:$0xff]
    %v1414 = vld [vmem:[#allocation2 + $0x248] sm:$0xff]
    %v1415 = vld [vmem:[#allocation2 + $0x250] sm:$0xff]
    %v1416 = vld [vmem:[#allocation2 + $0x258] sm:$0xff]
    %v1417 = vld [vmem:[#allocation2 + $0x260] sm:$0xff]
    %v1418 = vld [vmem:[#allocation2 + $0x268] sm:$0xff]
    %v1419 = vld [vmem:[#allocation2 + $0x270] sm:$0xff]
    %v1420 = vld [vmem:[#allocation2 + $0x278] sm:$0xff]
    %v1421 = vld [vmem:[#allocation2 + $0x280] sm:$0xff]
    %v1422 = vld [vmem:[#allocation2 + $0x288] sm:$0xff]
    %v1423 = vld [vmem:[#allocation2 + $0x290] sm:$0xff]
    %v1424 = vld [vmem:[#allocation2 + $0x298] sm:$0xff]
    %v1425 = vld [vmem:[#allocation2 + $0x2a0] sm:$0xff]
    %v1426 = vld [vmem:[#allocation2 + $0x2a8] sm:$0xff]
    %v1427 = vld [vmem:[#allocation2 + $0x2b0] sm:$0xff]
    %v1428 = vld [vmem:[#allocation2 + $0x2b8] sm:$0xff]
    %v1429 = vld [vmem:[#allocation2 + $0x2c0] sm:$0xff]
    %v1430 = vld [vmem:[#allocation2 + $0x2c8] sm:$0xff]
    %v1431 = vld [vmem:[#allocation2 + $0x2d0] sm:$0xff]
    %v1432 = vld [vmem:[#allocation2 + $0x2d8] sm:$0xff]
    %v1433 = vld [vmem:[#allocation2 + $0x2e0] sm:$0xff]
    %v1434 = vld [vmem:[#allocation2 + $0x2e8] sm:$0xff]
    %v1435 = vld [vmem:[#allocation2 + $0x2f0] sm:$0xff]
    %v1436 = vld [vmem:[#allocation2 + $0x2f8] sm:$0xff]
    %v1437 = vld [vmem:[#allocation2 + $0x300] sm:$0xff]
    %v1438 = vld [vmem:[#allocation2 + $0x308] sm:$0xff]
    %v1439 = vld [vmem:[#allocation2 + $0x310] sm:$0xff]
    %v1440 = vld [vmem:[#allocation2 + $0x318] sm:$0xff]
    %v1441 = vld [vmem:[#allocation2 + $0x320] sm:$0xff]
    %v1442 = vld [vmem:[#allocation2 + $0x328] sm:$0xff]
    %v1443 = vld [vmem:[#allocation2 + $0x330] sm:$0xff]
    %v1444 = vld [vmem:[#allocation2 + $0x338] sm:$0xff]
    %v1445 = vld [vmem:[#allocation2 + $0x340] sm:$0xff]
    %v1446 = vld [vmem:[#allocation2 + $0x348] sm:$0xff]
    %v1447 = vld [vmem:[#allocation2 + $0x350] sm:$0xff]
    %v1448 = vld [vmem:[#allocation2 + $0x358] sm:$0xff]
    %v1449 = vld [vmem:[#allocation2 + $0x360] sm:$0xff]
    %v1450 = vld [vmem:[#allocation2 + $0x368] sm:$0xff]
    %v1451 = vld [vmem:[#allocation2 + $0x370] sm:$0xff]
    %v1452 = vld [vmem:[#allocation2 + $0x378] sm:$0xff]
    %v1453 = vld [vmem:[#allocation2 + $0x380] sm:$0xff]
    %v1454 = vld [vmem:[#allocation2 + $0x388] sm:$0xff]
    %v1455 = vld [vmem:[#allocation2 + $0x390] sm:$0xff]
    %v1456 = vld [vmem:[#allocation2 + $0x398] sm:$0xff]
    %v1457 = vld [vmem:[#allocation2 + $0x3a0] sm:$0xff]
    %v1458 = vld [vmem:[#allocation2 + $0x3a8] sm:$0xff]
    %v1459 = vld [vmem:[#allocation2 + $0x3b0] sm:$0xff]
    %v1460 = vld [vmem:[#allocation2 + $0x3b8] sm:$0xff]
    %v1461 = vld [vmem:[#allocation2 + $0x3c0] sm:$0xff]
    %v1462 = vld [vmem:[#allocation2 + $0x3c8] sm:$0xff]
    %v1463 = vld [vmem:[#allocation2 + $0x3d0] sm:$0xff]
    %v1464 = vld [vmem:[#allocation2 + $0x3d8] sm:$0xff]
    %v1465 = vld [vmem:[#allocation2 + $0x3e0] sm:$0xff]
    %v1466 = vld [vmem:[#allocation2 + $0x3e8] sm:$0xff]
    %v1467 = vld [vmem:[#allocation2 + $0x3f0] sm:$0xff]
    %v1468 = vld [vmem:[#allocation2 + $0x3f8] sm:$0xff]
    %v1469 = vld [vmem:[#allocation2 + $0x400] sm:$0xff]
    %v1470 = vld [vmem:[#allocation2 + $0x408] sm:$0xff]
    %v1471 = vld [vmem:[#allocation2 + $0x410] sm:$0xff]
    %v1472 = vld [vmem:[#allocation2 + $0x418] sm:$0xff]
    %v1473 = vld [vmem:[#allocation2 + $0x420] sm:$0xff]
    %v1474 = vld [vmem:[#allocation2 + $0x428] sm:$0xff]
    %v1475 = vld [vmem:[#allocation2 + $0x430] sm:$0xff]
    %v1476 = vld [vmem:[#allocation2 + $0x438] sm:$0xff]
    %v1477 = vld [vmem:[#allocation2 + $0x440] sm:$0xff]
    %v1478 = vld [vmem:[#allocation2 + $0x448] sm:$0xff]
    %v1479 = vld [vmem:[#allocation2 + $0x450] sm:$0xff]
    %v1480 = vld [vmem:[#allocation2 + $0x458] sm:$0xff]
    %v1481 = vld [vmem:[#allocation2 + $0x460] sm:$0xff]
    %v1482 = vld [vmem:[#allocation2 + $0x468] sm:$0xff]
    %v1483 = vld [vmem:[#allocation2 + $0x470] sm:$0xff]
    %v1484 = vld [vmem:[#allocation2 + $0x478] sm:$0xff]
    %v1485 = vld [vmem:[#allocation2 + $0x480] sm:$0xff]
    %v1486 = vld [vmem:[#allocation2 + $0x488] sm:$0xff]
    %v1487 = vld [vmem:[#allocation2 + $0x490] sm:$0xff]
    %v1488 = vld [vmem:[#allocation2 + $0x498] sm:$0xff]
    %v1489 = vld [vmem:[#allocation2 + $0x4a0] sm:$0xff]
    %v1490 = vld [vmem:[#allocation2 + $0x4a8] sm:$0xff]
    %v1491 = vld [vmem:[#allocation2 + $0x4b0] sm:$0xff]
    %v1492 = vld [vmem:[#allocation2 + $0x4b8] sm:$0xff]
    %v1493 = vld [vmem:[#allocation2 + $0x4c0] sm:$0xff]
    %v1494 = vld [vmem:[#allocation2 + $0x4c8] sm:$0xff]
    %v1495 = vld [vmem:[#allocation2 + $0x4d0] sm:$0xff]
    %v1496 = vld [vmem:[#allocation2 + $0x4d8] sm:$0xff]
    %v1497 = vld [vmem:[#allocation2 + $0x4e0] sm:$0xff]
    %v1498 = vld [vmem:[#allocation2 + $0x4e8] sm:$0xff]
    %v1499 = vld [vmem:[#allocation2 + $0x4f0] sm:$0xff]
    %v1500 = vld [vmem:[#allocation2 + $0x4f8] sm:$0xff]
    %v1501 = vld [vmem:[#allocation2 + $0x500] sm:$0xff]
    %v1502 = vld [vmem:[#allocation2 + $0x508] sm:$0xff]
    %v1503 = vld [vmem:[#allocation2 + $0x510] sm:$0xff]
    %v1504 = vld [vmem:[#allocation2 + $0x518] sm:$0xff]
    %v1505 = vld [vmem:[#allocation2 + $0x520] sm:$0xff]
    %v1506 = vld [vmem:[#allocation2 + $0x528] sm:$0xff]
    %v1507 = vld [vmem:[#allocation2 + $0x530] sm:$0xff]
    %v1508 = vld [vmem:[#allocation2 + $0x538] sm:$0xff]
    %v1509 = vld [vmem:[#allocation2 + $0x540] sm:$0xff]
    %v1510 = vld [vmem:[#allocation2 + $0x548] sm:$0xff]
    %v1511 = vld [vmem:[#allocation2 + $0x550] sm:$0xff]
    %v1512 = vld [vmem:[#allocation2 + $0x558] sm:$0xff]
    %v1513 = vld [vmem:[#allocation2 + $0x560] sm:$0xff]
    %v1514 = vld [vmem:[#allocation2 + $0x568] sm:$0xff]
    %v1515 = vld [vmem:[#allocation2 + $0x570] sm:$0xff]
    %v1516 = vld [vmem:[#allocation2 + $0x578] sm:$0xff]
    %v1517 = vld [vmem:[#allocation2 + $0x580] sm:$0xff]
    %v1518 = vld [vmem:[#allocation2 + $0x588] sm:$0xff]
    %v1519 = vld [vmem:[#allocation2 + $0x590] sm:$0xff]
    %v1520 = vld [vmem:[#allocation2 + $0x598] sm:$0xff]
    %v1521 = vld [vmem:[#allocation2 + $0x5a0] sm:$0xff]
    %v1522 = vld [vmem:[#allocation2 + $0x5a8] sm:$0xff]
    %v1523 = vld [vmem:[#allocation2 + $0x5b0] sm:$0xff]
    %v1524 = vld [vmem:[#allocation2 + $0x5b8] sm:$0xff]
    %v1525 = vld [vmem:[#allocation2 + $0x5c0] sm:$0xff]
    %v1526 = vld [vmem:[#allocation2 + $0x5c8] sm:$0xff]
    %v1527 = vld [vmem:[#allocation2 + $0x5d0] sm:$0xff]
    %v1528 = vld [vmem:[#allocation2 + $0x5d8] sm:$0xff]
    %v1529 = vld [vmem:[#allocation2 + $0x5e0] sm:$0xff]
    %v1530 = vld [vmem:[#allocation2 + $0x5e8] sm:$0xff]
    %v1531 = vld [vmem:[#allocation2 + $0x5f0] sm:$0xff]
    %v1532 = vld [vmem:[#allocation2 + $0x5f8] sm:$0xff]
    %v1533 = vld [vmem:[#allocation2 + $0x600] sm:$0xff]
    %v1534 = vld [vmem:[#allocation2 + $0x608] sm:$0xff]
    %v1535 = vld [vmem:[#allocation2 + $0x610] sm:$0xff]
    %v1536 = vld [vmem:[#allocation2 + $0x618] sm:$0xff]
    %v1537 = vld [vmem:[#allocation2 + $0x620] sm:$0xff]
    %v1538 = vld [vmem:[#allocation2 + $0x628] sm:$0xff]
    %v1539 = vld [vmem:[#allocation2 + $0x630] sm:$0xff]
    %v1540 = vld [vmem:[#allocation2 + $0x638] sm:$0xff]
    %v1541 = vld [vmem:[#allocation2 + $0x640] sm:$0xff]
    %v1542 = vld [vmem:[#allocation2 + $0x648] sm:$0xff]
    %v1543 = vld [vmem:[#allocation2 + $0x650] sm:$0xff]
    %v1544 = vld [vmem:[#allocation2 + $0x658] sm:$0xff]
    %v1545 = vld [vmem:[#allocation2 + $0x660] sm:$0xff]
    %v1546 = vld [vmem:[#allocation2 + $0x668] sm:$0xff]
    %v1547 = vld [vmem:[#allocation2 + $0x670] sm:$0xff]
    %v1548 = vld [vmem:[#allocation2 + $0x678] sm:$0xff]
    %v1549 = vld [vmem:[#allocation2 + $0x680] sm:$0xff]
    %v1550 = vld [vmem:[#allocation2 + $0x688] sm:$0xff]
    %v1551 = vld [vmem:[#allocation2 + $0x690] sm:$0xff]
    %v1552 = vld [vmem:[#allocation2 + $0x698] sm:$0xff]
    %v1553 = vld [vmem:[#allocation2 + $0x6a0] sm:$0xff]
    %v1554 = vld [vmem:[#allocation2 + $0x6a8] sm:$0xff]
    %v1555 = vld [vmem:[#allocation2 + $0x6b0] sm:$0xff]
    %v1556 = vld [vmem:[#allocation2 + $0x6b8] sm:$0xff]
    %v1557 = vld [vmem:[#allocation2 + $0x6c0] sm:$0xff]
    %v1558 = vld [vmem:[#allocation2 + $0x6c8] sm:$0xff]
    %v1559 = vld [vmem:[#allocation2 + $0x6d0] sm:$0xff]
    %v1560 = vld [vmem:[#allocation2 + $0x6d8] sm:$0xff]
    %v1561 = vld [vmem:[#allocation2 + $0x6e0] sm:$0xff]
    %v1562 = vld [vmem:[#allocation2 + $0x6e8] sm:$0xff]
    %v1563 = vld [vmem:[#allocation2 + $0x6f0] sm:$0xff]
    %v1564 = vld [vmem:[#allocation2 + $0x6f8] sm:$0xff]
    %v1565 = vld [vmem:[#allocation2 + $0x700] sm:$0xff]
    %v1566 = vld [vmem:[#allocation2 + $0x708] sm:$0xff]
    %v1567 = vld [vmem:[#allocation2 + $0x710] sm:$0xff]
    %v1568 = vld [vmem:[#allocation2 + $0x718] sm:$0xff]
    %v1569 = vld [vmem:[#allocation2 + $0x720] sm:$0xff]
    %v1570 = vld [vmem:[#allocation2 + $0x728] sm:$0xff]
    %v1571 = vld [vmem:[#allocation2 + $0x730] sm:$0xff]
    %v1572 = vld [vmem:[#allocation2 + $0x738] sm:$0xff]
    %v1573 = vld [vmem:[#allocation2 + $0x740] sm:$0xff]
    %v1574 = vld [vmem:[#allocation2 + $0x748] sm:$0xff]
    %v1575 = vld [vmem:[#allocation2 + $0x750] sm:$0xff]
    %v1576 = vld [vmem:[#allocation2 + $0x758] sm:$0xff]
    %v1577 = vld [vmem:[#allocation2 + $0x760] sm:$0xff]
    %v1578 = vld [vmem:[#allocation2 + $0x768] sm:$0xff]
    %v1579 = vld [vmem:[#allocation2 + $0x770] sm:$0xff]
    %v1580 = vld [vmem:[#allocation2 + $0x778] sm:$0xff]
    %v1581 = vld [vmem:[#allocation2 + $0x780] sm:$0xff]
    %v1582 = vld [vmem:[#allocation2 + $0x788] sm:$0xff]
    %v1583 = vld [vmem:[#allocation2 + $0x790] sm:$0xff]
    %v1584 = vld [vmem:[#allocation2 + $0x798] sm:$0xff]
    %v1585 = vld [vmem:[#allocation2 + $0x7a0] sm:$0xff]
    %v1586 = vld [vmem:[#allocation2 + $0x7a8] sm:$0xff]
    %v1587 = vld [vmem:[#allocation2 + $0x7b0] sm:$0xff]
    %v1588 = vld [vmem:[#allocation2 + $0x7b8] sm:$0xff]
    %v1589 = vld [vmem:[#allocation2 + $0x7c0] sm:$0xff]
    %v1590 = vld [vmem:[#allocation2 + $0x7c8] sm:$0xff]
    %v1591 = vld [vmem:[#allocation2 + $0x7d0] sm:$0xff]
    %v1592 = vld [vmem:[#allocation2 + $0x7d8] sm:$0xff]
    %v1593 = vld [vmem:[#allocation2 + $0x7e0] sm:$0xff]
    %v1594 = vld [vmem:[#allocation2 + $0x7e8] sm:$0xff]
    %v1595 = vld [vmem:[#allocation2 + $0x7f0] sm:$0xff]
    %v1596 = vld [vmem:[#allocation2 + $0x7f8] sm:$0xff]
    %v1597 = vld [vmem:[#allocation2 + $0x800] sm:$0xff]
    %v1598 = vld [vmem:[#allocation2 + $0x808] sm:$0xff]
    %v1599 = vld [vmem:[#allocation2 + $0x810] sm:$0xff]
    %v1600 = vld [vmem:[#allocation2 + $0x818] sm:$0xff]
    %v1601 = vld [vmem:[#allocation2 + $0x820] sm:$0xff]
    %v1602 = vld [vmem:[#allocation2 + $0x828] sm:$0xff]
    %v1603 = vld [vmem:[#allocation2 + $0x830] sm:$0xff]
    %v1604 = vld [vmem:[#allocation2 + $0x838] sm:$0xff]
    %v1605 = vld [vmem:[#allocation2 + $0x840] sm:$0xff]
    %v1606 = vld [vmem:[#allocation2 + $0x848] sm:$0xff]
    %v1607 = vld [vmem:[#allocation2 + $0x850] sm:$0xff]
    %v1608 = vld [vmem:[#allocation2 + $0x858] sm:$0xff]
    %v1609 = vld [vmem:[#allocation2 + $0x860] sm:$0xff]
    %v1610 = vld [vmem:[#allocation2 + $0x868] sm:$0xff]
    %v1611 = vld [vmem:[#allocation2 + $0x870] sm:$0xff]
    %v1612 = vld [vmem:[#allocation2 + $0x878] sm:$0xff]
    %v1613 = vld [vmem:[#allocation2 + $0x880] sm:$0xff]
    %v1614 = vld [vmem:[#allocation2 + $0x888] sm:$0xff]
    %v1615 = vld [vmem:[#allocation2 + $0x890] sm:$0xff]
    %v1616 = vld [vmem:[#allocation2 + $0x898] sm:$0xff]
    %v1617 = vld [vmem:[#allocation2 + $0x8a0] sm:$0xff]
    %v1618 = vld [vmem:[#allocation2 + $0x8a8] sm:$0xff]
    %v1619 = vld [vmem:[#allocation2 + $0x8b0] sm:$0xff]
    %v1620 = vld [vmem:[#allocation2 + $0x8b8] sm:$0xff]
    %v1621 = vld [vmem:[#allocation2 + $0x8c0] sm:$0xff]
    %v1622 = vld [vmem:[#allocation2 + $0x8c8] sm:$0xff]
    %v1623 = vld [vmem:[#allocation2 + $0x8d0] sm:$0xff]
    %v1624 = vld [vmem:[#allocation2 + $0x8d8] sm:$0xff]
    %v1625 = vld [vmem:[#allocation2 + $0x8e0] sm:$0xff]
    %v1626 = vld [vmem:[#allocation2 + $0x8e8] sm:$0xff]
    %v1627 = vld [vmem:[#allocation2 + $0x8f0] sm:$0xff]
    %v1628 = vld [vmem:[#allocation2 + $0x8f8] sm:$0xff]
    %v1629 = vld [vmem:[#allocation2 + $0x900] sm:$0xff]
    %v1630 = vld [vmem:[#allocation2 + $0x908] sm:$0xff]
    %v1631 = vld [vmem:[#allocation2 + $0x910] sm:$0xff]
    %v1632 = vld [vmem:[#allocation2 + $0x918] sm:$0xff]
    %v1633 = vld [vmem:[#allocation2 + $0x920] sm:$0xff]
    %v1634 = vld [vmem:[#allocation2 + $0x928] sm:$0xff]
    %v1635 = vld [vmem:[#allocation2 + $0x930] sm:$0xff]
    %v1636 = vld [vmem:[#allocation2 + $0x938] sm:$0xff]
    %v1637 = vld [vmem:[#allocation2 + $0x940] sm:$0xff]
    %v1638 = vld [vmem:[#allocation2 + $0x948] sm:$0xff]
    %v1639 = vld [vmem:[#allocation2 + $0x950] sm:$0xff]
    %v1640 = vld [vmem:[#allocation2 + $0x958] sm:$0xff]
    %v1641 = vld [vmem:[#allocation2 + $0x960] sm:$0xff]
    %v1642 = vld [vmem:[#allocation2 + $0x968] sm:$0xff]
    %v1643 = vld [vmem:[#allocation2 + $0x970] sm:$0xff]
    %v1644 = vld [vmem:[#allocation2 + $0x978] sm:$0xff]
    %v1645 = vld [vmem:[#allocation2 + $0x980] sm:$0xff]
    %v1646 = vld [vmem:[#allocation2 + $0x988] sm:$0xff]
    %v1647 = vld [vmem:[#allocation2 + $0x990] sm:$0xff]
    %v1648 = vld [vmem:[#allocation2 + $0x998] sm:$0xff]
    %v1649 = vld [vmem:[#allocation2 + $0x9a0] sm:$0xff]
    %v1650 = vld [vmem:[#allocation2 + $0x9a8] sm:$0xff]
    %v1651 = vld [vmem:[#allocation2 + $0x9b0] sm:$0xff]
    %v1652 = vld [vmem:[#allocation2 + $0x9b8] sm:$0xff]
    %v1653 = vld [vmem:[#allocation2 + $0x9c0] sm:$0xff]
    %v1654 = vld [vmem:[#allocation2 + $0x9c8] sm:$0xff]
    %v1655 = vld [vmem:[#allocation2 + $0x9d0] sm:$0xff]
    %v1656 = vld [vmem:[#allocation2 + $0x9d8] sm:$0xff]
    %v1657 = vld [vmem:[#allocation2 + $0x9e0] sm:$0xff]
    %v1658 = vld [vmem:[#allocation2 + $0x9e8] sm:$0xff]
    %v1659 = vld [vmem:[#allocation2 + $0x9f0] sm:$0xff]
    %v1660 = vld [vmem:[#allocation2 + $0x9f8] sm:$0xff]
    %v1661 = vld [vmem:[#allocation2 + $0xa00] sm:$0xff]
    %v1662 = vld [vmem:[#allocation2 + $0xa08] sm:$0xff]
    %v1663 = vld [vmem:[#allocation2 + $0xa10] sm:$0xff]
    %v1664 = vld [vmem:[#allocation2 + $0xa18] sm:$0xff]
    %v1665 = vld [vmem:[#allocation2 + $0xa20] sm:$0xff]
    %v1666 = vld [vmem:[#allocation2 + $0xa28] sm:$0xff]
    %v1667 = vld [vmem:[#allocation2 + $0xa30] sm:$0xff]
    %v1668 = vld [vmem:[#allocation2 + $0xa38] sm:$0xff]
    %v1669 = vld [vmem:[#allocation2 + $0xa40] sm:$0xff]
    %v1670 = vld [vmem:[#allocation2 + $0xa48] sm:$0xff]
    %v1671 = vld [vmem:[#allocation2 + $0xa50] sm:$0xff]
    %v1672 = vld [vmem:[#allocation2 + $0xa58] sm:$0xff]
    %v1673 = vld [vmem:[#allocation2 + $0xa60] sm:$0xff]
    %v1674 = vld [vmem:[#allocation2 + $0xa68] sm:$0xff]
    %v1675 = vld [vmem:[#allocation2 + $0xa70] sm:$0xff]
    %v1676 = vld [vmem:[#allocation2 + $0xa78] sm:$0xff]
    %v1677 = vld [vmem:[#allocation2 + $0xa80] sm:$0xff]
    %v1678 = vld [vmem:[#allocation2 + $0xa88] sm:$0xff]
    %v1679 = vld [vmem:[#allocation2 + $0xa90] sm:$0xff]
    %v1680 = vld [vmem:[#allocation2 + $0xa98] sm:$0xff]
    %v1681 = vld [vmem:[#allocation2 + $0xaa0] sm:$0xff]
    %v1682 = vld [vmem:[#allocation2 + $0xaa8] sm:$0xff]
    %v1683 = vld [vmem:[#allocation2 + $0xab0] sm:$0xff]
    %v1684 = vld [vmem:[#allocation2 + $0xab8] sm:$0xff]
    %v1685 = vld [vmem:[#allocation2 + $0xac0] sm:$0xff]
    %v1686 = vld [vmem:[#allocation2 + $0xac8] sm:$0xff]
    %v1687 = vld [vmem:[#allocation2 + $0xad0] sm:$0xff]
    %v1688 = vld [vmem:[#allocation2 + $0xad8] sm:$0xff]
    %v1689 = vld [vmem:[#allocation2 + $0xae0] sm:$0xff]
    %v1690 = vld [vmem:[#allocation2 + $0xae8] sm:$0xff]
    %v1691 = vld [vmem:[#allocation2 + $0xaf0] sm:$0xff]
    %v1692 = vld [vmem:[#allocation2 + $0xaf8] sm:$0xff]
    %v1693 = vld [vmem:[#allocation2 + $0xb00] sm:$0xff]
    %v1694 = vld [vmem:[#allocation2 + $0xb08] sm:$0xff]
    %v1695 = vld [vmem:[#allocation2 + $0xb10] sm:$0xff]
    %v1696 = vld [vmem:[#allocation2 + $0xb18] sm:$0xff]
    %v1697 = vld [vmem:[#allocation2 + $0xb20] sm:$0xff]
    %v1698 = vld [vmem:[#allocation2 + $0xb28] sm:$0xff]
    %v1699 = vld [vmem:[#allocation2 + $0xb30] sm:$0xff]
    %v1700 = vld [vmem:[#allocation2 + $0xb38] sm:$0xff]
    %v1701 = vld [vmem:[#allocation2 + $0xb40] sm:$0xff]
    %v1702 = vld [vmem:[#allocation2 + $0xb48] sm:$0xff]
    %v1703 = vld [vmem:[#allocation2 + $0xb50] sm:$0xff]
    %v1704 = vld [vmem:[#allocation2 + $0xb58] sm:$0xff]
    %v1705 = vld [vmem:[#allocation2 + $0xb60] sm:$0xff]
    %v1706 = vld [vmem:[#allocation2 + $0xb68] sm:$0xff]
    %v1707 = vld [vmem:[#allocation2 + $0xb70] sm:$0xff]
    %v1708 = vld [vmem:[#allocation2 + $0xb78] sm:$0xff]
    %v1709 = vld [vmem:[#allocation2 + $0xb80] sm:$0xff]
    %v1710 = vld [vmem:[#allocation2 + $0xb88] sm:$0xff]
    %v1711 = vld [vmem:[#allocation2 + $0xb90] sm:$0xff]
    %v1712 = vld [vmem:[#allocation2 + $0xb98] sm:$0xff]
    %v1713 = vld [vmem:[#allocation2 + $0xba0] sm:$0xff]
    %v1714 = vld [vmem:[#allocation2 + $0xba8] sm:$0xff]
    %v1715 = vld [vmem:[#allocation2 + $0xbb0] sm:$0xff]
    %v1716 = vld [vmem:[#allocation2 + $0xbb8] sm:$0xff]
    %v1717 = vld [vmem:[#allocation2 + $0xbc0] sm:$0xff]
    %v1718 = vld [vmem:[#allocation2 + $0xbc8] sm:$0xff]
    %v1719 = vld [vmem:[#allocation2 + $0xbd0] sm:$0xff]
    %v1720 = vld [vmem:[#allocation2 + $0xbd8] sm:$0xff]
    %v1721 = vld [vmem:[#allocation2 + $0xbe0] sm:$0xff]
    %v1722 = vld [vmem:[#allocation2 + $0xbe8] sm:$0xff]
    %v1723 = vld [vmem:[#allocation2 + $0xbf0] sm:$0xff]
    %v1724 = vld [vmem:[#allocation2 + $0xbf8] sm:$0xff]
    %v1725 = vld [vmem:[#allocation2 + $0xc00] sm:$0xff]
    %v1726 = vld [vmem:[#allocation2 + $0xc08] sm:$0xff]
    %v1727 = vld [vmem:[#allocation2 + $0xc10] sm:$0xff]
    %v1728 = vld [vmem:[#allocation2 + $0xc18] sm:$0xff]
    %v1729 = vld [vmem:[#allocation2 + $0xc20] sm:$0xff]
    %v1730 = vld [vmem:[#allocation2 + $0xc28] sm:$0xff]
    %v1731 = vld [vmem:[#allocation2 + $0xc30] sm:$0xff]
    %v1732 = vld [vmem:[#allocation2 + $0xc38] sm:$0xff]
    %v1733 = vld [vmem:[#allocation2 + $0xc40] sm:$0xff]
    %v1734 = vld [vmem:[#allocation2 + $0xc48] sm:$0xff]
    %v1735 = vld [vmem:[#allocation2 + $0xc50] sm:$0xff]
    %v1736 = vld [vmem:[#allocation2 + $0xc58] sm:$0xff]
    %v1737 = vld [vmem:[#allocation2 + $0xc60] sm:$0xff]
    %v1738 = vld [vmem:[#allocation2 + $0xc68] sm:$0xff]
    %v1739 = vld [vmem:[#allocation2 + $0xc70] sm:$0xff]
    %v1740 = vld [vmem:[#allocation2 + $0xc78] sm:$0xff]
    %v1741 = vld [vmem:[#allocation2 + $0xc80] sm:$0xff]
    %v1742 = vld [vmem:[#allocation2 + $0xc88] sm:$0xff]
    %v1743 = vld [vmem:[#allocation2 + $0xc90] sm:$0xff]
    %v1744 = vld [vmem:[#allocation2 + $0xc98] sm:$0xff]
    %v1745 = vld [vmem:[#allocation2 + $0xca0] sm:$0xff]
    %v1746 = vld [vmem:[#allocation2 + $0xca8] sm:$0xff]
    %v1747 = vld [vmem:[#allocation2 + $0xcb0] sm:$0xff]
    %v1748 = vld [vmem:[#allocation2 + $0xcb8] sm:$0xff]
    %v1749 = vld [vmem:[#allocation2 + $0xcc0] sm:$0xff]
    %v1750 = vld [vmem:[#allocation2 + $0xcc8] sm:$0xff]
    %v1751 = vld [vmem:[#allocation2 + $0xcd0] sm:$0xff]
    %v1752 = vld [vmem:[#allocation2 + $0xcd8] sm:$0xff]
    %v1753 = vld [vmem:[#allocation2 + $0xce0] sm:$0xff]
    %v1754 = vld [vmem:[#allocation2 + $0xce8] sm:$0xff]
    %v1755 = vld [vmem:[#allocation2 + $0xcf0] sm:$0xff]
    %v1756 = vld [vmem:[#allocation2 + $0xcf8] sm:$0xff]
    %v1757 = vld [vmem:[#allocation2 + $0xd00] sm:$0xff]
    %v1758 = vld [vmem:[#allocation2 + $0xd08] sm:$0xff]
    %v1759 = vld [vmem:[#allocation2 + $0xd10] sm:$0xff]
    %v1760 = vld [vmem:[#allocation2 + $0xd18] sm:$0xff]
    %v1761 = vld [vmem:[#allocation2 + $0xd20] sm:$0xff]
    %v1762 = vld [vmem:[#allocation2 + $0xd28] sm:$0xff]
    %v1763 = vld [vmem:[#allocation2 + $0xd30] sm:$0xff]
    %v1764 = vld [vmem:[#allocation2 + $0xd38] sm:$0xff]
    %v1765 = vld [vmem:[#allocation2 + $0xd40] sm:$0xff]
    %v1766 = vld [vmem:[#allocation2 + $0xd48] sm:$0xff]
    %v1767 = vld [vmem:[#allocation2 + $0xd50] sm:$0xff]
    %v1768 = vld [vmem:[#allocation2 + $0xd58] sm:$0xff]
    %v1769 = vld [vmem:[#allocation2 + $0xd60] sm:$0xff]
    %v1770 = vld [vmem:[#allocation2 + $0xd68] sm:$0xff]
    %v1771 = vld [vmem:[#allocation2 + $0xd70] sm:$0xff]
    %v1772 = vld [vmem:[#allocation2 + $0xd78] sm:$0xff]
    %v1773 = vld [vmem:[#allocation2 + $0xd80] sm:$0xff]
    %v1774 = vld [vmem:[#allocation2 + $0xd88] sm:$0xff]
    %v1775 = vld [vmem:[#allocation2 + $0xd90] sm:$0xff]
    %v1776 = vld [vmem:[#allocation2 + $0xd98] sm:$0xff]
    %v1777 = vld [vmem:[#allocation2 + $0xda0] sm:$0xff]
    %v1778 = vld [vmem:[#allocation2 + $0xda8] sm:$0xff]
    %v1779 = vld [vmem:[#allocation2 + $0xdb0] sm:$0xff]
    %v1780 = vld [vmem:[#allocation2 + $0xdb8] sm:$0xff]
    %v1781 = vld [vmem:[#allocation2 + $0xdc0] sm:$0xff]
    %v1782 = vld [vmem:[#allocation2 + $0xdc8] sm:$0xff]
    %v1783 = vld [vmem:[#allocation2 + $0xdd0] sm:$0xff]
    %v1784 = vld [vmem:[#allocation2 + $0xdd8] sm:$0xff]
    %v1785 = vld [vmem:[#allocation2 + $0xde0] sm:$0xff]
    %v1786 = vld [vmem:[#allocation2 + $0xde8] sm:$0xff]
    %v1787 = vld [vmem:[#allocation2 + $0xdf0] sm:$0xff]
    %v1788 = vld [vmem:[#allocation2 + $0xdf8] sm:$0xff]
    %v1789 = vld [vmem:[#allocation2 + $0xe00] sm:$0xff]
    %v1790 = vld [vmem:[#allocation2 + $0xe08] sm:$0xff]
    %v1791 = vld [vmem:[#allocation2 + $0xe10] sm:$0xff]
    %v1792 = vld [vmem:[#allocation2 + $0xe18] sm:$0xff]
    %v1793 = vld [vmem:[#allocation2 + $0xe20] sm:$0xff]
    %v1794 = vld [vmem:[#allocation2 + $0xe28] sm:$0xff]
    %v1795 = vld [vmem:[#allocation2 + $0xe30] sm:$0xff]
    %v1796 = vld [vmem:[#allocation2 + $0xe38] sm:$0xff]
    %v1797 = vld [vmem:[#allocation2 + $0xe40] sm:$0xff]
    %v1798 = vld [vmem:[#allocation2 + $0xe48] sm:$0xff]
    %v1799 = vld [vmem:[#allocation2 + $0xe50] sm:$0xff]
    %v1800 = vld [vmem:[#allocation2 + $0xe58] sm:$0xff]
    %v1801 = vld [vmem:[#allocation2 + $0xe60] sm:$0xff]
    %v1802 = vld [vmem:[#allocation2 + $0xe68] sm:$0xff]
    %v1803 = vld [vmem:[#allocation2 + $0xe70] sm:$0xff]
    %v1804 = vld [vmem:[#allocation2 + $0xe78] sm:$0xff]
    %v1805 = vld [vmem:[#allocation2 + $0xe80] sm:$0xff]
    %v1806 = vld [vmem:[#allocation2 + $0xe88] sm:$0xff]
    %v1807 = vld [vmem:[#allocation2 + $0xe90] sm:$0xff]
    %v1808 = vld [vmem:[#allocation2 + $0xe98] sm:$0xff]
    %v1809 = vld [vmem:[#allocation2 + $0xea0] sm:$0xff]
    %v1810 = vld [vmem:[#allocation2 + $0xea8] sm:$0xff]
    %v1811 = vld [vmem:[#allocation2 + $0xeb0] sm:$0xff]
    %v1812 = vld [vmem:[#allocation2 + $0xeb8] sm:$0xff]
    %v1813 = vld [vmem:[#allocation2 + $0xec0] sm:$0xff]
    %v1814 = vld [vmem:[#allocation2 + $0xec8] sm:$0xff]
    %v1815 = vld [vmem:[#allocation2 + $0xed0] sm:$0xff]
    %v1816 = vld [vmem:[#allocation2 + $0xed8] sm:$0xff]
    %v1817 = vld [vmem:[#allocation2 + $0xee0] sm:$0xff]
    %v1818 = vld [vmem:[#allocation2 + $0xee8] sm:$0xff]
    %v1819 = vld [vmem:[#allocation2 + $0xef0] sm:$0xff]
    %v1820 = vld [vmem:[#allocation2 + $0xef8] sm:$0xff]
    %v1821 = vld [vmem:[#allocation2 + $0xf00] sm:$0xff]
    %v1822 = vld [vmem:[#allocation2 + $0xf08] sm:$0xff]
    %v1823 = vld [vmem:[#allocation2 + $0xf10] sm:$0xff]
    %v1824 = vld [vmem:[#allocation2 + $0xf18] sm:$0xff]
    %v1825 = vld [vmem:[#allocation2 + $0xf20] sm:$0xff]
    %v1826 = vld [vmem:[#allocation2 + $0xf28] sm:$0xff]
    %v1827 = vld [vmem:[#allocation2 + $0xf30] sm:$0xff]
    %v1828 = vld [vmem:[#allocation2 + $0xf38] sm:$0xff]
    %v1829 = vld [vmem:[#allocation2 + $0xf40] sm:$0xff]
    %v1830 = vld [vmem:[#allocation2 + $0xf48] sm:$0xff]
    %v1831 = vld [vmem:[#allocation2 + $0xf50] sm:$0xff]
    %v1832 = vld [vmem:[#allocation2 + $0xf58] sm:$0xff]
    %v1833 = vld [vmem:[#allocation2 + $0xf60] sm:$0xff]
    %v1834 = vld [vmem:[#allocation2 + $0xf68] sm:$0xff]
    %v1835 = vld [vmem:[#allocation2 + $0xf70] sm:$0xff]
    %v1836 = vld [vmem:[#allocation2 + $0xf78] sm:$0xff]
    %v1837 = vld [vmem:[#allocation2 + $0xf80] sm:$0xff]
    %v1838 = vld [vmem:[#allocation2 + $0xf88] sm:$0xff]
    %v1839 = vld [vmem:[#allocation2 + $0xf90] sm:$0xff]
    %v1840 = vld [vmem:[#allocation2 + $0xf98] sm:$0xff]
    %v1841 = vld [vmem:[#allocation2 + $0xfa0] sm:$0xff]
    %v1842 = vld [vmem:[#allocation2 + $0xfa8] sm:$0xff]
    %v1843 = vld [vmem:[#allocation2 + $0xfb0] sm:$0xff]
    %v1844 = vld [vmem:[#allocation2 + $0xfb8] sm:$0xff]
    %v1845 = vld [vmem:[#allocation2 + $0xfc0] sm:$0xff]
    %v1846 = vld [vmem:[#allocation2 + $0xfc8] sm:$0xff]
    %v1847 = vld [vmem:[#allocation2 + $0xfd0] sm:$0xff]
    %v1848 = vld [vmem:[#allocation2 + $0xfd8] sm:$0xff]
    %v1849 = vld [vmem:[#allocation2 + $0xfe0] sm:$0xff]
    %v1850 = vld [vmem:[#allocation2 + $0xfe8] sm:$0xff]
    %v1851 = vld [vmem:[#allocation2 + $0xff0] sm:$0xff]
    %v1852 = vld [vmem:[#allocation2 + $0xff8] sm:$0xff]
    %v1853 = vld [vmem:[#allocation2 + $0x1000] sm:$0xff]
    %v1854 = vld [vmem:[#allocation2 + $0x1008] sm:$0xff]
    %v1855 = vld [vmem:[#allocation2 + $0x1010] sm:$0xff]
    %v1856 = vld [vmem:[#allocation2 + $0x1018] sm:$0xff]
    %v1857 = vld [vmem:[#allocation2 + $0x1020] sm:$0xff]
    %v1858 = vld [vmem:[#allocation2 + $0x1028] sm:$0xff]
    %v1859 = vld [vmem:[#allocation2 + $0x1030] sm:$0xff]
    %v1860 = vld [vmem:[#allocation2 + $0x1038] sm:$0xff]
    %v1861 = vld [vmem:[#allocation2 + $0x1040] sm:$0xff]
    %v1862 = vld [vmem:[#allocation2 + $0x1048] sm:$0xff]
    %v1863 = vld [vmem:[#allocation2 + $0x1050] sm:$0xff]
    %v1864 = vld [vmem:[#allocation2 + $0x1058] sm:$0xff]
    %v1865 = vld [vmem:[#allocation2 + $0x1060] sm:$0xff]
    %v1866 = vld [vmem:[#allocation2 + $0x1068] sm:$0xff]
    %v1867 = vld [vmem:[#allocation2 + $0x1070] sm:$0xff]
    %v1868 = vld [vmem:[#allocation2 + $0x1078] sm:$0xff]
    %v1869 = vld [vmem:[#allocation2 + $0x1080] sm:$0xff]
    %v1870 = vld [vmem:[#allocation2 + $0x1088] sm:$0xff]
    %v1871 = vld [vmem:[#allocation2 + $0x1090] sm:$0xff]
    %v1872 = vld [vmem:[#allocation2 + $0x1098] sm:$0xff]
    %v1873 = vld [vmem:[#allocation2 + $0x10a0] sm:$0xff]
    %v1874 = vld [vmem:[#allocation2 + $0x10a8] sm:$0xff]
    %v1875 = vld [vmem:[#allocation2 + $0x10b0] sm:$0xff]
    %v1876 = vld [vmem:[#allocation2 + $0x10b8] sm:$0xff]
    %v1877 = vld [vmem:[#allocation2 + $0x10c0] sm:$0xff]
    %v1878 = vld [vmem:[#allocation2 + $0x10c8] sm:$0xff]
    %v1879 = vld [vmem:[#allocation2 + $0x10d0] sm:$0xff]
    %v1880 = vld [vmem:[#allocation2 + $0x10d8] sm:$0xff]
    %v1881 = vld [vmem:[#allocation2 + $0x10e0] sm:$0xff]
    %v1882 = vld [vmem:[#allocation2 + $0x10e8] sm:$0xff]
    %v1883 = vld [vmem:[#allocation2 + $0x10f0] sm:$0xff]
    %v1884 = vld [vmem:[#allocation2 + $0x10f8] sm:$0xff]
    %v1885 = vld [vmem:[#allocation2 + $0x1100] sm:$0xff]
    %v1886 = vld [vmem:[#allocation2 + $0x1108] sm:$0xff]
    %v1887 = vld [vmem:[#allocation2 + $0x1110] sm:$0xff]
    %v1888 = vld [vmem:[#allocation2 + $0x1118] sm:$0xff]
    %v1889 = vld [vmem:[#allocation2 + $0x1120] sm:$0xff]
    %v1890 = vld [vmem:[#allocation2 + $0x1128] sm:$0xff]
    %v1891 = vld [vmem:[#allocation2 + $0x1130] sm:$0xff]
    %v1892 = vld [vmem:[#allocation2 + $0x1138] sm:$0xff]
    %v1893 = vld [vmem:[#allocation2 + $0x1140] sm:$0xff]
    %v1894 = vld [vmem:[#allocation2 + $0x1148] sm:$0xff]
    %v1895 = vld [vmem:[#allocation2 + $0x1150] sm:$0xff]
    %v1896 = vld [vmem:[#allocation2 + $0x1158] sm:$0xff]
    %v1897 = vld [vmem:[#allocation2 + $0x1160] sm:$0xff]
    %v1898 = vld [vmem:[#allocation2 + $0x1168] sm:$0xff]
    %v1899 = vld [vmem:[#allocation2 + $0x1170] sm:$0xff]
    %v1900 = vld [vmem:[#allocation2 + $0x1178] sm:$0xff]
    %v1901 = vld [vmem:[#allocation2 + $0x1180] sm:$0xff]
    %v1902 = vld [vmem:[#allocation2 + $0x1188] sm:$0xff]
    %v1903 = vld [vmem:[#allocation2 + $0x1190] sm:$0xff]
    %v1904 = vld [vmem:[#allocation2 + $0x1198] sm:$0xff]
    %v1905 = vld [vmem:[#allocation2 + $0x11a0] sm:$0xff]
    %v1906 = vld [vmem:[#allocation2 + $0x11a8] sm:$0xff]
    %v1907 = vld [vmem:[#allocation2 + $0x11b0] sm:$0xff]
    %v1908 = vld [vmem:[#allocation2 + $0x11b8] sm:$0xff]
    %v1909 = vld [vmem:[#allocation2 + $0x11c0] sm:$0xff]
    %v1910 = vld [vmem:[#allocation2 + $0x11c8] sm:$0xff]
    %v1911 = vld [vmem:[#allocation2 + $0x11d0] sm:$0xff]
    %v1912 = vld [vmem:[#allocation2 + $0x11d8] sm:$0xff]
    %v1913 = vld [vmem:[#allocation2 + $0x11e0] sm:$0xff]
    %v1914 = vld [vmem:[#allocation2 + $0x11e8] sm:$0xff]
    %v1915 = vld [vmem:[#allocation2 + $0x11f0] sm:$0xff]
    %v1916 = vld [vmem:[#allocation2 + $0x11f8] sm:$0xff]
    %v1917 = vld [vmem:[#allocation2 + $0x1200] sm:$0xff]
    %v1918 = vld [vmem:[#allocation2 + $0x1208] sm:$0xff]
    %v1919 = vld [vmem:[#allocation2 + $0x1210] sm:$0xff]
    %v1920 = vld [vmem:[#allocation2 + $0x1218] sm:$0xff]
    %v1921 = vld [vmem:[#allocation2 + $0x1220] sm:$0xff]
    %v1922 = vld [vmem:[#allocation2 + $0x1228] sm:$0xff]
    %v1923 = vld [vmem:[#allocation2 + $0x1230] sm:$0xff]
    %v1924 = vld [vmem:[#allocation2 + $0x1238] sm:$0xff]
    %v1925 = vld [vmem:[#allocation2 + $0x1240] sm:$0xff]
    %v1926 = vld [vmem:[#allocation2 + $0x1248] sm:$0xff]
    %v1927 = vld [vmem:[#allocation2 + $0x1250] sm:$0xff]
    %v1928 = vld [vmem:[#allocation2 + $0x1258] sm:$0xff]
    %v1929 = vld [vmem:[#allocation2 + $0x1260] sm:$0xff]
    %v1930 = vld [vmem:[#allocation2 + $0x1268] sm:$0xff]
    %v1931 = vld [vmem:[#allocation2 + $0x1270] sm:$0xff]
    %v1932 = vld [vmem:[#allocation2 + $0x1278] sm:$0xff]
    %v1933 = vld [vmem:[#allocation2 + $0x1280] sm:$0xff]
    %v1934 = vld [vmem:[#allocation2 + $0x1288] sm:$0xff]
    %v1935 = vld [vmem:[#allocation2 + $0x1290] sm:$0xff]
    %v1936 = vld [vmem:[#allocation2 + $0x1298] sm:$0xff]
    %v1937 = vld [vmem:[#allocation2 + $0x12a0] sm:$0xff]
    %v1938 = vld [vmem:[#allocation2 + $0x12a8] sm:$0xff]
    %v1939 = vld [vmem:[#allocation2 + $0x12b0] sm:$0xff]
    %v1940 = vld [vmem:[#allocation2 + $0x12b8] sm:$0xff]
    %v1941 = vld [vmem:[#allocation2 + $0x12c0] sm:$0xff]
    %v1942 = vld [vmem:[#allocation2 + $0x12c8] sm:$0xff]
    %v1943 = vld [vmem:[#allocation2 + $0x12d0] sm:$0xff]
    %v1944 = vld [vmem:[#allocation2 + $0x12d8] sm:$0xff]
    %v1945 = vld [vmem:[#allocation2 + $0x12e0] sm:$0xff]
    %v1946 = vld [vmem:[#allocation2 + $0x12e8] sm:$0xff]
    %v1947 = vld [vmem:[#allocation2 + $0x12f0] sm:$0xff]
    %v1948 = vld [vmem:[#allocation2 + $0x12f8] sm:$0xff]
    %v1949 = vld [vmem:[#allocation2 + $0x1300] sm:$0xff]
    %v1950 = vld [vmem:[#allocation2 + $0x1308] sm:$0xff]
    %v1951 = vld [vmem:[#allocation2 + $0x1310] sm:$0xff]
    %v1952 = vld [vmem:[#allocation2 + $0x1318] sm:$0xff]
    %v1953 = vld [vmem:[#allocation2 + $0x1320] sm:$0xff]
    %v1954 = vld [vmem:[#allocation2 + $0x1328] sm:$0xff]
    %v1955 = vld [vmem:[#allocation2 + $0x1330] sm:$0xff]
    %v1956 = vld [vmem:[#allocation2 + $0x1338] sm:$0xff]
    %v1957 = vld [vmem:[#allocation2 + $0x1340] sm:$0xff]
    %v1958 = vld [vmem:[#allocation2 + $0x1348] sm:$0xff]
    %v1959 = vld [vmem:[#allocation2 + $0x1350] sm:$0xff]
    %v1960 = vld [vmem:[#allocation2 + $0x1358] sm:$0xff]
    %v1961 = vld [vmem:[#allocation2 + $0x1360] sm:$0xff]
    %v1962 = vld [vmem:[#allocation2 + $0x1368] sm:$0xff]
    %v1963 = vld [vmem:[#allocation2 + $0x1370] sm:$0xff]
    %v1964 = vld [vmem:[#allocation2 + $0x1378] sm:$0xff]
    %v1965 = vld [vmem:[#allocation2 + $0x1380] sm:$0xff]
    %v1966 = vld [vmem:[#allocation2 + $0x1388] sm:$0xff]
    %v1967 = vld [vmem:[#allocation2 + $0x1390] sm:$0xff]
    %v1968 = vld [vmem:[#allocation2 + $0x1398] sm:$0xff]
    %v1969 = vld [vmem:[#allocation2 + $0x13a0] sm:$0xff]
    %v1970 = vld [vmem:[#allocation2 + $0x13a8] sm:$0xff]
    %v1971 = vld [vmem:[#allocation2 + $0x13b0] sm:$0xff]
    %v1972 = vld [vmem:[#allocation2 + $0x13b8] sm:$0xff]
    %v1973 = vld [vmem:[#allocation2 + $0x13c0] sm:$0xff]
    %v1974 = vld [vmem:[#allocation2 + $0x13c8] sm:$0xff]
    %v1975 = vld [vmem:[#allocation2 + $0x13d0] sm:$0xff]
    %v1976 = vld [vmem:[#allocation2 + $0x13d8] sm:$0xff]
    %v1977 = vld [vmem:[#allocation2 + $0x13e0] sm:$0xff]
    %v1978 = vld [vmem:[#allocation2 + $0x13e8] sm:$0xff]
    %v1979 = vld [vmem:[#allocation2 + $0x13f0] sm:$0xff]
    %v1980 = vld [vmem:[#allocation2 + $0x13f8] sm:$0xff]
    %v1981 = vld [vmem:[#allocation2 + $0x1400] sm:$0xff]
    %v1982 = vld [vmem:[#allocation2 + $0x1408] sm:$0xff]
    %v1983 = vld [vmem:[#allocation2 + $0x1410] sm:$0xff]
    %v1984 = vld [vmem:[#allocation2 + $0x1418] sm:$0xff]
    %v1985 = vld [vmem:[#allocation2 + $0x1420] sm:$0xff]
    %v1986 = vld [vmem:[#allocation2 + $0x1428] sm:$0xff]
    %v1987 = vld [vmem:[#allocation2 + $0x1430] sm:$0xff]
    %v1988 = vld [vmem:[#allocation2 + $0x1438] sm:$0xff]
    %v1989 = vld [vmem:[#allocation2 + $0x1440] sm:$0xff]
    %v1990 = vld [vmem:[#allocation2 + $0x1448] sm:$0xff]
    %v1991 = vld [vmem:[#allocation2 + $0x1450] sm:$0xff]
    %v1992 = vld [vmem:[#allocation2 + $0x1458] sm:$0xff]
    %v1993 = vld [vmem:[#allocation2 + $0x1460] sm:$0xff]
    %v1994 = vld [vmem:[#allocation2 + $0x1468] sm:$0xff]
    %v1995 = vld [vmem:[#allocation2 + $0x1470] sm:$0xff]
    %v1996 = vld [vmem:[#allocation2 + $0x1478] sm:$0xff]
    %v1997 = vld [vmem:[#allocation2 + $0x1480] sm:$0xff]
    %v1998 = vld [vmem:[#allocation2 + $0x1488] sm:$0xff]
    %v1999 = vld [vmem:[#allocation2 + $0x1490] sm:$0xff]
    %v2000 = vld [vmem:[#allocation2 + $0x1498] sm:$0xff]
    %v2001 = vld [vmem:[#allocation2 + $0x14a0] sm:$0xff]
    %v2002 = vld [vmem:[#allocation2 + $0x14a8] sm:$0xff]
    %v2003 = vld [vmem:[#allocation2 + $0x14b0] sm:$0xff]
    %v2004 = vld [vmem:[#allocation2 + $0x14b8] sm:$0xff]
    %v2005 = vld [vmem:[#allocation2 + $0x14c0] sm:$0xff]
    %v2006 = vld [vmem:[#allocation2 + $0x14c8] sm:$0xff]
    %v2007 = vld [vmem:[#allocation2 + $0x14d0] sm:$0xff]
    %v2008 = vld [vmem:[#allocation2 + $0x14d8] sm:$0xff]
    %v2009 = vld [vmem:[#allocation2 + $0x14e0] sm:$0xff]
    %v2010 = vld [vmem:[#allocation2 + $0x14e8] sm:$0xff]
    %v2011 = vld [vmem:[#allocation2 + $0x14f0] sm:$0xff]
    %v2012 = vld [vmem:[#allocation2 + $0x14f8] sm:$0xff]
    %v2013 = vld [vmem:[#allocation2 + $0x1500] sm:$0xff]
    %v2014 = vld [vmem:[#allocation2 + $0x1508] sm:$0xff]
    %v2015 = vld [vmem:[#allocation2 + $0x1510] sm:$0xff]
    %v2016 = vld [vmem:[#allocation2 + $0x1518] sm:$0xff]
    %v2017 = vld [vmem:[#allocation2 + $0x1520] sm:$0xff]
    %v2018 = vld [vmem:[#allocation2 + $0x1528] sm:$0xff]
    %v2019 = vld [vmem:[#allocation2 + $0x1530] sm:$0xff]
    %v2020 = vld [vmem:[#allocation2 + $0x1538] sm:$0xff]
    %v2021 = vld [vmem:[#allocation2 + $0x1540] sm:$0xff]
    %v2022 = vld [vmem:[#allocation2 + $0x1548] sm:$0xff]
    %v2023 = vld [vmem:[#allocation2 + $0x1550] sm:$0xff]
    %v2024 = vld [vmem:[#allocation2 + $0x1558] sm:$0xff]
    %v2025 = vld [vmem:[#allocation2 + $0x1560] sm:$0xff]
    %v2026 = vld [vmem:[#allocation2 + $0x1568] sm:$0xff]
    %v2027 = vld [vmem:[#allocation2 + $0x1570] sm:$0xff]
    %v2028 = vld [vmem:[#allocation2 + $0x1578] sm:$0xff]
    %v2029 = vld [vmem:[#allocation2 + $0x1580] sm:$0xff]
    %v2030 = vld [vmem:[#allocation2 + $0x1588] sm:$0xff]
    %v2031 = vld [vmem:[#allocation2 + $0x1590] sm:$0xff]
    %v2032 = vld [vmem:[#allocation2 + $0x1598] sm:$0xff]
    %v2033 = vld [vmem:[#allocation2 + $0x15a0] sm:$0xff]
    %v2034 = vld [vmem:[#allocation2 + $0x15a8] sm:$0xff]
    %v2035 = vld [vmem:[#allocation2 + $0x15b0] sm:$0xff]
    %v2036 = vld [vmem:[#allocation2 + $0x15b8] sm:$0xff]
    %v2037 = vld [vmem:[#allocation2 + $0x15c0] sm:$0xff]
    %v2038 = vld [vmem:[#allocation2 + $0x15c8] sm:$0xff]
    %v2039 = vld [vmem:[#allocation2 + $0x15d0] sm:$0xff]
    %v2040 = vld [vmem:[#allocation2 + $0x15d8] sm:$0xff]
    %v2041 = vld [vmem:[#allocation2 + $0x15e0] sm:$0xff]
    %v2042 = vld [vmem:[#allocation2 + $0x15e8] sm:$0xff]
    %v2043 = vld [vmem:[#allocation2 + $0x15f0] sm:$0xff]
    %v2044 = vld [vmem:[#allocation2 + $0x15f8] sm:$0xff]
    %v2045 = vld [vmem:[#allocation2 + $0x1600] sm:$0xff]
    %v2046 = vld [vmem:[#allocation2 + $0x1608] sm:$0xff]
    %v2047 = vld [vmem:[#allocation2 + $0x1610] sm:$0xff]
    %v2048 = vld [vmem:[#allocation2 + $0x1618] sm:$0xff]
    %v2049 = vld [vmem:[#allocation2 + $0x1620] sm:$0xff]
    %v2050 = vld [vmem:[#allocation2 + $0x1628] sm:$0xff]
    %v2051 = vld [vmem:[#allocation2 + $0x1630] sm:$0xff]
    %v2052 = vld [vmem:[#allocation2 + $0x1638] sm:$0xff]
    %v2053 = vld [vmem:[#allocation2 + $0x1640] sm:$0xff]
    %v2054 = vld [vmem:[#allocation2 + $0x1648] sm:$0xff]
    %v2055 = vld [vmem:[#allocation2 + $0x1650] sm:$0xff]
    %v2056 = vld [vmem:[#allocation2 + $0x1658] sm:$0xff]
    %v2057 = vld [vmem:[#allocation2 + $0x1660] sm:$0xff]
    %v2058 = vld [vmem:[#allocation2 + $0x1668] sm:$0xff]
    %v2059 = vld [vmem:[#allocation2 + $0x1670] sm:$0xff]
    %v2060 = vld [vmem:[#allocation2 + $0x1678] sm:$0xff]
    %v2061 = vld [vmem:[#allocation2 + $0x1680] sm:$0xff]
    %v2062 = vld [vmem:[#allocation2 + $0x1688] sm:$0xff]
    %v2063 = vld [vmem:[#allocation2 + $0x1690] sm:$0xff]
    %v2064 = vld [vmem:[#allocation2 + $0x1698] sm:$0xff]
    %v2065 = vld [vmem:[#allocation2 + $0x16a0] sm:$0xff]
    %v2066 = vld [vmem:[#allocation2 + $0x16a8] sm:$0xff]
    %v2067 = vld [vmem:[#allocation2 + $0x16b0] sm:$0xff]
    %v2068 = vld [vmem:[#allocation2 + $0x16b8] sm:$0xff]
    %v2069 = vld [vmem:[#allocation2 + $0x16c0] sm:$0xff]
    %v2070 = vld [vmem:[#allocation2 + $0x16c8] sm:$0xff]
    %v2071 = vld [vmem:[#allocation2 + $0x16d0] sm:$0xff]
    %v2072 = vld [vmem:[#allocation2 + $0x16d8] sm:$0xff]
    %v2073 = vld [vmem:[#allocation2 + $0x16e0] sm:$0xff]
    %v2074 = vld [vmem:[#allocation2 + $0x16e8] sm:$0xff]
    %v2075 = vld [vmem:[#allocation2 + $0x16f0] sm:$0xff]
    %v2076 = vld [vmem:[#allocation2 + $0x16f8] sm:$0xff]
    %v2077 = vld [vmem:[#allocation2 + $0x1700] sm:$0xff]
    %v2078 = vld [vmem:[#allocation2 + $0x1708] sm:$0xff]
    %v2079 = vld [vmem:[#allocation2 + $0x1710] sm:$0xff]
    %v2080 = vld [vmem:[#allocation2 + $0x1718] sm:$0xff]
    %v2081 = vld [vmem:[#allocation2 + $0x1720] sm:$0xff]
    %v2082 = vld [vmem:[#allocation2 + $0x1728] sm:$0xff]
    %v2083 = vld [vmem:[#allocation2 + $0x1730] sm:$0xff]
    %v2084 = vld [vmem:[#allocation2 + $0x1738] sm:$0xff]
    %v2085 = vld [vmem:[#allocation2 + $0x1740] sm:$0xff]
    %v2086 = vld [vmem:[#allocation2 + $0x1748] sm:$0xff]
    %v2087 = vld [vmem:[#allocation2 + $0x1750] sm:$0xff]
    %v2088 = vld [vmem:[#allocation2 + $0x1758] sm:$0xff]
    %v2089 = vld [vmem:[#allocation2 + $0x1760] sm:$0xff]
    %v2090 = vld [vmem:[#allocation2 + $0x1768] sm:$0xff]
    %v2091 = vld [vmem:[#allocation2 + $0x1770] sm:$0xff]
    %v2092 = vld [vmem:[#allocation2 + $0x1778] sm:$0xff]
    %v2093 = vld [vmem:[#allocation2 + $0x1780] sm:$0xff]
    %v2094 = vld [vmem:[#allocation2 + $0x1788] sm:$0xff]
    %v2095 = vld [vmem:[#allocation2 + $0x1790] sm:$0xff]
    %v2096 = vld [vmem:[#allocation2 + $0x1798] sm:$0xff]
    %v2097 = vld [vmem:[#allocation2 + $0x17a0] sm:$0xff]
    %v2098 = vld [vmem:[#allocation2 + $0x17a8] sm:$0xff]
    %v2099 = vld [vmem:[#allocation2 + $0x17b0] sm:$0xff]
    %v2100 = vld [vmem:[#allocation2 + $0x17b8] sm:$0xff]
    %v2101 = vld [vmem:[#allocation2 + $0x17c0] sm:$0xff]
    %v2102 = vld [vmem:[#allocation2 + $0x17c8] sm:$0xff]
    %v2103 = vld [vmem:[#allocation2 + $0x17d0] sm:$0xff]
    %v2104 = vld [vmem:[#allocation2 + $0x17d8] sm:$0xff]
    %v2105 = vld [vmem:[#allocation2 + $0x17e0] sm:$0xff]
    %v2106 = vld [vmem:[#allocation2 + $0x17e8] sm:$0xff]
    %v2107 = vld [vmem:[#allocation2 + $0x17f0] sm:$0xff]
    %v2108 = vld [vmem:[#allocation2 + $0x17f8] sm:$0xff]
    %v2109 = vld [vmem:[#allocation2 + $0x1800] sm:$0xff]
    %v2110 = vld [vmem:[#allocation2 + $0x1808] sm:$0xff]
    %v2111 = vld [vmem:[#allocation2 + $0x1810] sm:$0xff]
    %v2112 = vld [vmem:[#allocation2 + $0x1818] sm:$0xff]
    %v2113 = vld [vmem:[#allocation2 + $0x1820] sm:$0xff]
    %v2114 = vld [vmem:[#allocation2 + $0x1828] sm:$0xff]
    %v2115 = vld [vmem:[#allocation2 + $0x1830] sm:$0xff]
    %v2116 = vld [vmem:[#allocation2 + $0x1838] sm:$0xff]
    %v2117 = vld [vmem:[#allocation2 + $0x1840] sm:$0xff]
    %v2118 = vld [vmem:[#allocation2 + $0x1848] sm:$0xff]
    %v2119 = vld [vmem:[#allocation2 + $0x1850] sm:$0xff]
    %v2120 = vld [vmem:[#allocation2 + $0x1858] sm:$0xff]
    %v2121 = vld [vmem:[#allocation2 + $0x1860] sm:$0xff]
    %v2122 = vld [vmem:[#allocation2 + $0x1868] sm:$0xff]
    %v2123 = vld [vmem:[#allocation2 + $0x1870] sm:$0xff]
    %v2124 = vld [vmem:[#allocation2 + $0x1878] sm:$0xff]
    %v2125 = vld [vmem:[#allocation2 + $0x1880] sm:$0xff]
    %v2126 = vld [vmem:[#allocation2 + $0x1888] sm:$0xff]
    %v2127 = vld [vmem:[#allocation2 + $0x1890] sm:$0xff]
    %v2128 = vld [vmem:[#allocation2 + $0x1898] sm:$0xff]
    %v2129 = vld [vmem:[#allocation2 + $0x18a0] sm:$0xff]
    %v2130 = vld [vmem:[#allocation2 + $0x18a8] sm:$0xff]
    %v2131 = vld [vmem:[#allocation2 + $0x18b0] sm:$0xff]
    %v2132 = vld [vmem:[#allocation2 + $0x18b8] sm:$0xff]
    %v2133 = vld [vmem:[#allocation2 + $0x18c0] sm:$0xff]
    %v2134 = vld [vmem:[#allocation2 + $0x18c8] sm:$0xff]
    %v2135 = vld [vmem:[#allocation2 + $0x18d0] sm:$0xff]
    %v2136 = vld [vmem:[#allocation2 + $0x18d8] sm:$0xff]
    %v2137 = vld [vmem:[#allocation2 + $0x18e0] sm:$0xff]
    %v2138 = vld [vmem:[#allocation2 + $0x18e8] sm:$0xff]
    %v2139 = vld [vmem:[#allocation2 + $0x18f0] sm:$0xff]
    %v2140 = vld [vmem:[#allocation2 + $0x18f8] sm:$0xff]
    %v2941 = vunpack.c.l.b16 %v1341
    %v2942 = vunpack.c.h.b16 %v1341
    %v2943 = vunpack.c.l.b16 %v1342
    %v2944 = vunpack.c.h.b16 %v1342
    %v2945 = vunpack.c.l.b16 %v1343
    %v2946 = vunpack.c.h.b16 %v1343
    %v2947 = vunpack.c.l.b16 %v1344
    %v2948 = vunpack.c.h.b16 %v1344
    %v2949 = vunpack.c.l.b16 %v1345
    %v2950 = vunpack.c.h.b16 %v1345
    %v2951 = vunpack.c.l.b16 %v1346
    %v2952 = vunpack.c.h.b16 %v1346
    %v2953 = vunpack.c.l.b16 %v1347
    %v2954 = vunpack.c.h.b16 %v1347
    %v2955 = vunpack.c.l.b16 %v1348
    %v2956 = vunpack.c.h.b16 %v1348
    %v2957 = vunpack.c.l.b16 %v1349
    %v2958 = vunpack.c.h.b16 %v1349
    %v2959 = vunpack.c.l.b16 %v1350
    %v2960 = vunpack.c.h.b16 %v1350
    %v2961 = vunpack.c.l.b16 %v1351
    %v2962 = vunpack.c.h.b16 %v1351
    %v2963 = vunpack.c.l.b16 %v1352
    %v2964 = vunpack.c.h.b16 %v1352
    %v2965 = vunpack.c.l.b16 %v1353
    %v2966 = vunpack.c.h.b16 %v1353
    %v2967 = vunpack.c.l.b16 %v1354
    %v2968 = vunpack.c.h.b16 %v1354
    %v2969 = vunpack.c.l.b16 %v1355
    %v2970 = vunpack.c.h.b16 %v1355
    %v2971 = vunpack.c.l.b16 %v1356
    %v2972 = vunpack.c.h.b16 %v1356
    %v2973 = vunpack.c.l.b16 %v1357
    %v2974 = vunpack.c.h.b16 %v1357
    %v2975 = vunpack.c.l.b16 %v1358
    %v2976 = vunpack.c.h.b16 %v1358
    %v2977 = vunpack.c.l.b16 %v1359
    %v2978 = vunpack.c.h.b16 %v1359
    %v2979 = vunpack.c.l.b16 %v1360
    %v2980 = vunpack.c.h.b16 %v1360
    %v2981 = vunpack.c.l.b16 %v1361
    %v2982 = vunpack.c.h.b16 %v1361
    %v2983 = vunpack.c.l.b16 %v1362
    %v2984 = vunpack.c.h.b16 %v1362
    %v2985 = vunpack.c.l.b16 %v1363
    %v2986 = vunpack.c.h.b16 %v1363
    %v2987 = vunpack.c.l.b16 %v1364
    %v2988 = vunpack.c.h.b16 %v1364
    %v2989 = vunpack.c.l.b16 %v1365
    %v2990 = vunpack.c.h.b16 %v1365
    %v2991 = vunpack.c.l.b16 %v1366
    %v2992 = vunpack.c.h.b16 %v1366
    %v2993 = vunpack.c.l.b16 %v1367
    %v2994 = vunpack.c.h.b16 %v1367
    %v2995 = vunpack.c.l.b16 %v1368
    %v2996 = vunpack.c.h.b16 %v1368
    %v2997 = vunpack.c.l.b16 %v1369
    %v2998 = vunpack.c.h.b16 %v1369
    %v2999 = vunpack.c.l.b16 %v1370
    %v3000 = vunpack.c.h.b16 %v1370
    %v3001 = vunpack.c.l.b16 %v1371
    %v3002 = vunpack.c.h.b16 %v1371
    %v3003 = vunpack.c.l.b16 %v1372
    %v3004 = vunpack.c.h.b16 %v1372
    %v3005 = vunpack.c.l.b16 %v1373
    %v3006 = vunpack.c.h.b16 %v1373
    %v3007 = vunpack.c.l.b16 %v1374
    %v3008 = vunpack.c.h.b16 %v1374
    %v3009 = vunpack.c.l.b16 %v1375
    %v3010 = vunpack.c.h.b16 %v1375
    %v3011 = vunpack.c.l.b16 %v1376
    %v3012 = vunpack.c.h.b16 %v1376
    %v3013 = vunpack.c.l.b16 %v1377
    %v3014 = vunpack.c.h.b16 %v1377
    %v3015 = vunpack.c.l.b16 %v1378
    %v3016 = vunpack.c.h.b16 %v1378
    %v3017 = vunpack.c.l.b16 %v1379
    %v3018 = vunpack.c.h.b16 %v1379
    %v3019 = vunpack.c.l.b16 %v1380
    %v3020 = vunpack.c.h.b16 %v1380
    %v3021 = vunpack.c.l.b16 %v1381
    %v3022 = vunpack.c.h.b16 %v1381
    %v3023 = vunpack.c.l.b16 %v1382
    %v3024 = vunpack.c.h.b16 %v1382
    %v3025 = vunpack.c.l.b16 %v1383
    %v3026 = vunpack.c.h.b16 %v1383
    %v3027 = vunpack.c.l.b16 %v1384
    %v3028 = vunpack.c.h.b16 %v1384
    %v3029 = vunpack.c.l.b16 %v1385
    %v3030 = vunpack.c.h.b16 %v1385
    %v3031 = vunpack.c.l.b16 %v1386
    %v3032 = vunpack.c.h.b16 %v1386
    %v3033 = vunpack.c.l.b16 %v1387
    %v3034 = vunpack.c.h.b16 %v1387
    %v3035 = vunpack.c.l.b16 %v1388
    %v3036 = vunpack.c.h.b16 %v1388
    %v3037 = vunpack.c.l.b16 %v1389
    %v3038 = vunpack.c.h.b16 %v1389
    %v3039 = vunpack.c.l.b16 %v1390
    %v3040 = vunpack.c.h.b16 %v1390
    %v3041 = vunpack.c.l.b16 %v1391
    %v3042 = vunpack.c.h.b16 %v1391
    %v3043 = vunpack.c.l.b16 %v1392
    %v3044 = vunpack.c.h.b16 %v1392
    %v3045 = vunpack.c.l.b16 %v1393
    %v3046 = vunpack.c.h.b16 %v1393
    %v3047 = vunpack.c.l.b16 %v1394
    %v3048 = vunpack.c.h.b16 %v1394
    %v3049 = vunpack.c.l.b16 %v1395
    %v3050 = vunpack.c.h.b16 %v1395
    %v3051 = vunpack.c.l.b16 %v1396
    %v3052 = vunpack.c.h.b16 %v1396
    %v3053 = vunpack.c.l.b16 %v1397
    %v3054 = vunpack.c.h.b16 %v1397
    %v3055 = vunpack.c.l.b16 %v1398
    %v3056 = vunpack.c.h.b16 %v1398
    %v3057 = vunpack.c.l.b16 %v1399
    %v3058 = vunpack.c.h.b16 %v1399
    %v3059 = vunpack.c.l.b16 %v1400
    %v3060 = vunpack.c.h.b16 %v1400
    %v3061 = vunpack.c.l.b16 %v1401
    %v3062 = vunpack.c.h.b16 %v1401
    %v3063 = vunpack.c.l.b16 %v1402
    %v3064 = vunpack.c.h.b16 %v1402
    %v3065 = vunpack.c.l.b16 %v1403
    %v3066 = vunpack.c.h.b16 %v1403
    %v3067 = vunpack.c.l.b16 %v1404
    %v3068 = vunpack.c.h.b16 %v1404
    %v3069 = vunpack.c.l.b16 %v1405
    %v3070 = vunpack.c.h.b16 %v1405
    %v3071 = vunpack.c.l.b16 %v1406
    %v3072 = vunpack.c.h.b16 %v1406
    %v3073 = vunpack.c.l.b16 %v1407
    %v3074 = vunpack.c.h.b16 %v1407
    %v3075 = vunpack.c.l.b16 %v1408
    %v3076 = vunpack.c.h.b16 %v1408
    %v3077 = vunpack.c.l.b16 %v1409
    %v3078 = vunpack.c.h.b16 %v1409
    %v3079 = vunpack.c.l.b16 %v1410
    %v3080 = vunpack.c.h.b16 %v1410
    %v3081 = vunpack.c.l.b16 %v1411
    %v3082 = vunpack.c.h.b16 %v1411
    %v3083 = vunpack.c.l.b16 %v1412
    %v3084 = vunpack.c.h.b16 %v1412
    %v3085 = vunpack.c.l.b16 %v1413
    %v3086 = vunpack.c.h.b16 %v1413
    %v3087 = vunpack.c.l.b16 %v1414
    %v3088 = vunpack.c.h.b16 %v1414
    %v3089 = vunpack.c.l.b16 %v1415
    %v3090 = vunpack.c.h.b16 %v1415
    %v3091 = vunpack.c.l.b16 %v1416
    %v3092 = vunpack.c.h.b16 %v1416
    %v3093 = vunpack.c.l.b16 %v1417
    %v3094 = vunpack.c.h.b16 %v1417
    %v3095 = vunpack.c.l.b16 %v1418
    %v3096 = vunpack.c.h.b16 %v1418
    %v3097 = vunpack.c.l.b16 %v1419
    %v3098 = vunpack.c.h.b16 %v1419
    %v3099 = vunpack.c.l.b16 %v1420
    %v3100 = vunpack.c.h.b16 %v1420
    %v3101 = vunpack.c.l.b16 %v1421
    %v3102 = vunpack.c.h.b16 %v1421
    %v3103 = vunpack.c.l.b16 %v1422
    %v3104 = vunpack.c.h.b16 %v1422
    %v3105 = vunpack.c.l.b16 %v1423
    %v3106 = vunpack.c.h.b16 %v1423
    %v3107 = vunpack.c.l.b16 %v1424
    %v3108 = vunpack.c.h.b16 %v1424
    %v3109 = vunpack.c.l.b16 %v1425
    %v3110 = vunpack.c.h.b16 %v1425
    %v3111 = vunpack.c.l.b16 %v1426
    %v3112 = vunpack.c.h.b16 %v1426
    %v3113 = vunpack.c.l.b16 %v1427
    %v3114 = vunpack.c.h.b16 %v1427
    %v3115 = vunpack.c.l.b16 %v1428
    %v3116 = vunpack.c.h.b16 %v1428
    %v3117 = vunpack.c.l.b16 %v1429
    %v3118 = vunpack.c.h.b16 %v1429
    %v3119 = vunpack.c.l.b16 %v1430
    %v3120 = vunpack.c.h.b16 %v1430
    %v3121 = vunpack.c.l.b16 %v1431
    %v3122 = vunpack.c.h.b16 %v1431
    %v3123 = vunpack.c.l.b16 %v1432
    %v3124 = vunpack.c.h.b16 %v1432
    %v3125 = vunpack.c.l.b16 %v1433
    %v3126 = vunpack.c.h.b16 %v1433
    %v3127 = vunpack.c.l.b16 %v1434
    %v3128 = vunpack.c.h.b16 %v1434
    %v3129 = vunpack.c.l.b16 %v1435
    %v3130 = vunpack.c.h.b16 %v1435
    %v3131 = vunpack.c.l.b16 %v1436
    %v3132 = vunpack.c.h.b16 %v1436
    %v3133 = vunpack.c.l.b16 %v1437
    %v3134 = vunpack.c.h.b16 %v1437
    %v3135 = vunpack.c.l.b16 %v1438
    %v3136 = vunpack.c.h.b16 %v1438
    %v3137 = vunpack.c.l.b16 %v1439
    %v3138 = vunpack.c.h.b16 %v1439
    %v3139 = vunpack.c.l.b16 %v1440
    %v3140 = vunpack.c.h.b16 %v1440
    %v3141 = vunpack.c.l.b16 %v1441
    %v3142 = vunpack.c.h.b16 %v1441
    %v3143 = vunpack.c.l.b16 %v1442
    %v3144 = vunpack.c.h.b16 %v1442
    %v3145 = vunpack.c.l.b16 %v1443
    %v3146 = vunpack.c.h.b16 %v1443
    %v3147 = vunpack.c.l.b16 %v1444
    %v3148 = vunpack.c.h.b16 %v1444
    %v3149 = vunpack.c.l.b16 %v1445
    %v3150 = vunpack.c.h.b16 %v1445
    %v3151 = vunpack.c.l.b16 %v1446
    %v3152 = vunpack.c.h.b16 %v1446
    %v3153 = vunpack.c.l.b16 %v1447
    %v3154 = vunpack.c.h.b16 %v1447
    %v3155 = vunpack.c.l.b16 %v1448
    %v3156 = vunpack.c.h.b16 %v1448
    %v3157 = vunpack.c.l.b16 %v1449
    %v3158 = vunpack.c.h.b16 %v1449
    %v3159 = vunpack.c.l.b16 %v1450
    %v3160 = vunpack.c.h.b16 %v1450
    %v3161 = vunpack.c.l.b16 %v1451
    %v3162 = vunpack.c.h.b16 %v1451
    %v3163 = vunpack.c.l.b16 %v1452
    %v3164 = vunpack.c.h.b16 %v1452
    %v3165 = vunpack.c.l.b16 %v1453
    %v3166 = vunpack.c.h.b16 %v1453
    %v3167 = vunpack.c.l.b16 %v1454
    %v3168 = vunpack.c.h.b16 %v1454
    %v3169 = vunpack.c.l.b16 %v1455
    %v3170 = vunpack.c.h.b16 %v1455
    %v3171 = vunpack.c.l.b16 %v1456
    %v3172 = vunpack.c.h.b16 %v1456
    %v3173 = vunpack.c.l.b16 %v1457
    %v3174 = vunpack.c.h.b16 %v1457
    %v3175 = vunpack.c.l.b16 %v1458
    %v3176 = vunpack.c.h.b16 %v1458
    %v3177 = vunpack.c.l.b16 %v1459
    %v3178 = vunpack.c.h.b16 %v1459
    %v3179 = vunpack.c.l.b16 %v1460
    %v3180 = vunpack.c.h.b16 %v1460
    %v3181 = vunpack.c.l.b16 %v1461
    %v3182 = vunpack.c.h.b16 %v1461
    %v3183 = vunpack.c.l.b16 %v1462
    %v3184 = vunpack.c.h.b16 %v1462
    %v3185 = vunpack.c.l.b16 %v1463
    %v3186 = vunpack.c.h.b16 %v1463
    %v3187 = vunpack.c.l.b16 %v1464
    %v3188 = vunpack.c.h.b16 %v1464
    %v3189 = vunpack.c.l.b16 %v1465
    %v3190 = vunpack.c.h.b16 %v1465
    %v3191 = vunpack.c.l.b16 %v1466
    %v3192 = vunpack.c.h.b16 %v1466
    %v3193 = vunpack.c.l.b16 %v1467
    %v3194 = vunpack.c.h.b16 %v1467
    %v3195 = vunpack.c.l.b16 %v1468
    %v3196 = vunpack.c.h.b16 %v1468
    %v3197 = vunpack.c.l.b16 %v1469
    %v3198 = vunpack.c.h.b16 %v1469
    %v3199 = vunpack.c.l.b16 %v1470
    %v3200 = vunpack.c.h.b16 %v1470
    %v3201 = vunpack.c.l.b16 %v1471
    %v3202 = vunpack.c.h.b16 %v1471
    %v3203 = vunpack.c.l.b16 %v1472
    %v3204 = vunpack.c.h.b16 %v1472
    %v3205 = vunpack.c.l.b16 %v1473
    %v3206 = vunpack.c.h.b16 %v1473
    %v3207 = vunpack.c.l.b16 %v1474
    %v3208 = vunpack.c.h.b16 %v1474
    %v3209 = vunpack.c.l.b16 %v1475
    %v3210 = vunpack.c.h.b16 %v1475
    %v3211 = vunpack.c.l.b16 %v1476
    %v3212 = vunpack.c.h.b16 %v1476
    %v3213 = vunpack.c.l.b16 %v1477
    %v3214 = vunpack.c.h.b16 %v1477
    %v3215 = vunpack.c.l.b16 %v1478
    %v3216 = vunpack.c.h.b16 %v1478
    %v3217 = vunpack.c.l.b16 %v1479
    %v3218 = vunpack.c.h.b16 %v1479
    %v3219 = vunpack.c.l.b16 %v1480
    %v3220 = vunpack.c.h.b16 %v1480
    %v3221 = vunpack.c.l.b16 %v1481
    %v3222 = vunpack.c.h.b16 %v1481
    %v3223 = vunpack.c.l.b16 %v1482
    %v3224 = vunpack.c.h.b16 %v1482
    %v3225 = vunpack.c.l.b16 %v1483
    %v3226 = vunpack.c.h.b16 %v1483
    %v3227 = vunpack.c.l.b16 %v1484
    %v3228 = vunpack.c.h.b16 %v1484
    %v3229 = vunpack.c.l.b16 %v1485
    %v3230 = vunpack.c.h.b16 %v1485
    %v3231 = vunpack.c.l.b16 %v1486
    %v3232 = vunpack.c.h.b16 %v1486
    %v3233 = vunpack.c.l.b16 %v1487
    %v3234 = vunpack.c.h.b16 %v1487
    %v3235 = vunpack.c.l.b16 %v1488
    %v3236 = vunpack.c.h.b16 %v1488
    %v3237 = vunpack.c.l.b16 %v1489
    %v3238 = vunpack.c.h.b16 %v1489
    %v3239 = vunpack.c.l.b16 %v1490
    %v3240 = vunpack.c.h.b16 %v1490
    %v3241 = vunpack.c.l.b16 %v1491
    %v3242 = vunpack.c.h.b16 %v1491
    %v3243 = vunpack.c.l.b16 %v1492
    %v3244 = vunpack.c.h.b16 %v1492
    %v3245 = vunpack.c.l.b16 %v1493
    %v3246 = vunpack.c.h.b16 %v1493
    %v3247 = vunpack.c.l.b16 %v1494
    %v3248 = vunpack.c.h.b16 %v1494
    %v3249 = vunpack.c.l.b16 %v1495
    %v3250 = vunpack.c.h.b16 %v1495
    %v3251 = vunpack.c.l.b16 %v1496
    %v3252 = vunpack.c.h.b16 %v1496
    %v3253 = vunpack.c.l.b16 %v1497
    %v3254 = vunpack.c.h.b16 %v1497
    %v3255 = vunpack.c.l.b16 %v1498
    %v3256 = vunpack.c.h.b16 %v1498
    %v3257 = vunpack.c.l.b16 %v1499
    %v3258 = vunpack.c.h.b16 %v1499
    %v3259 = vunpack.c.l.b16 %v1500
    %v3260 = vunpack.c.h.b16 %v1500
    %v3261 = vunpack.c.l.b16 %v1501
    %v3262 = vunpack.c.h.b16 %v1501
    %v3263 = vunpack.c.l.b16 %v1502
    %v3264 = vunpack.c.h.b16 %v1502
    %v3265 = vunpack.c.l.b16 %v1503
    %v3266 = vunpack.c.h.b16 %v1503
    %v3267 = vunpack.c.l.b16 %v1504
    %v3268 = vunpack.c.h.b16 %v1504
    %v3269 = vunpack.c.l.b16 %v1505
    %v3270 = vunpack.c.h.b16 %v1505
    %v3271 = vunpack.c.l.b16 %v1506
    %v3272 = vunpack.c.h.b16 %v1506
    %v3273 = vunpack.c.l.b16 %v1507
    %v3274 = vunpack.c.h.b16 %v1507
    %v3275 = vunpack.c.l.b16 %v1508
    %v3276 = vunpack.c.h.b16 %v1508
    %v3277 = vunpack.c.l.b16 %v1509
    %v3278 = vunpack.c.h.b16 %v1509
    %v3279 = vunpack.c.l.b16 %v1510
    %v3280 = vunpack.c.h.b16 %v1510
    %v3281 = vunpack.c.l.b16 %v1511
    %v3282 = vunpack.c.h.b16 %v1511
    %v3283 = vunpack.c.l.b16 %v1512
    %v3284 = vunpack.c.h.b16 %v1512
    %v3285 = vunpack.c.l.b16 %v1513
    %v3286 = vunpack.c.h.b16 %v1513
    %v3287 = vunpack.c.l.b16 %v1514
    %v3288 = vunpack.c.h.b16 %v1514
    %v3289 = vunpack.c.l.b16 %v1515
    %v3290 = vunpack.c.h.b16 %v1515
    %v3291 = vunpack.c.l.b16 %v1516
    %v3292 = vunpack.c.h.b16 %v1516
    %v3293 = vunpack.c.l.b16 %v1517
    %v3294 = vunpack.c.h.b16 %v1517
    %v3295 = vunpack.c.l.b16 %v1518
    %v3296 = vunpack.c.h.b16 %v1518
    %v3297 = vunpack.c.l.b16 %v1519
    %v3298 = vunpack.c.h.b16 %v1519
    %v3299 = vunpack.c.l.b16 %v1520
    %v3300 = vunpack.c.h.b16 %v1520
    %v3301 = vunpack.c.l.b16 %v1521
    %v3302 = vunpack.c.h.b16 %v1521
    %v3303 = vunpack.c.l.b16 %v1522
    %v3304 = vunpack.c.h.b16 %v1522
    %v3305 = vunpack.c.l.b16 %v1523
    %v3306 = vunpack.c.h.b16 %v1523
    %v3307 = vunpack.c.l.b16 %v1524
    %v3308 = vunpack.c.h.b16 %v1524
    %v3309 = vunpack.c.l.b16 %v1525
    %v3310 = vunpack.c.h.b16 %v1525
    %v3311 = vunpack.c.l.b16 %v1526
    %v3312 = vunpack.c.h.b16 %v1526
    %v3313 = vunpack.c.l.b16 %v1527
    %v3314 = vunpack.c.h.b16 %v1527
    %v3315 = vunpack.c.l.b16 %v1528
    %v3316 = vunpack.c.h.b16 %v1528
    %v3317 = vunpack.c.l.b16 %v1529
    %v3318 = vunpack.c.h.b16 %v1529
    %v3319 = vunpack.c.l.b16 %v1530
    %v3320 = vunpack.c.h.b16 %v1530
    %v3321 = vunpack.c.l.b16 %v1531
    %v3322 = vunpack.c.h.b16 %v1531
    %v3323 = vunpack.c.l.b16 %v1532
    %v3324 = vunpack.c.h.b16 %v1532
    %v3325 = vunpack.c.l.b16 %v1533
    %v3326 = vunpack.c.h.b16 %v1533
    %v3327 = vunpack.c.l.b16 %v1534
    %v3328 = vunpack.c.h.b16 %v1534
    %v3329 = vunpack.c.l.b16 %v1535
    %v3330 = vunpack.c.h.b16 %v1535
    %v3331 = vunpack.c.l.b16 %v1536
    %v3332 = vunpack.c.h.b16 %v1536
    %v3333 = vunpack.c.l.b16 %v1537
    %v3334 = vunpack.c.h.b16 %v1537
    %v3335 = vunpack.c.l.b16 %v1538
    %v3336 = vunpack.c.h.b16 %v1538
    %v3337 = vunpack.c.l.b16 %v1539
    %v3338 = vunpack.c.h.b16 %v1539
    %v3339 = vunpack.c.l.b16 %v1540
    %v3340 = vunpack.c.h.b16 %v1540
    %v3341 = vunpack.c.l.b16 %v1541
    %v3342 = vunpack.c.h.b16 %v1541
    %v3343 = vunpack.c.l.b16 %v1542
    %v3344 = vunpack.c.h.b16 %v1542
    %v3345 = vunpack.c.l.b16 %v1543
    %v3346 = vunpack.c.h.b16 %v1543
    %v3347 = vunpack.c.l.b16 %v1544
    %v3348 = vunpack.c.h.b16 %v1544
    %v3349 = vunpack.c.l.b16 %v1545
    %v3350 = vunpack.c.h.b16 %v1545
    %v3351 = vunpack.c.l.b16 %v1546
    %v3352 = vunpack.c.h.b16 %v1546
    %v3353 = vunpack.c.l.b16 %v1547
    %v3354 = vunpack.c.h.b16 %v1547
    %v3355 = vunpack.c.l.b16 %v1548
    %v3356 = vunpack.c.h.b16 %v1548
    %v3357 = vunpack.c.l.b16 %v1549
    %v3358 = vunpack.c.h.b16 %v1549
    %v3359 = vunpack.c.l.b16 %v1550
    %v3360 = vunpack.c.h.b16 %v1550
    %v3361 = vunpack.c.l.b16 %v1551
    %v3362 = vunpack.c.h.b16 %v1551
    %v3363 = vunpack.c.l.b16 %v1552
    %v3364 = vunpack.c.h.b16 %v1552
    %v3365 = vunpack.c.l.b16 %v1553
    %v3366 = vunpack.c.h.b16 %v1553
    %v3367 = vunpack.c.l.b16 %v1554
    %v3368 = vunpack.c.h.b16 %v1554
    %v3369 = vunpack.c.l.b16 %v1555
    %v3370 = vunpack.c.h.b16 %v1555
    %v3371 = vunpack.c.l.b16 %v1556
    %v3372 = vunpack.c.h.b16 %v1556
    %v3373 = vunpack.c.l.b16 %v1557
    %v3374 = vunpack.c.h.b16 %v1557
    %v3375 = vunpack.c.l.b16 %v1558
    %v3376 = vunpack.c.h.b16 %v1558
    %v3377 = vunpack.c.l.b16 %v1559
    %v3378 = vunpack.c.h.b16 %v1559
    %v3379 = vunpack.c.l.b16 %v1560
    %v3380 = vunpack.c.h.b16 %v1560
    %v3381 = vunpack.c.l.b16 %v1561
    %v3382 = vunpack.c.h.b16 %v1561
    %v3383 = vunpack.c.l.b16 %v1562
    %v3384 = vunpack.c.h.b16 %v1562
    %v3385 = vunpack.c.l.b16 %v1563
    %v3386 = vunpack.c.h.b16 %v1563
    %v3387 = vunpack.c.l.b16 %v1564
    %v3388 = vunpack.c.h.b16 %v1564
    %v3389 = vunpack.c.l.b16 %v1565
    %v3390 = vunpack.c.h.b16 %v1565
    %v3391 = vunpack.c.l.b16 %v1566
    %v3392 = vunpack.c.h.b16 %v1566
    %v3393 = vunpack.c.l.b16 %v1567
    %v3394 = vunpack.c.h.b16 %v1567
    %v3395 = vunpack.c.l.b16 %v1568
    %v3396 = vunpack.c.h.b16 %v1568
    %v3397 = vunpack.c.l.b16 %v1569
    %v3398 = vunpack.c.h.b16 %v1569
    %v3399 = vunpack.c.l.b16 %v1570
    %v3400 = vunpack.c.h.b16 %v1570
    %v3401 = vunpack.c.l.b16 %v1571
    %v3402 = vunpack.c.h.b16 %v1571
    %v3403 = vunpack.c.l.b16 %v1572
    %v3404 = vunpack.c.h.b16 %v1572
    %v3405 = vunpack.c.l.b16 %v1573
    %v3406 = vunpack.c.h.b16 %v1573
    %v3407 = vunpack.c.l.b16 %v1574
    %v3408 = vunpack.c.h.b16 %v1574
    %v3409 = vunpack.c.l.b16 %v1575
    %v3410 = vunpack.c.h.b16 %v1575
    %v3411 = vunpack.c.l.b16 %v1576
    %v3412 = vunpack.c.h.b16 %v1576
    %v3413 = vunpack.c.l.b16 %v1577
    %v3414 = vunpack.c.h.b16 %v1577
    %v3415 = vunpack.c.l.b16 %v1578
    %v3416 = vunpack.c.h.b16 %v1578
    %v3417 = vunpack.c.l.b16 %v1579
    %v3418 = vunpack.c.h.b16 %v1579
    %v3419 = vunpack.c.l.b16 %v1580
    %v3420 = vunpack.c.h.b16 %v1580
    %v3421 = vunpack.c.l.b16 %v1581
    %v3422 = vunpack.c.h.b16 %v1581
    %v3423 = vunpack.c.l.b16 %v1582
    %v3424 = vunpack.c.h.b16 %v1582
    %v3425 = vunpack.c.l.b16 %v1583
    %v3426 = vunpack.c.h.b16 %v1583
    %v3427 = vunpack.c.l.b16 %v1584
    %v3428 = vunpack.c.h.b16 %v1584
    %v3429 = vunpack.c.l.b16 %v1585
    %v3430 = vunpack.c.h.b16 %v1585
    %v3431 = vunpack.c.l.b16 %v1586
    %v3432 = vunpack.c.h.b16 %v1586
    %v3433 = vunpack.c.l.b16 %v1587
    %v3434 = vunpack.c.h.b16 %v1587
    %v3435 = vunpack.c.l.b16 %v1588
    %v3436 = vunpack.c.h.b16 %v1588
    %v3437 = vunpack.c.l.b16 %v1589
    %v3438 = vunpack.c.h.b16 %v1589
    %v3439 = vunpack.c.l.b16 %v1590
    %v3440 = vunpack.c.h.b16 %v1590
    %v3441 = vunpack.c.l.b16 %v1591
    %v3442 = vunpack.c.h.b16 %v1591
    %v3443 = vunpack.c.l.b16 %v1592
    %v3444 = vunpack.c.h.b16 %v1592
    %v3445 = vunpack.c.l.b16 %v1593
    %v3446 = vunpack.c.h.b16 %v1593
    %v3447 = vunpack.c.l.b16 %v1594
    %v3448 = vunpack.c.h.b16 %v1594
    %v3449 = vunpack.c.l.b16 %v1595
    %v3450 = vunpack.c.h.b16 %v1595
    %v3451 = vunpack.c.l.b16 %v1596
    %v3452 = vunpack.c.h.b16 %v1596
    %v3453 = vunpack.c.l.b16 %v1597
    %v3454 = vunpack.c.h.b16 %v1597
    %v3455 = vunpack.c.l.b16 %v1598
    %v3456 = vunpack.c.h.b16 %v1598
    %v3457 = vunpack.c.l.b16 %v1599
    %v3458 = vunpack.c.h.b16 %v1599
    %v3459 = vunpack.c.l.b16 %v1600
    %v3460 = vunpack.c.h.b16 %v1600
    %v3461 = vunpack.c.l.b16 %v1601
    %v3462 = vunpack.c.h.b16 %v1601
    %v3463 = vunpack.c.l.b16 %v1602
    %v3464 = vunpack.c.h.b16 %v1602
    %v3465 = vunpack.c.l.b16 %v1603
    %v3466 = vunpack.c.h.b16 %v1603
    %v3467 = vunpack.c.l.b16 %v1604
    %v3468 = vunpack.c.h.b16 %v1604
    %v3469 = vunpack.c.l.b16 %v1605
    %v3470 = vunpack.c.h.b16 %v1605
    %v3471 = vunpack.c.l.b16 %v1606
    %v3472 = vunpack.c.h.b16 %v1606
    %v3473 = vunpack.c.l.b16 %v1607
    %v3474 = vunpack.c.h.b16 %v1607
    %v3475 = vunpack.c.l.b16 %v1608
    %v3476 = vunpack.c.h.b16 %v1608
    %v3477 = vunpack.c.l.b16 %v1609
    %v3478 = vunpack.c.h.b16 %v1609
    %v3479 = vunpack.c.l.b16 %v1610
    %v3480 = vunpack.c.h.b16 %v1610
    %v3481 = vunpack.c.l.b16 %v1611
    %v3482 = vunpack.c.h.b16 %v1611
    %v3483 = vunpack.c.l.b16 %v1612
    %v3484 = vunpack.c.h.b16 %v1612
    %v3485 = vunpack.c.l.b16 %v1613
    %v3486 = vunpack.c.h.b16 %v1613
    %v3487 = vunpack.c.l.b16 %v1614
    %v3488 = vunpack.c.h.b16 %v1614
    %v3489 = vunpack.c.l.b16 %v1615
    %v3490 = vunpack.c.h.b16 %v1615
    %v3491 = vunpack.c.l.b16 %v1616
    %v3492 = vunpack.c.h.b16 %v1616
    %v3493 = vunpack.c.l.b16 %v1617
    %v3494 = vunpack.c.h.b16 %v1617
    %v3495 = vunpack.c.l.b16 %v1618
    %v3496 = vunpack.c.h.b16 %v1618
    %v3497 = vunpack.c.l.b16 %v1619
    %v3498 = vunpack.c.h.b16 %v1619
    %v3499 = vunpack.c.l.b16 %v1620
    %v3500 = vunpack.c.h.b16 %v1620
    %v3501 = vunpack.c.l.b16 %v1621
    %v3502 = vunpack.c.h.b16 %v1621
    %v3503 = vunpack.c.l.b16 %v1622
    %v3504 = vunpack.c.h.b16 %v1622
    %v3505 = vunpack.c.l.b16 %v1623
    %v3506 = vunpack.c.h.b16 %v1623
    %v3507 = vunpack.c.l.b16 %v1624
    %v3508 = vunpack.c.h.b16 %v1624
    %v3509 = vunpack.c.l.b16 %v1625
    %v3510 = vunpack.c.h.b16 %v1625
    %v3511 = vunpack.c.l.b16 %v1626
    %v3512 = vunpack.c.h.b16 %v1626
    %v3513 = vunpack.c.l.b16 %v1627
    %v3514 = vunpack.c.h.b16 %v1627
    %v3515 = vunpack.c.l.b16 %v1628
    %v3516 = vunpack.c.h.b16 %v1628
    %v3517 = vunpack.c.l.b16 %v1629
    %v3518 = vunpack.c.h.b16 %v1629
    %v3519 = vunpack.c.l.b16 %v1630
    %v3520 = vunpack.c.h.b16 %v1630
    %v3521 = vunpack.c.l.b16 %v1631
    %v3522 = vunpack.c.h.b16 %v1631
    %v3523 = vunpack.c.l.b16 %v1632
    %v3524 = vunpack.c.h.b16 %v1632
    %v3525 = vunpack.c.l.b16 %v1633
    %v3526 = vunpack.c.h.b16 %v1633
    %v3527 = vunpack.c.l.b16 %v1634
    %v3528 = vunpack.c.h.b16 %v1634
    %v3529 = vunpack.c.l.b16 %v1635
    %v3530 = vunpack.c.h.b16 %v1635
    %v3531 = vunpack.c.l.b16 %v1636
    %v3532 = vunpack.c.h.b16 %v1636
    %v3533 = vunpack.c.l.b16 %v1637
    %v3534 = vunpack.c.h.b16 %v1637
    %v3535 = vunpack.c.l.b16 %v1638
    %v3536 = vunpack.c.h.b16 %v1638
    %v3537 = vunpack.c.l.b16 %v1639
    %v3538 = vunpack.c.h.b16 %v1639
    %v3539 = vunpack.c.l.b16 %v1640
    %v3540 = vunpack.c.h.b16 %v1640
    %v3541 = vunpack.c.l.b16 %v1641
    %v3542 = vunpack.c.h.b16 %v1641
    %v3543 = vunpack.c.l.b16 %v1642
    %v3544 = vunpack.c.h.b16 %v1642
    %v3545 = vunpack.c.l.b16 %v1643
    %v3546 = vunpack.c.h.b16 %v1643
    %v3547 = vunpack.c.l.b16 %v1644
    %v3548 = vunpack.c.h.b16 %v1644
    %v3549 = vunpack.c.l.b16 %v1645
    %v3550 = vunpack.c.h.b16 %v1645
    %v3551 = vunpack.c.l.b16 %v1646
    %v3552 = vunpack.c.h.b16 %v1646
    %v3553 = vunpack.c.l.b16 %v1647
    %v3554 = vunpack.c.h.b16 %v1647
    %v3555 = vunpack.c.l.b16 %v1648
    %v3556 = vunpack.c.h.b16 %v1648
    %v3557 = vunpack.c.l.b16 %v1649
    %v3558 = vunpack.c.h.b16 %v1649
    %v3559 = vunpack.c.l.b16 %v1650
    %v3560 = vunpack.c.h.b16 %v1650
    %v3561 = vunpack.c.l.b16 %v1651
    %v3562 = vunpack.c.h.b16 %v1651
    %v3563 = vunpack.c.l.b16 %v1652
    %v3564 = vunpack.c.h.b16 %v1652
    %v3565 = vunpack.c.l.b16 %v1653
    %v3566 = vunpack.c.h.b16 %v1653
    %v3567 = vunpack.c.l.b16 %v1654
    %v3568 = vunpack.c.h.b16 %v1654
    %v3569 = vunpack.c.l.b16 %v1655
    %v3570 = vunpack.c.h.b16 %v1655
    %v3571 = vunpack.c.l.b16 %v1656
    %v3572 = vunpack.c.h.b16 %v1656
    %v3573 = vunpack.c.l.b16 %v1657
    %v3574 = vunpack.c.h.b16 %v1657
    %v3575 = vunpack.c.l.b16 %v1658
    %v3576 = vunpack.c.h.b16 %v1658
    %v3577 = vunpack.c.l.b16 %v1659
    %v3578 = vunpack.c.h.b16 %v1659
    %v3579 = vunpack.c.l.b16 %v1660
    %v3580 = vunpack.c.h.b16 %v1660
    %v3581 = vunpack.c.l.b16 %v1661
    %v3582 = vunpack.c.h.b16 %v1661
    %v3583 = vunpack.c.l.b16 %v1662
    %v3584 = vunpack.c.h.b16 %v1662
    %v3585 = vunpack.c.l.b16 %v1663
    %v3586 = vunpack.c.h.b16 %v1663
    %v3587 = vunpack.c.l.b16 %v1664
    %v3588 = vunpack.c.h.b16 %v1664
    %v3589 = vunpack.c.l.b16 %v1665
    %v3590 = vunpack.c.h.b16 %v1665
    %v3591 = vunpack.c.l.b16 %v1666
    %v3592 = vunpack.c.h.b16 %v1666
    %v3593 = vunpack.c.l.b16 %v1667
    %v3594 = vunpack.c.h.b16 %v1667
    %v3595 = vunpack.c.l.b16 %v1668
    %v3596 = vunpack.c.h.b16 %v1668
    %v3597 = vunpack.c.l.b16 %v1669
    %v3598 = vunpack.c.h.b16 %v1669
    %v3599 = vunpack.c.l.b16 %v1670
    %v3600 = vunpack.c.h.b16 %v1670
    %v3601 = vunpack.c.l.b16 %v1671
    %v3602 = vunpack.c.h.b16 %v1671
    %v3603 = vunpack.c.l.b16 %v1672
    %v3604 = vunpack.c.h.b16 %v1672
    %v3605 = vunpack.c.l.b16 %v1673
    %v3606 = vunpack.c.h.b16 %v1673
    %v3607 = vunpack.c.l.b16 %v1674
    %v3608 = vunpack.c.h.b16 %v1674
    %v3609 = vunpack.c.l.b16 %v1675
    %v3610 = vunpack.c.h.b16 %v1675
    %v3611 = vunpack.c.l.b16 %v1676
    %v3612 = vunpack.c.h.b16 %v1676
    %v3613 = vunpack.c.l.b16 %v1677
    %v3614 = vunpack.c.h.b16 %v1677
    %v3615 = vunpack.c.l.b16 %v1678
    %v3616 = vunpack.c.h.b16 %v1678
    %v3617 = vunpack.c.l.b16 %v1679
    %v3618 = vunpack.c.h.b16 %v1679
    %v3619 = vunpack.c.l.b16 %v1680
    %v3620 = vunpack.c.h.b16 %v1680
    %v3621 = vunpack.c.l.b16 %v1681
    %v3622 = vunpack.c.h.b16 %v1681
    %v3623 = vunpack.c.l.b16 %v1682
    %v3624 = vunpack.c.h.b16 %v1682
    %v3625 = vunpack.c.l.b16 %v1683
    %v3626 = vunpack.c.h.b16 %v1683
    %v3627 = vunpack.c.l.b16 %v1684
    %v3628 = vunpack.c.h.b16 %v1684
    %v3629 = vunpack.c.l.b16 %v1685
    %v3630 = vunpack.c.h.b16 %v1685
    %v3631 = vunpack.c.l.b16 %v1686
    %v3632 = vunpack.c.h.b16 %v1686
    %v3633 = vunpack.c.l.b16 %v1687
    %v3634 = vunpack.c.h.b16 %v1687
    %v3635 = vunpack.c.l.b16 %v1688
    %v3636 = vunpack.c.h.b16 %v1688
    %v3637 = vunpack.c.l.b16 %v1689
    %v3638 = vunpack.c.h.b16 %v1689
    %v3639 = vunpack.c.l.b16 %v1690
    %v3640 = vunpack.c.h.b16 %v1690
    %v3641 = vunpack.c.l.b16 %v1691
    %v3642 = vunpack.c.h.b16 %v1691
    %v3643 = vunpack.c.l.b16 %v1692
    %v3644 = vunpack.c.h.b16 %v1692
    %v3645 = vunpack.c.l.b16 %v1693
    %v3646 = vunpack.c.h.b16 %v1693
    %v3647 = vunpack.c.l.b16 %v1694
    %v3648 = vunpack.c.h.b16 %v1694
    %v3649 = vunpack.c.l.b16 %v1695
    %v3650 = vunpack.c.h.b16 %v1695
    %v3651 = vunpack.c.l.b16 %v1696
    %v3652 = vunpack.c.h.b16 %v1696
    %v3653 = vunpack.c.l.b16 %v1697
    %v3654 = vunpack.c.h.b16 %v1697
    %v3655 = vunpack.c.l.b16 %v1698
    %v3656 = vunpack.c.h.b16 %v1698
    %v3657 = vunpack.c.l.b16 %v1699
    %v3658 = vunpack.c.h.b16 %v1699
    %v3659 = vunpack.c.l.b16 %v1700
    %v3660 = vunpack.c.h.b16 %v1700
    %v3661 = vunpack.c.l.b16 %v1701
    %v3662 = vunpack.c.h.b16 %v1701
    %v3663 = vunpack.c.l.b16 %v1702
    %v3664 = vunpack.c.h.b16 %v1702
    %v3665 = vunpack.c.l.b16 %v1703
    %v3666 = vunpack.c.h.b16 %v1703
    %v3667 = vunpack.c.l.b16 %v1704
    %v3668 = vunpack.c.h.b16 %v1704
    %v3669 = vunpack.c.l.b16 %v1705
    %v3670 = vunpack.c.h.b16 %v1705
    %v3671 = vunpack.c.l.b16 %v1706
    %v3672 = vunpack.c.h.b16 %v1706
    %v3673 = vunpack.c.l.b16 %v1707
    %v3674 = vunpack.c.h.b16 %v1707
    %v3675 = vunpack.c.l.b16 %v1708
    %v3676 = vunpack.c.h.b16 %v1708
    %v3677 = vunpack.c.l.b16 %v1709
    %v3678 = vunpack.c.h.b16 %v1709
    %v3679 = vunpack.c.l.b16 %v1710
    %v3680 = vunpack.c.h.b16 %v1710
    %v3681 = vunpack.c.l.b16 %v1711
    %v3682 = vunpack.c.h.b16 %v1711
    %v3683 = vunpack.c.l.b16 %v1712
    %v3684 = vunpack.c.h.b16 %v1712
    %v3685 = vunpack.c.l.b16 %v1713
    %v3686 = vunpack.c.h.b16 %v1713
    %v3687 = vunpack.c.l.b16 %v1714
    %v3688 = vunpack.c.h.b16 %v1714
    %v3689 = vunpack.c.l.b16 %v1715
    %v3690 = vunpack.c.h.b16 %v1715
    %v3691 = vunpack.c.l.b16 %v1716
    %v3692 = vunpack.c.h.b16 %v1716
    %v3693 = vunpack.c.l.b16 %v1717
    %v3694 = vunpack.c.h.b16 %v1717
    %v3695 = vunpack.c.l.b16 %v1718
    %v3696 = vunpack.c.h.b16 %v1718
    %v3697 = vunpack.c.l.b16 %v1719
    %v3698 = vunpack.c.h.b16 %v1719
    %v3699 = vunpack.c.l.b16 %v1720
    %v3700 = vunpack.c.h.b16 %v1720
    %v3701 = vunpack.c.l.b16 %v1721
    %v3702 = vunpack.c.h.b16 %v1721
    %v3703 = vunpack.c.l.b16 %v1722
    %v3704 = vunpack.c.h.b16 %v1722
    %v3705 = vunpack.c.l.b16 %v1723
    %v3706 = vunpack.c.h.b16 %v1723
    %v3707 = vunpack.c.l.b16 %v1724
    %v3708 = vunpack.c.h.b16 %v1724
    %v3709 = vunpack.c.l.b16 %v1725
    %v3710 = vunpack.c.h.b16 %v1725
    %v3711 = vunpack.c.l.b16 %v1726
    %v3712 = vunpack.c.h.b16 %v1726
    %v3713 = vunpack.c.l.b16 %v1727
    %v3714 = vunpack.c.h.b16 %v1727
    %v3715 = vunpack.c.l.b16 %v1728
    %v3716 = vunpack.c.h.b16 %v1728
    %v3717 = vunpack.c.l.b16 %v1729
    %v3718 = vunpack.c.h.b16 %v1729
    %v3719 = vunpack.c.l.b16 %v1730
    %v3720 = vunpack.c.h.b16 %v1730
    %v3721 = vunpack.c.l.b16 %v1731
    %v3722 = vunpack.c.h.b16 %v1731
    %v3723 = vunpack.c.l.b16 %v1732
    %v3724 = vunpack.c.h.b16 %v1732
    %v3725 = vunpack.c.l.b16 %v1733
    %v3726 = vunpack.c.h.b16 %v1733
    %v3727 = vunpack.c.l.b16 %v1734
    %v3728 = vunpack.c.h.b16 %v1734
    %v3729 = vunpack.c.l.b16 %v1735
    %v3730 = vunpack.c.h.b16 %v1735
    %v3731 = vunpack.c.l.b16 %v1736
    %v3732 = vunpack.c.h.b16 %v1736
    %v3733 = vunpack.c.l.b16 %v1737
    %v3734 = vunpack.c.h.b16 %v1737
    %v3735 = vunpack.c.l.b16 %v1738
    %v3736 = vunpack.c.h.b16 %v1738
    %v3737 = vunpack.c.l.b16 %v1739
    %v3738 = vunpack.c.h.b16 %v1739
    %v3739 = vunpack.c.l.b16 %v1740
    %v3740 = vunpack.c.h.b16 %v1740
    %v3741 = vunpack.c.l.b16 %v1741
    %v3742 = vunpack.c.h.b16 %v1741
    %v3743 = vunpack.c.l.b16 %v1742
    %v3744 = vunpack.c.h.b16 %v1742
    %v3745 = vunpack.c.l.b16 %v1743
    %v3746 = vunpack.c.h.b16 %v1743
    %v3747 = vunpack.c.l.b16 %v1744
    %v3748 = vunpack.c.h.b16 %v1744
    %v3749 = vunpack.c.l.b16 %v1745
    %v3750 = vunpack.c.h.b16 %v1745
    %v3751 = vunpack.c.l.b16 %v1746
    %v3752 = vunpack.c.h.b16 %v1746
    %v3753 = vunpack.c.l.b16 %v1747
    %v3754 = vunpack.c.h.b16 %v1747
    %v3755 = vunpack.c.l.b16 %v1748
    %v3756 = vunpack.c.h.b16 %v1748
    %v3757 = vunpack.c.l.b16 %v1749
    %v3758 = vunpack.c.h.b16 %v1749
    %v3759 = vunpack.c.l.b16 %v1750
    %v3760 = vunpack.c.h.b16 %v1750
    %v3761 = vunpack.c.l.b16 %v1751
    %v3762 = vunpack.c.h.b16 %v1751
    %v3763 = vunpack.c.l.b16 %v1752
    %v3764 = vunpack.c.h.b16 %v1752
    %v3765 = vunpack.c.l.b16 %v1753
    %v3766 = vunpack.c.h.b16 %v1753
    %v3767 = vunpack.c.l.b16 %v1754
    %v3768 = vunpack.c.h.b16 %v1754
    %v3769 = vunpack.c.l.b16 %v1755
    %v3770 = vunpack.c.h.b16 %v1755
    %v3771 = vunpack.c.l.b16 %v1756
    %v3772 = vunpack.c.h.b16 %v1756
    %v3773 = vunpack.c.l.b16 %v1757
    %v3774 = vunpack.c.h.b16 %v1757
    %v3775 = vunpack.c.l.b16 %v1758
    %v3776 = vunpack.c.h.b16 %v1758
    %v3777 = vunpack.c.l.b16 %v1759
    %v3778 = vunpack.c.h.b16 %v1759
    %v3779 = vunpack.c.l.b16 %v1760
    %v3780 = vunpack.c.h.b16 %v1760
    %v3781 = vunpack.c.l.b16 %v1761
    %v3782 = vunpack.c.h.b16 %v1761
    %v3783 = vunpack.c.l.b16 %v1762
    %v3784 = vunpack.c.h.b16 %v1762
    %v3785 = vunpack.c.l.b16 %v1763
    %v3786 = vunpack.c.h.b16 %v1763
    %v3787 = vunpack.c.l.b16 %v1764
    %v3788 = vunpack.c.h.b16 %v1764
    %v3789 = vunpack.c.l.b16 %v1765
    %v3790 = vunpack.c.h.b16 %v1765
    %v3791 = vunpack.c.l.b16 %v1766
    %v3792 = vunpack.c.h.b16 %v1766
    %v3793 = vunpack.c.l.b16 %v1767
    %v3794 = vunpack.c.h.b16 %v1767
    %v3795 = vunpack.c.l.b16 %v1768
    %v3796 = vunpack.c.h.b16 %v1768
    %v3797 = vunpack.c.l.b16 %v1769
    %v3798 = vunpack.c.h.b16 %v1769
    %v3799 = vunpack.c.l.b16 %v1770
    %v3800 = vunpack.c.h.b16 %v1770
    %v3801 = vunpack.c.l.b16 %v1771
    %v3802 = vunpack.c.h.b16 %v1771
    %v3803 = vunpack.c.l.b16 %v1772
    %v3804 = vunpack.c.h.b16 %v1772
    %v3805 = vunpack.c.l.b16 %v1773
    %v3806 = vunpack.c.h.b16 %v1773
    %v3807 = vunpack.c.l.b16 %v1774
    %v3808 = vunpack.c.h.b16 %v1774
    %v3809 = vunpack.c.l.b16 %v1775
    %v3810 = vunpack.c.h.b16 %v1775
    %v3811 = vunpack.c.l.b16 %v1776
    %v3812 = vunpack.c.h.b16 %v1776
    %v3813 = vunpack.c.l.b16 %v1777
    %v3814 = vunpack.c.h.b16 %v1777
    %v3815 = vunpack.c.l.b16 %v1778
    %v3816 = vunpack.c.h.b16 %v1778
    %v3817 = vunpack.c.l.b16 %v1779
    %v3818 = vunpack.c.h.b16 %v1779
    %v3819 = vunpack.c.l.b16 %v1780
    %v3820 = vunpack.c.h.b16 %v1780
    %v3821 = vunpack.c.l.b16 %v1781
    %v3822 = vunpack.c.h.b16 %v1781
    %v3823 = vunpack.c.l.b16 %v1782
    %v3824 = vunpack.c.h.b16 %v1782
    %v3825 = vunpack.c.l.b16 %v1783
    %v3826 = vunpack.c.h.b16 %v1783
    %v3827 = vunpack.c.l.b16 %v1784
    %v3828 = vunpack.c.h.b16 %v1784
    %v3829 = vunpack.c.l.b16 %v1785
    %v3830 = vunpack.c.h.b16 %v1785
    %v3831 = vunpack.c.l.b16 %v1786
    %v3832 = vunpack.c.h.b16 %v1786
    %v3833 = vunpack.c.l.b16 %v1787
    %v3834 = vunpack.c.h.b16 %v1787
    %v3835 = vunpack.c.l.b16 %v1788
    %v3836 = vunpack.c.h.b16 %v1788
    %v3837 = vunpack.c.l.b16 %v1789
    %v3838 = vunpack.c.h.b16 %v1789
    %v3839 = vunpack.c.l.b16 %v1790
    %v3840 = vunpack.c.h.b16 %v1790
    %v3841 = vunpack.c.l.b16 %v1791
    %v3842 = vunpack.c.h.b16 %v1791
    %v3843 = vunpack.c.l.b16 %v1792
    %v3844 = vunpack.c.h.b16 %v1792
    %v3845 = vunpack.c.l.b16 %v1793
    %v3846 = vunpack.c.h.b16 %v1793
    %v3847 = vunpack.c.l.b16 %v1794
    %v3848 = vunpack.c.h.b16 %v1794
    %v3849 = vunpack.c.l.b16 %v1795
    %v3850 = vunpack.c.h.b16 %v1795
    %v3851 = vunpack.c.l.b16 %v1796
    %v3852 = vunpack.c.h.b16 %v1796
    %v3853 = vunpack.c.l.b16 %v1797
    %v3854 = vunpack.c.h.b16 %v1797
    %v3855 = vunpack.c.l.b16 %v1798
    %v3856 = vunpack.c.h.b16 %v1798
    %v3857 = vunpack.c.l.b16 %v1799
    %v3858 = vunpack.c.h.b16 %v1799
    %v3859 = vunpack.c.l.b16 %v1800
    %v3860 = vunpack.c.h.b16 %v1800
    %v3861 = vunpack.c.l.b16 %v1801
    %v3862 = vunpack.c.h.b16 %v1801
    %v3863 = vunpack.c.l.b16 %v1802
    %v3864 = vunpack.c.h.b16 %v1802
    %v3865 = vunpack.c.l.b16 %v1803
    %v3866 = vunpack.c.h.b16 %v1803
    %v3867 = vunpack.c.l.b16 %v1804
    %v3868 = vunpack.c.h.b16 %v1804
    %v3869 = vunpack.c.l.b16 %v1805
    %v3870 = vunpack.c.h.b16 %v1805
    %v3871 = vunpack.c.l.b16 %v1806
    %v3872 = vunpack.c.h.b16 %v1806
    %v3873 = vunpack.c.l.b16 %v1807
    %v3874 = vunpack.c.h.b16 %v1807
    %v3875 = vunpack.c.l.b16 %v1808
    %v3876 = vunpack.c.h.b16 %v1808
    %v3877 = vunpack.c.l.b16 %v1809
    %v3878 = vunpack.c.h.b16 %v1809
    %v3879 = vunpack.c.l.b16 %v1810
    %v3880 = vunpack.c.h.b16 %v1810
    %v3881 = vunpack.c.l.b16 %v1811
    %v3882 = vunpack.c.h.b16 %v1811
    %v3883 = vunpack.c.l.b16 %v1812
    %v3884 = vunpack.c.h.b16 %v1812
    %v3885 = vunpack.c.l.b16 %v1813
    %v3886 = vunpack.c.h.b16 %v1813
    %v3887 = vunpack.c.l.b16 %v1814
    %v3888 = vunpack.c.h.b16 %v1814
    %v3889 = vunpack.c.l.b16 %v1815
    %v3890 = vunpack.c.h.b16 %v1815
    %v3891 = vunpack.c.l.b16 %v1816
    %v3892 = vunpack.c.h.b16 %v1816
    %v3893 = vunpack.c.l.b16 %v1817
    %v3894 = vunpack.c.h.b16 %v1817
    %v3895 = vunpack.c.l.b16 %v1818
    %v3896 = vunpack.c.h.b16 %v1818
    %v3897 = vunpack.c.l.b16 %v1819
    %v3898 = vunpack.c.h.b16 %v1819
    %v3899 = vunpack.c.l.b16 %v1820
    %v3900 = vunpack.c.h.b16 %v1820
    %v3901 = vunpack.c.l.b16 %v1821
    %v3902 = vunpack.c.h.b16 %v1821
    %v3903 = vunpack.c.l.b16 %v1822
    %v3904 = vunpack.c.h.b16 %v1822
    %v3905 = vunpack.c.l.b16 %v1823
    %v3906 = vunpack.c.h.b16 %v1823
    %v3907 = vunpack.c.l.b16 %v1824
    %v3908 = vunpack.c.h.b16 %v1824
    %v3909 = vunpack.c.l.b16 %v1825
    %v3910 = vunpack.c.h.b16 %v1825
    %v3911 = vunpack.c.l.b16 %v1826
    %v3912 = vunpack.c.h.b16 %v1826
    %v3913 = vunpack.c.l.b16 %v1827
    %v3914 = vunpack.c.h.b16 %v1827
    %v3915 = vunpack.c.l.b16 %v1828
    %v3916 = vunpack.c.h.b16 %v1828
    %v3917 = vunpack.c.l.b16 %v1829
    %v3918 = vunpack.c.h.b16 %v1829
    %v3919 = vunpack.c.l.b16 %v1830
    %v3920 = vunpack.c.h.b16 %v1830
    %v3921 = vunpack.c.l.b16 %v1831
    %v3922 = vunpack.c.h.b16 %v1831
    %v3923 = vunpack.c.l.b16 %v1832
    %v3924 = vunpack.c.h.b16 %v1832
    %v3925 = vunpack.c.l.b16 %v1833
    %v3926 = vunpack.c.h.b16 %v1833
    %v3927 = vunpack.c.l.b16 %v1834
    %v3928 = vunpack.c.h.b16 %v1834
    %v3929 = vunpack.c.l.b16 %v1835
    %v3930 = vunpack.c.h.b16 %v1835
    %v3931 = vunpack.c.l.b16 %v1836
    %v3932 = vunpack.c.h.b16 %v1836
    %v3933 = vunpack.c.l.b16 %v1837
    %v3934 = vunpack.c.h.b16 %v1837
    %v3935 = vunpack.c.l.b16 %v1838
    %v3936 = vunpack.c.h.b16 %v1838
    %v3937 = vunpack.c.l.b16 %v1839
    %v3938 = vunpack.c.h.b16 %v1839
    %v3939 = vunpack.c.l.b16 %v1840
    %v3940 = vunpack.c.h.b16 %v1840
    %v3941 = vunpack.c.l.b16 %v1841
    %v3942 = vunpack.c.h.b16 %v1841
    %v3943 = vunpack.c.l.b16 %v1842
    %v3944 = vunpack.c.h.b16 %v1842
    %v3945 = vunpack.c.l.b16 %v1843
    %v3946 = vunpack.c.h.b16 %v1843
    %v3947 = vunpack.c.l.b16 %v1844
    %v3948 = vunpack.c.h.b16 %v1844
    %v3949 = vunpack.c.l.b16 %v1845
    %v3950 = vunpack.c.h.b16 %v1845
    %v3951 = vunpack.c.l.b16 %v1846
    %v3952 = vunpack.c.h.b16 %v1846
    %v3953 = vunpack.c.l.b16 %v1847
    %v3954 = vunpack.c.h.b16 %v1847
    %v3955 = vunpack.c.l.b16 %v1848
    %v3956 = vunpack.c.h.b16 %v1848
    %v3957 = vunpack.c.l.b16 %v1849
    %v3958 = vunpack.c.h.b16 %v1849
    %v3959 = vunpack.c.l.b16 %v1850
    %v3960 = vunpack.c.h.b16 %v1850
    %v3961 = vunpack.c.l.b16 %v1851
    %v3962 = vunpack.c.h.b16 %v1851
    %v3963 = vunpack.c.l.b16 %v1852
    %v3964 = vunpack.c.h.b16 %v1852
    %v3965 = vunpack.c.l.b16 %v1853
    %v3966 = vunpack.c.h.b16 %v1853
    %v3967 = vunpack.c.l.b16 %v1854
    %v3968 = vunpack.c.h.b16 %v1854
    %v3969 = vunpack.c.l.b16 %v1855
    %v3970 = vunpack.c.h.b16 %v1855
    %v3971 = vunpack.c.l.b16 %v1856
    %v3972 = vunpack.c.h.b16 %v1856
    %v3973 = vunpack.c.l.b16 %v1857
    %v3974 = vunpack.c.h.b16 %v1857
    %v3975 = vunpack.c.l.b16 %v1858
    %v3976 = vunpack.c.h.b16 %v1858
    %v3977 = vunpack.c.l.b16 %v1859
    %v3978 = vunpack.c.h.b16 %v1859
    %v3979 = vunpack.c.l.b16 %v1860
    %v3980 = vunpack.c.h.b16 %v1860
    %v3981 = vunpack.c.l.b16 %v1861
    %v3982 = vunpack.c.h.b16 %v1861
    %v3983 = vunpack.c.l.b16 %v1862
    %v3984 = vunpack.c.h.b16 %v1862
    %v3985 = vunpack.c.l.b16 %v1863
    %v3986 = vunpack.c.h.b16 %v1863
    %v3987 = vunpack.c.l.b16 %v1864
    %v3988 = vunpack.c.h.b16 %v1864
    %v3989 = vunpack.c.l.b16 %v1865
    %v3990 = vunpack.c.h.b16 %v1865
    %v3991 = vunpack.c.l.b16 %v1866
    %v3992 = vunpack.c.h.b16 %v1866
    %v3993 = vunpack.c.l.b16 %v1867
    %v3994 = vunpack.c.h.b16 %v1867
    %v3995 = vunpack.c.l.b16 %v1868
    %v3996 = vunpack.c.h.b16 %v1868
    %v3997 = vunpack.c.l.b16 %v1869
    %v3998 = vunpack.c.h.b16 %v1869
    %v3999 = vunpack.c.l.b16 %v1870
    %v4000 = vunpack.c.h.b16 %v1870
    %v4001 = vunpack.c.l.b16 %v1871
    %v4002 = vunpack.c.h.b16 %v1871
    %v4003 = vunpack.c.l.b16 %v1872
    %v4004 = vunpack.c.h.b16 %v1872
    %v4005 = vunpack.c.l.b16 %v1873
    %v4006 = vunpack.c.h.b16 %v1873
    %v4007 = vunpack.c.l.b16 %v1874
    %v4008 = vunpack.c.h.b16 %v1874
    %v4009 = vunpack.c.l.b16 %v1875
    %v4010 = vunpack.c.h.b16 %v1875
    %v4011 = vunpack.c.l.b16 %v1876
    %v4012 = vunpack.c.h.b16 %v1876
    %v4013 = vunpack.c.l.b16 %v1877
    %v4014 = vunpack.c.h.b16 %v1877
    %v4015 = vunpack.c.l.b16 %v1878
    %v4016 = vunpack.c.h.b16 %v1878
    %v4017 = vunpack.c.l.b16 %v1879
    %v4018 = vunpack.c.h.b16 %v1879
    %v4019 = vunpack.c.l.b16 %v1880
    %v4020 = vunpack.c.h.b16 %v1880
    %v4021 = vunpack.c.l.b16 %v1881
    %v4022 = vunpack.c.h.b16 %v1881
    %v4023 = vunpack.c.l.b16 %v1882
    %v4024 = vunpack.c.h.b16 %v1882
    %v4025 = vunpack.c.l.b16 %v1883
    %v4026 = vunpack.c.h.b16 %v1883
    %v4027 = vunpack.c.l.b16 %v1884
    %v4028 = vunpack.c.h.b16 %v1884
    %v4029 = vunpack.c.l.b16 %v1885
    %v4030 = vunpack.c.h.b16 %v1885
    %v4031 = vunpack.c.l.b16 %v1886
    %v4032 = vunpack.c.h.b16 %v1886
    %v4033 = vunpack.c.l.b16 %v1887
    %v4034 = vunpack.c.h.b16 %v1887
    %v4035 = vunpack.c.l.b16 %v1888
    %v4036 = vunpack.c.h.b16 %v1888
    %v4037 = vunpack.c.l.b16 %v1889
    %v4038 = vunpack.c.h.b16 %v1889
    %v4039 = vunpack.c.l.b16 %v1890
    %v4040 = vunpack.c.h.b16 %v1890
    %v4041 = vunpack.c.l.b16 %v1891
    %v4042 = vunpack.c.h.b16 %v1891
    %v4043 = vunpack.c.l.b16 %v1892
    %v4044 = vunpack.c.h.b16 %v1892
    %v4045 = vunpack.c.l.b16 %v1893
    %v4046 = vunpack.c.h.b16 %v1893
    %v4047 = vunpack.c.l.b16 %v1894
    %v4048 = vunpack.c.h.b16 %v1894
    %v4049 = vunpack.c.l.b16 %v1895
    %v4050 = vunpack.c.h.b16 %v1895
    %v4051 = vunpack.c.l.b16 %v1896
    %v4052 = vunpack.c.h.b16 %v1896
    %v4053 = vunpack.c.l.b16 %v1897
    %v4054 = vunpack.c.h.b16 %v1897
    %v4055 = vunpack.c.l.b16 %v1898
    %v4056 = vunpack.c.h.b16 %v1898
    %v4057 = vunpack.c.l.b16 %v1899
    %v4058 = vunpack.c.h.b16 %v1899
    %v4059 = vunpack.c.l.b16 %v1900
    %v4060 = vunpack.c.h.b16 %v1900
    %v4061 = vunpack.c.l.b16 %v1901
    %v4062 = vunpack.c.h.b16 %v1901
    %v4063 = vunpack.c.l.b16 %v1902
    %v4064 = vunpack.c.h.b16 %v1902
    %v4065 = vunpack.c.l.b16 %v1903
    %v4066 = vunpack.c.h.b16 %v1903
    %v4067 = vunpack.c.l.b16 %v1904
    %v4068 = vunpack.c.h.b16 %v1904
    %v4069 = vunpack.c.l.b16 %v1905
    %v4070 = vunpack.c.h.b16 %v1905
    %v4071 = vunpack.c.l.b16 %v1906
    %v4072 = vunpack.c.h.b16 %v1906
    %v4073 = vunpack.c.l.b16 %v1907
    %v4074 = vunpack.c.h.b16 %v1907
    %v4075 = vunpack.c.l.b16 %v1908
    %v4076 = vunpack.c.h.b16 %v1908
    %v4077 = vunpack.c.l.b16 %v1909
    %v4078 = vunpack.c.h.b16 %v1909
    %v4079 = vunpack.c.l.b16 %v1910
    %v4080 = vunpack.c.h.b16 %v1910
    %v4081 = vunpack.c.l.b16 %v1911
    %v4082 = vunpack.c.h.b16 %v1911
    %v4083 = vunpack.c.l.b16 %v1912
    %v4084 = vunpack.c.h.b16 %v1912
    %v4085 = vunpack.c.l.b16 %v1913
    %v4086 = vunpack.c.h.b16 %v1913
    %v4087 = vunpack.c.l.b16 %v1914
    %v4088 = vunpack.c.h.b16 %v1914
    %v4089 = vunpack.c.l.b16 %v1915
    %v4090 = vunpack.c.h.b16 %v1915
    %v4091 = vunpack.c.l.b16 %v1916
    %v4092 = vunpack.c.h.b16 %v1916
    %v4093 = vunpack.c.l.b16 %v1917
    %v4094 = vunpack.c.h.b16 %v1917
    %v4095 = vunpack.c.l.b16 %v1918
    %v4096 = vunpack.c.h.b16 %v1918
    %v4097 = vunpack.c.l.b16 %v1919
    %v4098 = vunpack.c.h.b16 %v1919
    %v4099 = vunpack.c.l.b16 %v1920
    %v4100 = vunpack.c.h.b16 %v1920
    %v4101 = vunpack.c.l.b16 %v1921
    %v4102 = vunpack.c.h.b16 %v1921
    %v4103 = vunpack.c.l.b16 %v1922
    %v4104 = vunpack.c.h.b16 %v1922
    %v4105 = vunpack.c.l.b16 %v1923
    %v4106 = vunpack.c.h.b16 %v1923
    %v4107 = vunpack.c.l.b16 %v1924
    %v4108 = vunpack.c.h.b16 %v1924
    %v4109 = vunpack.c.l.b16 %v1925
    %v4110 = vunpack.c.h.b16 %v1925
    %v4111 = vunpack.c.l.b16 %v1926
    %v4112 = vunpack.c.h.b16 %v1926
    %v4113 = vunpack.c.l.b16 %v1927
    %v4114 = vunpack.c.h.b16 %v1927
    %v4115 = vunpack.c.l.b16 %v1928
    %v4116 = vunpack.c.h.b16 %v1928
    %v4117 = vunpack.c.l.b16 %v1929
    %v4118 = vunpack.c.h.b16 %v1929
    %v4119 = vunpack.c.l.b16 %v1930
    %v4120 = vunpack.c.h.b16 %v1930
    %v4121 = vunpack.c.l.b16 %v1931
    %v4122 = vunpack.c.h.b16 %v1931
    %v4123 = vunpack.c.l.b16 %v1932
    %v4124 = vunpack.c.h.b16 %v1932
    %v4125 = vunpack.c.l.b16 %v1933
    %v4126 = vunpack.c.h.b16 %v1933
    %v4127 = vunpack.c.l.b16 %v1934
    %v4128 = vunpack.c.h.b16 %v1934
    %v4129 = vunpack.c.l.b16 %v1935
    %v4130 = vunpack.c.h.b16 %v1935
    %v4131 = vunpack.c.l.b16 %v1936
    %v4132 = vunpack.c.h.b16 %v1936
    %v4133 = vunpack.c.l.b16 %v1937
    %v4134 = vunpack.c.h.b16 %v1937
    %v4135 = vunpack.c.l.b16 %v1938
    %v4136 = vunpack.c.h.b16 %v1938
    %v4137 = vunpack.c.l.b16 %v1939
    %v4138 = vunpack.c.h.b16 %v1939
    %v4139 = vunpack.c.l.b16 %v1940
    %v4140 = vunpack.c.h.b16 %v1940
    %v4141 = vunpack.c.l.b16 %v1941
    %v4142 = vunpack.c.h.b16 %v1941
    %v4143 = vunpack.c.l.b16 %v1942
    %v4144 = vunpack.c.h.b16 %v1942
    %v4145 = vunpack.c.l.b16 %v1943
    %v4146 = vunpack.c.h.b16 %v1943
    %v4147 = vunpack.c.l.b16 %v1944
    %v4148 = vunpack.c.h.b16 %v1944
    %v4149 = vunpack.c.l.b16 %v1945
    %v4150 = vunpack.c.h.b16 %v1945
    %v4151 = vunpack.c.l.b16 %v1946
    %v4152 = vunpack.c.h.b16 %v1946
    %v4153 = vunpack.c.l.b16 %v1947
    %v4154 = vunpack.c.h.b16 %v1947
    %v4155 = vunpack.c.l.b16 %v1948
    %v4156 = vunpack.c.h.b16 %v1948
    %v4157 = vunpack.c.l.b16 %v1949
    %v4158 = vunpack.c.h.b16 %v1949
    %v4159 = vunpack.c.l.b16 %v1950
    %v4160 = vunpack.c.h.b16 %v1950
    %v4161 = vunpack.c.l.b16 %v1951
    %v4162 = vunpack.c.h.b16 %v1951
    %v4163 = vunpack.c.l.b16 %v1952
    %v4164 = vunpack.c.h.b16 %v1952
    %v4165 = vunpack.c.l.b16 %v1953
    %v4166 = vunpack.c.h.b16 %v1953
    %v4167 = vunpack.c.l.b16 %v1954
    %v4168 = vunpack.c.h.b16 %v1954
    %v4169 = vunpack.c.l.b16 %v1955
    %v4170 = vunpack.c.h.b16 %v1955
    %v4171 = vunpack.c.l.b16 %v1956
    %v4172 = vunpack.c.h.b16 %v1956
    %v4173 = vunpack.c.l.b16 %v1957
    %v4174 = vunpack.c.h.b16 %v1957
    %v4175 = vunpack.c.l.b16 %v1958
    %v4176 = vunpack.c.h.b16 %v1958
    %v4177 = vunpack.c.l.b16 %v1959
    %v4178 = vunpack.c.h.b16 %v1959
    %v4179 = vunpack.c.l.b16 %v1960
    %v4180 = vunpack.c.h.b16 %v1960
    %v4181 = vunpack.c.l.b16 %v1961
    %v4182 = vunpack.c.h.b16 %v1961
    %v4183 = vunpack.c.l.b16 %v1962
    %v4184 = vunpack.c.h.b16 %v1962
    %v4185 = vunpack.c.l.b16 %v1963
    %v4186 = vunpack.c.h.b16 %v1963
    %v4187 = vunpack.c.l.b16 %v1964
    %v4188 = vunpack.c.h.b16 %v1964
    %v4189 = vunpack.c.l.b16 %v1965
    %v4190 = vunpack.c.h.b16 %v1965
    %v4191 = vunpack.c.l.b16 %v1966
    %v4192 = vunpack.c.h.b16 %v1966
    %v4193 = vunpack.c.l.b16 %v1967
    %v4194 = vunpack.c.h.b16 %v1967
    %v4195 = vunpack.c.l.b16 %v1968
    %v4196 = vunpack.c.h.b16 %v1968
    %v4197 = vunpack.c.l.b16 %v1969
    %v4198 = vunpack.c.h.b16 %v1969
    %v4199 = vunpack.c.l.b16 %v1970
    %v4200 = vunpack.c.h.b16 %v1970
    %v4201 = vunpack.c.l.b16 %v1971
    %v4202 = vunpack.c.h.b16 %v1971
    %v4203 = vunpack.c.l.b16 %v1972
    %v4204 = vunpack.c.h.b16 %v1972
    %v4205 = vunpack.c.l.b16 %v1973
    %v4206 = vunpack.c.h.b16 %v1973
    %v4207 = vunpack.c.l.b16 %v1974
    %v4208 = vunpack.c.h.b16 %v1974
    %v4209 = vunpack.c.l.b16 %v1975
    %v4210 = vunpack.c.h.b16 %v1975
    %v4211 = vunpack.c.l.b16 %v1976
    %v4212 = vunpack.c.h.b16 %v1976
    %v4213 = vunpack.c.l.b16 %v1977
    %v4214 = vunpack.c.h.b16 %v1977
    %v4215 = vunpack.c.l.b16 %v1978
    %v4216 = vunpack.c.h.b16 %v1978
    %v4217 = vunpack.c.l.b16 %v1979
    %v4218 = vunpack.c.h.b16 %v1979
    %v4219 = vunpack.c.l.b16 %v1980
    %v4220 = vunpack.c.h.b16 %v1980
    %v4221 = vunpack.c.l.b16 %v1981
    %v4222 = vunpack.c.h.b16 %v1981
    %v4223 = vunpack.c.l.b16 %v1982
    %v4224 = vunpack.c.h.b16 %v1982
    %v4225 = vunpack.c.l.b16 %v1983
    %v4226 = vunpack.c.h.b16 %v1983
    %v4227 = vunpack.c.l.b16 %v1984
    %v4228 = vunpack.c.h.b16 %v1984
    %v4229 = vunpack.c.l.b16 %v1985
    %v4230 = vunpack.c.h.b16 %v1985
    %v4231 = vunpack.c.l.b16 %v1986
    %v4232 = vunpack.c.h.b16 %v1986
    %v4233 = vunpack.c.l.b16 %v1987
    %v4234 = vunpack.c.h.b16 %v1987
    %v4235 = vunpack.c.l.b16 %v1988
    %v4236 = vunpack.c.h.b16 %v1988
    %v4237 = vunpack.c.l.b16 %v1989
    %v4238 = vunpack.c.h.b16 %v1989
    %v4239 = vunpack.c.l.b16 %v1990
    %v4240 = vunpack.c.h.b16 %v1990
    %v4241 = vunpack.c.l.b16 %v1991
    %v4242 = vunpack.c.h.b16 %v1991
    %v4243 = vunpack.c.l.b16 %v1992
    %v4244 = vunpack.c.h.b16 %v1992
    %v4245 = vunpack.c.l.b16 %v1993
    %v4246 = vunpack.c.h.b16 %v1993
    %v4247 = vunpack.c.l.b16 %v1994
    %v4248 = vunpack.c.h.b16 %v1994
    %v4249 = vunpack.c.l.b16 %v1995
    %v4250 = vunpack.c.h.b16 %v1995
    %v4251 = vunpack.c.l.b16 %v1996
    %v4252 = vunpack.c.h.b16 %v1996
    %v4253 = vunpack.c.l.b16 %v1997
    %v4254 = vunpack.c.h.b16 %v1997
    %v4255 = vunpack.c.l.b16 %v1998
    %v4256 = vunpack.c.h.b16 %v1998
    %v4257 = vunpack.c.l.b16 %v1999
    %v4258 = vunpack.c.h.b16 %v1999
    %v4259 = vunpack.c.l.b16 %v2000
    %v4260 = vunpack.c.h.b16 %v2000
    %v4261 = vunpack.c.l.b16 %v2001
    %v4262 = vunpack.c.h.b16 %v2001
    %v4263 = vunpack.c.l.b16 %v2002
    %v4264 = vunpack.c.h.b16 %v2002
    %v4265 = vunpack.c.l.b16 %v2003
    %v4266 = vunpack.c.h.b16 %v2003
    %v4267 = vunpack.c.l.b16 %v2004
    %v4268 = vunpack.c.h.b16 %v2004
    %v4269 = vunpack.c.l.b16 %v2005
    %v4270 = vunpack.c.h.b16 %v2005
    %v4271 = vunpack.c.l.b16 %v2006
    %v4272 = vunpack.c.h.b16 %v2006
    %v4273 = vunpack.c.l.b16 %v2007
    %v4274 = vunpack.c.h.b16 %v2007
    %v4275 = vunpack.c.l.b16 %v2008
    %v4276 = vunpack.c.h.b16 %v2008
    %v4277 = vunpack.c.l.b16 %v2009
    %v4278 = vunpack.c.h.b16 %v2009
    %v4279 = vunpack.c.l.b16 %v2010
    %v4280 = vunpack.c.h.b16 %v2010
    %v4281 = vunpack.c.l.b16 %v2011
    %v4282 = vunpack.c.h.b16 %v2011
    %v4283 = vunpack.c.l.b16 %v2012
    %v4284 = vunpack.c.h.b16 %v2012
    %v4285 = vunpack.c.l.b16 %v2013
    %v4286 = vunpack.c.h.b16 %v2013
    %v4287 = vunpack.c.l.b16 %v2014
    %v4288 = vunpack.c.h.b16 %v2014
    %v4289 = vunpack.c.l.b16 %v2015
    %v4290 = vunpack.c.h.b16 %v2015
    %v4291 = vunpack.c.l.b16 %v2016
    %v4292 = vunpack.c.h.b16 %v2016
    %v4293 = vunpack.c.l.b16 %v2017
    %v4294 = vunpack.c.h.b16 %v2017
    %v4295 = vunpack.c.l.b16 %v2018
    %v4296 = vunpack.c.h.b16 %v2018
    %v4297 = vunpack.c.l.b16 %v2019
    %v4298 = vunpack.c.h.b16 %v2019
    %v4299 = vunpack.c.l.b16 %v2020
    %v4300 = vunpack.c.h.b16 %v2020
    %v4301 = vunpack.c.l.b16 %v2021
    %v4302 = vunpack.c.h.b16 %v2021
    %v4303 = vunpack.c.l.b16 %v2022
    %v4304 = vunpack.c.h.b16 %v2022
    %v4305 = vunpack.c.l.b16 %v2023
    %v4306 = vunpack.c.h.b16 %v2023
    %v4307 = vunpack.c.l.b16 %v2024
    %v4308 = vunpack.c.h.b16 %v2024
    %v4309 = vunpack.c.l.b16 %v2025
    %v4310 = vunpack.c.h.b16 %v2025
    %v4311 = vunpack.c.l.b16 %v2026
    %v4312 = vunpack.c.h.b16 %v2026
    %v4313 = vunpack.c.l.b16 %v2027
    %v4314 = vunpack.c.h.b16 %v2027
    %v4315 = vunpack.c.l.b16 %v2028
    %v4316 = vunpack.c.h.b16 %v2028
    %v4317 = vunpack.c.l.b16 %v2029
    %v4318 = vunpack.c.h.b16 %v2029
    %v4319 = vunpack.c.l.b16 %v2030
    %v4320 = vunpack.c.h.b16 %v2030
    %v4321 = vunpack.c.l.b16 %v2031
    %v4322 = vunpack.c.h.b16 %v2031
    %v4323 = vunpack.c.l.b16 %v2032
    %v4324 = vunpack.c.h.b16 %v2032
    %v4325 = vunpack.c.l.b16 %v2033
    %v4326 = vunpack.c.h.b16 %v2033
    %v4327 = vunpack.c.l.b16 %v2034
    %v4328 = vunpack.c.h.b16 %v2034
    %v4329 = vunpack.c.l.b16 %v2035
    %v4330 = vunpack.c.h.b16 %v2035
    %v4331 = vunpack.c.l.b16 %v2036
    %v4332 = vunpack.c.h.b16 %v2036
    %v4333 = vunpack.c.l.b16 %v2037
    %v4334 = vunpack.c.h.b16 %v2037
    %v4335 = vunpack.c.l.b16 %v2038
    %v4336 = vunpack.c.h.b16 %v2038
    %v4337 = vunpack.c.l.b16 %v2039
    %v4338 = vunpack.c.h.b16 %v2039
    %v4339 = vunpack.c.l.b16 %v2040
    %v4340 = vunpack.c.h.b16 %v2040
    %v4341 = vunpack.c.l.b16 %v2041
    %v4342 = vunpack.c.h.b16 %v2041
    %v4343 = vunpack.c.l.b16 %v2042
    %v4344 = vunpack.c.h.b16 %v2042
    %v4345 = vunpack.c.l.b16 %v2043
    %v4346 = vunpack.c.h.b16 %v2043
    %v4347 = vunpack.c.l.b16 %v2044
    %v4348 = vunpack.c.h.b16 %v2044
    %v4349 = vunpack.c.l.b16 %v2045
    %v4350 = vunpack.c.h.b16 %v2045
    %v4351 = vunpack.c.l.b16 %v2046
    %v4352 = vunpack.c.h.b16 %v2046
    %v4353 = vunpack.c.l.b16 %v2047
    %v4354 = vunpack.c.h.b16 %v2047
    %v4355 = vunpack.c.l.b16 %v2048
    %v4356 = vunpack.c.h.b16 %v2048
    %v4357 = vunpack.c.l.b16 %v2049
    %v4358 = vunpack.c.h.b16 %v2049
    %v4359 = vunpack.c.l.b16 %v2050
    %v4360 = vunpack.c.h.b16 %v2050
    %v4361 = vunpack.c.l.b16 %v2051
    %v4362 = vunpack.c.h.b16 %v2051
    %v4363 = vunpack.c.l.b16 %v2052
    %v4364 = vunpack.c.h.b16 %v2052
    %v4365 = vunpack.c.l.b16 %v2053
    %v4366 = vunpack.c.h.b16 %v2053
    %v4367 = vunpack.c.l.b16 %v2054
    %v4368 = vunpack.c.h.b16 %v2054
    %v4369 = vunpack.c.l.b16 %v2055
    %v4370 = vunpack.c.h.b16 %v2055
    %v4371 = vunpack.c.l.b16 %v2056
    %v4372 = vunpack.c.h.b16 %v2056
    %v4373 = vunpack.c.l.b16 %v2057
    %v4374 = vunpack.c.h.b16 %v2057
    %v4375 = vunpack.c.l.b16 %v2058
    %v4376 = vunpack.c.h.b16 %v2058
    %v4377 = vunpack.c.l.b16 %v2059
    %v4378 = vunpack.c.h.b16 %v2059
    %v4379 = vunpack.c.l.b16 %v2060
    %v4380 = vunpack.c.h.b16 %v2060
    %v4381 = vunpack.c.l.b16 %v2061
    %v4382 = vunpack.c.h.b16 %v2061
    %v4383 = vunpack.c.l.b16 %v2062
    %v4384 = vunpack.c.h.b16 %v2062
    %v4385 = vunpack.c.l.b16 %v2063
    %v4386 = vunpack.c.h.b16 %v2063
    %v4387 = vunpack.c.l.b16 %v2064
    %v4388 = vunpack.c.h.b16 %v2064
    %v4389 = vunpack.c.l.b16 %v2065
    %v4390 = vunpack.c.h.b16 %v2065
    %v4391 = vunpack.c.l.b16 %v2066
    %v4392 = vunpack.c.h.b16 %v2066
    %v4393 = vunpack.c.l.b16 %v2067
    %v4394 = vunpack.c.h.b16 %v2067
    %v4395 = vunpack.c.l.b16 %v2068
    %v4396 = vunpack.c.h.b16 %v2068
    %v4397 = vunpack.c.l.b16 %v2069
    %v4398 = vunpack.c.h.b16 %v2069
    %v4399 = vunpack.c.l.b16 %v2070
    %v4400 = vunpack.c.h.b16 %v2070
    %v4401 = vunpack.c.l.b16 %v2071
    %v4402 = vunpack.c.h.b16 %v2071
    %v4403 = vunpack.c.l.b16 %v2072
    %v4404 = vunpack.c.h.b16 %v2072
    %v4405 = vunpack.c.l.b16 %v2073
    %v4406 = vunpack.c.h.b16 %v2073
    %v4407 = vunpack.c.l.b16 %v2074
    %v4408 = vunpack.c.h.b16 %v2074
    %v4409 = vunpack.c.l.b16 %v2075
    %v4410 = vunpack.c.h.b16 %v2075
    %v4411 = vunpack.c.l.b16 %v2076
    %v4412 = vunpack.c.h.b16 %v2076
    %v4413 = vunpack.c.l.b16 %v2077
    %v4414 = vunpack.c.h.b16 %v2077
    %v4415 = vunpack.c.l.b16 %v2078
    %v4416 = vunpack.c.h.b16 %v2078
    %v4417 = vunpack.c.l.b16 %v2079
    %v4418 = vunpack.c.h.b16 %v2079
    %v4419 = vunpack.c.l.b16 %v2080
    %v4420 = vunpack.c.h.b16 %v2080
    %v4421 = vunpack.c.l.b16 %v2081
    %v4422 = vunpack.c.h.b16 %v2081
    %v4423 = vunpack.c.l.b16 %v2082
    %v4424 = vunpack.c.h.b16 %v2082
    %v4425 = vunpack.c.l.b16 %v2083
    %v4426 = vunpack.c.h.b16 %v2083
    %v4427 = vunpack.c.l.b16 %v2084
    %v4428 = vunpack.c.h.b16 %v2084
    %v4429 = vunpack.c.l.b16 %v2085
    %v4430 = vunpack.c.h.b16 %v2085
    %v4431 = vunpack.c.l.b16 %v2086
    %v4432 = vunpack.c.h.b16 %v2086
    %v4433 = vunpack.c.l.b16 %v2087
    %v4434 = vunpack.c.h.b16 %v2087
    %v4435 = vunpack.c.l.b16 %v2088
    %v4436 = vunpack.c.h.b16 %v2088
    %v4437 = vunpack.c.l.b16 %v2089
    %v4438 = vunpack.c.h.b16 %v2089
    %v4439 = vunpack.c.l.b16 %v2090
    %v4440 = vunpack.c.h.b16 %v2090
    %v4441 = vunpack.c.l.b16 %v2091
    %v4442 = vunpack.c.h.b16 %v2091
    %v4443 = vunpack.c.l.b16 %v2092
    %v4444 = vunpack.c.h.b16 %v2092
    %v4445 = vunpack.c.l.b16 %v2093
    %v4446 = vunpack.c.h.b16 %v2093
    %v4447 = vunpack.c.l.b16 %v2094
    %v4448 = vunpack.c.h.b16 %v2094
    %v4449 = vunpack.c.l.b16 %v2095
    %v4450 = vunpack.c.h.b16 %v2095
    %v4451 = vunpack.c.l.b16 %v2096
    %v4452 = vunpack.c.h.b16 %v2096
    %v4453 = vunpack.c.l.b16 %v2097
    %v4454 = vunpack.c.h.b16 %v2097
    %v4455 = vunpack.c.l.b16 %v2098
    %v4456 = vunpack.c.h.b16 %v2098
    %v4457 = vunpack.c.l.b16 %v2099
    %v4458 = vunpack.c.h.b16 %v2099
    %v4459 = vunpack.c.l.b16 %v2100
    %v4460 = vunpack.c.h.b16 %v2100
    %v4461 = vunpack.c.l.b16 %v2101
    %v4462 = vunpack.c.h.b16 %v2101
    %v4463 = vunpack.c.l.b16 %v2102
    %v4464 = vunpack.c.h.b16 %v2102
    %v4465 = vunpack.c.l.b16 %v2103
    %v4466 = vunpack.c.h.b16 %v2103
    %v4467 = vunpack.c.l.b16 %v2104
    %v4468 = vunpack.c.h.b16 %v2104
    %v4469 = vunpack.c.l.b16 %v2105
    %v4470 = vunpack.c.h.b16 %v2105
    %v4471 = vunpack.c.l.b16 %v2106
    %v4472 = vunpack.c.h.b16 %v2106
    %v4473 = vunpack.c.l.b16 %v2107
    %v4474 = vunpack.c.h.b16 %v2107
    %v4475 = vunpack.c.l.b16 %v2108
    %v4476 = vunpack.c.h.b16 %v2108
    %v4477 = vunpack.c.l.b16 %v2109
    %v4478 = vunpack.c.h.b16 %v2109
    %v4479 = vunpack.c.l.b16 %v2110
    %v4480 = vunpack.c.h.b16 %v2110
    %v4481 = vunpack.c.l.b16 %v2111
    %v4482 = vunpack.c.h.b16 %v2111
    %v4483 = vunpack.c.l.b16 %v2112
    %v4484 = vunpack.c.h.b16 %v2112
    %v4485 = vunpack.c.l.b16 %v2113
    %v4486 = vunpack.c.h.b16 %v2113
    %v4487 = vunpack.c.l.b16 %v2114
    %v4488 = vunpack.c.h.b16 %v2114
    %v4489 = vunpack.c.l.b16 %v2115
    %v4490 = vunpack.c.h.b16 %v2115
    %v4491 = vunpack.c.l.b16 %v2116
    %v4492 = vunpack.c.h.b16 %v2116
    %v4493 = vunpack.c.l.b16 %v2117
    %v4494 = vunpack.c.h.b16 %v2117
    %v4495 = vunpack.c.l.b16 %v2118
    %v4496 = vunpack.c.h.b16 %v2118
    %v4497 = vunpack.c.l.b16 %v2119
    %v4498 = vunpack.c.h.b16 %v2119
    %v4499 = vunpack.c.l.b16 %v2120
    %v4500 = vunpack.c.h.b16 %v2120
    %v4501 = vunpack.c.l.b16 %v2121
    %v4502 = vunpack.c.h.b16 %v2121
    %v4503 = vunpack.c.l.b16 %v2122
    %v4504 = vunpack.c.h.b16 %v2122
    %v4505 = vunpack.c.l.b16 %v2123
    %v4506 = vunpack.c.h.b16 %v2123
    %v4507 = vunpack.c.l.b16 %v2124
    %v4508 = vunpack.c.h.b16 %v2124
    %v4509 = vunpack.c.l.b16 %v2125
    %v4510 = vunpack.c.h.b16 %v2125
    %v4511 = vunpack.c.l.b16 %v2126
    %v4512 = vunpack.c.h.b16 %v2126
    %v4513 = vunpack.c.l.b16 %v2127
    %v4514 = vunpack.c.h.b16 %v2127
    %v4515 = vunpack.c.l.b16 %v2128
    %v4516 = vunpack.c.h.b16 %v2128
    %v4517 = vunpack.c.l.b16 %v2129
    %v4518 = vunpack.c.h.b16 %v2129
    %v4519 = vunpack.c.l.b16 %v2130
    %v4520 = vunpack.c.h.b16 %v2130
    %v4521 = vunpack.c.l.b16 %v2131
    %v4522 = vunpack.c.h.b16 %v2131
    %v4523 = vunpack.c.l.b16 %v2132
    %v4524 = vunpack.c.h.b16 %v2132
    %v4525 = vunpack.c.l.b16 %v2133
    %v4526 = vunpack.c.h.b16 %v2133
    %v4527 = vunpack.c.l.b16 %v2134
    %v4528 = vunpack.c.h.b16 %v2134
    %v4529 = vunpack.c.l.b16 %v2135
    %v4530 = vunpack.c.h.b16 %v2135
    %v4531 = vunpack.c.l.b16 %v2136
    %v4532 = vunpack.c.h.b16 %v2136
    %v4533 = vunpack.c.l.b16 %v2137
    %v4534 = vunpack.c.h.b16 %v2137
    %v4535 = vunpack.c.l.b16 %v2138
    %v4536 = vunpack.c.h.b16 %v2138
    %v4537 = vunpack.c.l.b16 %v2139
    %v4538 = vunpack.c.h.b16 %v2139
    %v4539 = vunpack.c.l.b16 %v2140
    %v4540 = vunpack.c.h.b16 %v2140
    %v4541 = vpack.c.b16 %v2951, %v2941
    %v4542 = vpack.c.b16 %v2952, %v2942
    %v4543 = vpack.c.b16 %v2953, %v2943
    %v4544 = vpack.c.b16 %v2954, %v2944
    %v4545 = vpack.c.b16 %v2955, %v2945
    %v4546 = vpack.c.b16 %v2956, %v2946
    %v4547 = vpack.c.b16 %v2957, %v2947
    %v4548 = vpack.c.b16 %v2958, %v2948
    %v4549 = vpack.c.b16 %v2959, %v2949
    %v4550 = vpack.c.b16 %v2960, %v2950
    %v4551 = vpack.c.b16 %v2971, %v2961
    %v4552 = vpack.c.b16 %v2972, %v2962
    %v4553 = vpack.c.b16 %v2973, %v2963
    %v4554 = vpack.c.b16 %v2974, %v2964
    %v4555 = vpack.c.b16 %v2975, %v2965
    %v4556 = vpack.c.b16 %v2976, %v2966
    %v4557 = vpack.c.b16 %v2977, %v2967
    %v4558 = vpack.c.b16 %v2978, %v2968
    %v4559 = vpack.c.b16 %v2979, %v2969
    %v4560 = vpack.c.b16 %v2980, %v2970
    %v4561 = vpack.c.b16 %v2991, %v2981
    %v4562 = vpack.c.b16 %v2992, %v2982
    %v4563 = vpack.c.b16 %v2993, %v2983
    %v4564 = vpack.c.b16 %v2994, %v2984
    %v4565 = vpack.c.b16 %v2995, %v2985
    %v4566 = vpack.c.b16 %v2996, %v2986
    %v4567 = vpack.c.b16 %v2997, %v2987
    %v4568 = vpack.c.b16 %v2998, %v2988
    %v4569 = vpack.c.b16 %v2999, %v2989
    %v4570 = vpack.c.b16 %v3000, %v2990
    %v4571 = vpack.c.b16 %v3011, %v3001
    %v4572 = vpack.c.b16 %v3012, %v3002
    %v4573 = vpack.c.b16 %v3013, %v3003
    %v4574 = vpack.c.b16 %v3014, %v3004
    %v4575 = vpack.c.b16 %v3015, %v3005
    %v4576 = vpack.c.b16 %v3016, %v3006
    %v4577 = vpack.c.b16 %v3017, %v3007
    %v4578 = vpack.c.b16 %v3018, %v3008
    %v4579 = vpack.c.b16 %v3019, %v3009
    %v4580 = vpack.c.b16 %v3020, %v3010
    %v4581 = vpack.c.b16 %v3031, %v3021
    %v4582 = vpack.c.b16 %v3032, %v3022
    %v4583 = vpack.c.b16 %v3033, %v3023
    %v4584 = vpack.c.b16 %v3034, %v3024
    %v4585 = vpack.c.b16 %v3035, %v3025
    %v4586 = vpack.c.b16 %v3036, %v3026
    %v4587 = vpack.c.b16 %v3037, %v3027
    %v4588 = vpack.c.b16 %v3038, %v3028
    %v4589 = vpack.c.b16 %v3039, %v3029
    %v4590 = vpack.c.b16 %v3040, %v3030
    %v4591 = vpack.c.b16 %v3051, %v3041
    %v4592 = vpack.c.b16 %v3052, %v3042
    %v4593 = vpack.c.b16 %v3053, %v3043
    %v4594 = vpack.c.b16 %v3054, %v3044
    %v4595 = vpack.c.b16 %v3055, %v3045
    %v4596 = vpack.c.b16 %v3056, %v3046
    %v4597 = vpack.c.b16 %v3057, %v3047
    %v4598 = vpack.c.b16 %v3058, %v3048
    %v4599 = vpack.c.b16 %v3059, %v3049
    %v4600 = vpack.c.b16 %v3060, %v3050
    %v4601 = vpack.c.b16 %v3071, %v3061
    %v4602 = vpack.c.b16 %v3072, %v3062
    %v4603 = vpack.c.b16 %v3073, %v3063
    %v4604 = vpack.c.b16 %v3074, %v3064
    %v4605 = vpack.c.b16 %v3075, %v3065
    %v4606 = vpack.c.b16 %v3076, %v3066
    %v4607 = vpack.c.b16 %v3077, %v3067
    %v4608 = vpack.c.b16 %v3078, %v3068
    %v4609 = vpack.c.b16 %v3079, %v3069
    %v4610 = vpack.c.b16 %v3080, %v3070
    %v4611 = vpack.c.b16 %v3091, %v3081
    %v4612 = vpack.c.b16 %v3092, %v3082
    %v4613 = vpack.c.b16 %v3093, %v3083
    %v4614 = vpack.c.b16 %v3094, %v3084
    %v4615 = vpack.c.b16 %v3095, %v3085
    %v4616 = vpack.c.b16 %v3096, %v3086
    %v4617 = vpack.c.b16 %v3097, %v3087
    %v4618 = vpack.c.b16 %v3098, %v3088
    %v4619 = vpack.c.b16 %v3099, %v3089
    %v4620 = vpack.c.b16 %v3100, %v3090
    %v4621 = vpack.c.b16 %v3111, %v3101
    %v4622 = vpack.c.b16 %v3112, %v3102
    %v4623 = vpack.c.b16 %v3113, %v3103
    %v4624 = vpack.c.b16 %v3114, %v3104
    %v4625 = vpack.c.b16 %v3115, %v3105
    %v4626 = vpack.c.b16 %v3116, %v3106
    %v4627 = vpack.c.b16 %v3117, %v3107
    %v4628 = vpack.c.b16 %v3118, %v3108
    %v4629 = vpack.c.b16 %v3119, %v3109
    %v4630 = vpack.c.b16 %v3120, %v3110
    %v4631 = vpack.c.b16 %v3131, %v3121
    %v4632 = vpack.c.b16 %v3132, %v3122
    %v4633 = vpack.c.b16 %v3133, %v3123
    %v4634 = vpack.c.b16 %v3134, %v3124
    %v4635 = vpack.c.b16 %v3135, %v3125
    %v4636 = vpack.c.b16 %v3136, %v3126
    %v4637 = vpack.c.b16 %v3137, %v3127
    %v4638 = vpack.c.b16 %v3138, %v3128
    %v4639 = vpack.c.b16 %v3139, %v3129
    %v4640 = vpack.c.b16 %v3140, %v3130
    %v4641 = vpack.c.b16 %v3151, %v3141
    %v4642 = vpack.c.b16 %v3152, %v3142
    %v4643 = vpack.c.b16 %v3153, %v3143
    %v4644 = vpack.c.b16 %v3154, %v3144
    %v4645 = vpack.c.b16 %v3155, %v3145
    %v4646 = vpack.c.b16 %v3156, %v3146
    %v4647 = vpack.c.b16 %v3157, %v3147
    %v4648 = vpack.c.b16 %v3158, %v3148
    %v4649 = vpack.c.b16 %v3159, %v3149
    %v4650 = vpack.c.b16 %v3160, %v3150
    %v4651 = vpack.c.b16 %v3171, %v3161
    %v4652 = vpack.c.b16 %v3172, %v3162
    %v4653 = vpack.c.b16 %v3173, %v3163
    %v4654 = vpack.c.b16 %v3174, %v3164
    %v4655 = vpack.c.b16 %v3175, %v3165
    %v4656 = vpack.c.b16 %v3176, %v3166
    %v4657 = vpack.c.b16 %v3177, %v3167
    %v4658 = vpack.c.b16 %v3178, %v3168
    %v4659 = vpack.c.b16 %v3179, %v3169
    %v4660 = vpack.c.b16 %v3180, %v3170
    %v4661 = vpack.c.b16 %v3191, %v3181
    %v4662 = vpack.c.b16 %v3192, %v3182
    %v4663 = vpack.c.b16 %v3193, %v3183
    %v4664 = vpack.c.b16 %v3194, %v3184
    %v4665 = vpack.c.b16 %v3195, %v3185
    %v4666 = vpack.c.b16 %v3196, %v3186
    %v4667 = vpack.c.b16 %v3197, %v3187
    %v4668 = vpack.c.b16 %v3198, %v3188
    %v4669 = vpack.c.b16 %v3199, %v3189
    %v4670 = vpack.c.b16 %v3200, %v3190
    %v4671 = vpack.c.b16 %v3211, %v3201
    %v4672 = vpack.c.b16 %v3212, %v3202
    %v4673 = vpack.c.b16 %v3213, %v3203
    %v4674 = vpack.c.b16 %v3214, %v3204
    %v4675 = vpack.c.b16 %v3215, %v3205
    %v4676 = vpack.c.b16 %v3216, %v3206
    %v4677 = vpack.c.b16 %v3217, %v3207
    %v4678 = vpack.c.b16 %v3218, %v3208
    %v4679 = vpack.c.b16 %v3219, %v3209
    %v4680 = vpack.c.b16 %v3220, %v3210
    %v4681 = vpack.c.b16 %v3231, %v3221
    %v4682 = vpack.c.b16 %v3232, %v3222
    %v4683 = vpack.c.b16 %v3233, %v3223
    %v4684 = vpack.c.b16 %v3234, %v3224
    %v4685 = vpack.c.b16 %v3235, %v3225
    %v4686 = vpack.c.b16 %v3236, %v3226
    %v4687 = vpack.c.b16 %v3237, %v3227
    %v4688 = vpack.c.b16 %v3238, %v3228
    %v4689 = vpack.c.b16 %v3239, %v3229
    %v4690 = vpack.c.b16 %v3240, %v3230
    %v4691 = vpack.c.b16 %v3251, %v3241
    %v4692 = vpack.c.b16 %v3252, %v3242
    %v4693 = vpack.c.b16 %v3253, %v3243
    %v4694 = vpack.c.b16 %v3254, %v3244
    %v4695 = vpack.c.b16 %v3255, %v3245
    %v4696 = vpack.c.b16 %v3256, %v3246
    %v4697 = vpack.c.b16 %v3257, %v3247
    %v4698 = vpack.c.b16 %v3258, %v3248
    %v4699 = vpack.c.b16 %v3259, %v3249
    %v4700 = vpack.c.b16 %v3260, %v3250
    %v4701 = vpack.c.b16 %v3271, %v3261
    %v4702 = vpack.c.b16 %v3272, %v3262
    %v4703 = vpack.c.b16 %v3273, %v3263
    %v4704 = vpack.c.b16 %v3274, %v3264
    %v4705 = vpack.c.b16 %v3275, %v3265
    %v4706 = vpack.c.b16 %v3276, %v3266
    %v4707 = vpack.c.b16 %v3277, %v3267
    %v4708 = vpack.c.b16 %v3278, %v3268
    %v4709 = vpack.c.b16 %v3279, %v3269
    %v4710 = vpack.c.b16 %v3280, %v3270
    %v4711 = vpack.c.b16 %v3291, %v3281
    %v4712 = vpack.c.b16 %v3292, %v3282
    %v4713 = vpack.c.b16 %v3293, %v3283
    %v4714 = vpack.c.b16 %v3294, %v3284
    %v4715 = vpack.c.b16 %v3295, %v3285
    %v4716 = vpack.c.b16 %v3296, %v3286
    %v4717 = vpack.c.b16 %v3297, %v3287
    %v4718 = vpack.c.b16 %v3298, %v3288
    %v4719 = vpack.c.b16 %v3299, %v3289
    %v4720 = vpack.c.b16 %v3300, %v3290
    %v4721 = vpack.c.b16 %v3311, %v3301
    %v4722 = vpack.c.b16 %v3312, %v3302
    %v4723 = vpack.c.b16 %v3313, %v3303
    %v4724 = vpack.c.b16 %v3314, %v3304
    %v4725 = vpack.c.b16 %v3315, %v3305
    %v4726 = vpack.c.b16 %v3316, %v3306
    %v4727 = vpack.c.b16 %v3317, %v3307
    %v4728 = vpack.c.b16 %v3318, %v3308
    %v4729 = vpack.c.b16 %v3319, %v3309
    %v4730 = vpack.c.b16 %v3320, %v3310
    %v4731 = vpack.c.b16 %v3331, %v3321
    %v4732 = vpack.c.b16 %v3332, %v3322
    %v4733 = vpack.c.b16 %v3333, %v3323
    %v4734 = vpack.c.b16 %v3334, %v3324
    %v4735 = vpack.c.b16 %v3335, %v3325
    %v4736 = vpack.c.b16 %v3336, %v3326
    %v4737 = vpack.c.b16 %v3337, %v3327
    %v4738 = vpack.c.b16 %v3338, %v3328
    %v4739 = vpack.c.b16 %v3339, %v3329
    %v4740 = vpack.c.b16 %v3340, %v3330
    %v4741 = vpack.c.b16 %v3351, %v3341
    %v4742 = vpack.c.b16 %v3352, %v3342
    %v4743 = vpack.c.b16 %v3353, %v3343
    %v4744 = vpack.c.b16 %v3354, %v3344
    %v4745 = vpack.c.b16 %v3355, %v3345
    %v4746 = vpack.c.b16 %v3356, %v3346
    %v4747 = vpack.c.b16 %v3357, %v3347
    %v4748 = vpack.c.b16 %v3358, %v3348
    %v4749 = vpack.c.b16 %v3359, %v3349
    %v4750 = vpack.c.b16 %v3360, %v3350
    %v4751 = vpack.c.b16 %v3371, %v3361
    %v4752 = vpack.c.b16 %v3372, %v3362
    %v4753 = vpack.c.b16 %v3373, %v3363
    %v4754 = vpack.c.b16 %v3374, %v3364
    %v4755 = vpack.c.b16 %v3375, %v3365
    %v4756 = vpack.c.b16 %v3376, %v3366
    %v4757 = vpack.c.b16 %v3377, %v3367
    %v4758 = vpack.c.b16 %v3378, %v3368
    %v4759 = vpack.c.b16 %v3379, %v3369
    %v4760 = vpack.c.b16 %v3380, %v3370
    %v4761 = vpack.c.b16 %v3391, %v3381
    %v4762 = vpack.c.b16 %v3392, %v3382
    %v4763 = vpack.c.b16 %v3393, %v3383
    %v4764 = vpack.c.b16 %v3394, %v3384
    %v4765 = vpack.c.b16 %v3395, %v3385
    %v4766 = vpack.c.b16 %v3396, %v3386
    %v4767 = vpack.c.b16 %v3397, %v3387
    %v4768 = vpack.c.b16 %v3398, %v3388
    %v4769 = vpack.c.b16 %v3399, %v3389
    %v4770 = vpack.c.b16 %v3400, %v3390
    %v4771 = vpack.c.b16 %v3411, %v3401
    %v4772 = vpack.c.b16 %v3412, %v3402
    %v4773 = vpack.c.b16 %v3413, %v3403
    %v4774 = vpack.c.b16 %v3414, %v3404
    %v4775 = vpack.c.b16 %v3415, %v3405
    %v4776 = vpack.c.b16 %v3416, %v3406
    %v4777 = vpack.c.b16 %v3417, %v3407
    %v4778 = vpack.c.b16 %v3418, %v3408
    %v4779 = vpack.c.b16 %v3419, %v3409
    %v4780 = vpack.c.b16 %v3420, %v3410
    %v4781 = vpack.c.b16 %v3431, %v3421
    %v4782 = vpack.c.b16 %v3432, %v3422
    %v4783 = vpack.c.b16 %v3433, %v3423
    %v4784 = vpack.c.b16 %v3434, %v3424
    %v4785 = vpack.c.b16 %v3435, %v3425
    %v4786 = vpack.c.b16 %v3436, %v3426
    %v4787 = vpack.c.b16 %v3437, %v3427
    %v4788 = vpack.c.b16 %v3438, %v3428
    %v4789 = vpack.c.b16 %v3439, %v3429
    %v4790 = vpack.c.b16 %v3440, %v3430
    %v4791 = vpack.c.b16 %v3451, %v3441
    %v4792 = vpack.c.b16 %v3452, %v3442
    %v4793 = vpack.c.b16 %v3453, %v3443
    %v4794 = vpack.c.b16 %v3454, %v3444
    %v4795 = vpack.c.b16 %v3455, %v3445
    %v4796 = vpack.c.b16 %v3456, %v3446
    %v4797 = vpack.c.b16 %v3457, %v3447
    %v4798 = vpack.c.b16 %v3458, %v3448
    %v4799 = vpack.c.b16 %v3459, %v3449
    %v4800 = vpack.c.b16 %v3460, %v3450
    %v4801 = vpack.c.b16 %v3471, %v3461
    %v4802 = vpack.c.b16 %v3472, %v3462
    %v4803 = vpack.c.b16 %v3473, %v3463
    %v4804 = vpack.c.b16 %v3474, %v3464
    %v4805 = vpack.c.b16 %v3475, %v3465
    %v4806 = vpack.c.b16 %v3476, %v3466
    %v4807 = vpack.c.b16 %v3477, %v3467
    %v4808 = vpack.c.b16 %v3478, %v3468
    %v4809 = vpack.c.b16 %v3479, %v3469
    %v4810 = vpack.c.b16 %v3480, %v3470
    %v4811 = vpack.c.b16 %v3491, %v3481
    %v4812 = vpack.c.b16 %v3492, %v3482
    %v4813 = vpack.c.b16 %v3493, %v3483
    %v4814 = vpack.c.b16 %v3494, %v3484
    %v4815 = vpack.c.b16 %v3495, %v3485
    %v4816 = vpack.c.b16 %v3496, %v3486
    %v4817 = vpack.c.b16 %v3497, %v3487
    %v4818 = vpack.c.b16 %v3498, %v3488
    %v4819 = vpack.c.b16 %v3499, %v3489
    %v4820 = vpack.c.b16 %v3500, %v3490
    %v4821 = vpack.c.b16 %v3511, %v3501
    %v4822 = vpack.c.b16 %v3512, %v3502
    %v4823 = vpack.c.b16 %v3513, %v3503
    %v4824 = vpack.c.b16 %v3514, %v3504
    %v4825 = vpack.c.b16 %v3515, %v3505
    %v4826 = vpack.c.b16 %v3516, %v3506
    %v4827 = vpack.c.b16 %v3517, %v3507
    %v4828 = vpack.c.b16 %v3518, %v3508
    %v4829 = vpack.c.b16 %v3519, %v3509
    %v4830 = vpack.c.b16 %v3520, %v3510
    %v4831 = vpack.c.b16 %v3531, %v3521
    %v4832 = vpack.c.b16 %v3532, %v3522
    %v4833 = vpack.c.b16 %v3533, %v3523
    %v4834 = vpack.c.b16 %v3534, %v3524
    %v4835 = vpack.c.b16 %v3535, %v3525
    %v4836 = vpack.c.b16 %v3536, %v3526
    %v4837 = vpack.c.b16 %v3537, %v3527
    %v4838 = vpack.c.b16 %v3538, %v3528
    %v4839 = vpack.c.b16 %v3539, %v3529
    %v4840 = vpack.c.b16 %v3540, %v3530
    %v4841 = vpack.c.b16 %v3551, %v3541
    %v4842 = vpack.c.b16 %v3552, %v3542
    %v4843 = vpack.c.b16 %v3553, %v3543
    %v4844 = vpack.c.b16 %v3554, %v3544
    %v4845 = vpack.c.b16 %v3555, %v3545
    %v4846 = vpack.c.b16 %v3556, %v3546
    %v4847 = vpack.c.b16 %v3557, %v3547
    %v4848 = vpack.c.b16 %v3558, %v3548
    %v4849 = vpack.c.b16 %v3559, %v3549
    %v4850 = vpack.c.b16 %v3560, %v3550
    %v4851 = vpack.c.b16 %v3571, %v3561
    %v4852 = vpack.c.b16 %v3572, %v3562
    %v4853 = vpack.c.b16 %v3573, %v3563
    %v4854 = vpack.c.b16 %v3574, %v3564
    %v4855 = vpack.c.b16 %v3575, %v3565
    %v4856 = vpack.c.b16 %v3576, %v3566
    %v4857 = vpack.c.b16 %v3577, %v3567
    %v4858 = vpack.c.b16 %v3578, %v3568
    %v4859 = vpack.c.b16 %v3579, %v3569
    %v4860 = vpack.c.b16 %v3580, %v3570
    %v4861 = vpack.c.b16 %v3591, %v3581
    %v4862 = vpack.c.b16 %v3592, %v3582
    %v4863 = vpack.c.b16 %v3593, %v3583
    %v4864 = vpack.c.b16 %v3594, %v3584
    %v4865 = vpack.c.b16 %v3595, %v3585
    %v4866 = vpack.c.b16 %v3596, %v3586
    %v4867 = vpack.c.b16 %v3597, %v3587
    %v4868 = vpack.c.b16 %v3598, %v3588
    %v4869 = vpack.c.b16 %v3599, %v3589
    %v4870 = vpack.c.b16 %v3600, %v3590
    %v4871 = vpack.c.b16 %v3611, %v3601
    %v4872 = vpack.c.b16 %v3612, %v3602
    %v4873 = vpack.c.b16 %v3613, %v3603
    %v4874 = vpack.c.b16 %v3614, %v3604
    %v4875 = vpack.c.b16 %v3615, %v3605
    %v4876 = vpack.c.b16 %v3616, %v3606
    %v4877 = vpack.c.b16 %v3617, %v3607
    %v4878 = vpack.c.b16 %v3618, %v3608
    %v4879 = vpack.c.b16 %v3619, %v3609
    %v4880 = vpack.c.b16 %v3620, %v3610
    %v4881 = vpack.c.b16 %v3631, %v3621
    %v4882 = vpack.c.b16 %v3632, %v3622
    %v4883 = vpack.c.b16 %v3633, %v3623
    %v4884 = vpack.c.b16 %v3634, %v3624
    %v4885 = vpack.c.b16 %v3635, %v3625
    %v4886 = vpack.c.b16 %v3636, %v3626
    %v4887 = vpack.c.b16 %v3637, %v3627
    %v4888 = vpack.c.b16 %v3638, %v3628
    %v4889 = vpack.c.b16 %v3639, %v3629
    %v4890 = vpack.c.b16 %v3640, %v3630
    %v4891 = vpack.c.b16 %v3651, %v3641
    %v4892 = vpack.c.b16 %v3652, %v3642
    %v4893 = vpack.c.b16 %v3653, %v3643
    %v4894 = vpack.c.b16 %v3654, %v3644
    %v4895 = vpack.c.b16 %v3655, %v3645
    %v4896 = vpack.c.b16 %v3656, %v3646
    %v4897 = vpack.c.b16 %v3657, %v3647
    %v4898 = vpack.c.b16 %v3658, %v3648
    %v4899 = vpack.c.b16 %v3659, %v3649
    %v4900 = vpack.c.b16 %v3660, %v3650
    %v4901 = vpack.c.b16 %v3671, %v3661
    %v4902 = vpack.c.b16 %v3672, %v3662
    %v4903 = vpack.c.b16 %v3673, %v3663
    %v4904 = vpack.c.b16 %v3674, %v3664
    %v4905 = vpack.c.b16 %v3675, %v3665
    %v4906 = vpack.c.b16 %v3676, %v3666
    %v4907 = vpack.c.b16 %v3677, %v3667
    %v4908 = vpack.c.b16 %v3678, %v3668
    %v4909 = vpack.c.b16 %v3679, %v3669
    %v4910 = vpack.c.b16 %v3680, %v3670
    %v4911 = vpack.c.b16 %v3691, %v3681
    %v4912 = vpack.c.b16 %v3692, %v3682
    %v4913 = vpack.c.b16 %v3693, %v3683
    %v4914 = vpack.c.b16 %v3694, %v3684
    %v4915 = vpack.c.b16 %v3695, %v3685
    %v4916 = vpack.c.b16 %v3696, %v3686
    %v4917 = vpack.c.b16 %v3697, %v3687
    %v4918 = vpack.c.b16 %v3698, %v3688
    %v4919 = vpack.c.b16 %v3699, %v3689
    %v4920 = vpack.c.b16 %v3700, %v3690
    %v4921 = vpack.c.b16 %v3711, %v3701
    %v4922 = vpack.c.b16 %v3712, %v3702
    %v4923 = vpack.c.b16 %v3713, %v3703
    %v4924 = vpack.c.b16 %v3714, %v3704
    %v4925 = vpack.c.b16 %v3715, %v3705
    %v4926 = vpack.c.b16 %v3716, %v3706
    %v4927 = vpack.c.b16 %v3717, %v3707
    %v4928 = vpack.c.b16 %v3718, %v3708
    %v4929 = vpack.c.b16 %v3719, %v3709
    %v4930 = vpack.c.b16 %v3720, %v3710
    %v4931 = vpack.c.b16 %v3731, %v3721
    %v4932 = vpack.c.b16 %v3732, %v3722
    %v4933 = vpack.c.b16 %v3733, %v3723
    %v4934 = vpack.c.b16 %v3734, %v3724
    %v4935 = vpack.c.b16 %v3735, %v3725
    %v4936 = vpack.c.b16 %v3736, %v3726
    %v4937 = vpack.c.b16 %v3737, %v3727
    %v4938 = vpack.c.b16 %v3738, %v3728
    %v4939 = vpack.c.b16 %v3739, %v3729
    %v4940 = vpack.c.b16 %v3740, %v3730
    %v4941 = vpack.c.b16 %v3751, %v3741
    %v4942 = vpack.c.b16 %v3752, %v3742
    %v4943 = vpack.c.b16 %v3753, %v3743
    %v4944 = vpack.c.b16 %v3754, %v3744
    %v4945 = vpack.c.b16 %v3755, %v3745
    %v4946 = vpack.c.b16 %v3756, %v3746
    %v4947 = vpack.c.b16 %v3757, %v3747
    %v4948 = vpack.c.b16 %v3758, %v3748
    %v4949 = vpack.c.b16 %v3759, %v3749
    %v4950 = vpack.c.b16 %v3760, %v3750
    %v4951 = vpack.c.b16 %v3771, %v3761
    %v4952 = vpack.c.b16 %v3772, %v3762
    %v4953 = vpack.c.b16 %v3773, %v3763
    %v4954 = vpack.c.b16 %v3774, %v3764
    %v4955 = vpack.c.b16 %v3775, %v3765
    %v4956 = vpack.c.b16 %v3776, %v3766
    %v4957 = vpack.c.b16 %v3777, %v3767
    %v4958 = vpack.c.b16 %v3778, %v3768
    %v4959 = vpack.c.b16 %v3779, %v3769
    %v4960 = vpack.c.b16 %v3780, %v3770
    %v4961 = vpack.c.b16 %v3791, %v3781
    %v4962 = vpack.c.b16 %v3792, %v3782
    %v4963 = vpack.c.b16 %v3793, %v3783
    %v4964 = vpack.c.b16 %v3794, %v3784
    %v4965 = vpack.c.b16 %v3795, %v3785
    %v4966 = vpack.c.b16 %v3796, %v3786
    %v4967 = vpack.c.b16 %v3797, %v3787
    %v4968 = vpack.c.b16 %v3798, %v3788
    %v4969 = vpack.c.b16 %v3799, %v3789
    %v4970 = vpack.c.b16 %v3800, %v3790
    %v4971 = vpack.c.b16 %v3811, %v3801
    %v4972 = vpack.c.b16 %v3812, %v3802
    %v4973 = vpack.c.b16 %v3813, %v3803
    %v4974 = vpack.c.b16 %v3814, %v3804
    %v4975 = vpack.c.b16 %v3815, %v3805
    %v4976 = vpack.c.b16 %v3816, %v3806
    %v4977 = vpack.c.b16 %v3817, %v3807
    %v4978 = vpack.c.b16 %v3818, %v3808
    %v4979 = vpack.c.b16 %v3819, %v3809
    %v4980 = vpack.c.b16 %v3820, %v3810
    %v4981 = vpack.c.b16 %v3831, %v3821
    %v4982 = vpack.c.b16 %v3832, %v3822
    %v4983 = vpack.c.b16 %v3833, %v3823
    %v4984 = vpack.c.b16 %v3834, %v3824
    %v4985 = vpack.c.b16 %v3835, %v3825
    %v4986 = vpack.c.b16 %v3836, %v3826
    %v4987 = vpack.c.b16 %v3837, %v3827
    %v4988 = vpack.c.b16 %v3838, %v3828
    %v4989 = vpack.c.b16 %v3839, %v3829
    %v4990 = vpack.c.b16 %v3840, %v3830
    %v4991 = vpack.c.b16 %v3851, %v3841
    %v4992 = vpack.c.b16 %v3852, %v3842
    %v4993 = vpack.c.b16 %v3853, %v3843
    %v4994 = vpack.c.b16 %v3854, %v3844
    %v4995 = vpack.c.b16 %v3855, %v3845
    %v4996 = vpack.c.b16 %v3856, %v3846
    %v4997 = vpack.c.b16 %v3857, %v3847
    %v4998 = vpack.c.b16 %v3858, %v3848
    %v4999 = vpack.c.b16 %v3859, %v3849
    %v5000 = vpack.c.b16 %v3860, %v3850
    %v5001 = vpack.c.b16 %v3871, %v3861
    %v5002 = vpack.c.b16 %v3872, %v3862
    %v5003 = vpack.c.b16 %v3873, %v3863
    %v5004 = vpack.c.b16 %v3874, %v3864
    %v5005 = vpack.c.b16 %v3875, %v3865
    %v5006 = vpack.c.b16 %v3876, %v3866
    %v5007 = vpack.c.b16 %v3877, %v3867
    %v5008 = vpack.c.b16 %v3878, %v3868
    %v5009 = vpack.c.b16 %v3879, %v3869
    %v5010 = vpack.c.b16 %v3880, %v3870
    %v5011 = vpack.c.b16 %v3891, %v3881
    %v5012 = vpack.c.b16 %v3892, %v3882
    %v5013 = vpack.c.b16 %v3893, %v3883
    %v5014 = vpack.c.b16 %v3894, %v3884
    %v5015 = vpack.c.b16 %v3895, %v3885
    %v5016 = vpack.c.b16 %v3896, %v3886
    %v5017 = vpack.c.b16 %v3897, %v3887
    %v5018 = vpack.c.b16 %v3898, %v3888
    %v5019 = vpack.c.b16 %v3899, %v3889
    %v5020 = vpack.c.b16 %v3900, %v3890
    %v5021 = vpack.c.b16 %v3911, %v3901
    %v5022 = vpack.c.b16 %v3912, %v3902
    %v5023 = vpack.c.b16 %v3913, %v3903
    %v5024 = vpack.c.b16 %v3914, %v3904
    %v5025 = vpack.c.b16 %v3915, %v3905
    %v5026 = vpack.c.b16 %v3916, %v3906
    %v5027 = vpack.c.b16 %v3917, %v3907
    %v5028 = vpack.c.b16 %v3918, %v3908
    %v5029 = vpack.c.b16 %v3919, %v3909
    %v5030 = vpack.c.b16 %v3920, %v3910
    %v5031 = vpack.c.b16 %v3931, %v3921
    %v5032 = vpack.c.b16 %v3932, %v3922
    %v5033 = vpack.c.b16 %v3933, %v3923
    %v5034 = vpack.c.b16 %v3934, %v3924
    %v5035 = vpack.c.b16 %v3935, %v3925
    %v5036 = vpack.c.b16 %v3936, %v3926
    %v5037 = vpack.c.b16 %v3937, %v3927
    %v5038 = vpack.c.b16 %v3938, %v3928
    %v5039 = vpack.c.b16 %v3939, %v3929
    %v5040 = vpack.c.b16 %v3940, %v3930
    %v5041 = vpack.c.b16 %v3951, %v3941
    %v5042 = vpack.c.b16 %v3952, %v3942
    %v5043 = vpack.c.b16 %v3953, %v3943
    %v5044 = vpack.c.b16 %v3954, %v3944
    %v5045 = vpack.c.b16 %v3955, %v3945
    %v5046 = vpack.c.b16 %v3956, %v3946
    %v5047 = vpack.c.b16 %v3957, %v3947
    %v5048 = vpack.c.b16 %v3958, %v3948
    %v5049 = vpack.c.b16 %v3959, %v3949
    %v5050 = vpack.c.b16 %v3960, %v3950
    %v5051 = vpack.c.b16 %v3971, %v3961
    %v5052 = vpack.c.b16 %v3972, %v3962
    %v5053 = vpack.c.b16 %v3973, %v3963
    %v5054 = vpack.c.b16 %v3974, %v3964
    %v5055 = vpack.c.b16 %v3975, %v3965
    %v5056 = vpack.c.b16 %v3976, %v3966
    %v5057 = vpack.c.b16 %v3977, %v3967
    %v5058 = vpack.c.b16 %v3978, %v3968
    %v5059 = vpack.c.b16 %v3979, %v3969
    %v5060 = vpack.c.b16 %v3980, %v3970
    %v5061 = vpack.c.b16 %v3991, %v3981
    %v5062 = vpack.c.b16 %v3992, %v3982
    %v5063 = vpack.c.b16 %v3993, %v3983
    %v5064 = vpack.c.b16 %v3994, %v3984
    %v5065 = vpack.c.b16 %v3995, %v3985
    %v5066 = vpack.c.b16 %v3996, %v3986
    %v5067 = vpack.c.b16 %v3997, %v3987
    %v5068 = vpack.c.b16 %v3998, %v3988
    %v5069 = vpack.c.b16 %v3999, %v3989
    %v5070 = vpack.c.b16 %v4000, %v3990
    %v5071 = vpack.c.b16 %v4011, %v4001
    %v5072 = vpack.c.b16 %v4012, %v4002
    %v5073 = vpack.c.b16 %v4013, %v4003
    %v5074 = vpack.c.b16 %v4014, %v4004
    %v5075 = vpack.c.b16 %v4015, %v4005
    %v5076 = vpack.c.b16 %v4016, %v4006
    %v5077 = vpack.c.b16 %v4017, %v4007
    %v5078 = vpack.c.b16 %v4018, %v4008
    %v5079 = vpack.c.b16 %v4019, %v4009
    %v5080 = vpack.c.b16 %v4020, %v4010
    %v5081 = vpack.c.b16 %v4031, %v4021
    %v5082 = vpack.c.b16 %v4032, %v4022
    %v5083 = vpack.c.b16 %v4033, %v4023
    %v5084 = vpack.c.b16 %v4034, %v4024
    %v5085 = vpack.c.b16 %v4035, %v4025
    %v5086 = vpack.c.b16 %v4036, %v4026
    %v5087 = vpack.c.b16 %v4037, %v4027
    %v5088 = vpack.c.b16 %v4038, %v4028
    %v5089 = vpack.c.b16 %v4039, %v4029
    %v5090 = vpack.c.b16 %v4040, %v4030
    %v5091 = vpack.c.b16 %v4051, %v4041
    %v5092 = vpack.c.b16 %v4052, %v4042
    %v5093 = vpack.c.b16 %v4053, %v4043
    %v5094 = vpack.c.b16 %v4054, %v4044
    %v5095 = vpack.c.b16 %v4055, %v4045
    %v5096 = vpack.c.b16 %v4056, %v4046
    %v5097 = vpack.c.b16 %v4057, %v4047
    %v5098 = vpack.c.b16 %v4058, %v4048
    %v5099 = vpack.c.b16 %v4059, %v4049
    %v5100 = vpack.c.b16 %v4060, %v4050
    %v5101 = vpack.c.b16 %v4071, %v4061
    %v5102 = vpack.c.b16 %v4072, %v4062
    %v5103 = vpack.c.b16 %v4073, %v4063
    %v5104 = vpack.c.b16 %v4074, %v4064
    %v5105 = vpack.c.b16 %v4075, %v4065
    %v5106 = vpack.c.b16 %v4076, %v4066
    %v5107 = vpack.c.b16 %v4077, %v4067
    %v5108 = vpack.c.b16 %v4078, %v4068
    %v5109 = vpack.c.b16 %v4079, %v4069
    %v5110 = vpack.c.b16 %v4080, %v4070
    %v5111 = vpack.c.b16 %v4091, %v4081
    %v5112 = vpack.c.b16 %v4092, %v4082
    %v5113 = vpack.c.b16 %v4093, %v4083
    %v5114 = vpack.c.b16 %v4094, %v4084
    %v5115 = vpack.c.b16 %v4095, %v4085
    %v5116 = vpack.c.b16 %v4096, %v4086
    %v5117 = vpack.c.b16 %v4097, %v4087
    %v5118 = vpack.c.b16 %v4098, %v4088
    %v5119 = vpack.c.b16 %v4099, %v4089
    %v5120 = vpack.c.b16 %v4100, %v4090
    %v5121 = vpack.c.b16 %v4111, %v4101
    %v5122 = vpack.c.b16 %v4112, %v4102
    %v5123 = vpack.c.b16 %v4113, %v4103
    %v5124 = vpack.c.b16 %v4114, %v4104
    %v5125 = vpack.c.b16 %v4115, %v4105
    %v5126 = vpack.c.b16 %v4116, %v4106
    %v5127 = vpack.c.b16 %v4117, %v4107
    %v5128 = vpack.c.b16 %v4118, %v4108
    %v5129 = vpack.c.b16 %v4119, %v4109
    %v5130 = vpack.c.b16 %v4120, %v4110
    %v5131 = vpack.c.b16 %v4131, %v4121
    %v5132 = vpack.c.b16 %v4132, %v4122
    %v5133 = vpack.c.b16 %v4133, %v4123
    %v5134 = vpack.c.b16 %v4134, %v4124
    %v5135 = vpack.c.b16 %v4135, %v4125
    %v5136 = vpack.c.b16 %v4136, %v4126
    %v5137 = vpack.c.b16 %v4137, %v4127
    %v5138 = vpack.c.b16 %v4138, %v4128
    %v5139 = vpack.c.b16 %v4139, %v4129
    %v5140 = vpack.c.b16 %v4140, %v4130
    %v5141 = vpack.c.b16 %v4151, %v4141
    %v5142 = vpack.c.b16 %v4152, %v4142
    %v5143 = vpack.c.b16 %v4153, %v4143
    %v5144 = vpack.c.b16 %v4154, %v4144
    %v5145 = vpack.c.b16 %v4155, %v4145
    %v5146 = vpack.c.b16 %v4156, %v4146
    %v5147 = vpack.c.b16 %v4157, %v4147
    %v5148 = vpack.c.b16 %v4158, %v4148
    %v5149 = vpack.c.b16 %v4159, %v4149
    %v5150 = vpack.c.b16 %v4160, %v4150
    %v5151 = vpack.c.b16 %v4171, %v4161
    %v5152 = vpack.c.b16 %v4172, %v4162
    %v5153 = vpack.c.b16 %v4173, %v4163
    %v5154 = vpack.c.b16 %v4174, %v4164
    %v5155 = vpack.c.b16 %v4175, %v4165
    %v5156 = vpack.c.b16 %v4176, %v4166
    %v5157 = vpack.c.b16 %v4177, %v4167
    %v5158 = vpack.c.b16 %v4178, %v4168
    %v5159 = vpack.c.b16 %v4179, %v4169
    %v5160 = vpack.c.b16 %v4180, %v4170
    %v5161 = vpack.c.b16 %v4191, %v4181
    %v5162 = vpack.c.b16 %v4192, %v4182
    %v5163 = vpack.c.b16 %v4193, %v4183
    %v5164 = vpack.c.b16 %v4194, %v4184
    %v5165 = vpack.c.b16 %v4195, %v4185
    %v5166 = vpack.c.b16 %v4196, %v4186
    %v5167 = vpack.c.b16 %v4197, %v4187
    %v5168 = vpack.c.b16 %v4198, %v4188
    %v5169 = vpack.c.b16 %v4199, %v4189
    %v5170 = vpack.c.b16 %v4200, %v4190
    %v5171 = vpack.c.b16 %v4211, %v4201
    %v5172 = vpack.c.b16 %v4212, %v4202
    %v5173 = vpack.c.b16 %v4213, %v4203
    %v5174 = vpack.c.b16 %v4214, %v4204
    %v5175 = vpack.c.b16 %v4215, %v4205
    %v5176 = vpack.c.b16 %v4216, %v4206
    %v5177 = vpack.c.b16 %v4217, %v4207
    %v5178 = vpack.c.b16 %v4218, %v4208
    %v5179 = vpack.c.b16 %v4219, %v4209
    %v5180 = vpack.c.b16 %v4220, %v4210
    %v5181 = vpack.c.b16 %v4231, %v4221
    %v5182 = vpack.c.b16 %v4232, %v4222
    %v5183 = vpack.c.b16 %v4233, %v4223
    %v5184 = vpack.c.b16 %v4234, %v4224
    %v5185 = vpack.c.b16 %v4235, %v4225
    %v5186 = vpack.c.b16 %v4236, %v4226
    %v5187 = vpack.c.b16 %v4237, %v4227
    %v5188 = vpack.c.b16 %v4238, %v4228
    %v5189 = vpack.c.b16 %v4239, %v4229
    %v5190 = vpack.c.b16 %v4240, %v4230
    %v5191 = vpack.c.b16 %v4251, %v4241
    %v5192 = vpack.c.b16 %v4252, %v4242
    %v5193 = vpack.c.b16 %v4253, %v4243
    %v5194 = vpack.c.b16 %v4254, %v4244
    %v5195 = vpack.c.b16 %v4255, %v4245
    %v5196 = vpack.c.b16 %v4256, %v4246
    %v5197 = vpack.c.b16 %v4257, %v4247
    %v5198 = vpack.c.b16 %v4258, %v4248
    %v5199 = vpack.c.b16 %v4259, %v4249
    %v5200 = vpack.c.b16 %v4260, %v4250
    %v5201 = vpack.c.b16 %v4271, %v4261
    %v5202 = vpack.c.b16 %v4272, %v4262
    %v5203 = vpack.c.b16 %v4273, %v4263
    %v5204 = vpack.c.b16 %v4274, %v4264
    %v5205 = vpack.c.b16 %v4275, %v4265
    %v5206 = vpack.c.b16 %v4276, %v4266
    %v5207 = vpack.c.b16 %v4277, %v4267
    %v5208 = vpack.c.b16 %v4278, %v4268
    %v5209 = vpack.c.b16 %v4279, %v4269
    %v5210 = vpack.c.b16 %v4280, %v4270
    %v5211 = vpack.c.b16 %v4291, %v4281
    %v5212 = vpack.c.b16 %v4292, %v4282
    %v5213 = vpack.c.b16 %v4293, %v4283
    %v5214 = vpack.c.b16 %v4294, %v4284
    %v5215 = vpack.c.b16 %v4295, %v4285
    %v5216 = vpack.c.b16 %v4296, %v4286
    %v5217 = vpack.c.b16 %v4297, %v4287
    %v5218 = vpack.c.b16 %v4298, %v4288
    %v5219 = vpack.c.b16 %v4299, %v4289
    %v5220 = vpack.c.b16 %v4300, %v4290
    %v5221 = vpack.c.b16 %v4311, %v4301
    %v5222 = vpack.c.b16 %v4312, %v4302
    %v5223 = vpack.c.b16 %v4313, %v4303
    %v5224 = vpack.c.b16 %v4314, %v4304
    %v5225 = vpack.c.b16 %v4315, %v4305
    %v5226 = vpack.c.b16 %v4316, %v4306
    %v5227 = vpack.c.b16 %v4317, %v4307
    %v5228 = vpack.c.b16 %v4318, %v4308
    %v5229 = vpack.c.b16 %v4319, %v4309
    %v5230 = vpack.c.b16 %v4320, %v4310
    %v5231 = vpack.c.b16 %v4331, %v4321
    %v5232 = vpack.c.b16 %v4332, %v4322
    %v5233 = vpack.c.b16 %v4333, %v4323
    %v5234 = vpack.c.b16 %v4334, %v4324
    %v5235 = vpack.c.b16 %v4335, %v4325
    %v5236 = vpack.c.b16 %v4336, %v4326
    %v5237 = vpack.c.b16 %v4337, %v4327
    %v5238 = vpack.c.b16 %v4338, %v4328
    %v5239 = vpack.c.b16 %v4339, %v4329
    %v5240 = vpack.c.b16 %v4340, %v4330
    %v5241 = vpack.c.b16 %v4351, %v4341
    %v5242 = vpack.c.b16 %v4352, %v4342
    %v5243 = vpack.c.b16 %v4353, %v4343
    %v5244 = vpack.c.b16 %v4354, %v4344
    %v5245 = vpack.c.b16 %v4355, %v4345
    %v5246 = vpack.c.b16 %v4356, %v4346
    %v5247 = vpack.c.b16 %v4357, %v4347
    %v5248 = vpack.c.b16 %v4358, %v4348
    %v5249 = vpack.c.b16 %v4359, %v4349
    %v5250 = vpack.c.b16 %v4360, %v4350
    %v5251 = vpack.c.b16 %v4371, %v4361
    %v5252 = vpack.c.b16 %v4372, %v4362
    %v5253 = vpack.c.b16 %v4373, %v4363
    %v5254 = vpack.c.b16 %v4374, %v4364
    %v5255 = vpack.c.b16 %v4375, %v4365
    %v5256 = vpack.c.b16 %v4376, %v4366
    %v5257 = vpack.c.b16 %v4377, %v4367
    %v5258 = vpack.c.b16 %v4378, %v4368
    %v5259 = vpack.c.b16 %v4379, %v4369
    %v5260 = vpack.c.b16 %v4380, %v4370
    %v5261 = vpack.c.b16 %v4391, %v4381
    %v5262 = vpack.c.b16 %v4392, %v4382
    %v5263 = vpack.c.b16 %v4393, %v4383
    %v5264 = vpack.c.b16 %v4394, %v4384
    %v5265 = vpack.c.b16 %v4395, %v4385
    %v5266 = vpack.c.b16 %v4396, %v4386
    %v5267 = vpack.c.b16 %v4397, %v4387
    %v5268 = vpack.c.b16 %v4398, %v4388
    %v5269 = vpack.c.b16 %v4399, %v4389
    %v5270 = vpack.c.b16 %v4400, %v4390
    %v5271 = vpack.c.b16 %v4411, %v4401
    %v5272 = vpack.c.b16 %v4412, %v4402
    %v5273 = vpack.c.b16 %v4413, %v4403
    %v5274 = vpack.c.b16 %v4414, %v4404
    %v5275 = vpack.c.b16 %v4415, %v4405
    %v5276 = vpack.c.b16 %v4416, %v4406
    %v5277 = vpack.c.b16 %v4417, %v4407
    %v5278 = vpack.c.b16 %v4418, %v4408
    %v5279 = vpack.c.b16 %v4419, %v4409
    %v5280 = vpack.c.b16 %v4420, %v4410
    %v5281 = vpack.c.b16 %v4431, %v4421
    %v5282 = vpack.c.b16 %v4432, %v4422
    %v5283 = vpack.c.b16 %v4433, %v4423
    %v5284 = vpack.c.b16 %v4434, %v4424
    %v5285 = vpack.c.b16 %v4435, %v4425
    %v5286 = vpack.c.b16 %v4436, %v4426
    %v5287 = vpack.c.b16 %v4437, %v4427
    %v5288 = vpack.c.b16 %v4438, %v4428
    %v5289 = vpack.c.b16 %v4439, %v4429
    %v5290 = vpack.c.b16 %v4440, %v4430
    %v5291 = vpack.c.b16 %v4451, %v4441
    %v5292 = vpack.c.b16 %v4452, %v4442
    %v5293 = vpack.c.b16 %v4453, %v4443
    %v5294 = vpack.c.b16 %v4454, %v4444
    %v5295 = vpack.c.b16 %v4455, %v4445
    %v5296 = vpack.c.b16 %v4456, %v4446
    %v5297 = vpack.c.b16 %v4457, %v4447
    %v5298 = vpack.c.b16 %v4458, %v4448
    %v5299 = vpack.c.b16 %v4459, %v4449
    %v5300 = vpack.c.b16 %v4460, %v4450
    %v5301 = vpack.c.b16 %v4471, %v4461
    %v5302 = vpack.c.b16 %v4472, %v4462
    %v5303 = vpack.c.b16 %v4473, %v4463
    %v5304 = vpack.c.b16 %v4474, %v4464
    %v5305 = vpack.c.b16 %v4475, %v4465
    %v5306 = vpack.c.b16 %v4476, %v4466
    %v5307 = vpack.c.b16 %v4477, %v4467
    %v5308 = vpack.c.b16 %v4478, %v4468
    %v5309 = vpack.c.b16 %v4479, %v4469
    %v5310 = vpack.c.b16 %v4480, %v4470
    %v5311 = vpack.c.b16 %v4491, %v4481
    %v5312 = vpack.c.b16 %v4492, %v4482
    %v5313 = vpack.c.b16 %v4493, %v4483
    %v5314 = vpack.c.b16 %v4494, %v4484
    %v5315 = vpack.c.b16 %v4495, %v4485
    %v5316 = vpack.c.b16 %v4496, %v4486
    %v5317 = vpack.c.b16 %v4497, %v4487
    %v5318 = vpack.c.b16 %v4498, %v4488
    %v5319 = vpack.c.b16 %v4499, %v4489
    %v5320 = vpack.c.b16 %v4500, %v4490
    %v5321 = vpack.c.b16 %v4511, %v4501
    %v5322 = vpack.c.b16 %v4512, %v4502
    %v5323 = vpack.c.b16 %v4513, %v4503
    %v5324 = vpack.c.b16 %v4514, %v4504
    %v5325 = vpack.c.b16 %v4515, %v4505
    %v5326 = vpack.c.b16 %v4516, %v4506
    %v5327 = vpack.c.b16 %v4517, %v4507
    %v5328 = vpack.c.b16 %v4518, %v4508
    %v5329 = vpack.c.b16 %v4519, %v4509
    %v5330 = vpack.c.b16 %v4520, %v4510
    %v5331 = vpack.c.b16 %v4531, %v4521
    %v5332 = vpack.c.b16 %v4532, %v4522
    %v5333 = vpack.c.b16 %v4533, %v4523
    %v5334 = vpack.c.b16 %v4534, %v4524
    %v5335 = vpack.c.b16 %v4535, %v4525
    %v5336 = vpack.c.b16 %v4536, %v4526
    %v5337 = vpack.c.b16 %v4537, %v4527
    %v5338 = vpack.c.b16 %v4538, %v4528
    %v5339 = vpack.c.b16 %v4539, %v4529
    %v5340 = vpack.c.b16 %v4540, %v4530
    %6141 = vmatprep.subr.bf16.mxu0 %v4612
    %6142 = vmatpush1.bf16.msra.mxu0 %v4611
    %6143 = vmatprep.subr.bf16.mxu0 %v4602
    %6144 = vmatpush1.bf16.msra.mxu0 %v4601
    %6145 = vmatprep.subr.bf16.mxu0 %v4592
    %6146 = vmatpush1.bf16.msra.mxu0 %v4591
    %6147 = vmatprep.subr.bf16.mxu0 %v4582
    %6148 = vmatpush1.bf16.msra.mxu0 %v4581
    %6149 = vmatprep.subr.bf16.mxu0 %v4572
    %6150 = vmatpush1.bf16.msra.mxu0 %v4571
    %6151 = vmatprep.subr.bf16.mxu0 %v4562
    %6152 = vmatpush1.bf16.msra.mxu0 %v4561
    %6153 = vmatprep.subr.bf16.mxu0 %v4552
    %6154 = vmatpush1.bf16.msra.mxu0 %v4551
    %6155 = vmatprep.subr.bf16.mxu0 %v4542
    %6156 = vmatpush1.bf16.msra.mxu0 %v4541
    %6157 = vmatprep.subr.bf16.mxu0 %v4692
    %6158 = vmatpush2.bf16.msra.mxu0 %v4691
    %6159 = vmatprep.subr.bf16.mxu0 %v4682
    %6160 = vmatpush2.bf16.msra.mxu0 %v4681
    %6161 = vmatprep.subr.bf16.mxu0 %v4672
    %6162 = vmatpush2.bf16.msra.mxu0 %v4671
    %6163 = vmatprep.subr.bf16.mxu0 %v4662
    %6164 = vmatpush2.bf16.msra.mxu0 %v4661
    %6165 = vmatprep.subr.bf16.mxu0 %v4652
    %6166 = vmatpush2.bf16.msra.mxu0 %v4651
    %6167 = vmatprep.subr.bf16.mxu0 %v4642
    %6168 = vmatpush2.bf16.msra.mxu0 %v4641
    %6169 = vmatprep.subr.bf16.mxu0 %v4632
    %6170 = vmatpush2.bf16.msra.mxu0 %v4631
    %6171 = vmatprep.subr.bf16.mxu0 %v4622
    %6172 = vmatpush2.bf16.msra.mxu0 %v4621
    %6173 = vmatprep.mubr.bf16.mxu0 %v1332
    %6174 = vmatmul.mubr.bf16.gmra.mxu0 %v1331
    %v6175 = vpop.f32.mrf.mxu0
    %v6176 = vadd.f32 0.0, %v6175
    %v6177 = vpop.f32.mrf.mxu0
    %v6178 = vadd.f32 0.0, %v6177
    %v6179 = vpop.f32.mrf.mxu0
    %v6180 = vpop.f32.mrf.mxu0
    %6181 = vdwg.mxu0
    %6182 = vmatprep.subr.bf16.mxu0 %v4772
    %6183 = vmatpush1.bf16.msra.mxu0 %v4771
    %6184 = vmatprep.subr.bf16.mxu0 %v4762
    %6185 = vmatpush1.bf16.msra.mxu0 %v4761
    %6186 = vmatprep.subr.bf16.mxu0 %v4752
    %6187 = vmatpush1.bf16.msra.mxu0 %v4751
    %6188 = vmatprep.subr.bf16.mxu0 %v4742
    %6189 = vmatpush1.bf16.msra.mxu0 %v4741
    %6190 = vmatprep.subr.bf16.mxu0 %v4732
    %6191 = vmatpush1.bf16.msra.mxu0 %v4731
    %6192 = vmatprep.subr.bf16.mxu0 %v4722
    %6193 = vmatpush1.bf16.msra.mxu0 %v4721
    %6194 = vmatprep.subr.bf16.mxu0 %v4712
    %6195 = vmatpush1.bf16.msra.mxu0 %v4711
    %6196 = vmatprep.subr.bf16.mxu0 %v4702
    %6197 = vmatpush1.bf16.msra.mxu0 %v4701
    %6198 = vmatprep.subr.bf16.mxu0 %v4852
    %6199 = vmatpush2.bf16.msra.mxu0 %v4851
    %6200 = vmatprep.subr.bf16.mxu0 %v4842
    %6201 = vmatpush2.bf16.msra.mxu0 %v4841
    %6202 = vmatprep.subr.bf16.mxu0 %v4832
    %6203 = vmatpush2.bf16.msra.mxu0 %v4831
    %6204 = vmatprep.subr.bf16.mxu0 %v4822
    %6205 = vmatpush2.bf16.msra.mxu0 %v4821
    %6206 = vmatprep.subr.bf16.mxu0 %v4812
    %6207 = vmatpush2.bf16.msra.mxu0 %v4811
    %6208 = vmatprep.subr.bf16.mxu0 %v4802
    %6209 = vmatpush2.bf16.msra.mxu0 %v4801
    %6210 = vmatprep.subr.bf16.mxu0 %v4792
    %6211 = vmatpush2.bf16.msra.mxu0 %v4791
    %6212 = vmatprep.subr.bf16.mxu0 %v4782
    %6213 = vmatpush2.bf16.msra.mxu0 %v4781
    %6214 = vmatprep.mubr.bf16.mxu0 %v1334
    %6215 = vmatmul.mubr.bf16.gmra.mxu0 %v1333
    %v6216 = vpop.f32.mrf.mxu0
    %v6217 = vadd.f32 %v6176, %v6216
    %v6218 = vpop.f32.mrf.mxu0
    %v6219 = vadd.f32 %v6178, %v6218
    %v6220 = vpop.f32.mrf.mxu0
    %v6221 = vpop.f32.mrf.mxu0
    %6222 = vdwg.mxu0
    %6223 = vmatprep.subr.bf16.mxu0 %v4932
    %6224 = vmatpush1.bf16.msra.mxu0 %v4931
    %6225 = vmatprep.subr.bf16.mxu0 %v4922
    %6226 = vmatpush1.bf16.msra.mxu0 %v4921
    %6227 = vmatprep.subr.bf16.mxu0 %v4912
    %6228 = vmatpush1.bf16.msra.mxu0 %v4911
    %6229 = vmatprep.subr.bf16.mxu0 %v4902
    %6230 = vmatpush1.bf16.msra.mxu0 %v4901
    %6231 = vmatprep.subr.bf16.mxu0 %v4892
    %6232 = vmatpush1.bf16.msra.mxu0 %v4891
    %6233 = vmatprep.subr.bf16.mxu0 %v4882
    %6234 = vmatpush1.bf16.msra.mxu0 %v4881
    %6235 = vmatprep.subr.bf16.mxu0 %v4872
    %6236 = vmatpush1.bf16.msra.mxu0 %v4871
    %6237 = vmatprep.subr.bf16.mxu0 %v4862
    %6238 = vmatpush1.bf16.msra.mxu0 %v4861
    %6239 = vmatprep.subr.bf16.mxu0 %v5012
    %6240 = vmatpush2.bf16.msra.mxu0 %v5011
    %6241 = vmatprep.subr.bf16.mxu0 %v5002
    %6242 = vmatpush2.bf16.msra.mxu0 %v5001
    %6243 = vmatprep.subr.bf16.mxu0 %v4992
    %6244 = vmatpush2.bf16.msra.mxu0 %v4991
    %6245 = vmatprep.subr.bf16.mxu0 %v4982
    %6246 = vmatpush2.bf16.msra.mxu0 %v4981
    %6247 = vmatprep.subr.bf16.mxu0 %v4972
    %6248 = vmatpush2.bf16.msra.mxu0 %v4971
    %6249 = vmatprep.subr.bf16.mxu0 %v4962
    %6250 = vmatpush2.bf16.msra.mxu0 %v4961
    %6251 = vmatprep.subr.bf16.mxu0 %v4952
    %6252 = vmatpush2.bf16.msra.mxu0 %v4951
    %6253 = vmatprep.subr.bf16.mxu0 %v4942
    %6254 = vmatpush2.bf16.msra.mxu0 %v4941
    %6255 = vmatprep.mubr.bf16.mxu0 %v1336
    %6256 = vmatmul.mubr.bf16.gmra.mxu0 %v1335
    %v6257 = vpop.f32.mrf.mxu0
    %v6258 = vadd.f32 %v6217, %v6257
    %v6259 = vpop.f32.mrf.mxu0
    %v6260 = vadd.f32 %v6219, %v6259
    %v6261 = vpop.f32.mrf.mxu0
    %v6262 = vpop.f32.mrf.mxu0
    %6263 = vdwg.mxu0
    %6264 = vmatprep.subr.bf16.mxu0 %v5092
    %6265 = vmatpush1.bf16.msra.mxu0 %v5091
    %6266 = vmatprep.subr.bf16.mxu0 %v5082
    %6267 = vmatpush1.bf16.msra.mxu0 %v5081
    %6268 = vmatprep.subr.bf16.mxu0 %v5072
    %6269 = vmatpush1.bf16.msra.mxu0 %v5071
    %6270 = vmatprep.subr.bf16.mxu0 %v5062
    %6271 = vmatpush1.bf16.msra.mxu0 %v5061
    %6272 = vmatprep.subr.bf16.mxu0 %v5052
    %6273 = vmatpush1.bf16.msra.mxu0 %v5051
    %6274 = vmatprep.subr.bf16.mxu0 %v5042
    %6275 = vmatpush1.bf16.msra.mxu0 %v5041
    %6276 = vmatprep.subr.bf16.mxu0 %v5032
    %6277 = vmatpush1.bf16.msra.mxu0 %v5031
    %6278 = vmatprep.subr.bf16.mxu0 %v5022
    %6279 = vmatpush1.bf16.msra.mxu0 %v5021
    %6280 = vmatprep.subr.bf16.mxu0 %v5172
    %6281 = vmatpush2.bf16.msra.mxu0 %v5171
    %6282 = vmatprep.subr.bf16.mxu0 %v5162
    %6283 = vmatpush2.bf16.msra.mxu0 %v5161
    %6284 = vmatprep.subr.bf16.mxu0 %v5152
    %6285 = vmatpush2.bf16.msra.mxu0 %v5151
    %6286 = vmatprep.subr.bf16.mxu0 %v5142
    %6287 = vmatpush2.bf16.msra.mxu0 %v5141
    %6288 = vmatprep.subr.bf16.mxu0 %v5132
    %6289 = vmatpush2.bf16.msra.mxu0 %v5131
    %6290 = vmatprep.subr.bf16.mxu0 %v5122
    %6291 = vmatpush2.bf16.msra.mxu0 %v5121
    %6292 = vmatprep.subr.bf16.mxu0 %v5112
    %6293 = vmatpush2.bf16.msra.mxu0 %v5111
    %6294 = vmatprep.subr.bf16.mxu0 %v5102
    %6295 = vmatpush2.bf16.msra.mxu0 %v5101
    %6296 = vmatprep.mubr.bf16.mxu0 %v1338
    %6297 = vmatmul.mubr.bf16.gmra.mxu0 %v1337
    %v6298 = vpop.f32.mrf.mxu0
    %v6299 = vadd.f32 %v6258, %v6298
    %v6300 = vpop.f32.mrf.mxu0
    %v6301 = vadd.f32 %v6260, %v6300
    %v6302 = vpop.f32.mrf.mxu0
    %v6303 = vpop.f32.mrf.mxu0
    %6304 = vdwg.mxu0
    %6305 = vmatprep.subr.bf16.mxu0 %v5252
    %6306 = vmatpush1.bf16.msra.mxu0 %v5251
    %6307 = vmatprep.subr.bf16.mxu0 %v5242
    %6308 = vmatpush1.bf16.msra.mxu0 %v5241
    %6309 = vmatprep.subr.bf16.mxu0 %v5232
    %6310 = vmatpush1.bf16.msra.mxu0 %v5231
    %6311 = vmatprep.subr.bf16.mxu0 %v5222
    %6312 = vmatpush1.bf16.msra.mxu0 %v5221
    %6313 = vmatprep.subr.bf16.mxu0 %v5212
    %6314 = vmatpush1.bf16.msra.mxu0 %v5211
    %6315 = vmatprep.subr.bf16.mxu0 %v5202
    %6316 = vmatpush1.bf16.msra.mxu0 %v5201
    %6317 = vmatprep.subr.bf16.mxu0 %v5192
    %6318 = vmatpush1.bf16.msra.mxu0 %v5191
    %6319 = vmatprep.subr.bf16.mxu0 %v5182
    %6320 = vmatpush1.bf16.msra.mxu0 %v5181
    %6321 = vmatprep.subr.bf16.mxu0 %v5332
    %6322 = vmatpush2.bf16.msra.mxu0 %v5331
    %6323 = vmatprep.subr.bf16.mxu0 %v5322
    %6324 = vmatpush2.bf16.msra.mxu0 %v5321
    %6325 = vmatprep.subr.bf16.mxu0 %v5312
    %6326 = vmatpush2.bf16.msra.mxu0 %v5311
    %6327 = vmatprep.subr.bf16.mxu0 %v5302
    %6328 = vmatpush2.bf16.msra.mxu0 %v5301
    %6329 = vmatprep.subr.bf16.mxu0 %v5292
    %6330 = vmatpush2.bf16.msra.mxu0 %v5291
    %6331 = vmatprep.subr.bf16.mxu0 %v5282
    %6332 = vmatpush2.bf16.msra.mxu0 %v5281
    %6333 = vmatprep.subr.bf16.mxu0 %v5272
    %6334 = vmatpush2.bf16.msra.mxu0 %v5271
    %6335 = vmatprep.subr.bf16.mxu0 %v5262
    %6336 = vmatpush2.bf16.msra.mxu0 %v5261
    %6337 = vmatprep.mubr.bf16.mxu0 %v1340
    %6338 = vmatmul.mubr.bf16.gmra.mxu0 %v1339
    %v6339 = vpop.f32.mrf.mxu0
    %v6340 = vadd.f32 %v6299, %v6339
    %v6341 = vpop.f32.mrf.mxu0
    %v6342 = vadd.f32 %v6301, %v6341
    %v6343 = vpop.f32.mrf.mxu0
    %v6344 = vpop.f32.mrf.mxu0
    %6345 = vdwg.mxu0
    %6346 = vmatprep.subr.bf16.mxu0 %v4614
    %6347 = vmatpush1.bf16.msra.mxu0 %v4613
    %6348 = vmatprep.subr.bf16.mxu0 %v4604
    %6349 = vmatpush1.bf16.msra.mxu0 %v4603
    %6350 = vmatprep.subr.bf16.mxu0 %v4594
    %6351 = vmatpush1.bf16.msra.mxu0 %v4593
    %6352 = vmatprep.subr.bf16.mxu0 %v4584
    %6353 = vmatpush1.bf16.msra.mxu0 %v4583
    %6354 = vmatprep.subr.bf16.mxu0 %v4574
    %6355 = vmatpush1.bf16.msra.mxu0 %v4573
    %6356 = vmatprep.subr.bf16.mxu0 %v4564
    %6357 = vmatpush1.bf16.msra.mxu0 %v4563
    %6358 = vmatprep.subr.bf16.mxu0 %v4554
    %6359 = vmatpush1.bf16.msra.mxu0 %v4553
    %6360 = vmatprep.subr.bf16.mxu0 %v4544
    %6361 = vmatpush1.bf16.msra.mxu0 %v4543
    %6362 = vmatprep.subr.bf16.mxu0 %v4694
    %6363 = vmatpush2.bf16.msra.mxu0 %v4693
    %6364 = vmatprep.subr.bf16.mxu0 %v4684
    %6365 = vmatpush2.bf16.msra.mxu0 %v4683
    %6366 = vmatprep.subr.bf16.mxu0 %v4674
    %6367 = vmatpush2.bf16.msra.mxu0 %v4673
    %6368 = vmatprep.subr.bf16.mxu0 %v4664
    %6369 = vmatpush2.bf16.msra.mxu0 %v4663
    %6370 = vmatprep.subr.bf16.mxu0 %v4654
    %6371 = vmatpush2.bf16.msra.mxu0 %v4653
    %6372 = vmatprep.subr.bf16.mxu0 %v4644
    %6373 = vmatpush2.bf16.msra.mxu0 %v4643
    %6374 = vmatprep.subr.bf16.mxu0 %v4634
    %6375 = vmatpush2.bf16.msra.mxu0 %v4633
    %6376 = vmatprep.subr.bf16.mxu0 %v4624
    %6377 = vmatpush2.bf16.msra.mxu0 %v4623
    %6378 = vmatprep.mubr.bf16.mxu0 %v1332
    %6379 = vmatmul.mubr.bf16.gmra.mxu0 %v1331
    %v6380 = vpop.f32.mrf.mxu0
    %v6381 = vadd.f32 0.0, %v6380
    %v6382 = vpop.f32.mrf.mxu0
    %v6383 = vadd.f32 0.0, %v6382
    %v6384 = vpop.f32.mrf.mxu0
    %v6385 = vpop.f32.mrf.mxu0
    %6386 = vdwg.mxu0
    %6387 = vmatprep.subr.bf16.mxu0 %v4774
    %6388 = vmatpush1.bf16.msra.mxu0 %v4773
    %6389 = vmatprep.subr.bf16.mxu0 %v4764
    %6390 = vmatpush1.bf16.msra.mxu0 %v4763
    %6391 = vmatprep.subr.bf16.mxu0 %v4754
    %6392 = vmatpush1.bf16.msra.mxu0 %v4753
    %6393 = vmatprep.subr.bf16.mxu0 %v4744
    %6394 = vmatpush1.bf16.msra.mxu0 %v4743
    %6395 = vmatprep.subr.bf16.mxu0 %v4734
    %6396 = vmatpush1.bf16.msra.mxu0 %v4733
    %6397 = vmatprep.subr.bf16.mxu0 %v4724
    %6398 = vmatpush1.bf16.msra.mxu0 %v4723
    %6399 = vmatprep.subr.bf16.mxu0 %v4714
    %6400 = vmatpush1.bf16.msra.mxu0 %v4713
    %6401 = vmatprep.subr.bf16.mxu0 %v4704
    %6402 = vmatpush1.bf16.msra.mxu0 %v4703
    %6403 = vmatprep.subr.bf16.mxu0 %v4854
    %6404 = vmatpush2.bf16.msra.mxu0 %v4853
    %6405 = vmatprep.subr.bf16.mxu0 %v4844
    %6406 = vmatpush2.bf16.msra.mxu0 %v4843
    %6407 = vmatprep.subr.bf16.mxu0 %v4834
    %6408 = vmatpush2.bf16.msra.mxu0 %v4833
    %6409 = vmatprep.subr.bf16.mxu0 %v4824
    %6410 = vmatpush2.bf16.msra.mxu0 %v4823
    %6411 = vmatprep.subr.bf16.mxu0 %v4814
    %6412 = vmatpush2.bf16.msra.mxu0 %v4813
    %6413 = vmatprep.subr.bf16.mxu0 %v4804
    %6414 = vmatpush2.bf16.msra.mxu0 %v4803
    %6415 = vmatprep.subr.bf16.mxu0 %v4794
    %6416 = vmatpush2.bf16.msra.mxu0 %v4793
    %6417 = vmatprep.subr.bf16.mxu0 %v4784
    %6418 = vmatpush2.bf16.msra.mxu0 %v4783
    %6419 = vmatprep.mubr.bf16.mxu0 %v1334
    %6420 = vmatmul.mubr.bf16.gmra.mxu0 %v1333
    %v6421 = vpop.f32.mrf.mxu0
    %v6422 = vadd.f32 %v6381, %v6421
    %v6423 = vpop.f32.mrf.mxu0
    %v6424 = vadd.f32 %v6383, %v6423
    %v6425 = vpop.f32.mrf.mxu0
    %v6426 = vpop.f32.mrf.mxu0
    %6427 = vdwg.mxu0
    %6428 = vmatprep.subr.bf16.mxu0 %v4934
    %6429 = vmatpush1.bf16.msra.mxu0 %v4933
    %6430 = vmatprep.subr.bf16.mxu0 %v4924
    %6431 = vmatpush1.bf16.msra.mxu0 %v4923
    %6432 = vmatprep.subr.bf16.mxu0 %v4914
    %6433 = vmatpush1.bf16.msra.mxu0 %v4913
    %6434 = vmatprep.subr.bf16.mxu0 %v4904
    %6435 = vmatpush1.bf16.msra.mxu0 %v4903
    %6436 = vmatprep.subr.bf16.mxu0 %v4894
    %6437 = vmatpush1.bf16.msra.mxu0 %v4893
    %6438 = vmatprep.subr.bf16.mxu0 %v4884
    %6439 = vmatpush1.bf16.msra.mxu0 %v4883
    %6440 = vmatprep.subr.bf16.mxu0 %v4874
    %6441 = vmatpush1.bf16.msra.mxu0 %v4873
    %6442 = vmatprep.subr.bf16.mxu0 %v4864
    %6443 = vmatpush1.bf16.msra.mxu0 %v4863
    %6444 = vmatprep.subr.bf16.mxu0 %v5014
    %6445 = vmatpush2.bf16.msra.mxu0 %v5013
    %6446 = vmatprep.subr.bf16.mxu0 %v5004
    %6447 = vmatpush2.bf16.msra.mxu0 %v5003
    %6448 = vmatprep.subr.bf16.mxu0 %v4994
    %6449 = vmatpush2.bf16.msra.mxu0 %v4993
    %6450 = vmatprep.subr.bf16.mxu0 %v4984
    %6451 = vmatpush2.bf16.msra.mxu0 %v4983
    %6452 = vmatprep.subr.bf16.mxu0 %v4974
    %6453 = vmatpush2.bf16.msra.mxu0 %v4973
    %6454 = vmatprep.subr.bf16.mxu0 %v4964
    %6455 = vmatpush2.bf16.msra.mxu0 %v4963
    %6456 = vmatprep.subr.bf16.mxu0 %v4954
    %6457 = vmatpush2.bf16.msra.mxu0 %v4953
    %6458 = vmatprep.subr.bf16.mxu0 %v4944
    %6459 = vmatpush2.bf16.msra.mxu0 %v4943
    %6460 = vmatprep.mubr.bf16.mxu0 %v1336
    %6461 = vmatmul.mubr.bf16.gmra.mxu0 %v1335
    %v6462 = vpop.f32.mrf.mxu0
    %v6463 = vadd.f32 %v6422, %v6462
    %v6464 = vpop.f32.mrf.mxu0
    %v6465 = vadd.f32 %v6424, %v6464
    %v6466 = vpop.f32.mrf.mxu0
    %v6467 = vpop.f32.mrf.mxu0
    %6468 = vdwg.mxu0
    %6469 = vmatprep.subr.bf16.mxu0 %v5094
    %6470 = vmatpush1.bf16.msra.mxu0 %v5093
    %6471 = vmatprep.subr.bf16.mxu0 %v5084
    %6472 = vmatpush1.bf16.msra.mxu0 %v5083
    %6473 = vmatprep.subr.bf16.mxu0 %v5074
    %6474 = vmatpush1.bf16.msra.mxu0 %v5073
    %6475 = vmatprep.subr.bf16.mxu0 %v5064
    %6476 = vmatpush1.bf16.msra.mxu0 %v5063
    %6477 = vmatprep.subr.bf16.mxu0 %v5054
    %6478 = vmatpush1.bf16.msra.mxu0 %v5053
    %6479 = vmatprep.subr.bf16.mxu0 %v5044
    %6480 = vmatpush1.bf16.msra.mxu0 %v5043
    %6481 = vmatprep.subr.bf16.mxu0 %v5034
    %6482 = vmatpush1.bf16.msra.mxu0 %v5033
    %6483 = vmatprep.subr.bf16.mxu0 %v5024
    %6484 = vmatpush1.bf16.msra.mxu0 %v5023
    %6485 = vmatprep.subr.bf16.mxu0 %v5174
    %6486 = vmatpush2.bf16.msra.mxu0 %v5173
    %6487 = vmatprep.subr.bf16.mxu0 %v5164
    %6488 = vmatpush2.bf16.msra.mxu0 %v5163
    %6489 = vmatprep.subr.bf16.mxu0 %v5154
    %6490 = vmatpush2.bf16.msra.mxu0 %v5153
    %6491 = vmatprep.subr.bf16.mxu0 %v5144
    %6492 = vmatpush2.bf16.msra.mxu0 %v5143
    %6493 = vmatprep.subr.bf16.mxu0 %v5134
    %6494 = vmatpush2.bf16.msra.mxu0 %v5133
    %6495 = vmatprep.subr.bf16.mxu0 %v5124
    %6496 = vmatpush2.bf16.msra.mxu0 %v5123
    %6497 = vmatprep.subr.bf16.mxu0 %v5114
    %6498 = vmatpush2.bf16.msra.mxu0 %v5113
    %6499 = vmatprep.subr.bf16.mxu0 %v5104
    %6500 = vmatpush2.bf16.msra.mxu0 %v5103
    %6501 = vmatprep.mubr.bf16.mxu0 %v1338
    %6502 = vmatmul.mubr.bf16.gmra.mxu0 %v1337
    %v6503 = vpop.f32.mrf.mxu0
    %v6504 = vadd.f32 %v6463, %v6503
    %v6505 = vpop.f32.mrf.mxu0
    %v6506 = vadd.f32 %v6465, %v6505
    %v6507 = vpop.f32.mrf.mxu0
    %v6508 = vpop.f32.mrf.mxu0
    %6509 = vdwg.mxu0
    %6510 = vmatprep.subr.bf16.mxu0 %v5254
    %6511 = vmatpush1.bf16.msra.mxu0 %v5253
    %6512 = vmatprep.subr.bf16.mxu0 %v5244
    %6513 = vmatpush1.bf16.msra.mxu0 %v5243
    %6514 = vmatprep.subr.bf16.mxu0 %v5234
    %6515 = vmatpush1.bf16.msra.mxu0 %v5233
    %6516 = vmatprep.subr.bf16.mxu0 %v5224
    %6517 = vmatpush1.bf16.msra.mxu0 %v5223
    %6518 = vmatprep.subr.bf16.mxu0 %v5214
    %6519 = vmatpush1.bf16.msra.mxu0 %v5213
    %6520 = vmatprep.subr.bf16.mxu0 %v5204
    %6521 = vmatpush1.bf16.msra.mxu0 %v5203
    %6522 = vmatprep.subr.bf16.mxu0 %v5194
    %6523 = vmatpush1.bf16.msra.mxu0 %v5193
    %6524 = vmatprep.subr.bf16.mxu0 %v5184
    %6525 = vmatpush1.bf16.msra.mxu0 %v5183
    %6526 = vmatprep.subr.bf16.mxu0 %v5334
    %6527 = vmatpush2.bf16.msra.mxu0 %v5333
    %6528 = vmatprep.subr.bf16.mxu0 %v5324
    %6529 = vmatpush2.bf16.msra.mxu0 %v5323
    %6530 = vmatprep.subr.bf16.mxu0 %v5314
    %6531 = vmatpush2.bf16.msra.mxu0 %v5313
    %6532 = vmatprep.subr.bf16.mxu0 %v5304
    %6533 = vmatpush2.bf16.msra.mxu0 %v5303
    %6534 = vmatprep.subr.bf16.mxu0 %v5294
    %6535 = vmatpush2.bf16.msra.mxu0 %v5293
    %6536 = vmatprep.subr.bf16.mxu0 %v5284
    %6537 = vmatpush2.bf16.msra.mxu0 %v5283
    %6538 = vmatprep.subr.bf16.mxu0 %v5274
    %6539 = vmatpush2.bf16.msra.mxu0 %v5273
    %6540 = vmatprep.subr.bf16.mxu0 %v5264
    %6541 = vmatpush2.bf16.msra.mxu0 %v5263
    %6542 = vmatprep.mubr.bf16.mxu0 %v1340
    %6543 = vmatmul.mubr.bf16.gmra.mxu0 %v1339
    %v6544 = vpop.f32.mrf.mxu0
    %v6545 = vadd.f32 %v6504, %v6544
    %v6546 = vpop.f32.mrf.mxu0
    %v6547 = vadd.f32 %v6506, %v6546
    %v6548 = vpop.f32.mrf.mxu0
    %v6549 = vpop.f32.mrf.mxu0
    %6550 = vdwg.mxu0
    %6551 = vmatprep.subr.bf16.mxu0 %v4616
    %6552 = vmatpush1.bf16.msra.mxu0 %v4615
    %6553 = vmatprep.subr.bf16.mxu0 %v4606
    %6554 = vmatpush1.bf16.msra.mxu0 %v4605
    %6555 = vmatprep.subr.bf16.mxu0 %v4596
    %6556 = vmatpush1.bf16.msra.mxu0 %v4595
    %6557 = vmatprep.subr.bf16.mxu0 %v4586
    %6558 = vmatpush1.bf16.msra.mxu0 %v4585
    %6559 = vmatprep.subr.bf16.mxu0 %v4576
    %6560 = vmatpush1.bf16.msra.mxu0 %v4575
    %6561 = vmatprep.subr.bf16.mxu0 %v4566
    %6562 = vmatpush1.bf16.msra.mxu0 %v4565
    %6563 = vmatprep.subr.bf16.mxu0 %v4556
    %6564 = vmatpush1.bf16.msra.mxu0 %v4555
    %6565 = vmatprep.subr.bf16.mxu0 %v4546
    %6566 = vmatpush1.bf16.msra.mxu0 %v4545
    %6567 = vmatprep.subr.bf16.mxu0 %v4696
    %6568 = vmatpush2.bf16.msra.mxu0 %v4695
    %6569 = vmatprep.subr.bf16.mxu0 %v4686
    %6570 = vmatpush2.bf16.msra.mxu0 %v4685
    %6571 = vmatprep.subr.bf16.mxu0 %v4676
    %6572 = vmatpush2.bf16.msra.mxu0 %v4675
    %6573 = vmatprep.subr.bf16.mxu0 %v4666
    %6574 = vmatpush2.bf16.msra.mxu0 %v4665
    %6575 = vmatprep.subr.bf16.mxu0 %v4656
    %6576 = vmatpush2.bf16.msra.mxu0 %v4655
    %6577 = vmatprep.subr.bf16.mxu0 %v4646
    %6578 = vmatpush2.bf16.msra.mxu0 %v4645
    %6579 = vmatprep.subr.bf16.mxu0 %v4636
    %6580 = vmatpush2.bf16.msra.mxu0 %v4635
    %6581 = vmatprep.subr.bf16.mxu0 %v4626
    %6582 = vmatpush2.bf16.msra.mxu0 %v4625
    %6583 = vmatprep.mubr.bf16.mxu0 %v1332
    %6584 = vmatmul.mubr.bf16.gmra.mxu0 %v1331
    %v6585 = vpop.f32.mrf.mxu0
    %v6586 = vadd.f32 0.0, %v6585
    %v6587 = vpop.f32.mrf.mxu0
    %v6588 = vadd.f32 0.0, %v6587
    %v6589 = vpop.f32.mrf.mxu0
    %v6590 = vpop.f32.mrf.mxu0
    %6591 = vdwg.mxu0
    %6592 = vmatprep.subr.bf16.mxu0 %v4776
    %6593 = vmatpush1.bf16.msra.mxu0 %v4775
    %6594 = vmatprep.subr.bf16.mxu0 %v4766
    %6595 = vmatpush1.bf16.msra.mxu0 %v4765
    %6596 = vmatprep.subr.bf16.mxu0 %v4756
    %6597 = vmatpush1.bf16.msra.mxu0 %v4755
    %6598 = vmatprep.subr.bf16.mxu0 %v4746
    %6599 = vmatpush1.bf16.msra.mxu0 %v4745
    %6600 = vmatprep.subr.bf16.mxu0 %v4736
    %6601 = vmatpush1.bf16.msra.mxu0 %v4735
    %6602 = vmatprep.subr.bf16.mxu0 %v4726
    %6603 = vmatpush1.bf16.msra.mxu0 %v4725
    %6604 = vmatprep.subr.bf16.mxu0 %v4716
    %6605 = vmatpush1.bf16.msra.mxu0 %v4715
    %6606 = vmatprep.subr.bf16.mxu0 %v4706
    %6607 = vmatpush1.bf16.msra.mxu0 %v4705
    %6608 = vmatprep.subr.bf16.mxu0 %v4856
    %6609 = vmatpush2.bf16.msra.mxu0 %v4855
    %6610 = vmatprep.subr.bf16.mxu0 %v4846
    %6611 = vmatpush2.bf16.msra.mxu0 %v4845
    %6612 = vmatprep.subr.bf16.mxu0 %v4836
    %6613 = vmatpush2.bf16.msra.mxu0 %v4835
    %6614 = vmatprep.subr.bf16.mxu0 %v4826
    %6615 = vmatpush2.bf16.msra.mxu0 %v4825
    %6616 = vmatprep.subr.bf16.mxu0 %v4816
    %6617 = vmatpush2.bf16.msra.mxu0 %v4815
    %6618 = vmatprep.subr.bf16.mxu0 %v4806
    %6619 = vmatpush2.bf16.msra.mxu0 %v4805
    %6620 = vmatprep.subr.bf16.mxu0 %v4796
    %6621 = vmatpush2.bf16.msra.mxu0 %v4795
    %6622 = vmatprep.subr.bf16.mxu0 %v4786
    %6623 = vmatpush2.bf16.msra.mxu0 %v4785
    %6624 = vmatprep.mubr.bf16.mxu0 %v1334
    %6625 = vmatmul.mubr.bf16.gmra.mxu0 %v1333
    %v6626 = vpop.f32.mrf.mxu0
    %v6627 = vadd.f32 %v6586, %v6626
    %v6628 = vpop.f32.mrf.mxu0
    %v6629 = vadd.f32 %v6588, %v6628
    %v6630 = vpop.f32.mrf.mxu0
    %v6631 = vpop.f32.mrf.mxu0
    %6632 = vdwg.mxu0
    %6633 = vmatprep.subr.bf16.mxu0 %v4936
    %6634 = vmatpush1.bf16.msra.mxu0 %v4935
    %6635 = vmatprep.subr.bf16.mxu0 %v4926
    %6636 = vmatpush1.bf16.msra.mxu0 %v4925
    %6637 = vmatprep.subr.bf16.mxu0 %v4916
    %6638 = vmatpush1.bf16.msra.mxu0 %v4915
    %6639 = vmatprep.subr.bf16.mxu0 %v4906
    %6640 = vmatpush1.bf16.msra.mxu0 %v4905
    %6641 = vmatprep.subr.bf16.mxu0 %v4896
    %6642 = vmatpush1.bf16.msra.mxu0 %v4895
    %6643 = vmatprep.subr.bf16.mxu0 %v4886
    %6644 = vmatpush1.bf16.msra.mxu0 %v4885
    %6645 = vmatprep.subr.bf16.mxu0 %v4876
    %6646 = vmatpush1.bf16.msra.mxu0 %v4875
    %6647 = vmatprep.subr.bf16.mxu0 %v4866
    %6648 = vmatpush1.bf16.msra.mxu0 %v4865
    %6649 = vmatprep.subr.bf16.mxu0 %v5016
    %6650 = vmatpush2.bf16.msra.mxu0 %v5015
    %6651 = vmatprep.subr.bf16.mxu0 %v5006
    %6652 = vmatpush2.bf16.msra.mxu0 %v5005
    %6653 = vmatprep.subr.bf16.mxu0 %v4996
    %6654 = vmatpush2.bf16.msra.mxu0 %v4995
    %6655 = vmatprep.subr.bf16.mxu0 %v4986
    %6656 = vmatpush2.bf16.msra.mxu0 %v4985
    %6657 = vmatprep.subr.bf16.mxu0 %v4976
    %6658 = vmatpush2.bf16.msra.mxu0 %v4975
    %6659 = vmatprep.subr.bf16.mxu0 %v4966
    %6660 = vmatpush2.bf16.msra.mxu0 %v4965
    %6661 = vmatprep.subr.bf16.mxu0 %v4956
    %6662 = vmatpush2.bf16.msra.mxu0 %v4955
    %6663 = vmatprep.subr.bf16.mxu0 %v4946
    %6664 = vmatpush2.bf16.msra.mxu0 %v4945
    %6665 = vmatprep.mubr.bf16.mxu0 %v1336
    %6666 = vmatmul.mubr.bf16.gmra.mxu0 %v1335
    %v6667 = vpop.f32.mrf.mxu0
    %v6668 = vadd.f32 %v6627, %v6667
    %v6669 = vpop.f32.mrf.mxu0
    %v6670 = vadd.f32 %v6629, %v6669
    %v6671 = vpop.f32.mrf.mxu0
    %v6672 = vpop.f32.mrf.mxu0
    %6673 = vdwg.mxu0
    %6674 = vmatprep.subr.bf16.mxu0 %v5096
    %6675 = vmatpush1.bf16.msra.mxu0 %v5095
    %6676 = vmatprep.subr.bf16.mxu0 %v5086
    %6677 = vmatpush1.bf16.msra.mxu0 %v5085
    %6678 = vmatprep.subr.bf16.mxu0 %v5076
    %6679 = vmatpush1.bf16.msra.mxu0 %v5075
    %6680 = vmatprep.subr.bf16.mxu0 %v5066
    %6681 = vmatpush1.bf16.msra.mxu0 %v5065
    %6682 = vmatprep.subr.bf16.mxu0 %v5056
    %6683 = vmatpush1.bf16.msra.mxu0 %v5055
    %6684 = vmatprep.subr.bf16.mxu0 %v5046
    %6685 = vmatpush1.bf16.msra.mxu0 %v5045
    %6686 = vmatprep.subr.bf16.mxu0 %v5036
    %6687 = vmatpush1.bf16.msra.mxu0 %v5035
    %6688 = vmatprep.subr.bf16.mxu0 %v5026
    %6689 = vmatpush1.bf16.msra.mxu0 %v5025
    %6690 = vmatprep.subr.bf16.mxu0 %v5176
    %6691 = vmatpush2.bf16.msra.mxu0 %v5175
    %6692 = vmatprep.subr.bf16.mxu0 %v5166
    %6693 = vmatpush2.bf16.msra.mxu0 %v5165
    %6694 = vmatprep.subr.bf16.mxu0 %v5156
    %6695 = vmatpush2.bf16.msra.mxu0 %v5155
    %6696 = vmatprep.subr.bf16.mxu0 %v5146
    %6697 = vmatpush2.bf16.msra.mxu0 %v5145
    %6698 = vmatprep.subr.bf16.mxu0 %v5136
    %6699 = vmatpush2.bf16.msra.mxu0 %v5135
    %6700 = vmatprep.subr.bf16.mxu0 %v5126
    %6701 = vmatpush2.bf16.msra.mxu0 %v5125
    %6702 = vmatprep.subr.bf16.mxu0 %v5116
    %6703 = vmatpush2.bf16.msra.mxu0 %v5115
    %6704 = vmatprep.subr.bf16.mxu0 %v5106
    %6705 = vmatpush2.bf16.msra.mxu0 %v5105
    %6706 = vmatprep.mubr.bf16.mxu0 %v1338
    %6707 = vmatmul.mubr.bf16.gmra.mxu0 %v1337
    %v6708 = vpop.f32.mrf.mxu0
    %v6709 = vadd.f32 %v6668, %v6708
    %v6710 = vpop.f32.mrf.mxu0
    %v6711 = vadd.f32 %v6670, %v6710
    %v6712 = vpop.f32.mrf.mxu0
    %v6713 = vpop.f32.mrf.mxu0
    %6714 = vdwg.mxu0
    %6715 = vmatprep.subr.bf16.mxu0 %v5256
    %6716 = vmatpush1.bf16.msra.mxu0 %v5255
    %6717 = vmatprep.subr.bf16.mxu0 %v5246
    %6718 = vmatpush1.bf16.msra.mxu0 %v5245
    %6719 = vmatprep.subr.bf16.mxu0 %v5236
    %6720 = vmatpush1.bf16.msra.mxu0 %v5235
    %6721 = vmatprep.subr.bf16.mxu0 %v5226
    %6722 = vmatpush1.bf16.msra.mxu0 %v5225
    %6723 = vmatprep.subr.bf16.mxu0 %v5216
    %6724 = vmatpush1.bf16.msra.mxu0 %v5215
    %6725 = vmatprep.subr.bf16.mxu0 %v5206
    %6726 = vmatpush1.bf16.msra.mxu0 %v5205
    %6727 = vmatprep.subr.bf16.mxu0 %v5196
    %6728 = vmatpush1.bf16.msra.mxu0 %v5195
    %6729 = vmatprep.subr.bf16.mxu0 %v5186
    %6730 = vmatpush1.bf16.msra.mxu0 %v5185
    %6731 = vmatprep.subr.bf16.mxu0 %v5336
    %6732 = vmatpush2.bf16.msra.mxu0 %v5335
    %6733 = vmatprep.subr.bf16.mxu0 %v5326
    %6734 = vmatpush2.bf16.msra.mxu0 %v5325
    %6735 = vmatprep.subr.bf16.mxu0 %v5316
    %6736 = vmatpush2.bf16.msra.mxu0 %v5315
    %6737 = vmatprep.subr.bf16.mxu0 %v5306
    %6738 = vmatpush2.bf16.msra.mxu0 %v5305
    %6739 = vmatprep.subr.bf16.mxu0 %v5296
    %6740 = vmatpush2.bf16.msra.mxu0 %v5295
    %6741 = vmatprep.subr.bf16.mxu0 %v5286
    %6742 = vmatpush2.bf16.msra.mxu0 %v5285
    %6743 = vmatprep.subr.bf16.mxu0 %v5276
    %6744 = vmatpush2.bf16.msra.mxu0 %v5275
    %6745 = vmatprep.subr.bf16.mxu0 %v5266
    %6746 = vmatpush2.bf16.msra.mxu0 %v5265
    %6747 = vmatprep.mubr.bf16.mxu0 %v1340
    %6748 = vmatmul.mubr.bf16.gmra.mxu0 %v1339
    %v6749 = vpop.f32.mrf.mxu0
    %v6750 = vadd.f32 %v6709, %v6749
    %v6751 = vpop.f32.mrf.mxu0
    %v6752 = vadd.f32 %v6711, %v6751
    %v6753 = vpop.f32.mrf.mxu0
    %v6754 = vpop.f32.mrf.mxu0
    %6755 = vdwg.mxu0
    %6756 = vmatprep.subr.bf16.mxu0 %v4618
    %6757 = vmatpush1.bf16.msra.mxu0 %v4617
    %6758 = vmatprep.subr.bf16.mxu0 %v4608
    %6759 = vmatpush1.bf16.msra.mxu0 %v4607
    %6760 = vmatprep.subr.bf16.mxu0 %v4598
    %6761 = vmatpush1.bf16.msra.mxu0 %v4597
    %6762 = vmatprep.subr.bf16.mxu0 %v4588
    %6763 = vmatpush1.bf16.msra.mxu0 %v4587
    %6764 = vmatprep.subr.bf16.mxu0 %v4578
    %6765 = vmatpush1.bf16.msra.mxu0 %v4577
    %6766 = vmatprep.subr.bf16.mxu0 %v4568
    %6767 = vmatpush1.bf16.msra.mxu0 %v4567
    %6768 = vmatprep.subr.bf16.mxu0 %v4558
    %6769 = vmatpush1.bf16.msra.mxu0 %v4557
    %6770 = vmatprep.subr.bf16.mxu0 %v4548
    %6771 = vmatpush1.bf16.msra.mxu0 %v4547
    %6772 = vmatprep.subr.bf16.mxu0 %v4698
    %6773 = vmatpush2.bf16.msra.mxu0 %v4697
    %6774 = vmatprep.subr.bf16.mxu0 %v4688
    %6775 = vmatpush2.bf16.msra.mxu0 %v4687
    %6776 = vmatprep.subr.bf16.mxu0 %v4678
    %6777 = vmatpush2.bf16.msra.mxu0 %v4677
    %6778 = vmatprep.subr.bf16.mxu0 %v4668
    %6779 = vmatpush2.bf16.msra.mxu0 %v4667
    %6780 = vmatprep.subr.bf16.mxu0 %v4658
    %6781 = vmatpush2.bf16.msra.mxu0 %v4657
    %6782 = vmatprep.subr.bf16.mxu0 %v4648
    %6783 = vmatpush2.bf16.msra.mxu0 %v4647
    %6784 = vmatprep.subr.bf16.mxu0 %v4638
    %6785 = vmatpush2.bf16.msra.mxu0 %v4637
    %6786 = vmatprep.subr.bf16.mxu0 %v4628
    %6787 = vmatpush2.bf16.msra.mxu0 %v4627
    %6788 = vmatprep.mubr.bf16.mxu0 %v1332
    %6789 = vmatmul.mubr.bf16.gmra.mxu0 %v1331
    %v6790 = vpop.f32.mrf.mxu0
    %v6791 = vadd.f32 0.0, %v6790
    %v6792 = vpop.f32.mrf.mxu0
    %v6793 = vadd.f32 0.0, %v6792
    %v6794 = vpop.f32.mrf.mxu0
    %v6795 = vpop.f32.mrf.mxu0
    %6796 = vdwg.mxu0
    %6797 = vmatprep.subr.bf16.mxu0 %v4778
    %6798 = vmatpush1.bf16.msra.mxu0 %v4777
    %6799 = vmatprep.subr.bf16.mxu0 %v4768
    %6800 = vmatpush1.bf16.msra.mxu0 %v4767
    %6801 = vmatprep.subr.bf16.mxu0 %v4758
    %6802 = vmatpush1.bf16.msra.mxu0 %v4757
    %6803 = vmatprep.subr.bf16.mxu0 %v4748
    %6804 = vmatpush1.bf16.msra.mxu0 %v4747
    %6805 = vmatprep.subr.bf16.mxu0 %v4738
    %6806 = vmatpush1.bf16.msra.mxu0 %v4737
    %6807 = vmatprep.subr.bf16.mxu0 %v4728
    %6808 = vmatpush1.bf16.msra.mxu0 %v4727
    %6809 = vmatprep.subr.bf16.mxu0 %v4718
    %6810 = vmatpush1.bf16.msra.mxu0 %v4717
    %6811 = vmatprep.subr.bf16.mxu0 %v4708
    %6812 = vmatpush1.bf16.msra.mxu0 %v4707
    %6813 = vmatprep.subr.bf16.mxu0 %v4858
    %6814 = vmatpush2.bf16.msra.mxu0 %v4857
    %6815 = vmatprep.subr.bf16.mxu0 %v4848
    %6816 = vmatpush2.bf16.msra.mxu0 %v4847
    %6817 = vmatprep.subr.bf16.mxu0 %v4838
    %6818 = vmatpush2.bf16.msra.mxu0 %v4837
    %6819 = vmatprep.subr.bf16.mxu0 %v4828
    %6820 = vmatpush2.bf16.msra.mxu0 %v4827
    %6821 = vmatprep.subr.bf16.mxu0 %v4818
    %6822 = vmatpush2.bf16.msra.mxu0 %v4817
    %6823 = vmatprep.subr.bf16.mxu0 %v4808
    %6824 = vmatpush2.bf16.msra.mxu0 %v4807
    %6825 = vmatprep.subr.bf16.mxu0 %v4798
    %6826 = vmatpush2.bf16.msra.mxu0 %v4797
    %6827 = vmatprep.subr.bf16.mxu0 %v4788
    %6828 = vmatpush2.bf16.msra.mxu0 %v4787
    %6829 = vmatprep.mubr.bf16.mxu0 %v1334
    %6830 = vmatmul.mubr.bf16.gmra.mxu0 %v1333
    %v6831 = vpop.f32.mrf.mxu0
    %v6832 = vadd.f32 %v6791, %v6831
    %v6833 = vpop.f32.mrf.mxu0
    %v6834 = vadd.f32 %v6793, %v6833
    %v6835 = vpop.f32.mrf.mxu0
    %v6836 = vpop.f32.mrf.mxu0
    %6837 = vdwg.mxu0
    %6838 = vmatprep.subr.bf16.mxu0 %v4938
    %6839 = vmatpush1.bf16.msra.mxu0 %v4937
    %6840 = vmatprep.subr.bf16.mxu0 %v4928
    %6841 = vmatpush1.bf16.msra.mxu0 %v4927
    %6842 = vmatprep.subr.bf16.mxu0 %v4918
    %6843 = vmatpush1.bf16.msra.mxu0 %v4917
    %6844 = vmatprep.subr.bf16.mxu0 %v4908
    %6845 = vmatpush1.bf16.msra.mxu0 %v4907
    %6846 = vmatprep.subr.bf16.mxu0 %v4898
    %6847 = vmatpush1.bf16.msra.mxu0 %v4897
    %6848 = vmatprep.subr.bf16.mxu0 %v4888
    %6849 = vmatpush1.bf16.msra.mxu0 %v4887
    %6850 = vmatprep.subr.bf16.mxu0 %v4878
    %6851 = vmatpush1.bf16.msra.mxu0 %v4877
    %6852 = vmatprep.subr.bf16.mxu0 %v4868
    %6853 = vmatpush1.bf16.msra.mxu0 %v4867
    %6854 = vmatprep.subr.bf16.mxu0 %v5018
    %6855 = vmatpush2.bf16.msra.mxu0 %v5017
    %6856 = vmatprep.subr.bf16.mxu0 %v5008
    %6857 = vmatpush2.bf16.msra.mxu0 %v5007
    %6858 = vmatprep.subr.bf16.mxu0 %v4998
    %6859 = vmatpush2.bf16.msra.mxu0 %v4997
    %6860 = vmatprep.subr.bf16.mxu0 %v4988
    %6861 = vmatpush2.bf16.msra.mxu0 %v4987
    %6862 = vmatprep.subr.bf16.mxu0 %v4978
    %6863 = vmatpush2.bf16.msra.mxu0 %v4977
    %6864 = vmatprep.subr.bf16.mxu0 %v4968
    %6865 = vmatpush2.bf16.msra.mxu0 %v4967
    %6866 = vmatprep.subr.bf16.mxu0 %v4958
    %6867 = vmatpush2.bf16.msra.mxu0 %v4957
    %6868 = vmatprep.subr.bf16.mxu0 %v4948
    %6869 = vmatpush2.bf16.msra.mxu0 %v4947
    %6870 = vmatprep.mubr.bf16.mxu0 %v1336
    %6871 = vmatmul.mubr.bf16.gmra.mxu0 %v1335
    %v6872 = vpop.f32.mrf.mxu0
    %v6873 = vadd.f32 %v6832, %v6872
    %v6874 = vpop.f32.mrf.mxu0
    %v6875 = vadd.f32 %v6834, %v6874
    %v6876 = vpop.f32.mrf.mxu0
    %v6877 = vpop.f32.mrf.mxu0
    %6878 = vdwg.mxu0
    %6879 = vmatprep.subr.bf16.mxu0 %v5098
    %6880 = vmatpush1.bf16.msra.mxu0 %v5097
    %6881 = vmatprep.subr.bf16.mxu0 %v5088
    %6882 = vmatpush1.bf16.msra.mxu0 %v5087
    %6883 = vmatprep.subr.bf16.mxu0 %v5078
    %6884 = vmatpush1.bf16.msra.mxu0 %v5077
    %6885 = vmatprep.subr.bf16.mxu0 %v5068
    %6886 = vmatpush1.bf16.msra.mxu0 %v5067
    %6887 = vmatprep.subr.bf16.mxu0 %v5058
    %6888 = vmatpush1.bf16.msra.mxu0 %v5057
    %6889 = vmatprep.subr.bf16.mxu0 %v5048
    %6890 = vmatpush1.bf16.msra.mxu0 %v5047
    %6891 = vmatprep.subr.bf16.mxu0 %v5038
    %6892 = vmatpush1.bf16.msra.mxu0 %v5037
    %6893 = vmatprep.subr.bf16.mxu0 %v5028
    %6894 = vmatpush1.bf16.msra.mxu0 %v5027
    %6895 = vmatprep.subr.bf16.mxu0 %v5178
    %6896 = vmatpush2.bf16.msra.mxu0 %v5177
    %6897 = vmatprep.subr.bf16.mxu0 %v5168
    %6898 = vmatpush2.bf16.msra.mxu0 %v5167
    %6899 = vmatprep.subr.bf16.mxu0 %v5158
    %6900 = vmatpush2.bf16.msra.mxu0 %v5157
    %6901 = vmatprep.subr.bf16.mxu0 %v5148
    %6902 = vmatpush2.bf16.msra.mxu0 %v5147
    %6903 = vmatprep.subr.bf16.mxu0 %v5138
    %6904 = vmatpush2.bf16.msra.mxu0 %v5137
    %6905 = vmatprep.subr.bf16.mxu0 %v5128
    %6906 = vmatpush2.bf16.msra.mxu0 %v5127
    %6907 = vmatprep.subr.bf16.mxu0 %v5118
    %6908 = vmatpush2.bf16.msra.mxu0 %v5117
    %6909 = vmatprep.subr.bf16.mxu0 %v5108
    %6910 = vmatpush2.bf16.msra.mxu0 %v5107
    %6911 = vmatprep.mubr.bf16.mxu0 %v1338
    %6912 = vmatmul.mubr.bf16.gmra.mxu0 %v1337
    %v6913 = vpop.f32.mrf.mxu0
    %v6914 = vadd.f32 %v6873, %v6913
    %v6915 = vpop.f32.mrf.mxu0
    %v6916 = vadd.f32 %v6875, %v6915
    %v6917 = vpop.f32.mrf.mxu0
    %v6918 = vpop.f32.mrf.mxu0
    %6919 = vdwg.mxu0
    %6920 = vmatprep.subr.bf16.mxu0 %v5258
    %6921 = vmatpush1.bf16.msra.mxu0 %v5257
    %6922 = vmatprep.subr.bf16.mxu0 %v5248
    %6923 = vmatpush1.bf16.msra.mxu0 %v5247
    %6924 = vmatprep.subr.bf16.mxu0 %v5238
    %6925 = vmatpush1.bf16.msra.mxu0 %v5237
    %6926 = vmatprep.subr.bf16.mxu0 %v5228
    %6927 = vmatpush1.bf16.msra.mxu0 %v5227
    %6928 = vmatprep.subr.bf16.mxu0 %v5218
    %6929 = vmatpush1.bf16.msra.mxu0 %v5217
    %6930 = vmatprep.subr.bf16.mxu0 %v5208
    %6931 = vmatpush1.bf16.msra.mxu0 %v5207
    %6932 = vmatprep.subr.bf16.mxu0 %v5198
    %6933 = vmatpush1.bf16.msra.mxu0 %v5197
    %6934 = vmatprep.subr.bf16.mxu0 %v5188
    %6935 = vmatpush1.bf16.msra.mxu0 %v5187
    %6936 = vmatprep.subr.bf16.mxu0 %v5338
    %6937 = vmatpush2.bf16.msra.mxu0 %v5337
    %6938 = vmatprep.subr.bf16.mxu0 %v5328
    %6939 = vmatpush2.bf16.msra.mxu0 %v5327
    %6940 = vmatprep.subr.bf16.mxu0 %v5318
    %6941 = vmatpush2.bf16.msra.mxu0 %v5317
    %6942 = vmatprep.subr.bf16.mxu0 %v5308
    %6943 = vmatpush2.bf16.msra.mxu0 %v5307
    %6944 = vmatprep.subr.bf16.mxu0 %v5298
    %6945 = vmatpush2.bf16.msra.mxu0 %v5297
    %6946 = vmatprep.subr.bf16.mxu0 %v5288
    %6947 = vmatpush2.bf16.msra.mxu0 %v5287
    %6948 = vmatprep.subr.bf16.mxu0 %v5278
    %6949 = vmatpush2.bf16.msra.mxu0 %v5277
    %6950 = vmatprep.subr.bf16.mxu0 %v5268
    %6951 = vmatpush2.bf16.msra.mxu0 %v5267
    %6952 = vmatprep.mubr.bf16.mxu0 %v1340
    %6953 = vmatmul.mubr.bf16.gmra.mxu0 %v1339
    %v6954 = vpop.f32.mrf.mxu0
    %v6955 = vadd.f32 %v6914, %v6954
    %v6956 = vpop.f32.mrf.mxu0
    %v6957 = vadd.f32 %v6916, %v6956
    %v6958 = vpop.f32.mrf.mxu0
    %v6959 = vpop.f32.mrf.mxu0
    %6960 = vdwg.mxu0
    %6961 = vmatprep.subr.bf16.mxu0 %v4620
    %6962 = vmatpush1.bf16.msra.mxu0 %v4619
    %6963 = vmatprep.subr.bf16.mxu0 %v4610
    %6964 = vmatpush1.bf16.msra.mxu0 %v4609
    %6965 = vmatprep.subr.bf16.mxu0 %v4600
    %6966 = vmatpush1.bf16.msra.mxu0 %v4599
    %6967 = vmatprep.subr.bf16.mxu0 %v4590
    %6968 = vmatpush1.bf16.msra.mxu0 %v4589
    %6969 = vmatprep.subr.bf16.mxu0 %v4580
    %6970 = vmatpush1.bf16.msra.mxu0 %v4579
    %6971 = vmatprep.subr.bf16.mxu0 %v4570
    %6972 = vmatpush1.bf16.msra.mxu0 %v4569
    %6973 = vmatprep.subr.bf16.mxu0 %v4560
    %6974 = vmatpush1.bf16.msra.mxu0 %v4559
    %6975 = vmatprep.subr.bf16.mxu0 %v4550
    %6976 = vmatpush1.bf16.msra.mxu0 %v4549
    %6977 = vmatprep.subr.bf16.mxu0 %v4700
    %6978 = vmatpush2.bf16.msra.mxu0 %v4699
    %6979 = vmatprep.subr.bf16.mxu0 %v4690
    %6980 = vmatpush2.bf16.msra.mxu0 %v4689
    %6981 = vmatprep.subr.bf16.mxu0 %v4680
    %6982 = vmatpush2.bf16.msra.mxu0 %v4679
    %6983 = vmatprep.subr.bf16.mxu0 %v4670
    %6984 = vmatpush2.bf16.msra.mxu0 %v4669
    %6985 = vmatprep.subr.bf16.mxu0 %v4660
    %6986 = vmatpush2.bf16.msra.mxu0 %v4659
    %6987 = vmatprep.subr.bf16.mxu0 %v4650
    %6988 = vmatpush2.bf16.msra.mxu0 %v4649
    %6989 = vmatprep.subr.bf16.mxu0 %v4640
    %6990 = vmatpush2.bf16.msra.mxu0 %v4639
    %6991 = vmatprep.subr.bf16.mxu0 %v4630
    %6992 = vmatpush2.bf16.msra.mxu0 %v4629
    %6993 = vmatprep.mubr.bf16.mxu0 %v1332
    %6994 = vmatmul.mubr.bf16.gmra.mxu0 %v1331
    %v6995 = vpop.f32.mrf.mxu0
    %v6996 = vadd.f32 0.0, %v6995
    %v6997 = vpop.f32.mrf.mxu0
    %v6998 = vadd.f32 0.0, %v6997
    %v6999 = vpop.f32.mrf.mxu0
    %v7000 = vpop.f32.mrf.mxu0
    %7001 = vdwg.mxu0
    %7002 = vmatprep.subr.bf16.mxu0 %v4780
    %7003 = vmatpush1.bf16.msra.mxu0 %v4779
    %7004 = vmatprep.subr.bf16.mxu0 %v4770
    %7005 = vmatpush1.bf16.msra.mxu0 %v4769
    %7006 = vmatprep.subr.bf16.mxu0 %v4760
    %7007 = vmatpush1.bf16.msra.mxu0 %v4759
    %7008 = vmatprep.subr.bf16.mxu0 %v4750
    %7009 = vmatpush1.bf16.msra.mxu0 %v4749
    %7010 = vmatprep.subr.bf16.mxu0 %v4740
    %7011 = vmatpush1.bf16.msra.mxu0 %v4739
    %7012 = vmatprep.subr.bf16.mxu0 %v4730
    %7013 = vmatpush1.bf16.msra.mxu0 %v4729
    %7014 = vmatprep.subr.bf16.mxu0 %v4720
    %7015 = vmatpush1.bf16.msra.mxu0 %v4719
    %7016 = vmatprep.subr.bf16.mxu0 %v4710
    %7017 = vmatpush1.bf16.msra.mxu0 %v4709
    %7018 = vmatprep.subr.bf16.mxu0 %v4860
    %7019 = vmatpush2.bf16.msra.mxu0 %v4859
    %7020 = vmatprep.subr.bf16.mxu0 %v4850
    %7021 = vmatpush2.bf16.msra.mxu0 %v4849
    %7022 = vmatprep.subr.bf16.mxu0 %v4840
    %7023 = vmatpush2.bf16.msra.mxu0 %v4839
    %7024 = vmatprep.subr.bf16.mxu0 %v4830
    %7025 = vmatpush2.bf16.msra.mxu0 %v4829
    %7026 = vmatprep.subr.bf16.mxu0 %v4820
    %7027 = vmatpush2.bf16.msra.mxu0 %v4819
    %7028 = vmatprep.subr.bf16.mxu0 %v4810
    %7029 = vmatpush2.bf16.msra.mxu0 %v4809
    %7030 = vmatprep.subr.bf16.mxu0 %v4800
    %7031 = vmatpush2.bf16.msra.mxu0 %v4799
    %7032 = vmatprep.subr.bf16.mxu0 %v4790
    %7033 = vmatpush2.bf16.msra.mxu0 %v4789
    %7034 = vmatprep.mubr.bf16.mxu0 %v1334
    %7035 = vmatmul.mubr.bf16.gmra.mxu0 %v1333
    %v7036 = vpop.f32.mrf.mxu0
    %v7037 = vadd.f32 %v6996, %v7036
    %v7038 = vpop.f32.mrf.mxu0
    %v7039 = vadd.f32 %v6998, %v7038
    %v7040 = vpop.f32.mrf.mxu0
    %v7041 = vpop.f32.mrf.mxu0
    %7042 = vdwg.mxu0
    %7043 = vmatprep.subr.bf16.mxu0 %v4940
    %7044 = vmatpush1.bf16.msra.mxu0 %v4939
    %7045 = vmatprep.subr.bf16.mxu0 %v4930
    %7046 = vmatpush1.bf16.msra.mxu0 %v4929
    %7047 = vmatprep.subr.bf16.mxu0 %v4920
    %7048 = vmatpush1.bf16.msra.mxu0 %v4919
    %7049 = vmatprep.subr.bf16.mxu0 %v4910
    %7050 = vmatpush1.bf16.msra.mxu0 %v4909
    %7051 = vmatprep.subr.bf16.mxu0 %v4900
    %7052 = vmatpush1.bf16.msra.mxu0 %v4899
    %7053 = vmatprep.subr.bf16.mxu0 %v4890
    %7054 = vmatpush1.bf16.msra.mxu0 %v4889
    %7055 = vmatprep.subr.bf16.mxu0 %v4880
    %7056 = vmatpush1.bf16.msra.mxu0 %v4879
    %7057 = vmatprep.subr.bf16.mxu0 %v4870
    %7058 = vmatpush1.bf16.msra.mxu0 %v4869
    %7059 = vmatprep.subr.bf16.mxu0 %v5020
    %7060 = vmatpush2.bf16.msra.mxu0 %v5019
    %7061 = vmatprep.subr.bf16.mxu0 %v5010
    %7062 = vmatpush2.bf16.msra.mxu0 %v5009
    %7063 = vmatprep.subr.bf16.mxu0 %v5000
    %7064 = vmatpush2.bf16.msra.mxu0 %v4999
    %7065 = vmatprep.subr.bf16.mxu0 %v4990
    %7066 = vmatpush2.bf16.msra.mxu0 %v4989
    %7067 = vmatprep.subr.bf16.mxu0 %v4980
    %7068 = vmatpush2.bf16.msra.mxu0 %v4979
    %7069 = vmatprep.subr.bf16.mxu0 %v4970
    %7070 = vmatpush2.bf16.msra.mxu0 %v4969
    %7071 = vmatprep.subr.bf16.mxu0 %v4960
    %7072 = vmatpush2.bf16.msra.mxu0 %v4959
    %7073 = vmatprep.subr.bf16.mxu0 %v4950
    %7074 = vmatpush2.bf16.msra.mxu0 %v4949
    %7075 = vmatprep.mubr.bf16.mxu0 %v1336
    %7076 = vmatmul.mubr.bf16.gmra.mxu0 %v1335
    %v7077 = vpop.f32.mrf.mxu0
    %v7078 = vadd.f32 %v7037, %v7077
    %v7079 = vpop.f32.mrf.mxu0
    %v7080 = vadd.f32 %v7039, %v7079
    %v7081 = vpop.f32.mrf.mxu0
    %v7082 = vpop.f32.mrf.mxu0
    %7083 = vdwg.mxu0
    %7084 = vmatprep.subr.bf16.mxu0 %v5100
    %7085 = vmatpush1.bf16.msra.mxu0 %v5099
    %7086 = vmatprep.subr.bf16.mxu0 %v5090
    %7087 = vmatpush1.bf16.msra.mxu0 %v5089
    %7088 = vmatprep.subr.bf16.mxu0 %v5080
    %7089 = vmatpush1.bf16.msra.mxu0 %v5079
    %7090 = vmatprep.subr.bf16.mxu0 %v5070
    %7091 = vmatpush1.bf16.msra.mxu0 %v5069
    %7092 = vmatprep.subr.bf16.mxu0 %v5060
    %7093 = vmatpush1.bf16.msra.mxu0 %v5059
    %7094 = vmatprep.subr.bf16.mxu0 %v5050
    %7095 = vmatpush1.bf16.msra.mxu0 %v5049
    %7096 = vmatprep.subr.bf16.mxu0 %v5040
    %7097 = vmatpush1.bf16.msra.mxu0 %v5039
    %7098 = vmatprep.subr.bf16.mxu0 %v5030
    %7099 = vmatpush1.bf16.msra.mxu0 %v5029
    %7100 = vmatprep.subr.bf16.mxu0 %v5180
    %7101 = vmatpush2.bf16.msra.mxu0 %v5179
    %7102 = vmatprep.subr.bf16.mxu0 %v5170
    %7103 = vmatpush2.bf16.msra.mxu0 %v5169
    %7104 = vmatprep.subr.bf16.mxu0 %v5160
    %7105 = vmatpush2.bf16.msra.mxu0 %v5159
    %7106 = vmatprep.subr.bf16.mxu0 %v5150
    %7107 = vmatpush2.bf16.msra.mxu0 %v5149
    %7108 = vmatprep.subr.bf16.mxu0 %v5140
    %7109 = vmatpush2.bf16.msra.mxu0 %v5139
    %7110 = vmatprep.subr.bf16.mxu0 %v5130
    %7111 = vmatpush2.bf16.msra.mxu0 %v5129
    %7112 = vmatprep.subr.bf16.mxu0 %v5120
    %7113 = vmatpush2.bf16.msra.mxu0 %v5119
    %7114 = vmatprep.subr.bf16.mxu0 %v5110
    %7115 = vmatpush2.bf16.msra.mxu0 %v5109
    %7116 = vmatprep.mubr.bf16.mxu0 %v1338
    %7117 = vmatmul.mubr.bf16.gmra.mxu0 %v1337
    %v7118 = vpop.f32.mrf.mxu0
    %v7119 = vadd.f32 %v7078, %v7118
    %v7120 = vpop.f32.mrf.mxu0
    %v7121 = vadd.f32 %v7080, %v7120
    %v7122 = vpop.f32.mrf.mxu0
    %v7123 = vpop.f32.mrf.mxu0
    %7124 = vdwg.mxu0
    %7125 = vmatprep.subr.bf16.mxu0 %v5260
    %7126 = vmatpush1.bf16.msra.mxu0 %v5259
    %7127 = vmatprep.subr.bf16.mxu0 %v5250
    %7128 = vmatpush1.bf16.msra.mxu0 %v5249
    %7129 = vmatprep.subr.bf16.mxu0 %v5240
    %7130 = vmatpush1.bf16.msra.mxu0 %v5239
    %7131 = vmatprep.subr.bf16.mxu0 %v5230
    %7132 = vmatpush1.bf16.msra.mxu0 %v5229
    %7133 = vmatprep.subr.bf16.mxu0 %v5220
    %7134 = vmatpush1.bf16.msra.mxu0 %v5219
    %7135 = vmatprep.subr.bf16.mxu0 %v5210
    %7136 = vmatpush1.bf16.msra.mxu0 %v5209
    %7137 = vmatprep.subr.bf16.mxu0 %v5200
    %7138 = vmatpush1.bf16.msra.mxu0 %v5199
    %7139 = vmatprep.subr.bf16.mxu0 %v5190
    %7140 = vmatpush1.bf16.msra.mxu0 %v5189
    %7141 = vmatprep.subr.bf16.mxu0 %v5340
    %7142 = vmatpush2.bf16.msra.mxu0 %v5339
    %7143 = vmatprep.subr.bf16.mxu0 %v5330
    %7144 = vmatpush2.bf16.msra.mxu0 %v5329
    %7145 = vmatprep.subr.bf16.mxu0 %v5320
    %7146 = vmatpush2.bf16.msra.mxu0 %v5319
    %7147 = vmatprep.subr.bf16.mxu0 %v5310
    %7148 = vmatpush2.bf16.msra.mxu0 %v5309
    %7149 = vmatprep.subr.bf16.mxu0 %v5300
    %7150 = vmatpush2.bf16.msra.mxu0 %v5299
    %7151 = vmatprep.subr.bf16.mxu0 %v5290
    %7152 = vmatpush2.bf16.msra.mxu0 %v5289
    %7153 = vmatprep.subr.bf16.mxu0 %v5280
    %7154 = vmatpush2.bf16.msra.mxu0 %v5279
    %7155 = vmatprep.subr.bf16.mxu0 %v5270
    %7156 = vmatpush2.bf16.msra.mxu0 %v5269
    %7157 = vmatprep.mubr.bf16.mxu0 %v1340
    %7158 = vmatmul.mubr.bf16.gmra.mxu0 %v1339
    %v7159 = vpop.f32.mrf.mxu0
    %v7160 = vadd.f32 %v7119, %v7159
    %v7161 = vpop.f32.mrf.mxu0
    %v7162 = vadd.f32 %v7121, %v7161
    %v7163 = vpop.f32.mrf.mxu0
    %v7164 = vpop.f32.mrf.mxu0
    %7165 = vdwg.mxu0
    %v7166 = vld [vmem:[#allocation13] sm:$0xff]
    %v7167 = vld [vmem:[#allocation13 + $0x8] sm:$0x3]
    %v7168 = vld [vmem:[#allocation14] sm:$0xff]
    %v7169 = vld [vmem:[#allocation14 + $0x8] sm:$0x3]
    %v7170 = vrot.slane %v6340, 4
    %v7171 = vadd.f32 %v6340, %v7170
    %v7172 = vrot.slane %v7171, 2
    %v7173 = vadd.f32 %v7171, %v7172
    %v7174 = vrot.slane %v7173, 1
    %v7175 = vadd.f32 %v7173, %v7174
    %v7176 = vrot.slane %v6342, 4
    %v7177 = vadd.f32 %v6342, %v7176
    %v7178 = vrot.slane %v7177, 2
    %v7179 = vadd.f32 %v7177, %v7178
    %v7180 = vrot.slane %v7179, 1
    %v7181 = vadd.f32 %v7179, %v7180
    %v7182 = vrot.slane %v6545, 4
    %v7183 = vadd.f32 %v6545, %v7182
    %v7184 = vrot.slane %v7183, 2
    %v7185 = vadd.f32 %v7183, %v7184
    %v7186 = vrot.slane %v7185, 1
    %v7187 = vadd.f32 %v7185, %v7186
    %v7188 = vrot.slane %v6547, 4
    %v7189 = vadd.f32 %v6547, %v7188
    %v7190 = vrot.slane %v7189, 2
    %v7191 = vadd.f32 %v7189, %v7190
    %v7192 = vrot.slane %v7191, 1
    %v7193 = vadd.f32 %v7191, %v7192
    %v7194 = vrot.slane %v6750, 4
    %v7195 = vadd.f32 %v6750, %v7194
    %v7196 = vrot.slane %v7195, 2
    %v7197 = vadd.f32 %v7195, %v7196
    %v7198 = vrot.slane %v7197, 1
    %v7199 = vadd.f32 %v7197, %v7198
    %v7200 = vrot.slane %v6752, 4
    %v7201 = vadd.f32 %v6752, %v7200
    %v7202 = vrot.slane %v7201, 2
    %v7203 = vadd.f32 %v7201, %v7202
    %v7204 = vrot.slane %v7203, 1
    %v7205 = vadd.f32 %v7203, %v7204
    %v7206 = vrot.slane %v6955, 4
    %v7207 = vadd.f32 %v6955, %v7206
    %v7208 = vrot.slane %v7207, 2
    %v7209 = vadd.f32 %v7207, %v7208
    %v7210 = vrot.slane %v7209, 1
    %v7211 = vadd.f32 %v7209, %v7210
    %v7212 = vrot.slane %v6957, 4
    %v7213 = vadd.f32 %v6957, %v7212
    %v7214 = vrot.slane %v7213, 2
    %v7215 = vadd.f32 %v7213, %v7214
    %v7216 = vrot.slane %v7215, 1
    %v7217 = vadd.f32 %v7215, %v7216
    %v7218 = vrot.slane %v7160, 4
    %v7219 = vadd.f32 %v7160, %v7218
    %v7220 = vrot.slane %v7219, 2
    %v7221 = vadd.f32 %v7219, %v7220
    %v7222 = vrot.slane %v7221, 1
    %v7223 = vadd.f32 %v7221, %v7222
    %v7224 = vrot.slane %v7162, 4
    %v7225 = vadd.f32 %v7162, %v7224
    %v7226 = vrot.slane %v7225, 2
    %v7227 = vadd.f32 %v7225, %v7226
    %v7228 = vrot.slane %v7227, 1
    %v7229 = vadd.f32 %v7227, %v7228
    %v7230 = vmul.f32 %v7175, 0.125
    %v7231 = vmul.f32 %v7181, 0.125
    %v7232 = vmul.f32 %v7187, 0.125
    %v7233 = vmul.f32 %v7193, 0.125
    %v7234 = vmul.f32 %v7199, 0.125
    %v7235 = vmul.f32 %v7205, 0.125
    %v7236 = vmul.f32 %v7211, 0.125
    %v7237 = vmul.f32 %v7217, 0.125
    %v7238 = vmul.f32 %v7223, 0.125
    %v7239 = vmul.f32 %v7229, 0.125
    %v7240 = vmul.f32 %v6340, %v6340
    %v7241 = vmul.f32 %v6342, %v6342
    %v7242 = vmul.f32 %v6545, %v6545
    %v7243 = vmul.f32 %v6547, %v6547
    %v7244 = vmul.f32 %v6750, %v6750
    %v7245 = vmul.f32 %v6752, %v6752
    %v7246 = vmul.f32 %v6955, %v6955
    %v7247 = vmul.f32 %v6957, %v6957
    %v7248 = vmul.f32 %v7160, %v7160
    %v7249 = vmul.f32 %v7162, %v7162
    %v7250 = vrot.slane %v7240, 4
    %v7251 = vadd.f32 %v7240, %v7250
    %v7252 = vrot.slane %v7251, 2
    %v7253 = vadd.f32 %v7251, %v7252
    %v7254 = vrot.slane %v7253, 1
    %v7255 = vadd.f32 %v7253, %v7254
    %v7256 = vrot.slane %v7241, 4
    %v7257 = vadd.f32 %v7241, %v7256
    %v7258 = vrot.slane %v7257, 2
    %v7259 = vadd.f32 %v7257, %v7258
    %v7260 = vrot.slane %v7259, 1
    %v7261 = vadd.f32 %v7259, %v7260
    %v7262 = vrot.slane %v7242, 4
    %v7263 = vadd.f32 %v7242, %v7262
    %v7264 = vrot.slane %v7263, 2
    %v7265 = vadd.f32 %v7263, %v7264
    %v7266 = vrot.slane %v7265, 1
    %v7267 = vadd.f32 %v7265, %v7266
    %v7268 = vrot.slane %v7243, 4
    %v7269 = vadd.f32 %v7243, %v7268
    %v7270 = vrot.slane %v7269, 2
    %v7271 = vadd.f32 %v7269, %v7270
    %v7272 = vrot.slane %v7271, 1
    %v7273 = vadd.f32 %v7271, %v7272
    %v7274 = vrot.slane %v7244, 4
    %v7275 = vadd.f32 %v7244, %v7274
    %v7276 = vrot.slane %v7275, 2
    %v7277 = vadd.f32 %v7275, %v7276
    %v7278 = vrot.slane %v7277, 1
    %v7279 = vadd.f32 %v7277, %v7278
    %v7280 = vrot.slane %v7245, 4
    %v7281 = vadd.f32 %v7245, %v7280
    %v7282 = vrot.slane %v7281, 2
    %v7283 = vadd.f32 %v7281, %v7282
    %v7284 = vrot.slane %v7283, 1
    %v7285 = vadd.f32 %v7283, %v7284
    %v7286 = vrot.slane %v7246, 4
    %v7287 = vadd.f32 %v7246, %v7286
    %v7288 = vrot.slane %v7287, 2
    %v7289 = vadd.f32 %v7287, %v7288
    %v7290 = vrot.slane %v7289, 1
    %v7291 = vadd.f32 %v7289, %v7290
    %v7292 = vrot.slane %v7247, 4
    %v7293 = vadd.f32 %v7247, %v7292
    %v7294 = vrot.slane %v7293, 2
    %v7295 = vadd.f32 %v7293, %v7294
    %v7296 = vrot.slane %v7295, 1
    %v7297 = vadd.f32 %v7295, %v7296
    %v7298 = vrot.slane %v7248, 4
    %v7299 = vadd.f32 %v7248, %v7298
    %v7300 = vrot.slane %v7299, 2
    %v7301 = vadd.f32 %v7299, %v7300
    %v7302 = vrot.slane %v7301, 1
    %v7303 = vadd.f32 %v7301, %v7302
    %v7304 = vrot.slane %v7249, 4
    %v7305 = vadd.f32 %v7249, %v7304
    %v7306 = vrot.slane %v7305, 2
    %v7307 = vadd.f32 %v7305, %v7306
    %v7308 = vrot.slane %v7307, 1
    %v7309 = vadd.f32 %v7307, %v7308
    %v7310 = vmul.f32 %v7255, 0.125
    %v7311 = vmul.f32 %v7261, 0.125
    %v7312 = vmul.f32 %v7267, 0.125
    %v7313 = vmul.f32 %v7273, 0.125
    %v7314 = vmul.f32 %v7279, 0.125
    %v7315 = vmul.f32 %v7285, 0.125
    %v7316 = vmul.f32 %v7291, 0.125
    %v7317 = vmul.f32 %v7297, 0.125
    %v7318 = vmul.f32 %v7303, 0.125
    %v7319 = vmul.f32 %v7309, 0.125
    %v7320 = vmul.f32 %v7230, %v7230
    %v7321 = vmul.f32 %v7231, %v7231
    %v7322 = vmul.f32 %v7232, %v7232
    %v7323 = vmul.f32 %v7233, %v7233
    %v7324 = vmul.f32 %v7234, %v7234
    %v7325 = vmul.f32 %v7235, %v7235
    %v7326 = vmul.f32 %v7236, %v7236
    %v7327 = vmul.f32 %v7237, %v7237
    %v7328 = vmul.f32 %v7238, %v7238
    %v7329 = vmul.f32 %v7239, %v7239
    %v7330 = vsub.f32 %v7310, %v7320
    %v7331 = vsub.f32 %v7311, %v7321
    %v7332 = vsub.f32 %v7312, %v7322
    %v7333 = vsub.f32 %v7313, %v7323
    %v7334 = vsub.f32 %v7314, %v7324
    %v7335 = vsub.f32 %v7315, %v7325
    %v7336 = vsub.f32 %v7316, %v7326
    %v7337 = vsub.f32 %v7317, %v7327
    %v7338 = vsub.f32 %v7318, %v7328
    %v7339 = vsub.f32 %v7319, %v7329
    %v7340 = vmax.f32 %v7330, 0.0
    %v7341 = vmax.f32 %v7331, 0.0
    %v7342 = vmax.f32 %v7332, 0.0
    %v7343 = vmax.f32 %v7333, 0.0
    %v7344 = vmax.f32 %v7334, 0.0
    %v7345 = vmax.f32 %v7335, 0.0
    %v7346 = vmax.f32 %v7336, 0.0
    %v7347 = vmax.f32 %v7337, 0.0
    %v7348 = vmax.f32 %v7338, 0.0
    %v7349 = vmax.f32 %v7339, 0.0
    %v7350 = vadd.f32 %v7340, 1e-05
    %v7351 = vadd.f32 %v7341, 1e-05
    %v7352 = vadd.f32 %v7342, 1e-05
    %v7353 = vadd.f32 %v7343, 1e-05
    %v7354 = vadd.f32 %v7344, 1e-05
    %v7355 = vadd.f32 %v7345, 1e-05
    %v7356 = vadd.f32 %v7346, 1e-05
    %v7357 = vadd.f32 %v7347, 1e-05
    %v7358 = vadd.f32 %v7348, 1e-05
    %v7359 = vadd.f32 %v7349, 1e-05
    %v7360 = vrsqrt.pop %v7350
    %v7361 = vrsqrt.pop %v7351
    %v7362 = vrsqrt.pop %v7352
    %v7363 = vrsqrt.pop %v7353
    %v7364 = vrsqrt.pop %v7354
    %v7365 = vrsqrt.pop %v7355
    %v7366 = vrsqrt.pop %v7356
    %v7367 = vrsqrt.pop %v7357
    %v7368 = vrsqrt.pop %v7358
    %v7369 = vrsqrt.pop %v7359
    %v7380 = vcombine.low %v7360, %v7361
    %v7381 = vcombine.low %v7362, %v7363
    %v7382 = vcombine.low %v7364, %v7365
    %v7383 = vcombine.low %v7366, %v7367
    %v7385 = vunpack.c.l.s4 1966171168
    %v7386 = vunpack.c.0.s8 %v7385
    %v7387 = vlaneseq
    %v7388 = vshrl.u32 %v7387, 7
    %v7389 = vsub.s32 %v7386, %v7388
    %v7390 = vrot.slane %v7380, %v7389
    %v7392 = vunpack.c.l.s4 1966171168
    %v7393 = vunpack.c.0.s8 %v7392
    %v7394 = vlaneseq
    %v7395 = vshrl.u32 %v7394, 7
    %v7396 = vsub.s32 %v7393, %v7395
    %v7397 = vrot.slane %v7381, %v7396
    %v7399 = vunpack.c.l.s4 1966171168
    %v7400 = vunpack.c.0.s8 %v7399
    %v7401 = vlaneseq
    %v7402 = vshrl.u32 %v7401, 7
    %v7403 = vsub.s32 %v7400, %v7402
    %v7404 = vrot.slane %v7382, %v7403
    %v7406 = vunpack.c.l.s4 1966171168
    %v7407 = vunpack.c.0.s8 %v7406
    %v7408 = vlaneseq
    %v7409 = vshrl.u32 %v7408, 7
    %v7410 = vsub.s32 %v7407, %v7409
    %v7411 = vrot.slane %v7383, %v7410
    %v7412 = vcombine.low %v7390, %v7397
    %v7413 = vcombine.low %v7404, %v7411
    %v7415 = vunpack.c.l.s4 1966171168
    %v7416 = vunpack.c.0.s8 %v7415
    %v7417 = vlaneseq
    %v7418 = vshrl.u32 %v7417, 7
    %v7419 = vsub.s32 %v7416, %v7418
    %v7420 = vrot.slane %v7412, %v7419
    %v7422 = vunpack.c.l.s4 1966171168
    %v7423 = vunpack.c.0.s8 %v7422
    %v7424 = vlaneseq
    %v7425 = vshrl.u32 %v7424, 7
    %v7426 = vsub.s32 %v7423, %v7425
    %v7427 = vrot.slane %v7413, %v7426
    %v7428 = vcombine.low %v7420, %v7427
    %v7429 = vcombine.low %v7368, %v7369
    %v7431 = vunpack.c.l.s4 1966171168
    %v7432 = vunpack.c.0.s8 %v7431
    %v7433 = vlaneseq
    %v7434 = vshrl.u32 %v7433, 7
    %v7435 = vsub.s32 %v7432, %v7434
    %v7436 = vrot.slane %v7429, %v7435
    %v7438 = vunpack.c.l.s4 1966171168
    %v7439 = vunpack.c.0.s8 %v7438
    %v7440 = vlaneseq
    %v7441 = vshrl.u32 %v7440, 7
    %v7442 = vsub.s32 %v7439, %v7441
    %v7443 = vrot.slane %v7436, %v7442
    %v7446 = vmul.f32 %v7166, %v7428
    %v7447 = vmul.f32 %v7167, %v7443
    %v7450 = vlaneseq
    %v7451 = vshrl.u32 %v7450, 7
    %v7452 = vsub.s32 0, %v7451
    %v7453 = vrot.slane %v7446, %v7452
    %v7454 = vlaneseq
    %v7455 = vshrl.u32 %v7454, 7
    %v7456 = vsub.s32 1, %v7455
    %v7457 = vrot.slane %v7446, %v7456
    %v7458 = vlaneseq
    %v7459 = vshrl.u32 %v7458, 7
    %v7460 = vsub.s32 2, %v7459
    %v7461 = vrot.slane %v7446, %v7460
    %v7462 = vlaneseq
    %v7463 = vshrl.u32 %v7462, 7
    %v7464 = vsub.s32 3, %v7463
    %v7465 = vrot.slane %v7446, %v7464
    %v7466 = vlaneseq
    %v7467 = vshrl.u32 %v7466, 7
    %v7468 = vsub.s32 4, %v7467
    %v7469 = vrot.slane %v7446, %v7468
    %v7470 = vlaneseq
    %v7471 = vshrl.u32 %v7470, 7
    %v7472 = vsub.s32 5, %v7471
    %v7473 = vrot.slane %v7446, %v7472
    %v7474 = vlaneseq
    %v7475 = vshrl.u32 %v7474, 7
    %v7476 = vsub.s32 6, %v7475
    %v7477 = vrot.slane %v7446, %v7476
    %v7478 = vlaneseq
    %v7479 = vshrl.u32 %v7478, 7
    %v7480 = vsub.s32 7, %v7479
    %v7481 = vrot.slane %v7446, %v7480
    %v7482 = vlaneseq
    %v7483 = vshrl.u32 %v7482, 7
    %v7484 = vsub.s32 0, %v7483
    %v7485 = vrot.slane %v7447, %v7484
    %v7486 = vlaneseq
    %v7487 = vshrl.u32 %v7486, 7
    %v7488 = vsub.s32 1, %v7487
    %v7489 = vrot.slane %v7447, %v7488
    %v7500 = vmul.f32 %v7230, %v7453
    %v7501 = vmul.f32 %v7231, %v7457
    %v7502 = vmul.f32 %v7232, %v7461
    %v7503 = vmul.f32 %v7233, %v7465
    %v7504 = vmul.f32 %v7234, %v7469
    %v7505 = vmul.f32 %v7235, %v7473
    %v7506 = vmul.f32 %v7236, %v7477
    %v7507 = vmul.f32 %v7237, %v7481
    %v7508 = vmul.f32 %v7238, %v7485
    %v7509 = vmul.f32 %v7239, %v7489
    %v7520 = vcombine.low %v7500, %v7501
    %v7521 = vcombine.low %v7502, %v7503
    %v7522 = vcombine.low %v7504, %v7505
    %v7523 = vcombine.low %v7506, %v7507
    %v7525 = vunpack.c.l.s4 1966171168
    %v7526 = vunpack.c.0.s8 %v7525
    %v7527 = vlaneseq
    %v7528 = vshrl.u32 %v7527, 7
    %v7529 = vsub.s32 %v7526, %v7528
    %v7530 = vrot.slane %v7520, %v7529
    %v7532 = vunpack.c.l.s4 1966171168
    %v7533 = vunpack.c.0.s8 %v7532
    %v7534 = vlaneseq
    %v7535 = vshrl.u32 %v7534, 7
    %v7536 = vsub.s32 %v7533, %v7535
    %v7537 = vrot.slane %v7521, %v7536
    %v7539 = vunpack.c.l.s4 1966171168
    %v7540 = vunpack.c.0.s8 %v7539
    %v7541 = vlaneseq
    %v7542 = vshrl.u32 %v7541, 7
    %v7543 = vsub.s32 %v7540, %v7542
    %v7544 = vrot.slane %v7522, %v7543
    %v7546 = vunpack.c.l.s4 1966171168
    %v7547 = vunpack.c.0.s8 %v7546
    %v7548 = vlaneseq
    %v7549 = vshrl.u32 %v7548, 7
    %v7550 = vsub.s32 %v7547, %v7549
    %v7551 = vrot.slane %v7523, %v7550
    %v7552 = vcombine.low %v7530, %v7537
    %v7553 = vcombine.low %v7544, %v7551
    %v7555 = vunpack.c.l.s4 1966171168
    %v7556 = vunpack.c.0.s8 %v7555
    %v7557 = vlaneseq
    %v7558 = vshrl.u32 %v7557, 7
    %v7559 = vsub.s32 %v7556, %v7558
    %v7560 = vrot.slane %v7552, %v7559
    %v7562 = vunpack.c.l.s4 1966171168
    %v7563 = vunpack.c.0.s8 %v7562
    %v7564 = vlaneseq
    %v7565 = vshrl.u32 %v7564, 7
    %v7566 = vsub.s32 %v7563, %v7565
    %v7567 = vrot.slane %v7553, %v7566
    %v7568 = vcombine.low %v7560, %v7567
    %v7569 = vcombine.low %v7508, %v7509
    %v7571 = vunpack.c.l.s4 1966171168
    %v7572 = vunpack.c.0.s8 %v7571
    %v7573 = vlaneseq
    %v7574 = vshrl.u32 %v7573, 7
    %v7575 = vsub.s32 %v7572, %v7574
    %v7576 = vrot.slane %v7569, %v7575
    %v7578 = vunpack.c.l.s4 1966171168
    %v7579 = vunpack.c.0.s8 %v7578
    %v7580 = vlaneseq
    %v7581 = vshrl.u32 %v7580, 7
    %v7582 = vsub.s32 %v7579, %v7581
    %v7583 = vrot.slane %v7576, %v7582
    %v7586 = vsub.f32 %v7168, %v7568
    %v7587 = vsub.f32 %v7169, %v7583
    %v7588 = vmul.f32 %v6340, %v7453
    %v7589 = vmul.f32 %v6342, %v7457
    %v7590 = vmul.f32 %v6545, %v7461
    %v7591 = vmul.f32 %v6547, %v7465
    %v7592 = vmul.f32 %v6750, %v7469
    %v7593 = vmul.f32 %v6752, %v7473
    %v7594 = vmul.f32 %v6955, %v7477
    %v7595 = vmul.f32 %v6957, %v7481
    %v7596 = vmul.f32 %v7160, %v7485
    %v7597 = vmul.f32 %v7162, %v7489
    %v7600 = vlaneseq
    %v7601 = vshrl.u32 %v7600, 7
    %v7602 = vsub.s32 0, %v7601
    %v7603 = vrot.slane %v7586, %v7602
    %v7604 = vlaneseq
    %v7605 = vshrl.u32 %v7604, 7
    %v7606 = vsub.s32 1, %v7605
    %v7607 = vrot.slane %v7586, %v7606
    %v7608 = vlaneseq
    %v7609 = vshrl.u32 %v7608, 7
    %v7610 = vsub.s32 2, %v7609
    %v7611 = vrot.slane %v7586, %v7610
    %v7612 = vlaneseq
    %v7613 = vshrl.u32 %v7612, 7
    %v7614 = vsub.s32 3, %v7613
    %v7615 = vrot.slane %v7586, %v7614
    %v7616 = vlaneseq
    %v7617 = vshrl.u32 %v7616, 7
    %v7618 = vsub.s32 4, %v7617
    %v7619 = vrot.slane %v7586, %v7618
    %v7620 = vlaneseq
    %v7621 = vshrl.u32 %v7620, 7
    %v7622 = vsub.s32 5, %v7621
    %v7623 = vrot.slane %v7586, %v7622
    %v7624 = vlaneseq
    %v7625 = vshrl.u32 %v7624, 7
    %v7626 = vsub.s32 6, %v7625
    %v7627 = vrot.slane %v7586, %v7626
    %v7628 = vlaneseq
    %v7629 = vshrl.u32 %v7628, 7
    %v7630 = vsub.s32 7, %v7629
    %v7631 = vrot.slane %v7586, %v7630
    %v7632 = vlaneseq
    %v7633 = vshrl.u32 %v7632, 7
    %v7634 = vsub.s32 0, %v7633
    %v7635 = vrot.slane %v7587, %v7634
    %v7636 = vlaneseq
    %v7637 = vshrl.u32 %v7636, 7
    %v7638 = vsub.s32 1, %v7637
    %v7639 = vrot.slane %v7587, %v7638
    %v7650 = vadd.f32 %v7588, %v7603
    %v7651 = vadd.f32 %v7589, %v7607
    %v7652 = vadd.f32 %v7590, %v7611
    %v7653 = vadd.f32 %v7591, %v7615
    %v7654 = vadd.f32 %v7592, %v7619
    %v7655 = vadd.f32 %v7593, %v7623
    %v7656 = vadd.f32 %v7594, %v7627
    %v7657 = vadd.f32 %v7595, %v7631
    %v7658 = vadd.f32 %v7596, %v7635
    %v7659 = vadd.f32 %v7597, %v7639
    %v7660 = vmax.f32 %v7650, 0.0
    %v7661 = vmax.f32 %v7651, 0.0
    %v7662 = vmax.f32 %v7652, 0.0
    %v7663 = vmax.f32 %v7653, 0.0
    %v7664 = vmax.f32 %v7654, 0.0
    %v7665 = vmax.f32 %v7655, 0.0
    %v7666 = vmax.f32 %v7656, 0.0
    %v7667 = vmax.f32 %v7657, 0.0
    %v7668 = vmax.f32 %v7658, 0.0
    %v7669 = vmax.f32 %v7659, 0.0
    %s7670 = smul.u32 %s1327, 7
    %s7671 = sshll.u32 %s7670, 4
    %7672 = dma.done %s124, %s7671
    %v7673 = vpack.c.bf16 %v7660, %v7660
    %v7674 = vpack.c.bf16 %v7661, %v7661
    %v7675 = vpack.c.bf16 %v7662, %v7662
    %v7676 = vpack.c.bf16 %v7663, %v7663
    %v7677 = vpack.c.bf16 %v7664, %v7664
    %v7678 = vpack.c.bf16 %v7665, %v7665
    %v7679 = vpack.c.bf16 %v7666, %v7666
    %v7680 = vpack.c.bf16 %v7667, %v7667
    %v7681 = vpack.c.bf16 %v7668, %v7668
    %v7682 = vpack.c.bf16 %v7669, %v7669
    %v7683 = vld [vmem:[#allocation3] sm:$0xff]
    %v7684 = vld [vmem:[#allocation3 + $0x8] sm:$0xff]
    %v7685 = vld [vmem:[#allocation3 + $0x10] sm:$0xff]
    %v7686 = vld [vmem:[#allocation3 + $0x18] sm:$0xf]
    %v7687 = vld [vmem:[#allocation3 + $0x1c] sm:$0xff]
    %v7688 = vld [vmem:[#allocation3 + $0x24] sm:$0xff]
    %v7689 = vld [vmem:[#allocation3 + $0x2c] sm:$0xff]
    %v7690 = vld [vmem:[#allocation3 + $0x34] sm:$0xf]
    %v7691 = vld [vmem:[#allocation3 + $0x38] sm:$0xff]
    %v7692 = vld [vmem:[#allocation3 + $0x40] sm:$0xff]
    %v7693 = vld [vmem:[#allocation3 + $0x48] sm:$0xff]
    %v7694 = vld [vmem:[#allocation3 + $0x50] sm:$0xf]
    %v7695 = vld [vmem:[#allocation3 + $0x54] sm:$0xff]
    %v7696 = vld [vmem:[#allocation3 + $0x5c] sm:$0xff]
    %v7697 = vld [vmem:[#allocation3 + $0x64] sm:$0xff]
    %v7698 = vld [vmem:[#allocation3 + $0x6c] sm:$0xf]
    %v7699 = vld [vmem:[#allocation3 + $0x70] sm:$0xff]
    %v7700 = vld [vmem:[#allocation3 + $0x78] sm:$0xff]
    %v7701 = vld [vmem:[#allocation3 + $0x80] sm:$0xff]
    %v7702 = vld [vmem:[#allocation3 + $0x88] sm:$0xf]
    %v7703 = vld [vmem:[#allocation3 + $0x8c] sm:$0xff]
    %v7704 = vld [vmem:[#allocation3 + $0x94] sm:$0xff]
    %v7705 = vld [vmem:[#allocation3 + $0x9c] sm:$0xff]
    %v7706 = vld [vmem:[#allocation3 + $0xa4] sm:$0xf]
    %v7707 = vld [vmem:[#allocation3 + $0xa8] sm:$0xff]
    %v7708 = vld [vmem:[#allocation3 + $0xb0] sm:$0xff]
    %v7709 = vld [vmem:[#allocation3 + $0xb8] sm:$0xff]
    %v7710 = vld [vmem:[#allocation3 + $0xc0] sm:$0xf]
    %v7711 = vld [vmem:[#allocation3 + $0xc4] sm:$0xff]
    %v7712 = vld [vmem:[#allocation3 + $0xcc] sm:$0xff]
    %v7713 = vld [vmem:[#allocation3 + $0xd4] sm:$0xff]
    %v7714 = vld [vmem:[#allocation3 + $0xdc] sm:$0xf]
    %v7715 = vld [vmem:[#allocation3 + $0xe0] sm:$0xff]
    %v7716 = vld [vmem:[#allocation3 + $0xe8] sm:$0xff]
    %v7717 = vld [vmem:[#allocation3 + $0xf0] sm:$0xff]
    %v7718 = vld [vmem:[#allocation3 + $0xf8] sm:$0xf]
    %v7719 = vld [vmem:[#allocation3 + $0xfc] sm:$0xff]
    %v7720 = vld [vmem:[#allocation3 + $0x104] sm:$0xff]
    %v7721 = vld [vmem:[#allocation3 + $0x10c] sm:$0xff]
    %v7722 = vld [vmem:[#allocation3 + $0x114] sm:$0xf]
    %v7723 = vld [vmem:[#allocation3 + $0x118] sm:$0xff]
    %v7724 = vld [vmem:[#allocation3 + $0x120] sm:$0xff]
    %v7725 = vld [vmem:[#allocation3 + $0x128] sm:$0xff]
    %v7726 = vld [vmem:[#allocation3 + $0x130] sm:$0xf]
    %v7727 = vld [vmem:[#allocation3 + $0x134] sm:$0xff]
    %v7728 = vld [vmem:[#allocation3 + $0x13c] sm:$0xff]
    %v7729 = vld [vmem:[#allocation3 + $0x144] sm:$0xff]
    %v7730 = vld [vmem:[#allocation3 + $0x14c] sm:$0xf]
    %v7731 = vld [vmem:[#allocation3 + $0x150] sm:$0xff]
    %v7732 = vld [vmem:[#allocation3 + $0x158] sm:$0xff]
    %v7733 = vld [vmem:[#allocation3 + $0x160] sm:$0xff]
    %v7734 = vld [vmem:[#allocation3 + $0x168] sm:$0xf]
    %v7735 = vld [vmem:[#allocation3 + $0x16c] sm:$0xff]
    %v7736 = vld [vmem:[#allocation3 + $0x174] sm:$0xff]
    %v7737 = vld [vmem:[#allocation3 + $0x17c] sm:$0xff]
    %v7738 = vld [vmem:[#allocation3 + $0x184] sm:$0xf]
    %v7739 = vld [vmem:[#allocation3 + $0x188] sm:$0xff]
    %v7740 = vld [vmem:[#allocation3 + $0x190] sm:$0xff]
    %v7741 = vld [vmem:[#allocation3 + $0x198] sm:$0xff]
    %v7742 = vld [vmem:[#allocation3 + $0x1a0] sm:$0xf]
    %v7743 = vld [vmem:[#allocation3 + $0x1a4] sm:$0xff]
    %v7744 = vld [vmem:[#allocation3 + $0x1ac] sm:$0xff]
    %v7745 = vld [vmem:[#allocation3 + $0x1b4] sm:$0xff]
    %v7746 = vld [vmem:[#allocation3 + $0x1bc] sm:$0xf]
    %v7747 = vld [vmem:[#allocation3 + $0x1c0] sm:$0xff]
    %v7748 = vld [vmem:[#allocation3 + $0x1c8] sm:$0xff]
    %v7749 = vld [vmem:[#allocation3 + $0x1d0] sm:$0xff]
    %v7750 = vld [vmem:[#allocation3 + $0x1d8] sm:$0xf]
    %v7751 = vld [vmem:[#allocation3 + $0x1dc] sm:$0xff]
    %v7752 = vld [vmem:[#allocation3 + $0x1e4] sm:$0xff]
    %v7753 = vld [vmem:[#allocation3 + $0x1ec] sm:$0xff]
    %v7754 = vld [vmem:[#allocation3 + $0x1f4] sm:$0xf]
    %v7755 = vld [vmem:[#allocation3 + $0x1f8] sm:$0xff]
    %v7756 = vld [vmem:[#allocation3 + $0x200] sm:$0xff]
    %v7757 = vld [vmem:[#allocation3 + $0x208] sm:$0xff]
    %v7758 = vld [vmem:[#allocation3 + $0x210] sm:$0xf]
    %v7759 = vld [vmem:[#allocation3 + $0x214] sm:$0xff]
    %v7760 = vld [vmem:[#allocation3 + $0x21c] sm:$0xff]
    %v7761 = vld [vmem:[#allocation3 + $0x224] sm:$0xff]
    %v7762 = vld [vmem:[#allocation3 + $0x22c] sm:$0xf]
    %v7763 = vld [vmem:[#allocation3 + $0x230] sm:$0xff]
    %v7764 = vld [vmem:[#allocation3 + $0x238] sm:$0xff]
    %v7765 = vld [vmem:[#allocation3 + $0x240] sm:$0xff]
    %v7766 = vld [vmem:[#allocation3 + $0x248] sm:$0xf]
    %v7767 = vld [vmem:[#allocation3 + $0x24c] sm:$0xff]
    %v7768 = vld [vmem:[#allocation3 + $0x254] sm:$0xff]
    %v7769 = vld [vmem:[#allocation3 + $0x25c] sm:$0xff]
    %v7770 = vld [vmem:[#allocation3 + $0x264] sm:$0xf]
    %v7771 = vld [vmem:[#allocation3 + $0x268] sm:$0xff]
    %v7772 = vld [vmem:[#allocation3 + $0x270] sm:$0xff]
    %v7773 = vld [vmem:[#allocation3 + $0x278] sm:$0xff]
    %v7774 = vld [vmem:[#allocation3 + $0x280] sm:$0xf]
    %v7775 = vld [vmem:[#allocation3 + $0x284] sm:$0xff]
    %v7776 = vld [vmem:[#allocation3 + $0x28c] sm:$0xff]
    %v7777 = vld [vmem:[#allocation3 + $0x294] sm:$0xff]
    %v7778 = vld [vmem:[#allocation3 + $0x29c] sm:$0xf]
    %v7779 = vld [vmem:[#allocation3 + $0x2a0] sm:$0xff]
    %v7780 = vld [vmem:[#allocation3 + $0x2a8] sm:$0xff]
    %v7781 = vld [vmem:[#allocation3 + $0x2b0] sm:$0xff]
    %v7782 = vld [vmem:[#allocation3 + $0x2b8] sm:$0xf]
    %v7783 = vld [vmem:[#allocation3 + $0x2bc] sm:$0xff]
    %v7784 = vld [vmem:[#allocation3 + $0x2c4] sm:$0xff]
    %v7785 = vld [vmem:[#allocation3 + $0x2cc] sm:$0xff]
    %v7786 = vld [vmem:[#allocation3 + $0x2d4] sm:$0xf]
    %v7787 = vld [vmem:[#allocation3 + $0x2d8] sm:$0xff]
    %v7788 = vld [vmem:[#allocation3 + $0x2e0] sm:$0xff]
    %v7789 = vld [vmem:[#allocation3 + $0x2e8] sm:$0xff]
    %v7790 = vld [vmem:[#allocation3 + $0x2f0] sm:$0xf]
    %v7791 = vld [vmem:[#allocation3 + $0x2f4] sm:$0xff]
    %v7792 = vld [vmem:[#allocation3 + $0x2fc] sm:$0xff]
    %v7793 = vld [vmem:[#allocation3 + $0x304] sm:$0xff]
    %v7794 = vld [vmem:[#allocation3 + $0x30c] sm:$0xf]
    %v7795 = vld [vmem:[#allocation3 + $0x310] sm:$0xff]
    %v7796 = vld [vmem:[#allocation3 + $0x318] sm:$0xff]
    %v7797 = vld [vmem:[#allocation3 + $0x320] sm:$0xff]
    %v7798 = vld [vmem:[#allocation3 + $0x328] sm:$0xf]
    %v7799 = vld [vmem:[#allocation3 + $0x32c] sm:$0xff]
    %v7800 = vld [vmem:[#allocation3 + $0x334] sm:$0xff]
    %v7801 = vld [vmem:[#allocation3 + $0x33c] sm:$0xff]
    %v7802 = vld [vmem:[#allocation3 + $0x344] sm:$0xf]
    %v7803 = vld [vmem:[#allocation3 + $0x348] sm:$0xff]
    %v7804 = vld [vmem:[#allocation3 + $0x350] sm:$0xff]
    %v7805 = vld [vmem:[#allocation3 + $0x358] sm:$0xff]
    %v7806 = vld [vmem:[#allocation3 + $0x360] sm:$0xf]
    %v7807 = vld [vmem:[#allocation3 + $0x364] sm:$0xff]
    %v7808 = vld [vmem:[#allocation3 + $0x36c] sm:$0xff]
    %v7809 = vld [vmem:[#allocation3 + $0x374] sm:$0xff]
    %v7810 = vld [vmem:[#allocation3 + $0x37c] sm:$0xf]
    %v7811 = vld [vmem:[#allocation3 + $0x380] sm:$0xff]
    %v7812 = vld [vmem:[#allocation3 + $0x388] sm:$0xff]
    %v7813 = vld [vmem:[#allocation3 + $0x390] sm:$0xff]
    %v7814 = vld [vmem:[#allocation3 + $0x398] sm:$0xf]
    %v7815 = vld [vmem:[#allocation3 + $0x39c] sm:$0xff]
    %v7816 = vld [vmem:[#allocation3 + $0x3a4] sm:$0xff]
    %v7817 = vld [vmem:[#allocation3 + $0x3ac] sm:$0xff]
    %v7818 = vld [vmem:[#allocation3 + $0x3b4] sm:$0xf]
    %v7819 = vld [vmem:[#allocation3 + $0x3b8] sm:$0xff]
    %v7820 = vld [vmem:[#allocation3 + $0x3c0] sm:$0xff]
    %v7821 = vld [vmem:[#allocation3 + $0x3c8] sm:$0xff]
    %v7822 = vld [vmem:[#allocation3 + $0x3d0] sm:$0xf]
    %v7823 = vld [vmem:[#allocation3 + $0x3d4] sm:$0xff]
    %v7824 = vld [vmem:[#allocation3 + $0x3dc] sm:$0xff]
    %v7825 = vld [vmem:[#allocation3 + $0x3e4] sm:$0xff]
    %v7826 = vld [vmem:[#allocation3 + $0x3ec] sm:$0xf]
    %v7827 = vld [vmem:[#allocation3 + $0x3f0] sm:$0xff]
    %v7828 = vld [vmem:[#allocation3 + $0x3f8] sm:$0xff]
    %v7829 = vld [vmem:[#allocation3 + $0x400] sm:$0xff]
    %v7830 = vld [vmem:[#allocation3 + $0x408] sm:$0xf]
    %v7831 = vld [vmem:[#allocation3 + $0x40c] sm:$0xff]
    %v7832 = vld [vmem:[#allocation3 + $0x414] sm:$0xff]
    %v7833 = vld [vmem:[#allocation3 + $0x41c] sm:$0xff]
    %v7834 = vld [vmem:[#allocation3 + $0x424] sm:$0xf]
    %v7835 = vld [vmem:[#allocation3 + $0x428] sm:$0xff]
    %v7836 = vld [vmem:[#allocation3 + $0x430] sm:$0xff]
    %v7837 = vld [vmem:[#allocation3 + $0x438] sm:$0xff]
    %v7838 = vld [vmem:[#allocation3 + $0x440] sm:$0xf]
    %v7839 = vld [vmem:[#allocation3 + $0x444] sm:$0xff]
    %v7840 = vld [vmem:[#allocation3 + $0x44c] sm:$0xff]
    %v7841 = vld [vmem:[#allocation3 + $0x454] sm:$0xff]
    %v7842 = vld [vmem:[#allocation3 + $0x45c] sm:$0xf]
    %v7843 = vld [vmem:[#allocation3 + $0x460] sm:$0xff]
    %v7844 = vld [vmem:[#allocation3 + $0x468] sm:$0xff]
    %v7845 = vld [vmem:[#allocation3 + $0x470] sm:$0xff]
    %v7846 = vld [vmem:[#allocation3 + $0x478] sm:$0xf]
    %v7847 = vld [vmem:[#allocation3 + $0x47c] sm:$0xff]
    %v7848 = vld [vmem:[#allocation3 + $0x484] sm:$0xff]
    %v7849 = vld [vmem:[#allocation3 + $0x48c] sm:$0xff]
    %v7850 = vld [vmem:[#allocation3 + $0x494] sm:$0xf]
    %v7851 = vld [vmem:[#allocation3 + $0x498] sm:$0xff]
    %v7852 = vld [vmem:[#allocation3 + $0x4a0] sm:$0xff]
    %v7853 = vld [vmem:[#allocation3 + $0x4a8] sm:$0xff]
    %v7854 = vld [vmem:[#allocation3 + $0x4b0] sm:$0xf]
    %v7855 = vld [vmem:[#allocation3 + $0x4b4] sm:$0xff]
    %v7856 = vld [vmem:[#allocation3 + $0x4bc] sm:$0xff]
    %v7857 = vld [vmem:[#allocation3 + $0x4c4] sm:$0xff]
    %v7858 = vld [vmem:[#allocation3 + $0x4cc] sm:$0xf]
    %v7859 = vld [vmem:[#allocation3 + $0x4d0] sm:$0xff]
    %v7860 = vld [vmem:[#allocation3 + $0x4d8] sm:$0xff]
    %v7861 = vld [vmem:[#allocation3 + $0x4e0] sm:$0xff]
    %v7862 = vld [vmem:[#allocation3 + $0x4e8] sm:$0xf]
    %v7863 = vld [vmem:[#allocation3 + $0x4ec] sm:$0xff]
    %v7864 = vld [vmem:[#allocation3 + $0x4f4] sm:$0xff]
    %v7865 = vld [vmem:[#allocation3 + $0x4fc] sm:$0xff]
    %v7866 = vld [vmem:[#allocation3 + $0x504] sm:$0xf]
    %v7867 = vld [vmem:[#allocation3 + $0x508] sm:$0xff]
    %v7868 = vld [vmem:[#allocation3 + $0x510] sm:$0xff]
    %v7869 = vld [vmem:[#allocation3 + $0x518] sm:$0xff]
    %v7870 = vld [vmem:[#allocation3 + $0x520] sm:$0xf]
    %v7871 = vld [vmem:[#allocation3 + $0x524] sm:$0xff]
    %v7872 = vld [vmem:[#allocation3 + $0x52c] sm:$0xff]
    %v7873 = vld [vmem:[#allocation3 + $0x534] sm:$0xff]
    %v7874 = vld [vmem:[#allocation3 + $0x53c] sm:$0xf]
    %v7875 = vld [vmem:[#allocation3 + $0x540] sm:$0xff]
    %v7876 = vld [vmem:[#allocation3 + $0x548] sm:$0xff]
    %v7877 = vld [vmem:[#allocation3 + $0x550] sm:$0xff]
    %v7878 = vld [vmem:[#allocation3 + $0x558] sm:$0xf]
    %v7879 = vld [vmem:[#allocation3 + $0x55c] sm:$0xff]
    %v7880 = vld [vmem:[#allocation3 + $0x564] sm:$0xff]
    %v7881 = vld [vmem:[#allocation3 + $0x56c] sm:$0xff]
    %v7882 = vld [vmem:[#allocation3 + $0x574] sm:$0xf]
    %v7883 = vld [vmem:[#allocation3 + $0x578] sm:$0xff]
    %v7884 = vld [vmem:[#allocation3 + $0x580] sm:$0xff]
    %v7885 = vld [vmem:[#allocation3 + $0x588] sm:$0xff]
    %v7886 = vld [vmem:[#allocation3 + $0x590] sm:$0xf]
    %v7887 = vld [vmem:[#allocation3 + $0x594] sm:$0xff]
    %v7888 = vld [vmem:[#allocation3 + $0x59c] sm:$0xff]
    %v7889 = vld [vmem:[#allocation3 + $0x5a4] sm:$0xff]
    %v7890 = vld [vmem:[#allocation3 + $0x5ac] sm:$0xf]
    %v7891 = vld [vmem:[#allocation3 + $0x5b0] sm:$0xff]
    %v7892 = vld [vmem:[#allocation3 + $0x5b8] sm:$0xff]
    %v7893 = vld [vmem:[#allocation3 + $0x5c0] sm:$0xff]
    %v7894 = vld [vmem:[#allocation3 + $0x5c8] sm:$0xf]
    %v7895 = vld [vmem:[#allocation3 + $0x5cc] sm:$0xff]
    %v7896 = vld [vmem:[#allocation3 + $0x5d4] sm:$0xff]
    %v7897 = vld [vmem:[#allocation3 + $0x5dc] sm:$0xff]
    %v7898 = vld [vmem:[#allocation3 + $0x5e4] sm:$0xf]
    %v7899 = vld [vmem:[#allocation3 + $0x5e8] sm:$0xff]
    %v7900 = vld [vmem:[#allocation3 + $0x5f0] sm:$0xff]
    %v7901 = vld [vmem:[#allocation3 + $0x5f8] sm:$0xff]
    %v7902 = vld [vmem:[#allocation3 + $0x600] sm:$0xf]
    %v7903 = vld [vmem:[#allocation3 + $0x604] sm:$0xff]
    %v7904 = vld [vmem:[#allocation3 + $0x60c] sm:$0xff]
    %v7905 = vld [vmem:[#allocation3 + $0x614] sm:$0xff]
    %v7906 = vld [vmem:[#allocation3 + $0x61c] sm:$0xf]
    %v7907 = vld [vmem:[#allocation3 + $0x620] sm:$0xff]
    %v7908 = vld [vmem:[#allocation3 + $0x628] sm:$0xff]
    %v7909 = vld [vmem:[#allocation3 + $0x630] sm:$0xff]
    %v7910 = vld [vmem:[#allocation3 + $0x638] sm:$0xf]
    %v7911 = vld [vmem:[#allocation3 + $0x63c] sm:$0xff]
    %v7912 = vld [vmem:[#allocation3 + $0x644] sm:$0xff]
    %v7913 = vld [vmem:[#allocation3 + $0x64c] sm:$0xff]
    %v7914 = vld [vmem:[#allocation3 + $0x654] sm:$0xf]
    %v7915 = vld [vmem:[#allocation3 + $0x658] sm:$0xff]
    %v7916 = vld [vmem:[#allocation3 + $0x660] sm:$0xff]
    %v7917 = vld [vmem:[#allocation3 + $0x668] sm:$0xff]
    %v7918 = vld [vmem:[#allocation3 + $0x670] sm:$0xf]
    %v7919 = vld [vmem:[#allocation3 + $0x674] sm:$0xff]
    %v7920 = vld [vmem:[#allocation3 + $0x67c] sm:$0xff]
    %v7921 = vld [vmem:[#allocation3 + $0x684] sm:$0xff]
    %v7922 = vld [vmem:[#allocation3 + $0x68c] sm:$0xf]
    %v7923 = vld [vmem:[#allocation3 + $0x690] sm:$0xff]
    %v7924 = vld [vmem:[#allocation3 + $0x698] sm:$0xff]
    %v7925 = vld [vmem:[#allocation3 + $0x6a0] sm:$0xff]
    %v7926 = vld [vmem:[#allocation3 + $0x6a8] sm:$0xf]
    %v7927 = vld [vmem:[#allocation3 + $0x6ac] sm:$0xff]
    %v7928 = vld [vmem:[#allocation3 + $0x6b4] sm:$0xff]
    %v7929 = vld [vmem:[#allocation3 + $0x6bc] sm:$0xff]
    %v7930 = vld [vmem:[#allocation3 + $0x6c4] sm:$0xf]
    %v7931 = vld [vmem:[#allocation3 + $0x6c8] sm:$0xff]
    %v7932 = vld [vmem:[#allocation3 + $0x6d0] sm:$0xff]
    %v7933 = vld [vmem:[#allocation3 + $0x6d8] sm:$0xff]
    %v7934 = vld [vmem:[#allocation3 + $0x6e0] sm:$0xf]
    %v7935 = vld [vmem:[#allocation3 + $0x6e4] sm:$0xff]
    %v7936 = vld [vmem:[#allocation3 + $0x6ec] sm:$0xff]
    %v7937 = vld [vmem:[#allocation3 + $0x6f4] sm:$0xff]
    %v7938 = vld [vmem:[#allocation3 + $0x6fc] sm:$0xf]
    %v7939 = vld [vmem:[#allocation3 + $0x700] sm:$0xff]
    %v7940 = vld [vmem:[#allocation3 + $0x708] sm:$0xff]
    %v7941 = vld [vmem:[#allocation3 + $0x710] sm:$0xff]
    %v7942 = vld [vmem:[#allocation3 + $0x718] sm:$0xf]
    %v7943 = vld [vmem:[#allocation3 + $0x71c] sm:$0xff]
    %v7944 = vld [vmem:[#allocation3 + $0x724] sm:$0xff]
    %v7945 = vld [vmem:[#allocation3 + $0x72c] sm:$0xff]
    %v7946 = vld [vmem:[#allocation3 + $0x734] sm:$0xf]
    %v7947 = vld [vmem:[#allocation3 + $0x738] sm:$0xff]
    %v7948 = vld [vmem:[#allocation3 + $0x740] sm:$0xff]
    %v7949 = vld [vmem:[#allocation3 + $0x748] sm:$0xff]
    %v7950 = vld [vmem:[#allocation3 + $0x750] sm:$0xf]
    %v7951 = vld [vmem:[#allocation3 + $0x754] sm:$0xff]
    %v7952 = vld [vmem:[#allocation3 + $0x75c] sm:$0xff]
    %v7953 = vld [vmem:[#allocation3 + $0x764] sm:$0xff]
    %v7954 = vld [vmem:[#allocation3 + $0x76c] sm:$0xf]
    %v7955 = vld [vmem:[#allocation3 + $0x770] sm:$0xff]
    %v7956 = vld [vmem:[#allocation3 + $0x778] sm:$0xff]
    %v7957 = vld [vmem:[#allocation3 + $0x780] sm:$0xff]
    %v7958 = vld [vmem:[#allocation3 + $0x788] sm:$0xf]
    %v7959 = vld [vmem:[#allocation3 + $0x78c] sm:$0xff]
    %v7960 = vld [vmem:[#allocation3 + $0x794] sm:$0xff]
    %v7961 = vld [vmem:[#allocation3 + $0x79c] sm:$0xff]
    %v7962 = vld [vmem:[#allocation3 + $0x7a4] sm:$0xf]
    %v7963 = vld [vmem:[#allocation3 + $0x7a8] sm:$0xff]
    %v7964 = vld [vmem:[#allocation3 + $0x7b0] sm:$0xff]
    %v7965 = vld [vmem:[#allocation3 + $0x7b8] sm:$0xff]
    %v7966 = vld [vmem:[#allocation3 + $0x7c0] sm:$0xf]
    %v7967 = vld [vmem:[#allocation3 + $0x7c4] sm:$0xff]
    %v7968 = vld [vmem:[#allocation3 + $0x7cc] sm:$0xff]
    %v7969 = vld [vmem:[#allocation3 + $0x7d4] sm:$0xff]
    %v7970 = vld [vmem:[#allocation3 + $0x7dc] sm:$0xf]
    %v7971 = vld [vmem:[#allocation3 + $0x7e0] sm:$0xff]
    %v7972 = vld [vmem:[#allocation3 + $0x7e8] sm:$0xff]
    %v7973 = vld [vmem:[#allocation3 + $0x7f0] sm:$0xff]
    %v7974 = vld [vmem:[#allocation3 + $0x7f8] sm:$0xf]
    %v7975 = vld [vmem:[#allocation3 + $0x7fc] sm:$0xff]
    %v7976 = vld [vmem:[#allocation3 + $0x804] sm:$0xff]
    %v7977 = vld [vmem:[#allocation3 + $0x80c] sm:$0xff]
    %v7978 = vld [vmem:[#allocation3 + $0x814] sm:$0xf]
    %v7979 = vld [vmem:[#allocation3 + $0x818] sm:$0xff]
    %v7980 = vld [vmem:[#allocation3 + $0x820] sm:$0xff]
    %v7981 = vld [vmem:[#allocation3 + $0x828] sm:$0xff]
    %v7982 = vld [vmem:[#allocation3 + $0x830] sm:$0xf]
    %v7983 = vld [vmem:[#allocation3 + $0x834] sm:$0xff]
    %v7984 = vld [vmem:[#allocation3 + $0x83c] sm:$0xff]
    %v7985 = vld [vmem:[#allocation3 + $0x844] sm:$0xff]
    %v7986 = vld [vmem:[#allocation3 + $0x84c] sm:$0xf]
    %v7987 = vld [vmem:[#allocation3 + $0x850] sm:$0xff]
    %v7988 = vld [vmem:[#allocation3 + $0x858] sm:$0xff]
    %v7989 = vld [vmem:[#allocation3 + $0x860] sm:$0xff]
    %v7990 = vld [vmem:[#allocation3 + $0x868] sm:$0xf]
    %v7991 = vld [vmem:[#allocation3 + $0x86c] sm:$0xff]
    %v7992 = vld [vmem:[#allocation3 + $0x874] sm:$0xff]
    %v7993 = vld [vmem:[#allocation3 + $0x87c] sm:$0xff]
    %v7994 = vld [vmem:[#allocation3 + $0x884] sm:$0xf]
    %v7995 = vld [vmem:[#allocation3 + $0x888] sm:$0xff]
    %v7996 = vld [vmem:[#allocation3 + $0x890] sm:$0xff]
    %v7997 = vld [vmem:[#allocation3 + $0x898] sm:$0xff]
    %v7998 = vld [vmem:[#allocation3 + $0x8a0] sm:$0xf]
    %v7999 = vld [vmem:[#allocation3 + $0x8a4] sm:$0xff]
    %v8000 = vld [vmem:[#allocation3 + $0x8ac] sm:$0xff]
    %v8001 = vld [vmem:[#allocation3 + $0x8b4] sm:$0xff]
    %v8002 = vld [vmem:[#allocation3 + $0x8bc] sm:$0xf]
    %v8003 = vld [vmem:[#allocation3 + $0x8c0] sm:$0xff]
    %v8004 = vld [vmem:[#allocation3 + $0x8c8] sm:$0xff]
    %v8005 = vld [vmem:[#allocation3 + $0x8d0] sm:$0xff]
    %v8006 = vld [vmem:[#allocation3 + $0x8d8] sm:$0xf]
    %v8007 = vld [vmem:[#allocation3 + $0x8dc] sm:$0xff]
    %v8008 = vld [vmem:[#allocation3 + $0x8e4] sm:$0xff]
    %v8009 = vld [vmem:[#allocation3 + $0x8ec] sm:$0xff]
    %v8010 = vld [vmem:[#allocation3 + $0x8f4] sm:$0xf]
    %v8011 = vld [vmem:[#allocation3 + $0x8f8] sm:$0xff]
    %v8012 = vld [vmem:[#allocation3 + $0x900] sm:$0xff]
    %v8013 = vld [vmem:[#allocation3 + $0x908] sm:$0xff]
    %v8014 = vld [vmem:[#allocation3 + $0x910] sm:$0xf]
    %v8015 = vld [vmem:[#allocation3 + $0x914] sm:$0xff]
    %v8016 = vld [vmem:[#allocation3 + $0x91c] sm:$0xff]
    %v8017 = vld [vmem:[#allocation3 + $0x924] sm:$0xff]
    %v8018 = vld [vmem:[#allocation3 + $0x92c] sm:$0xf]
    %v8019 = vld [vmem:[#allocation3 + $0x930] sm:$0xff]
    %v8020 = vld [vmem:[#allocation3 + $0x938] sm:$0xff]
    %v8021 = vld [vmem:[#allocation3 + $0x940] sm:$0xff]
    %v8022 = vld [vmem:[#allocation3 + $0x948] sm:$0xf]
    %v8023 = vld [vmem:[#allocation3 + $0x94c] sm:$0xff]
    %v8024 = vld [vmem:[#allocation3 + $0x954] sm:$0xff]
    %v8025 = vld [vmem:[#allocation3 + $0x95c] sm:$0xff]
    %v8026 = vld [vmem:[#allocation3 + $0x964] sm:$0xf]
    %v8027 = vld [vmem:[#allocation3 + $0x968] sm:$0xff]
    %v8028 = vld [vmem:[#allocation3 + $0x970] sm:$0xff]
    %v8029 = vld [vmem:[#allocation3 + $0x978] sm:$0xff]
    %v8030 = vld [vmem:[#allocation3 + $0x980] sm:$0xf]
    %v8031 = vld [vmem:[#allocation3 + $0x984] sm:$0xff]
    %v8032 = vld [vmem:[#allocation3 + $0x98c] sm:$0xff]
    %v8033 = vld [vmem:[#allocation3 + $0x994] sm:$0xff]
    %v8034 = vld [vmem:[#allocation3 + $0x99c] sm:$0xf]
    %v8035 = vld [vmem:[#allocation3 + $0x9a0] sm:$0xff]
    %v8036 = vld [vmem:[#allocation3 + $0x9a8] sm:$0xff]
    %v8037 = vld [vmem:[#allocation3 + $0x9b0] sm:$0xff]
    %v8038 = vld [vmem:[#allocation3 + $0x9b8] sm:$0xf]
    %v8039 = vld [vmem:[#allocation3 + $0x9bc] sm:$0xff]
    %v8040 = vld [vmem:[#allocation3 + $0x9c4] sm:$0xff]
    %v8041 = vld [vmem:[#allocation3 + $0x9cc] sm:$0xff]
    %v8042 = vld [vmem:[#allocation3 + $0x9d4] sm:$0xf]
    %v8043 = vld [vmem:[#allocation3 + $0x9d8] sm:$0xff]
    %v8044 = vld [vmem:[#allocation3 + $0x9e0] sm:$0xff]
    %v8045 = vld [vmem:[#allocation3 + $0x9e8] sm:$0xff]
    %v8046 = vld [vmem:[#allocation3 + $0x9f0] sm:$0xf]
    %v8047 = vld [vmem:[#allocation3 + $0x9f4] sm:$0xff]
    %v8048 = vld [vmem:[#allocation3 + $0x9fc] sm:$0xff]
    %v8049 = vld [vmem:[#allocation3 + $0xa04] sm:$0xff]
    %v8050 = vld [vmem:[#allocation3 + $0xa0c] sm:$0xf]
    %v8051 = vld [vmem:[#allocation3 + $0xa10] sm:$0xff]
    %v8052 = vld [vmem:[#allocation3 + $0xa18] sm:$0xff]
    %v8053 = vld [vmem:[#allocation3 + $0xa20] sm:$0xff]
    %v8054 = vld [vmem:[#allocation3 + $0xa28] sm:$0xf]
    %v8055 = vld [vmem:[#allocation3 + $0xa2c] sm:$0xff]
    %v8056 = vld [vmem:[#allocation3 + $0xa34] sm:$0xff]
    %v8057 = vld [vmem:[#allocation3 + $0xa3c] sm:$0xff]
    %v8058 = vld [vmem:[#allocation3 + $0xa44] sm:$0xf]
    %v8059 = vld [vmem:[#allocation3 + $0xa48] sm:$0xff]
    %v8060 = vld [vmem:[#allocation3 + $0xa50] sm:$0xff]
    %v8061 = vld [vmem:[#allocation3 + $0xa58] sm:$0xff]
    %v8062 = vld [vmem:[#allocation3 + $0xa60] sm:$0xf]
    %v8063 = vld [vmem:[#allocation3 + $0xa64] sm:$0xff]
    %v8064 = vld [vmem:[#allocation3 + $0xa6c] sm:$0xff]
    %v8065 = vld [vmem:[#allocation3 + $0xa74] sm:$0xff]
    %v8066 = vld [vmem:[#allocation3 + $0xa7c] sm:$0xf]
    %v8067 = vld [vmem:[#allocation3 + $0xa80] sm:$0xff]
    %v8068 = vld [vmem:[#allocation3 + $0xa88] sm:$0xff]
    %v8069 = vld [vmem:[#allocation3 + $0xa90] sm:$0xff]
    %v8070 = vld [vmem:[#allocation3 + $0xa98] sm:$0xf]
    %v8071 = vld [vmem:[#allocation3 + $0xa9c] sm:$0xff]
    %v8072 = vld [vmem:[#allocation3 + $0xaa4] sm:$0xff]
    %v8073 = vld [vmem:[#allocation3 + $0xaac] sm:$0xff]
    %v8074 = vld [vmem:[#allocation3 + $0xab4] sm:$0xf]
    %v8075 = vld [vmem:[#allocation3 + $0xab8] sm:$0xff]
    %v8076 = vld [vmem:[#allocation3 + $0xac0] sm:$0xff]
    %v8077 = vld [vmem:[#allocation3 + $0xac8] sm:$0xff]
    %v8078 = vld [vmem:[#allocation3 + $0xad0] sm:$0xf]
    %v8079 = vld [vmem:[#allocation3 + $0xad4] sm:$0xff]
    %v8080 = vld [vmem:[#allocation3 + $0xadc] sm:$0xff]
    %v8081 = vld [vmem:[#allocation3 + $0xae4] sm:$0xff]
    %v8082 = vld [vmem:[#allocation3 + $0xaec] sm:$0xf]
    %v8083 = vld [vmem:[#allocation3 + $0xaf0] sm:$0xff]
    %v8084 = vld [vmem:[#allocation3 + $0xaf8] sm:$0xff]
    %v8085 = vld [vmem:[#allocation3 + $0xb00] sm:$0xff]
    %v8086 = vld [vmem:[#allocation3 + $0xb08] sm:$0xf]
    %v8087 = vld [vmem:[#allocation3 + $0xb0c] sm:$0xff]
    %v8088 = vld [vmem:[#allocation3 + $0xb14] sm:$0xff]
    %v8089 = vld [vmem:[#allocation3 + $0xb1c] sm:$0xff]
    %v8090 = vld [vmem:[#allocation3 + $0xb24] sm:$0xf]
    %v8091 = vld [vmem:[#allocation3 + $0xb28] sm:$0xff]
    %v8092 = vld [vmem:[#allocation3 + $0xb30] sm:$0xff]
    %v8093 = vld [vmem:[#allocation3 + $0xb38] sm:$0xff]
    %v8094 = vld [vmem:[#allocation3 + $0xb40] sm:$0xf]
    %v8095 = vld [vmem:[#allocation3 + $0xb44] sm:$0xff]
    %v8096 = vld [vmem:[#allocation3 + $0xb4c] sm:$0xff]
    %v8097 = vld [vmem:[#allocation3 + $0xb54] sm:$0xff]
    %v8098 = vld [vmem:[#allocation3 + $0xb5c] sm:$0xf]
    %v8099 = vld [vmem:[#allocation3 + $0xb60] sm:$0xff]
    %v8100 = vld [vmem:[#allocation3 + $0xb68] sm:$0xff]
    %v8101 = vld [vmem:[#allocation3 + $0xb70] sm:$0xff]
    %v8102 = vld [vmem:[#allocation3 + $0xb78] sm:$0xf]
    %v8103 = vld [vmem:[#allocation3 + $0xb7c] sm:$0xff]
    %v8104 = vld [vmem:[#allocation3 + $0xb84] sm:$0xff]
    %v8105 = vld [vmem:[#allocation3 + $0xb8c] sm:$0xff]
    %v8106 = vld [vmem:[#allocation3 + $0xb94] sm:$0xf]
    %v8107 = vld [vmem:[#allocation3 + $0xb98] sm:$0xff]
    %v8108 = vld [vmem:[#allocation3 + $0xba0] sm:$0xff]
    %v8109 = vld [vmem:[#allocation3 + $0xba8] sm:$0xff]
    %v8110 = vld [vmem:[#allocation3 + $0xbb0] sm:$0xf]
    %v8111 = vld [vmem:[#allocation3 + $0xbb4] sm:$0xff]
    %v8112 = vld [vmem:[#allocation3 + $0xbbc] sm:$0xff]
    %v8113 = vld [vmem:[#allocation3 + $0xbc4] sm:$0xff]
    %v8114 = vld [vmem:[#allocation3 + $0xbcc] sm:$0xf]
    %v8115 = vld [vmem:[#allocation3 + $0xbd0] sm:$0xff]
    %v8116 = vld [vmem:[#allocation3 + $0xbd8] sm:$0xff]
    %v8117 = vld [vmem:[#allocation3 + $0xbe0] sm:$0xff]
    %v8118 = vld [vmem:[#allocation3 + $0xbe8] sm:$0xf]
    %v8119 = vld [vmem:[#allocation3 + $0xbec] sm:$0xff]
    %v8120 = vld [vmem:[#allocation3 + $0xbf4] sm:$0xff]
    %v8121 = vld [vmem:[#allocation3 + $0xbfc] sm:$0xff]
    %v8122 = vld [vmem:[#allocation3 + $0xc04] sm:$0xf]
    %v8123 = vld [vmem:[#allocation3 + $0xc08] sm:$0xff]
    %v8124 = vld [vmem:[#allocation3 + $0xc10] sm:$0xff]
    %v8125 = vld [vmem:[#allocation3 + $0xc18] sm:$0xff]
    %v8126 = vld [vmem:[#allocation3 + $0xc20] sm:$0xf]
    %v8127 = vld [vmem:[#allocation3 + $0xc24] sm:$0xff]
    %v8128 = vld [vmem:[#allocation3 + $0xc2c] sm:$0xff]
    %v8129 = vld [vmem:[#allocation3 + $0xc34] sm:$0xff]
    %v8130 = vld [vmem:[#allocation3 + $0xc3c] sm:$0xf]
    %v8131 = vld [vmem:[#allocation3 + $0xc40] sm:$0xff]
    %v8132 = vld [vmem:[#allocation3 + $0xc48] sm:$0xff]
    %v8133 = vld [vmem:[#allocation3 + $0xc50] sm:$0xff]
    %v8134 = vld [vmem:[#allocation3 + $0xc58] sm:$0xf]
    %v8135 = vld [vmem:[#allocation3 + $0xc5c] sm:$0xff]
    %v8136 = vld [vmem:[#allocation3 + $0xc64] sm:$0xff]
    %v8137 = vld [vmem:[#allocation3 + $0xc6c] sm:$0xff]
    %v8138 = vld [vmem:[#allocation3 + $0xc74] sm:$0xf]
    %v8139 = vld [vmem:[#allocation3 + $0xc78] sm:$0xff]
    %v8140 = vld [vmem:[#allocation3 + $0xc80] sm:$0xff]
    %v8141 = vld [vmem:[#allocation3 + $0xc88] sm:$0xff]
    %v8142 = vld [vmem:[#allocation3 + $0xc90] sm:$0xf]
    %v8143 = vld [vmem:[#allocation3 + $0xc94] sm:$0xff]
    %v8144 = vld [vmem:[#allocation3 + $0xc9c] sm:$0xff]
    %v8145 = vld [vmem:[#allocation3 + $0xca4] sm:$0xff]
    %v8146 = vld [vmem:[#allocation3 + $0xcac] sm:$0xf]
    %v8147 = vld [vmem:[#allocation3 + $0xcb0] sm:$0xff]
    %v8148 = vld [vmem:[#allocation3 + $0xcb8] sm:$0xff]
    %v8149 = vld [vmem:[#allocation3 + $0xcc0] sm:$0xff]
    %v8150 = vld [vmem:[#allocation3 + $0xcc8] sm:$0xf]
    %v8151 = vld [vmem:[#allocation3 + $0xccc] sm:$0xff]
    %v8152 = vld [vmem:[#allocation3 + $0xcd4] sm:$0xff]
    %v8153 = vld [vmem:[#allocation3 + $0xcdc] sm:$0xff]
    %v8154 = vld [vmem:[#allocation3 + $0xce4] sm:$0xf]
    %v8155 = vld [vmem:[#allocation3 + $0xce8] sm:$0xff]
    %v8156 = vld [vmem:[#allocation3 + $0xcf0] sm:$0xff]
    %v8157 = vld [vmem:[#allocation3 + $0xcf8] sm:$0xff]
    %v8158 = vld [vmem:[#allocation3 + $0xd00] sm:$0xf]
    %v8159 = vld [vmem:[#allocation3 + $0xd04] sm:$0xff]
    %v8160 = vld [vmem:[#allocation3 + $0xd0c] sm:$0xff]
    %v8161 = vld [vmem:[#allocation3 + $0xd14] sm:$0xff]
    %v8162 = vld [vmem:[#allocation3 + $0xd1c] sm:$0xf]
    %v8163 = vld [vmem:[#allocation3 + $0xd20] sm:$0xff]
    %v8164 = vld [vmem:[#allocation3 + $0xd28] sm:$0xff]
    %v8165 = vld [vmem:[#allocation3 + $0xd30] sm:$0xff]
    %v8166 = vld [vmem:[#allocation3 + $0xd38] sm:$0xf]
    %v8167 = vld [vmem:[#allocation3 + $0xd3c] sm:$0xff]
    %v8168 = vld [vmem:[#allocation3 + $0xd44] sm:$0xff]
    %v8169 = vld [vmem:[#allocation3 + $0xd4c] sm:$0xff]
    %v8170 = vld [vmem:[#allocation3 + $0xd54] sm:$0xf]
    %v8171 = vld [vmem:[#allocation3 + $0xd58] sm:$0xff]
    %v8172 = vld [vmem:[#allocation3 + $0xd60] sm:$0xff]
    %v8173 = vld [vmem:[#allocation3 + $0xd68] sm:$0xff]
    %v8174 = vld [vmem:[#allocation3 + $0xd70] sm:$0xf]
    %v8175 = vld [vmem:[#allocation3 + $0xd74] sm:$0xff]
    %v8176 = vld [vmem:[#allocation3 + $0xd7c] sm:$0xff]
    %v8177 = vld [vmem:[#allocation3 + $0xd84] sm:$0xff]
    %v8178 = vld [vmem:[#allocation3 + $0xd8c] sm:$0xf]
    %v8179 = vld [vmem:[#allocation3 + $0xd90] sm:$0xff]
    %v8180 = vld [vmem:[#allocation3 + $0xd98] sm:$0xff]
    %v8181 = vld [vmem:[#allocation3 + $0xda0] sm:$0xff]
    %v8182 = vld [vmem:[#allocation3 + $0xda8] sm:$0xf]
    %v8183 = vld [vmem:[#allocation3 + $0xdac] sm:$0xff]
    %v8184 = vld [vmem:[#allocation3 + $0xdb4] sm:$0xff]
    %v8185 = vld [vmem:[#allocation3 + $0xdbc] sm:$0xff]
    %v8186 = vld [vmem:[#allocation3 + $0xdc4] sm:$0xf]
    %v8187 = vld [vmem:[#allocation3 + $0xdc8] sm:$0xff]
    %v8188 = vld [vmem:[#allocation3 + $0xdd0] sm:$0xff]
    %v8189 = vld [vmem:[#allocation3 + $0xdd8] sm:$0xff]
    %v8190 = vld [vmem:[#allocation3 + $0xde0] sm:$0xf]
    %v8191 = vld [vmem:[#allocation3 + $0xde4] sm:$0xff]
    %v8192 = vld [vmem:[#allocation3 + $0xdec] sm:$0xff]
    %v8193 = vld [vmem:[#allocation3 + $0xdf4] sm:$0xff]
    %v8194 = vld [vmem:[#allocation3 + $0xdfc] sm:$0xf]
    %v8195 = vld [vmem:[#allocation3 + $0xe00] sm:$0xff]
    %v8196 = vld [vmem:[#allocation3 + $0xe08] sm:$0xff]
    %v8197 = vld [vmem:[#allocation3 + $0xe10] sm:$0xff]
    %v8198 = vld [vmem:[#allocation3 + $0xe18] sm:$0xf]
    %v8199 = vld [vmem:[#allocation3 + $0xe1c] sm:$0xff]
    %v8200 = vld [vmem:[#allocation3 + $0xe24] sm:$0xff]
    %v8201 = vld [vmem:[#allocation3 + $0xe2c] sm:$0xff]
    %v8202 = vld [vmem:[#allocation3 + $0xe34] sm:$0xf]
    %v8203 = vld [vmem:[#allocation3 + $0xe38] sm:$0xff]
    %v8204 = vld [vmem:[#allocation3 + $0xe40] sm:$0xff]
    %v8205 = vld [vmem:[#allocation3 + $0xe48] sm:$0xff]
    %v8206 = vld [vmem:[#allocation3 + $0xe50] sm:$0xf]
    %v8207 = vld [vmem:[#allocation3 + $0xe54] sm:$0xff]
    %v8208 = vld [vmem:[#allocation3 + $0xe5c] sm:$0xff]
    %v8209 = vld [vmem:[#allocation3 + $0xe64] sm:$0xff]
    %v8210 = vld [vmem:[#allocation3 + $0xe6c] sm:$0xf]
    %v8211 = vld [vmem:[#allocation3 + $0xe70] sm:$0xff]
    %v8212 = vld [vmem:[#allocation3 + $0xe78] sm:$0xff]
    %v8213 = vld [vmem:[#allocation3 + $0xe80] sm:$0xff]
    %v8214 = vld [vmem:[#allocation3 + $0xe88] sm:$0xf]
    %v8215 = vld [vmem:[#allocation3 + $0xe8c] sm:$0xff]
    %v8216 = vld [vmem:[#allocation3 + $0xe94] sm:$0xff]
    %v8217 = vld [vmem:[#allocation3 + $0xe9c] sm:$0xff]
    %v8218 = vld [vmem:[#allocation3 + $0xea4] sm:$0xf]
    %v8219 = vld [vmem:[#allocation3 + $0xea8] sm:$0xff]
    %v8220 = vld [vmem:[#allocation3 + $0xeb0] sm:$0xff]
    %v8221 = vld [vmem:[#allocation3 + $0xeb8] sm:$0xff]
    %v8222 = vld [vmem:[#allocation3 + $0xec0] sm:$0xf]
    %v8223 = vld [vmem:[#allocation3 + $0xec4] sm:$0xff]
    %v8224 = vld [vmem:[#allocation3 + $0xecc] sm:$0xff]
    %v8225 = vld [vmem:[#allocation3 + $0xed4] sm:$0xff]
    %v8226 = vld [vmem:[#allocation3 + $0xedc] sm:$0xf]
    %v8227 = vld [vmem:[#allocation3 + $0xee0] sm:$0xff]
    %v8228 = vld [vmem:[#allocation3 + $0xee8] sm:$0xff]
    %v8229 = vld [vmem:[#allocation3 + $0xef0] sm:$0xff]
    %v8230 = vld [vmem:[#allocation3 + $0xef8] sm:$0xf]
    %v8231 = vld [vmem:[#allocation3 + $0xefc] sm:$0xff]
    %v8232 = vld [vmem:[#allocation3 + $0xf04] sm:$0xff]
    %v8233 = vld [vmem:[#allocation3 + $0xf0c] sm:$0xff]
    %v8234 = vld [vmem:[#allocation3 + $0xf14] sm:$0xf]
    %v8235 = vld [vmem:[#allocation3 + $0xf18] sm:$0xff]
    %v8236 = vld [vmem:[#allocation3 + $0xf20] sm:$0xff]
    %v8237 = vld [vmem:[#allocation3 + $0xf28] sm:$0xff]
    %v8238 = vld [vmem:[#allocation3 + $0xf30] sm:$0xf]
    %v8239 = vld [vmem:[#allocation3 + $0xf34] sm:$0xff]
    %v8240 = vld [vmem:[#allocation3 + $0xf3c] sm:$0xff]
    %v8241 = vld [vmem:[#allocation3 + $0xf44] sm:$0xff]
    %v8242 = vld [vmem:[#allocation3 + $0xf4c] sm:$0xf]
    %v8243 = vld [vmem:[#allocation3 + $0xf50] sm:$0xff]
    %v8244 = vld [vmem:[#allocation3 + $0xf58] sm:$0xff]
    %v8245 = vld [vmem:[#allocation3 + $0xf60] sm:$0xff]
    %v8246 = vld [vmem:[#allocation3 + $0xf68] sm:$0xf]
    %v8247 = vld [vmem:[#allocation3 + $0xf6c] sm:$0xff]
    %v8248 = vld [vmem:[#allocation3 + $0xf74] sm:$0xff]
    %v8249 = vld [vmem:[#allocation3 + $0xf7c] sm:$0xff]
    %v8250 = vld [vmem:[#allocation3 + $0xf84] sm:$0xf]
    %v8251 = vld [vmem:[#allocation3 + $0xf88] sm:$0xff]
    %v8252 = vld [vmem:[#allocation3 + $0xf90] sm:$0xff]
    %v8253 = vld [vmem:[#allocation3 + $0xf98] sm:$0xff]
    %v8254 = vld [vmem:[#allocation3 + $0xfa0] sm:$0xf]
    %v8255 = vld [vmem:[#allocation3 + $0xfa4] sm:$0xff]
    %v8256 = vld [vmem:[#allocation3 + $0xfac] sm:$0xff]
    %v8257 = vld [vmem:[#allocation3 + $0xfb4] sm:$0xff]
    %v8258 = vld [vmem:[#allocation3 + $0xfbc] sm:$0xf]
    %v8259 = vld [vmem:[#allocation3 + $0xfc0] sm:$0xff]
    %v8260 = vld [vmem:[#allocation3 + $0xfc8] sm:$0xff]
    %v8261 = vld [vmem:[#allocation3 + $0xfd0] sm:$0xff]
    %v8262 = vld [vmem:[#allocation3 + $0xfd8] sm:$0xf]
    %v8263 = vld [vmem:[#allocation3 + $0xfdc] sm:$0xff]
    %v8264 = vld [vmem:[#allocation3 + $0xfe4] sm:$0xff]
    %v8265 = vld [vmem:[#allocation3 + $0xfec] sm:$0xff]
    %v8266 = vld [vmem:[#allocation3 + $0xff4] sm:$0xf]
    %v8267 = vld [vmem:[#allocation3 + $0xff8] sm:$0xff]
    %v8268 = vld [vmem:[#allocation3 + $0x1000] sm:$0xff]
    %v8269 = vld [vmem:[#allocation3 + $0x1008] sm:$0xff]
    %v8270 = vld [vmem:[#allocation3 + $0x1010] sm:$0xf]
    %v8271 = vld [vmem:[#allocation3 + $0x1014] sm:$0xff]
    %v8272 = vld [vmem:[#allocation3 + $0x101c] sm:$0xff]
    %v8273 = vld [vmem:[#allocation3 + $0x1024] sm:$0xff]
    %v8274 = vld [vmem:[#allocation3 + $0x102c] sm:$0xf]
    %v8275 = vld [vmem:[#allocation3 + $0x1030] sm:$0xff]
    %v8276 = vld [vmem:[#allocation3 + $0x1038] sm:$0xff]
    %v8277 = vld [vmem:[#allocation3 + $0x1040] sm:$0xff]
    %v8278 = vld [vmem:[#allocation3 + $0x1048] sm:$0xf]
    %v8279 = vld [vmem:[#allocation3 + $0x104c] sm:$0xff]
    %v8280 = vld [vmem:[#allocation3 + $0x1054] sm:$0xff]
    %v8281 = vld [vmem:[#allocation3 + $0x105c] sm:$0xff]
    %v8282 = vld [vmem:[#allocation3 + $0x1064] sm:$0xf]
    %v8283 = vld [vmem:[#allocation3 + $0x1068] sm:$0xff]
    %v8284 = vld [vmem:[#allocation3 + $0x1070] sm:$0xff]
    %v8285 = vld [vmem:[#allocation3 + $0x1078] sm:$0xff]
    %v8286 = vld [vmem:[#allocation3 + $0x1080] sm:$0xf]
    %v8287 = vld [vmem:[#allocation3 + $0x1084] sm:$0xff]
    %v8288 = vld [vmem:[#allocation3 + $0x108c] sm:$0xff]
    %v8289 = vld [vmem:[#allocation3 + $0x1094] sm:$0xff]
    %v8290 = vld [vmem:[#allocation3 + $0x109c] sm:$0xf]
    %v8291 = vld [vmem:[#allocation3 + $0x10a0] sm:$0xff]
    %v8292 = vld [vmem:[#allocation3 + $0x10a8] sm:$0xff]
    %v8293 = vld [vmem:[#allocation3 + $0x10b0] sm:$0xff]
    %v8294 = vld [vmem:[#allocation3 + $0x10b8] sm:$0xf]
    %v8295 = vld [vmem:[#allocation3 + $0x10bc] sm:$0xff]
    %v8296 = vld [vmem:[#allocation3 + $0x10c4] sm:$0xff]
    %v8297 = vld [vmem:[#allocation3 + $0x10cc] sm:$0xff]
    %v8298 = vld [vmem:[#allocation3 + $0x10d4] sm:$0xf]
    %v8299 = vld [vmem:[#allocation3 + $0x10d8] sm:$0xff]
    %v8300 = vld [vmem:[#allocation3 + $0x10e0] sm:$0xff]
    %v8301 = vld [vmem:[#allocation3 + $0x10e8] sm:$0xff]
    %v8302 = vld [vmem:[#allocation3 + $0x10f0] sm:$0xf]
    %v8303 = vld [vmem:[#allocation3 + $0x10f4] sm:$0xff]
    %v8304 = vld [vmem:[#allocation3 + $0x10fc] sm:$0xff]
    %v8305 = vld [vmem:[#allocation3 + $0x1104] sm:$0xff]
    %v8306 = vld [vmem:[#allocation3 + $0x110c] sm:$0xf]
    %v8307 = vld [vmem:[#allocation3 + $0x1110] sm:$0xff]
    %v8308 = vld [vmem:[#allocation3 + $0x1118] sm:$0xff]
    %v8309 = vld [vmem:[#allocation3 + $0x1120] sm:$0xff]
    %v8310 = vld [vmem:[#allocation3 + $0x1128] sm:$0xf]
    %v8311 = vld [vmem:[#allocation3 + $0x112c] sm:$0xff]
    %v8312 = vld [vmem:[#allocation3 + $0x1134] sm:$0xff]
    %v8313 = vld [vmem:[#allocation3 + $0x113c] sm:$0xff]
    %v8314 = vld [vmem:[#allocation3 + $0x1144] sm:$0xf]
    %v8315 = vld [vmem:[#allocation3 + $0x1148] sm:$0xff]
    %v8316 = vld [vmem:[#allocation3 + $0x1150] sm:$0xff]
    %v8317 = vld [vmem:[#allocation3 + $0x1158] sm:$0xff]
    %v8318 = vld [vmem:[#allocation3 + $0x1160] sm:$0xf]
    %v8319 = vld [vmem:[#allocation3 + $0x1164] sm:$0xff]
    %v8320 = vld [vmem:[#allocation3 + $0x116c] sm:$0xff]
    %v8321 = vld [vmem:[#allocation3 + $0x1174] sm:$0xff]
    %v8322 = vld [vmem:[#allocation3 + $0x117c] sm:$0xf]
    %v8323 = vld [vmem:[#allocation16] sm:$0xff]
    %v8325 = vlaneseq
    %v8326 = vshrl.u32 %v8325, 7
    %v8327 = vsub.s32 0, %v8326
    %v8328 = vrot.slane %v8323, %v8327
    %v8329 = vlaneseq
    %v8330 = vshrl.u32 %v8329, 7
    %v8331 = vsub.s32 1, %v8330
    %v8332 = vrot.slane %v8323, %v8331
    %v8333 = vlaneseq
    %v8334 = vshrl.u32 %v8333, 7
    %v8335 = vsub.s32 2, %v8334
    %v8336 = vrot.slane %v8323, %v8335
    %v8337 = vlaneseq
    %v8338 = vshrl.u32 %v8337, 7
    %v8339 = vsub.s32 3, %v8338
    %v8340 = vrot.slane %v8323, %v8339
    %v8341 = vlaneseq
    %v8342 = vshrl.u32 %v8341, 7
    %v8343 = vsub.s32 4, %v8342
    %v8344 = vrot.slane %v8323, %v8343
    %v8345 = vlaneseq
    %v8346 = vshrl.u32 %v8345, 7
    %v8347 = vsub.s32 5, %v8346
    %v8348 = vrot.slane %v8323, %v8347
    %v8349 = vlaneseq
    %v8350 = vshrl.u32 %v8349, 7
    %v8351 = vsub.s32 6, %v8350
    %v8352 = vrot.slane %v8323, %v8351
    %v9000 = vunpack.c.l.b16 %v7683
    %v9001 = vunpack.c.h.b16 %v7683
    %v9002 = vunpack.c.l.b16 %v7684
    %v9003 = vunpack.c.h.b16 %v7684
    %v9004 = vunpack.c.l.b16 %v7685
    %v9005 = vunpack.c.h.b16 %v7685
    %v9006 = vunpack.c.l.b16 %v7686
    %v9007 = vunpack.c.l.b16 %v7687
    %v9008 = vunpack.c.h.b16 %v7687
    %v9009 = vunpack.c.l.b16 %v7688
    %v9010 = vunpack.c.h.b16 %v7688
    %v9011 = vunpack.c.l.b16 %v7689
    %v9012 = vunpack.c.h.b16 %v7689
    %v9013 = vunpack.c.l.b16 %v7690
    %v9014 = vunpack.c.l.b16 %v7691
    %v9015 = vunpack.c.h.b16 %v7691
    %v9016 = vunpack.c.l.b16 %v7692
    %v9017 = vunpack.c.h.b16 %v7692
    %v9018 = vunpack.c.l.b16 %v7693
    %v9019 = vunpack.c.h.b16 %v7693
    %v9020 = vunpack.c.l.b16 %v7694
    %v9021 = vunpack.c.l.b16 %v7695
    %v9022 = vunpack.c.h.b16 %v7695
    %v9023 = vunpack.c.l.b16 %v7696
    %v9024 = vunpack.c.h.b16 %v7696
    %v9025 = vunpack.c.l.b16 %v7697
    %v9026 = vunpack.c.h.b16 %v7697
    %v9027 = vunpack.c.l.b16 %v7698
    %v9028 = vunpack.c.l.b16 %v7699
    %v9029 = vunpack.c.h.b16 %v7699
    %v9030 = vunpack.c.l.b16 %v7700
    %v9031 = vunpack.c.h.b16 %v7700
    %v9032 = vunpack.c.l.b16 %v7701
    %v9033 = vunpack.c.h.b16 %v7701
    %v9034 = vunpack.c.l.b16 %v7702
    %v9035 = vunpack.c.l.b16 %v7703
    %v9036 = vunpack.c.h.b16 %v7703
    %v9037 = vunpack.c.l.b16 %v7704
    %v9038 = vunpack.c.h.b16 %v7704
    %v9039 = vunpack.c.l.b16 %v7705
    %v9040 = vunpack.c.h.b16 %v7705
    %v9041 = vunpack.c.l.b16 %v7706
    %v9042 = vunpack.c.l.b16 %v7707
    %v9043 = vunpack.c.h.b16 %v7707
    %v9044 = vunpack.c.l.b16 %v7708
    %v9045 = vunpack.c.h.b16 %v7708
    %v9046 = vunpack.c.l.b16 %v7709
    %v9047 = vunpack.c.h.b16 %v7709
    %v9048 = vunpack.c.l.b16 %v7710
    %v9049 = vunpack.c.l.b16 %v7711
    %v9050 = vunpack.c.h.b16 %v7711
    %v9051 = vunpack.c.l.b16 %v7712
    %v9052 = vunpack.c.h.b16 %v7712
    %v9053 = vunpack.c.l.b16 %v7713
    %v9054 = vunpack.c.h.b16 %v7713
    %v9055 = vunpack.c.l.b16 %v7714
    %v9056 = vunpack.c.l.b16 %v7715
    %v9057 = vunpack.c.h.b16 %v7715
    %v9058 = vunpack.c.l.b16 %v7716
    %v9059 = vunpack.c.h.b16 %v7716
    %v9060 = vunpack.c.l.b16 %v7717
    %v9061 = vunpack.c.h.b16 %v7717
    %v9062 = vunpack.c.l.b16 %v7718
    %v9063 = vunpack.c.l.b16 %v7719
    %v9064 = vunpack.c.h.b16 %v7719
    %v9065 = vunpack.c.l.b16 %v7720
    %v9066 = vunpack.c.h.b16 %v7720
    %v9067 = vunpack.c.l.b16 %v7721
    %v9068 = vunpack.c.h.b16 %v7721
    %v9069 = vunpack.c.l.b16 %v7722
    %v9070 = vunpack.c.l.b16 %v7723
    %v9071 = vunpack.c.h.b16 %v7723
    %v9072 = vunpack.c.l.b16 %v7724
    %v9073 = vunpack.c.h.b16 %v7724
    %v9074 = vunpack.c.l.b16 %v7725
    %v9075 = vunpack.c.h.b16 %v7725
    %v9076 = vunpack.c.l.b16 %v7726
    %v9077 = vunpack.c.l.b16 %v7727
    %v9078 = vunpack.c.h.b16 %v7727
    %v9079 = vunpack.c.l.b16 %v7728
    %v9080 = vunpack.c.h.b16 %v7728
    %v9081 = vunpack.c.l.b16 %v7729
    %v9082 = vunpack.c.h.b16 %v7729
    %v9083 = vunpack.c.l.b16 %v7730
    %v9084 = vunpack.c.l.b16 %v7731
    %v9085 = vunpack.c.h.b16 %v7731
    %v9086 = vunpack.c.l.b16 %v7732
    %v9087 = vunpack.c.h.b16 %v7732
    %v9088 = vunpack.c.l.b16 %v7733
    %v9089 = vunpack.c.h.b16 %v7733
    %v9090 = vunpack.c.l.b16 %v7734
    %v9091 = vunpack.c.l.b16 %v7735
    %v9092 = vunpack.c.h.b16 %v7735
    %v9093 = vunpack.c.l.b16 %v7736
    %v9094 = vunpack.c.h.b16 %v7736
    %v9095 = vunpack.c.l.b16 %v7737
    %v9096 = vunpack.c.h.b16 %v7737
    %v9097 = vunpack.c.l.b16 %v7738
    %v9098 = vunpack.c.l.b16 %v7739
    %v9099 = vunpack.c.h.b16 %v7739
    %v9100 = vunpack.c.l.b16 %v7740
    %v9101 = vunpack.c.h.b16 %v7740
    %v9102 = vunpack.c.l.b16 %v7741
    %v9103 = vunpack.c.h.b16 %v7741
    %v9104 = vunpack.c.l.b16 %v7742
    %v9105 = vunpack.c.l.b16 %v7743
    %v9106 = vunpack.c.h.b16 %v7743
    %v9107 = vunpack.c.l.b16 %v7744
    %v9108 = vunpack.c.h.b16 %v7744
    %v9109 = vunpack.c.l.b16 %v7745
    %v9110 = vunpack.c.h.b16 %v7745
    %v9111 = vunpack.c.l.b16 %v7746
    %v9112 = vunpack.c.l.b16 %v7747
    %v9113 = vunpack.c.h.b16 %v7747
    %v9114 = vunpack.c.l.b16 %v7748
    %v9115 = vunpack.c.h.b16 %v7748
    %v9116 = vunpack.c.l.b16 %v7749
    %v9117 = vunpack.c.h.b16 %v7749
    %v9118 = vunpack.c.l.b16 %v7750
    %v9119 = vunpack.c.l.b16 %v7751
    %v9120 = vunpack.c.h.b16 %v7751
    %v9121 = vunpack.c.l.b16 %v7752
    %v9122 = vunpack.c.h.b16 %v7752
    %v9123 = vunpack.c.l.b16 %v7753
    %v9124 = vunpack.c.h.b16 %v7753
    %v9125 = vunpack.c.l.b16 %v7754
    %v9126 = vunpack.c.l.b16 %v7755
    %v9127 = vunpack.c.h.b16 %v7755
    %v9128 = vunpack.c.l.b16 %v7756
    %v9129 = vunpack.c.h.b16 %v7756
    %v9130 = vunpack.c.l.b16 %v7757
    %v9131 = vunpack.c.h.b16 %v7757
    %v9132 = vunpack.c.l.b16 %v7758
    %v9133 = vunpack.c.l.b16 %v7759
    %v9134 = vunpack.c.h.b16 %v7759
    %v9135 = vunpack.c.l.b16 %v7760
    %v9136 = vunpack.c.h.b16 %v7760
    %v9137 = vunpack.c.l.b16 %v7761
    %v9138 = vunpack.c.h.b16 %v7761
    %v9139 = vunpack.c.l.b16 %v7762
    %v9140 = vunpack.c.l.b16 %v7763
    %v9141 = vunpack.c.h.b16 %v7763
    %v9142 = vunpack.c.l.b16 %v7764
    %v9143 = vunpack.c.h.b16 %v7764
    %v9144 = vunpack.c.l.b16 %v7765
    %v9145 = vunpack.c.h.b16 %v7765
    %v9146 = vunpack.c.l.b16 %v7766
    %v9147 = vunpack.c.l.b16 %v7767
    %v9148 = vunpack.c.h.b16 %v7767
    %v9149 = vunpack.c.l.b16 %v7768
    %v9150 = vunpack.c.h.b16 %v7768
    %v9151 = vunpack.c.l.b16 %v7769
    %v9152 = vunpack.c.h.b16 %v7769
    %v9153 = vunpack.c.l.b16 %v7770
    %v9154 = vunpack.c.l.b16 %v7771
    %v9155 = vunpack.c.h.b16 %v7771
    %v9156 = vunpack.c.l.b16 %v7772
    %v9157 = vunpack.c.h.b16 %v7772
    %v9158 = vunpack.c.l.b16 %v7773
    %v9159 = vunpack.c.h.b16 %v7773
    %v9160 = vunpack.c.l.b16 %v7774
    %v9161 = vunpack.c.l.b16 %v7775
    %v9162 = vunpack.c.h.b16 %v7775
    %v9163 = vunpack.c.l.b16 %v7776
    %v9164 = vunpack.c.h.b16 %v7776
    %v9165 = vunpack.c.l.b16 %v7777
    %v9166 = vunpack.c.h.b16 %v7777
    %v9167 = vunpack.c.l.b16 %v7778
    %v9168 = vunpack.c.l.b16 %v7779
    %v9169 = vunpack.c.h.b16 %v7779
    %v9170 = vunpack.c.l.b16 %v7780
    %v9171 = vunpack.c.h.b16 %v7780
    %v9172 = vunpack.c.l.b16 %v7781
    %v9173 = vunpack.c.h.b16 %v7781
    %v9174 = vunpack.c.l.b16 %v7782
    %v9175 = vunpack.c.l.b16 %v7783
    %v9176 = vunpack.c.h.b16 %v7783
    %v9177 = vunpack.c.l.b16 %v7784
    %v9178 = vunpack.c.h.b16 %v7784
    %v9179 = vunpack.c.l.b16 %v7785
    %v9180 = vunpack.c.h.b16 %v7785
    %v9181 = vunpack.c.l.b16 %v7786
    %v9182 = vunpack.c.l.b16 %v7787
    %v9183 = vunpack.c.h.b16 %v7787
    %v9184 = vunpack.c.l.b16 %v7788
    %v9185 = vunpack.c.h.b16 %v7788
    %v9186 = vunpack.c.l.b16 %v7789
    %v9187 = vunpack.c.h.b16 %v7789
    %v9188 = vunpack.c.l.b16 %v7790
    %v9189 = vunpack.c.l.b16 %v7791
    %v9190 = vunpack.c.h.b16 %v7791
    %v9191 = vunpack.c.l.b16 %v7792
    %v9192 = vunpack.c.h.b16 %v7792
    %v9193 = vunpack.c.l.b16 %v7793
    %v9194 = vunpack.c.h.b16 %v7793
    %v9195 = vunpack.c.l.b16 %v7794
    %v9196 = vunpack.c.l.b16 %v7795
    %v9197 = vunpack.c.h.b16 %v7795
    %v9198 = vunpack.c.l.b16 %v7796
    %v9199 = vunpack.c.h.b16 %v7796
    %v9200 = vunpack.c.l.b16 %v7797
    %v9201 = vunpack.c.h.b16 %v7797
    %v9202 = vunpack.c.l.b16 %v7798
    %v9203 = vunpack.c.l.b16 %v7799
    %v9204 = vunpack.c.h.b16 %v7799
    %v9205 = vunpack.c.l.b16 %v7800
    %v9206 = vunpack.c.h.b16 %v7800
    %v9207 = vunpack.c.l.b16 %v7801
    %v9208 = vunpack.c.h.b16 %v7801
    %v9209 = vunpack.c.l.b16 %v7802
    %v9210 = vunpack.c.l.b16 %v7803
    %v9211 = vunpack.c.h.b16 %v7803
    %v9212 = vunpack.c.l.b16 %v7804
    %v9213 = vunpack.c.h.b16 %v7804
    %v9214 = vunpack.c.l.b16 %v7805
    %v9215 = vunpack.c.h.b16 %v7805
    %v9216 = vunpack.c.l.b16 %v7806
    %v9217 = vunpack.c.l.b16 %v7807
    %v9218 = vunpack.c.h.b16 %v7807
    %v9219 = vunpack.c.l.b16 %v7808
    %v9220 = vunpack.c.h.b16 %v7808
    %v9221 = vunpack.c.l.b16 %v7809
    %v9222 = vunpack.c.h.b16 %v7809
    %v9223 = vunpack.c.l.b16 %v7810
    %v9224 = vunpack.c.l.b16 %v7811
    %v9225 = vunpack.c.h.b16 %v7811
    %v9226 = vunpack.c.l.b16 %v7812
    %v9227 = vunpack.c.h.b16 %v7812
    %v9228 = vunpack.c.l.b16 %v7813
    %v9229 = vunpack.c.h.b16 %v7813
    %v9230 = vunpack.c.l.b16 %v7814
    %v9231 = vunpack.c.l.b16 %v7815
    %v9232 = vunpack.c.h.b16 %v7815
    %v9233 = vunpack.c.l.b16 %v7816
    %v9234 = vunpack.c.h.b16 %v7816
    %v9235 = vunpack.c.l.b16 %v7817
    %v9236 = vunpack.c.h.b16 %v7817
    %v9237 = vunpack.c.l.b16 %v7818
    %v9238 = vunpack.c.l.b16 %v7819
    %v9239 = vunpack.c.h.b16 %v7819
    %v9240 = vunpack.c.l.b16 %v7820
    %v9241 = vunpack.c.h.b16 %v7820
    %v9242 = vunpack.c.l.b16 %v7821
    %v9243 = vunpack.c.h.b16 %v7821
    %v9244 = vunpack.c.l.b16 %v7822
    %v9245 = vunpack.c.l.b16 %v7823
    %v9246 = vunpack.c.h.b16 %v7823
    %v9247 = vunpack.c.l.b16 %v7824
    %v9248 = vunpack.c.h.b16 %v7824
    %v9249 = vunpack.c.l.b16 %v7825
    %v9250 = vunpack.c.h.b16 %v7825
    %v9251 = vunpack.c.l.b16 %v7826
    %v9252 = vunpack.c.l.b16 %v7827
    %v9253 = vunpack.c.h.b16 %v7827
    %v9254 = vunpack.c.l.b16 %v7828
    %v9255 = vunpack.c.h.b16 %v7828
    %v9256 = vunpack.c.l.b16 %v7829
    %v9257 = vunpack.c.h.b16 %v7829
    %v9258 = vunpack.c.l.b16 %v7830
    %v9259 = vunpack.c.l.b16 %v7831
    %v9260 = vunpack.c.h.b16 %v7831
    %v9261 = vunpack.c.l.b16 %v7832
    %v9262 = vunpack.c.h.b16 %v7832
    %v9263 = vunpack.c.l.b16 %v7833
    %v9264 = vunpack.c.h.b16 %v7833
    %v9265 = vunpack.c.l.b16 %v7834
    %v9266 = vunpack.c.l.b16 %v7835
    %v9267 = vunpack.c.h.b16 %v7835
    %v9268 = vunpack.c.l.b16 %v7836
    %v9269 = vunpack.c.h.b16 %v7836
    %v9270 = vunpack.c.l.b16 %v7837
    %v9271 = vunpack.c.h.b16 %v7837
    %v9272 = vunpack.c.l.b16 %v7838
    %v9273 = vunpack.c.l.b16 %v7839
    %v9274 = vunpack.c.h.b16 %v7839
    %v9275 = vunpack.c.l.b16 %v7840
    %v9276 = vunpack.c.h.b16 %v7840
    %v9277 = vunpack.c.l.b16 %v7841
    %v9278 = vunpack.c.h.b16 %v7841
    %v9279 = vunpack.c.l.b16 %v7842
    %v9280 = vunpack.c.l.b16 %v7843
    %v9281 = vunpack.c.h.b16 %v7843
    %v9282 = vunpack.c.l.b16 %v7844
    %v9283 = vunpack.c.h.b16 %v7844
    %v9284 = vunpack.c.l.b16 %v7845
    %v9285 = vunpack.c.h.b16 %v7845
    %v9286 = vunpack.c.l.b16 %v7846
    %v9287 = vunpack.c.l.b16 %v7847
    %v9288 = vunpack.c.h.b16 %v7847
    %v9289 = vunpack.c.l.b16 %v7848
    %v9290 = vunpack.c.h.b16 %v7848
    %v9291 = vunpack.c.l.b16 %v7849
    %v9292 = vunpack.c.h.b16 %v7849
    %v9293 = vunpack.c.l.b16 %v7850
    %v9294 = vunpack.c.l.b16 %v7851
    %v9295 = vunpack.c.h.b16 %v7851
    %v9296 = vunpack.c.l.b16 %v7852
    %v9297 = vunpack.c.h.b16 %v7852
    %v9298 = vunpack.c.l.b16 %v7853
    %v9299 = vunpack.c.h.b16 %v7853
    %v9300 = vunpack.c.l.b16 %v7854
    %v9301 = vunpack.c.l.b16 %v7855
    %v9302 = vunpack.c.h.b16 %v7855
    %v9303 = vunpack.c.l.b16 %v7856
    %v9304 = vunpack.c.h.b16 %v7856
    %v9305 = vunpack.c.l.b16 %v7857
    %v9306 = vunpack.c.h.b16 %v7857
    %v9307 = vunpack.c.l.b16 %v7858
    %v9308 = vunpack.c.l.b16 %v7859
    %v9309 = vunpack.c.h.b16 %v7859
    %v9310 = vunpack.c.l.b16 %v7860
    %v9311 = vunpack.c.h.b16 %v7860
    %v9312 = vunpack.c.l.b16 %v7861
    %v9313 = vunpack.c.h.b16 %v7861
    %v9314 = vunpack.c.l.b16 %v7862
    %v9315 = vunpack.c.l.b16 %v7863
    %v9316 = vunpack.c.h.b16 %v7863
    %v9317 = vunpack.c.l.b16 %v7864
    %v9318 = vunpack.c.h.b16 %v7864
    %v9319 = vunpack.c.l.b16 %v7865
    %v9320 = vunpack.c.h.b16 %v7865
    %v9321 = vunpack.c.l.b16 %v7866
    %v9322 = vunpack.c.l.b16 %v7867
    %v9323 = vunpack.c.h.b16 %v7867
    %v9324 = vunpack.c.l.b16 %v7868
    %v9325 = vunpack.c.h.b16 %v7868
    %v9326 = vunpack.c.l.b16 %v7869
    %v9327 = vunpack.c.h.b16 %v7869
    %v9328 = vunpack.c.l.b16 %v7870
    %v9329 = vunpack.c.l.b16 %v7871
    %v9330 = vunpack.c.h.b16 %v7871
    %v9331 = vunpack.c.l.b16 %v7872
    %v9332 = vunpack.c.h.b16 %v7872
    %v9333 = vunpack.c.l.b16 %v7873
    %v9334 = vunpack.c.h.b16 %v7873
    %v9335 = vunpack.c.l.b16 %v7874
    %v9336 = vunpack.c.l.b16 %v7875
    %v9337 = vunpack.c.h.b16 %v7875
    %v9338 = vunpack.c.l.b16 %v7876
    %v9339 = vunpack.c.h.b16 %v7876
    %v9340 = vunpack.c.l.b16 %v7877
    %v9341 = vunpack.c.h.b16 %v7877
    %v9342 = vunpack.c.l.b16 %v7878
    %v9343 = vunpack.c.l.b16 %v7879
    %v9344 = vunpack.c.h.b16 %v7879
    %v9345 = vunpack.c.l.b16 %v7880
    %v9346 = vunpack.c.h.b16 %v7880
    %v9347 = vunpack.c.l.b16 %v7881
    %v9348 = vunpack.c.h.b16 %v7881
    %v9349 = vunpack.c.l.b16 %v7882
    %v9350 = vunpack.c.l.b16 %v7883
    %v9351 = vunpack.c.h.b16 %v7883
    %v9352 = vunpack.c.l.b16 %v7884
    %v9353 = vunpack.c.h.b16 %v7884
    %v9354 = vunpack.c.l.b16 %v7885
    %v9355 = vunpack.c.h.b16 %v7885
    %v9356 = vunpack.c.l.b16 %v7886
    %v9357 = vunpack.c.l.b16 %v7887
    %v9358 = vunpack.c.h.b16 %v7887
    %v9359 = vunpack.c.l.b16 %v7888
    %v9360 = vunpack.c.h.b16 %v7888
    %v9361 = vunpack.c.l.b16 %v7889
    %v9362 = vunpack.c.h.b16 %v7889
    %v9363 = vunpack.c.l.b16 %v7890
    %v9364 = vunpack.c.l.b16 %v7891
    %v9365 = vunpack.c.h.b16 %v7891
    %v9366 = vunpack.c.l.b16 %v7892
    %v9367 = vunpack.c.h.b16 %v7892
    %v9368 = vunpack.c.l.b16 %v7893
    %v9369 = vunpack.c.h.b16 %v7893
    %v9370 = vunpack.c.l.b16 %v7894
    %v9371 = vunpack.c.l.b16 %v7895
    %v9372 = vunpack.c.h.b16 %v7895
    %v9373 = vunpack.c.l.b16 %v7896
    %v9374 = vunpack.c.h.b16 %v7896
    %v9375 = vunpack.c.l.b16 %v7897
    %v9376 = vunpack.c.h.b16 %v7897
    %v9377 = vunpack.c.l.b16 %v7898
    %v9378 = vunpack.c.l.b16 %v7899
    %v9379 = vunpack.c.h.b16 %v7899
    %v9380 = vunpack.c.l.b16 %v7900
    %v9381 = vunpack.c.h.b16 %v7900
    %v9382 = vunpack.c.l.b16 %v7901
    %v9383 = vunpack.c.h.b16 %v7901
    %v9384 = vunpack.c.l.b16 %v7902
    %v9385 = vunpack.c.l.b16 %v7903
    %v9386 = vunpack.c.h.b16 %v7903
    %v9387 = vunpack.c.l.b16 %v7904
    %v9388 = vunpack.c.h.b16 %v7904
    %v9389 = vunpack.c.l.b16 %v7905
    %v9390 = vunpack.c.h.b16 %v7905
    %v9391 = vunpack.c.l.b16 %v7906
    %v9392 = vunpack.c.l.b16 %v7907
    %v9393 = vunpack.c.h.b16 %v7907
    %v9394 = vunpack.c.l.b16 %v7908
    %v9395 = vunpack.c.h.b16 %v7908
    %v9396 = vunpack.c.l.b16 %v7909
    %v9397 = vunpack.c.h.b16 %v7909
    %v9398 = vunpack.c.l.b16 %v7910
    %v9399 = vunpack.c.l.b16 %v7911
    %v9400 = vunpack.c.h.b16 %v7911
    %v9401 = vunpack.c.l.b16 %v7912
    %v9402 = vunpack.c.h.b16 %v7912
    %v9403 = vunpack.c.l.b16 %v7913
    %v9404 = vunpack.c.h.b16 %v7913
    %v9405 = vunpack.c.l.b16 %v7914
    %v9406 = vunpack.c.l.b16 %v7915
    %v9407 = vunpack.c.h.b16 %v7915
    %v9408 = vunpack.c.l.b16 %v7916
    %v9409 = vunpack.c.h.b16 %v7916
    %v9410 = vunpack.c.l.b16 %v7917
    %v9411 = vunpack.c.h.b16 %v7917
    %v9412 = vunpack.c.l.b16 %v7918
    %v9413 = vunpack.c.l.b16 %v7919
    %v9414 = vunpack.c.h.b16 %v7919
    %v9415 = vunpack.c.l.b16 %v7920
    %v9416 = vunpack.c.h.b16 %v7920
    %v9417 = vunpack.c.l.b16 %v7921
    %v9418 = vunpack.c.h.b16 %v7921
    %v9419 = vunpack.c.l.b16 %v7922
    %v9420 = vunpack.c.l.b16 %v7923
    %v9421 = vunpack.c.h.b16 %v7923
    %v9422 = vunpack.c.l.b16 %v7924
    %v9423 = vunpack.c.h.b16 %v7924
    %v9424 = vunpack.c.l.b16 %v7925
    %v9425 = vunpack.c.h.b16 %v7925
    %v9426 = vunpack.c.l.b16 %v7926
    %v9427 = vunpack.c.l.b16 %v7927
    %v9428 = vunpack.c.h.b16 %v7927
    %v9429 = vunpack.c.l.b16 %v7928
    %v9430 = vunpack.c.h.b16 %v7928
    %v9431 = vunpack.c.l.b16 %v7929
    %v9432 = vunpack.c.h.b16 %v7929
    %v9433 = vunpack.c.l.b16 %v7930
    %v9434 = vunpack.c.l.b16 %v7931
    %v9435 = vunpack.c.h.b16 %v7931
    %v9436 = vunpack.c.l.b16 %v7932
    %v9437 = vunpack.c.h.b16 %v7932
    %v9438 = vunpack.c.l.b16 %v7933
    %v9439 = vunpack.c.h.b16 %v7933
    %v9440 = vunpack.c.l.b16 %v7934
    %v9441 = vunpack.c.l.b16 %v7935
    %v9442 = vunpack.c.h.b16 %v7935
    %v9443 = vunpack.c.l.b16 %v7936
    %v9444 = vunpack.c.h.b16 %v7936
    %v9445 = vunpack.c.l.b16 %v7937
    %v9446 = vunpack.c.h.b16 %v7937
    %v9447 = vunpack.c.l.b16 %v7938
    %v9448 = vunpack.c.l.b16 %v7939
    %v9449 = vunpack.c.h.b16 %v7939
    %v9450 = vunpack.c.l.b16 %v7940
    %v9451 = vunpack.c.h.b16 %v7940
    %v9452 = vunpack.c.l.b16 %v7941
    %v9453 = vunpack.c.h.b16 %v7941
    %v9454 = vunpack.c.l.b16 %v7942
    %v9455 = vunpack.c.l.b16 %v7943
    %v9456 = vunpack.c.h.b16 %v7943
    %v9457 = vunpack.c.l.b16 %v7944
    %v9458 = vunpack.c.h.b16 %v7944
    %v9459 = vunpack.c.l.b16 %v7945
    %v9460 = vunpack.c.h.b16 %v7945
    %v9461 = vunpack.c.l.b16 %v7946
    %v9462 = vunpack.c.l.b16 %v7947
    %v9463 = vunpack.c.h.b16 %v7947
    %v9464 = vunpack.c.l.b16 %v7948
    %v9465 = vunpack.c.h.b16 %v7948
    %v9466 = vunpack.c.l.b16 %v7949
    %v9467 = vunpack.c.h.b16 %v7949
    %v9468 = vunpack.c.l.b16 %v7950
    %v9469 = vunpack.c.l.b16 %v7951
    %v9470 = vunpack.c.h.b16 %v7951
    %v9471 = vunpack.c.l.b16 %v7952
    %v9472 = vunpack.c.h.b16 %v7952
    %v9473 = vunpack.c.l.b16 %v7953
    %v9474 = vunpack.c.h.b16 %v7953
    %v9475 = vunpack.c.l.b16 %v7954
    %v9476 = vunpack.c.l.b16 %v7955
    %v9477 = vunpack.c.h.b16 %v7955
    %v9478 = vunpack.c.l.b16 %v7956
    %v9479 = vunpack.c.h.b16 %v7956
    %v9480 = vunpack.c.l.b16 %v7957
    %v9481 = vunpack.c.h.b16 %v7957
    %v9482 = vunpack.c.l.b16 %v7958
    %v9483 = vunpack.c.l.b16 %v7959
    %v9484 = vunpack.c.h.b16 %v7959
    %v9485 = vunpack.c.l.b16 %v7960
    %v9486 = vunpack.c.h.b16 %v7960
    %v9487 = vunpack.c.l.b16 %v7961
    %v9488 = vunpack.c.h.b16 %v7961
    %v9489 = vunpack.c.l.b16 %v7962
    %v9490 = vunpack.c.l.b16 %v7963
    %v9491 = vunpack.c.h.b16 %v7963
    %v9492 = vunpack.c.l.b16 %v7964
    %v9493 = vunpack.c.h.b16 %v7964
    %v9494 = vunpack.c.l.b16 %v7965
    %v9495 = vunpack.c.h.b16 %v7965
    %v9496 = vunpack.c.l.b16 %v7966
    %v9497 = vunpack.c.l.b16 %v7967
    %v9498 = vunpack.c.h.b16 %v7967
    %v9499 = vunpack.c.l.b16 %v7968
    %v9500 = vunpack.c.h.b16 %v7968
    %v9501 = vunpack.c.l.b16 %v7969
    %v9502 = vunpack.c.h.b16 %v7969
    %v9503 = vunpack.c.l.b16 %v7970
    %v9504 = vunpack.c.l.b16 %v7971
    %v9505 = vunpack.c.h.b16 %v7971
    %v9506 = vunpack.c.l.b16 %v7972
    %v9507 = vunpack.c.h.b16 %v7972
    %v9508 = vunpack.c.l.b16 %v7973
    %v9509 = vunpack.c.h.b16 %v7973
    %v9510 = vunpack.c.l.b16 %v7974
    %v9511 = vunpack.c.l.b16 %v7975
    %v9512 = vunpack.c.h.b16 %v7975
    %v9513 = vunpack.c.l.b16 %v7976
    %v9514 = vunpack.c.h.b16 %v7976
    %v9515 = vunpack.c.l.b16 %v7977
    %v9516 = vunpack.c.h.b16 %v7977
    %v9517 = vunpack.c.l.b16 %v7978
    %v9518 = vunpack.c.l.b16 %v7979
    %v9519 = vunpack.c.h.b16 %v7979
    %v9520 = vunpack.c.l.b16 %v7980
    %v9521 = vunpack.c.h.b16 %v7980
    %v9522 = vunpack.c.l.b16 %v7981
    %v9523 = vunpack.c.h.b16 %v7981
    %v9524 = vunpack.c.l.b16 %v7982
    %v9525 = vunpack.c.l.b16 %v7983
    %v9526 = vunpack.c.h.b16 %v7983
    %v9527 = vunpack.c.l.b16 %v7984
    %v9528 = vunpack.c.h.b16 %v7984
    %v9529 = vunpack.c.l.b16 %v7985
    %v9530 = vunpack.c.h.b16 %v7985
    %v9531 = vunpack.c.l.b16 %v7986
    %v9532 = vunpack.c.l.b16 %v7987
    %v9533 = vunpack.c.h.b16 %v7987
    %v9534 = vunpack.c.l.b16 %v7988
    %v9535 = vunpack.c.h.b16 %v7988
    %v9536 = vunpack.c.l.b16 %v7989
    %v9537 = vunpack.c.h.b16 %v7989
    %v9538 = vunpack.c.l.b16 %v7990
    %v9539 = vunpack.c.l.b16 %v7991
    %v9540 = vunpack.c.h.b16 %v7991
    %v9541 = vunpack.c.l.b16 %v7992
    %v9542 = vunpack.c.h.b16 %v7992
    %v9543 = vunpack.c.l.b16 %v7993
    %v9544 = vunpack.c.h.b16 %v7993
    %v9545 = vunpack.c.l.b16 %v7994
    %v9546 = vunpack.c.l.b16 %v7995
    %v9547 = vunpack.c.h.b16 %v7995
    %v9548 = vunpack.c.l.b16 %v7996
    %v9549 = vunpack.c.h.b16 %v7996
    %v9550 = vunpack.c.l.b16 %v7997
    %v9551 = vunpack.c.h.b16 %v7997
    %v9552 = vunpack.c.l.b16 %v7998
    %v9553 = vunpack.c.l.b16 %v7999
    %v9554 = vunpack.c.h.b16 %v7999
    %v9555 = vunpack.c.l.b16 %v8000
    %v9556 = vunpack.c.h.b16 %v8000
    %v9557 = vunpack.c.l.b16 %v8001
    %v9558 = vunpack.c.h.b16 %v8001
    %v9559 = vunpack.c.l.b16 %v8002
    %v9560 = vunpack.c.l.b16 %v8003
    %v9561 = vunpack.c.h.b16 %v8003
    %v9562 = vunpack.c.l.b16 %v8004
    %v9563 = vunpack.c.h.b16 %v8004
    %v9564 = vunpack.c.l.b16 %v8005
    %v9565 = vunpack.c.h.b16 %v8005
    %v9566 = vunpack.c.l.b16 %v8006
    %v9567 = vunpack.c.l.b16 %v8007
    %v9568 = vunpack.c.h.b16 %v8007
    %v9569 = vunpack.c.l.b16 %v8008
    %v9570 = vunpack.c.h.b16 %v8008
    %v9571 = vunpack.c.l.b16 %v8009
    %v9572 = vunpack.c.h.b16 %v8009
    %v9573 = vunpack.c.l.b16 %v8010
    %v9574 = vunpack.c.l.b16 %v8011
    %v9575 = vunpack.c.h.b16 %v8011
    %v9576 = vunpack.c.l.b16 %v8012
    %v9577 = vunpack.c.h.b16 %v8012
    %v9578 = vunpack.c.l.b16 %v8013
    %v9579 = vunpack.c.h.b16 %v8013
    %v9580 = vunpack.c.l.b16 %v8014
    %v9581 = vunpack.c.l.b16 %v8015
    %v9582 = vunpack.c.h.b16 %v8015
    %v9583 = vunpack.c.l.b16 %v8016
    %v9584 = vunpack.c.h.b16 %v8016
    %v9585 = vunpack.c.l.b16 %v8017
    %v9586 = vunpack.c.h.b16 %v8017
    %v9587 = vunpack.c.l.b16 %v8018
    %v9588 = vunpack.c.l.b16 %v8019
    %v9589 = vunpack.c.h.b16 %v8019
    %v9590 = vunpack.c.l.b16 %v8020
    %v9591 = vunpack.c.h.b16 %v8020
    %v9592 = vunpack.c.l.b16 %v8021
    %v9593 = vunpack.c.h.b16 %v8021
    %v9594 = vunpack.c.l.b16 %v8022
    %v9595 = vunpack.c.l.b16 %v8023
    %v9596 = vunpack.c.h.b16 %v8023
    %v9597 = vunpack.c.l.b16 %v8024
    %v9598 = vunpack.c.h.b16 %v8024
    %v9599 = vunpack.c.l.b16 %v8025
    %v9600 = vunpack.c.h.b16 %v8025
    %v9601 = vunpack.c.l.b16 %v8026
    %v9602 = vunpack.c.l.b16 %v8027
    %v9603 = vunpack.c.h.b16 %v8027
    %v9604 = vunpack.c.l.b16 %v8028
    %v9605 = vunpack.c.h.b16 %v8028
    %v9606 = vunpack.c.l.b16 %v8029
    %v9607 = vunpack.c.h.b16 %v8029
    %v9608 = vunpack.c.l.b16 %v8030
    %v9609 = vunpack.c.l.b16 %v8031
    %v9610 = vunpack.c.h.b16 %v8031
    %v9611 = vunpack.c.l.b16 %v8032
    %v9612 = vunpack.c.h.b16 %v8032
    %v9613 = vunpack.c.l.b16 %v8033
    %v9614 = vunpack.c.h.b16 %v8033
    %v9615 = vunpack.c.l.b16 %v8034
    %v9616 = vunpack.c.l.b16 %v8035
    %v9617 = vunpack.c.h.b16 %v8035
    %v9618 = vunpack.c.l.b16 %v8036
    %v9619 = vunpack.c.h.b16 %v8036
    %v9620 = vunpack.c.l.b16 %v8037
    %v9621 = vunpack.c.h.b16 %v8037
    %v9622 = vunpack.c.l.b16 %v8038
    %v9623 = vunpack.c.l.b16 %v8039
    %v9624 = vunpack.c.h.b16 %v8039
    %v9625 = vunpack.c.l.b16 %v8040
    %v9626 = vunpack.c.h.b16 %v8040
    %v9627 = vunpack.c.l.b16 %v8041
    %v9628 = vunpack.c.h.b16 %v8041
    %v9629 = vunpack.c.l.b16 %v8042
    %v9630 = vunpack.c.l.b16 %v8043
    %v9631 = vunpack.c.h.b16 %v8043
    %v9632 = vunpack.c.l.b16 %v8044
    %v9633 = vunpack.c.h.b16 %v8044
    %v9634 = vunpack.c.l.b16 %v8045
    %v9635 = vunpack.c.h.b16 %v8045
    %v9636 = vunpack.c.l.b16 %v8046
    %v9637 = vunpack.c.l.b16 %v8047
    %v9638 = vunpack.c.h.b16 %v8047
    %v9639 = vunpack.c.l.b16 %v8048
    %v9640 = vunpack.c.h.b16 %v8048
    %v9641 = vunpack.c.l.b16 %v8049
    %v9642 = vunpack.c.h.b16 %v8049
    %v9643 = vunpack.c.l.b16 %v8050
    %v9644 = vunpack.c.l.b16 %v8051
    %v9645 = vunpack.c.h.b16 %v8051
    %v9646 = vunpack.c.l.b16 %v8052
    %v9647 = vunpack.c.h.b16 %v8052
    %v9648 = vunpack.c.l.b16 %v8053
    %v9649 = vunpack.c.h.b16 %v8053
    %v9650 = vunpack.c.l.b16 %v8054
    %v9651 = vunpack.c.l.b16 %v8055
    %v9652 = vunpack.c.h.b16 %v8055
    %v9653 = vunpack.c.l.b16 %v8056
    %v9654 = vunpack.c.h.b16 %v8056
    %v9655 = vunpack.c.l.b16 %v8057
    %v9656 = vunpack.c.h.b16 %v8057
    %v9657 = vunpack.c.l.b16 %v8058
    %v9658 = vunpack.c.l.b16 %v8059
    %v9659 = vunpack.c.h.b16 %v8059
    %v9660 = vunpack.c.l.b16 %v8060
    %v9661 = vunpack.c.h.b16 %v8060
    %v9662 = vunpack.c.l.b16 %v8061
    %v9663 = vunpack.c.h.b16 %v8061
    %v9664 = vunpack.c.l.b16 %v8062
    %v9665 = vunpack.c.l.b16 %v8063
    %v9666 = vunpack.c.h.b16 %v8063
    %v9667 = vunpack.c.l.b16 %v8064
    %v9668 = vunpack.c.h.b16 %v8064
    %v9669 = vunpack.c.l.b16 %v8065
    %v9670 = vunpack.c.h.b16 %v8065
    %v9671 = vunpack.c.l.b16 %v8066
    %v9672 = vunpack.c.l.b16 %v8067
    %v9673 = vunpack.c.h.b16 %v8067
    %v9674 = vunpack.c.l.b16 %v8068
    %v9675 = vunpack.c.h.b16 %v8068
    %v9676 = vunpack.c.l.b16 %v8069
    %v9677 = vunpack.c.h.b16 %v8069
    %v9678 = vunpack.c.l.b16 %v8070
    %v9679 = vunpack.c.l.b16 %v8071
    %v9680 = vunpack.c.h.b16 %v8071
    %v9681 = vunpack.c.l.b16 %v8072
    %v9682 = vunpack.c.h.b16 %v8072
    %v9683 = vunpack.c.l.b16 %v8073
    %v9684 = vunpack.c.h.b16 %v8073
    %v9685 = vunpack.c.l.b16 %v8074
    %v9686 = vunpack.c.l.b16 %v8075
    %v9687 = vunpack.c.h.b16 %v8075
    %v9688 = vunpack.c.l.b16 %v8076
    %v9689 = vunpack.c.h.b16 %v8076
    %v9690 = vunpack.c.l.b16 %v8077
    %v9691 = vunpack.c.h.b16 %v8077
    %v9692 = vunpack.c.l.b16 %v8078
    %v9693 = vunpack.c.l.b16 %v8079
    %v9694 = vunpack.c.h.b16 %v8079
    %v9695 = vunpack.c.l.b16 %v8080
    %v9696 = vunpack.c.h.b16 %v8080
    %v9697 = vunpack.c.l.b16 %v8081
    %v9698 = vunpack.c.h.b16 %v8081
    %v9699 = vunpack.c.l.b16 %v8082
    %v9700 = vunpack.c.l.b16 %v8083
    %v9701 = vunpack.c.h.b16 %v8083
    %v9702 = vunpack.c.l.b16 %v8084
    %v9703 = vunpack.c.h.b16 %v8084
    %v9704 = vunpack.c.l.b16 %v8085
    %v9705 = vunpack.c.h.b16 %v8085
    %v9706 = vunpack.c.l.b16 %v8086
    %v9707 = vunpack.c.l.b16 %v8087
    %v9708 = vunpack.c.h.b16 %v8087
    %v9709 = vunpack.c.l.b16 %v8088
    %v9710 = vunpack.c.h.b16 %v8088
    %v9711 = vunpack.c.l.b16 %v8089
    %v9712 = vunpack.c.h.b16 %v8089
    %v9713 = vunpack.c.l.b16 %v8090
    %v9714 = vunpack.c.l.b16 %v8091
    %v9715 = vunpack.c.h.b16 %v8091
    %v9716 = vunpack.c.l.b16 %v8092
    %v9717 = vunpack.c.h.b16 %v8092
    %v9718 = vunpack.c.l.b16 %v8093
    %v9719 = vunpack.c.h.b16 %v8093
    %v9720 = vunpack.c.l.b16 %v8094
    %v9721 = vunpack.c.l.b16 %v8095
    %v9722 = vunpack.c.h.b16 %v8095
    %v9723 = vunpack.c.l.b16 %v8096
    %v9724 = vunpack.c.h.b16 %v8096
    %v9725 = vunpack.c.l.b16 %v8097
    %v9726 = vunpack.c.h.b16 %v8097
    %v9727 = vunpack.c.l.b16 %v8098
    %v9728 = vunpack.c.l.b16 %v8099
    %v9729 = vunpack.c.h.b16 %v8099
    %v9730 = vunpack.c.l.b16 %v8100
    %v9731 = vunpack.c.h.b16 %v8100
    %v9732 = vunpack.c.l.b16 %v8101
    %v9733 = vunpack.c.h.b16 %v8101
    %v9734 = vunpack.c.l.b16 %v8102
    %v9735 = vunpack.c.l.b16 %v8103
    %v9736 = vunpack.c.h.b16 %v8103
    %v9737 = vunpack.c.l.b16 %v8104
    %v9738 = vunpack.c.h.b16 %v8104
    %v9739 = vunpack.c.l.b16 %v8105
    %v9740 = vunpack.c.h.b16 %v8105
    %v9741 = vunpack.c.l.b16 %v8106
    %v9742 = vunpack.c.l.b16 %v8107
    %v9743 = vunpack.c.h.b16 %v8107
    %v9744 = vunpack.c.l.b16 %v8108
    %v9745 = vunpack.c.h.b16 %v8108
    %v9746 = vunpack.c.l.b16 %v8109
    %v9747 = vunpack.c.h.b16 %v8109
    %v9748 = vunpack.c.l.b16 %v8110
    %v9749 = vunpack.c.l.b16 %v8111
    %v9750 = vunpack.c.h.b16 %v8111
    %v9751 = vunpack.c.l.b16 %v8112
    %v9752 = vunpack.c.h.b16 %v8112
    %v9753 = vunpack.c.l.b16 %v8113
    %v9754 = vunpack.c.h.b16 %v8113
    %v9755 = vunpack.c.l.b16 %v8114
    %v9756 = vunpack.c.l.b16 %v8115
    %v9757 = vunpack.c.h.b16 %v8115
    %v9758 = vunpack.c.l.b16 %v8116
    %v9759 = vunpack.c.h.b16 %v8116
    %v9760 = vunpack.c.l.b16 %v8117
    %v9761 = vunpack.c.h.b16 %v8117
    %v9762 = vunpack.c.l.b16 %v8118
    %v9763 = vunpack.c.l.b16 %v8119
    %v9764 = vunpack.c.h.b16 %v8119
    %v9765 = vunpack.c.l.b16 %v8120
    %v9766 = vunpack.c.h.b16 %v8120
    %v9767 = vunpack.c.l.b16 %v8121
    %v9768 = vunpack.c.h.b16 %v8121
    %v9769 = vunpack.c.l.b16 %v8122
    %v9770 = vunpack.c.l.b16 %v8123
    %v9771 = vunpack.c.h.b16 %v8123
    %v9772 = vunpack.c.l.b16 %v8124
    %v9773 = vunpack.c.h.b16 %v8124
    %v9774 = vunpack.c.l.b16 %v8125
    %v9775 = vunpack.c.h.b16 %v8125
    %v9776 = vunpack.c.l.b16 %v8126
    %v9777 = vunpack.c.l.b16 %v8127
    %v9778 = vunpack.c.h.b16 %v8127
    %v9779 = vunpack.c.l.b16 %v8128
    %v9780 = vunpack.c.h.b16 %v8128
    %v9781 = vunpack.c.l.b16 %v8129
    %v9782 = vunpack.c.h.b16 %v8129
    %v9783 = vunpack.c.l.b16 %v8130
    %v9784 = vunpack.c.l.b16 %v8131
    %v9785 = vunpack.c.h.b16 %v8131
    %v9786 = vunpack.c.l.b16 %v8132
    %v9787 = vunpack.c.h.b16 %v8132
    %v9788 = vunpack.c.l.b16 %v8133
    %v9789 = vunpack.c.h.b16 %v8133
    %v9790 = vunpack.c.l.b16 %v8134
    %v9791 = vunpack.c.l.b16 %v8135
    %v9792 = vunpack.c.h.b16 %v8135
    %v9793 = vunpack.c.l.b16 %v8136
    %v9794 = vunpack.c.h.b16 %v8136
    %v9795 = vunpack.c.l.b16 %v8137
    %v9796 = vunpack.c.h.b16 %v8137
    %v9797 = vunpack.c.l.b16 %v8138
    %v9798 = vunpack.c.l.b16 %v8139
    %v9799 = vunpack.c.h.b16 %v8139
    %v9800 = vunpack.c.l.b16 %v8140
    %v9801 = vunpack.c.h.b16 %v8140
    %v9802 = vunpack.c.l.b16 %v8141
    %v9803 = vunpack.c.h.b16 %v8141
    %v9804 = vunpack.c.l.b16 %v8142
    %v9805 = vunpack.c.l.b16 %v8143
    %v9806 = vunpack.c.h.b16 %v8143
    %v9807 = vunpack.c.l.b16 %v8144
    %v9808 = vunpack.c.h.b16 %v8144
    %v9809 = vunpack.c.l.b16 %v8145
    %v9810 = vunpack.c.h.b16 %v8145
    %v9811 = vunpack.c.l.b16 %v8146
    %v9812 = vunpack.c.l.b16 %v8147
    %v9813 = vunpack.c.h.b16 %v8147
    %v9814 = vunpack.c.l.b16 %v8148
    %v9815 = vunpack.c.h.b16 %v8148
    %v9816 = vunpack.c.l.b16 %v8149
    %v9817 = vunpack.c.h.b16 %v8149
    %v9818 = vunpack.c.l.b16 %v8150
    %v9819 = vunpack.c.l.b16 %v8151
    %v9820 = vunpack.c.h.b16 %v8151
    %v9821 = vunpack.c.l.b16 %v8152
    %v9822 = vunpack.c.h.b16 %v8152
    %v9823 = vunpack.c.l.b16 %v8153
    %v9824 = vunpack.c.h.b16 %v8153
    %v9825 = vunpack.c.l.b16 %v8154
    %v9826 = vunpack.c.l.b16 %v8155
    %v9827 = vunpack.c.h.b16 %v8155
    %v9828 = vunpack.c.l.b16 %v8156
    %v9829 = vunpack.c.h.b16 %v8156
    %v9830 = vunpack.c.l.b16 %v8157
    %v9831 = vunpack.c.h.b16 %v8157
    %v9832 = vunpack.c.l.b16 %v8158
    %v9833 = vunpack.c.l.b16 %v8159
    %v9834 = vunpack.c.h.b16 %v8159
    %v9835 = vunpack.c.l.b16 %v8160
    %v9836 = vunpack.c.h.b16 %v8160
    %v9837 = vunpack.c.l.b16 %v8161
    %v9838 = vunpack.c.h.b16 %v8161
    %v9839 = vunpack.c.l.b16 %v8162
    %v9840 = vunpack.c.l.b16 %v8163
    %v9841 = vunpack.c.h.b16 %v8163
    %v9842 = vunpack.c.l.b16 %v8164
    %v9843 = vunpack.c.h.b16 %v8164
    %v9844 = vunpack.c.l.b16 %v8165
    %v9845 = vunpack.c.h.b16 %v8165
    %v9846 = vunpack.c.l.b16 %v8166
    %v9847 = vunpack.c.l.b16 %v8167
    %v9848 = vunpack.c.h.b16 %v8167
    %v9849 = vunpack.c.l.b16 %v8168
    %v9850 = vunpack.c.h.b16 %v8168
    %v9851 = vunpack.c.l.b16 %v8169
    %v9852 = vunpack.c.h.b16 %v8169
    %v9853 = vunpack.c.l.b16 %v8170
    %v9854 = vunpack.c.l.b16 %v8171
    %v9855 = vunpack.c.h.b16 %v8171
    %v9856 = vunpack.c.l.b16 %v8172
    %v9857 = vunpack.c.h.b16 %v8172
    %v9858 = vunpack.c.l.b16 %v8173
    %v9859 = vunpack.c.h.b16 %v8173
    %v9860 = vunpack.c.l.b16 %v8174
    %v9861 = vunpack.c.l.b16 %v8175
    %v9862 = vunpack.c.h.b16 %v8175
    %v9863 = vunpack.c.l.b16 %v8176
    %v9864 = vunpack.c.h.b16 %v8176
    %v9865 = vunpack.c.l.b16 %v8177
    %v9866 = vunpack.c.h.b16 %v8177
    %v9867 = vunpack.c.l.b16 %v8178
    %v9868 = vunpack.c.l.b16 %v8179
    %v9869 = vunpack.c.h.b16 %v8179
    %v9870 = vunpack.c.l.b16 %v8180
    %v9871 = vunpack.c.h.b16 %v8180
    %v9872 = vunpack.c.l.b16 %v8181
    %v9873 = vunpack.c.h.b16 %v8181
    %v9874 = vunpack.c.l.b16 %v8182
    %v9875 = vunpack.c.l.b16 %v8183
    %v9876 = vunpack.c.h.b16 %v8183
    %v9877 = vunpack.c.l.b16 %v8184
    %v9878 = vunpack.c.h.b16 %v8184
    %v9879 = vunpack.c.l.b16 %v8185
    %v9880 = vunpack.c.h.b16 %v8185
    %v9881 = vunpack.c.l.b16 %v8186
    %v9882 = vunpack.c.l.b16 %v8187
    %v9883 = vunpack.c.h.b16 %v8187
    %v9884 = vunpack.c.l.b16 %v8188
    %v9885 = vunpack.c.h.b16 %v8188
    %v9886 = vunpack.c.l.b16 %v8189
    %v9887 = vunpack.c.h.b16 %v8189
    %v9888 = vunpack.c.l.b16 %v8190
    %v9889 = vunpack.c.l.b16 %v8191
    %v9890 = vunpack.c.h.b16 %v8191
    %v9891 = vunpack.c.l.b16 %v8192
    %v9892 = vunpack.c.h.b16 %v8192
    %v9893 = vunpack.c.l.b16 %v8193
    %v9894 = vunpack.c.h.b16 %v8193
    %v9895 = vunpack.c.l.b16 %v8194
    %v9896 = vunpack.c.l.b16 %v8195
    %v9897 = vunpack.c.h.b16 %v8195
    %v9898 = vunpack.c.l.b16 %v8196
    %v9899 = vunpack.c.h.b16 %v8196
    %v9900 = vunpack.c.l.b16 %v8197
    %v9901 = vunpack.c.h.b16 %v8197
    %v9902 = vunpack.c.l.b16 %v8198
    %v9903 = vunpack.c.l.b16 %v8199
    %v9904 = vunpack.c.h.b16 %v8199
    %v9905 = vunpack.c.l.b16 %v8200
    %v9906 = vunpack.c.h.b16 %v8200
    %v9907 = vunpack.c.l.b16 %v8201
    %v9908 = vunpack.c.h.b16 %v8201
    %v9909 = vunpack.c.l.b16 %v8202
    %v9910 = vunpack.c.l.b16 %v8203
    %v9911 = vunpack.c.h.b16 %v8203
    %v9912 = vunpack.c.l.b16 %v8204
    %v9913 = vunpack.c.h.b16 %v8204
    %v9914 = vunpack.c.l.b16 %v8205
    %v9915 = vunpack.c.h.b16 %v8205
    %v9916 = vunpack.c.l.b16 %v8206
    %v9917 = vunpack.c.l.b16 %v8207
    %v9918 = vunpack.c.h.b16 %v8207
    %v9919 = vunpack.c.l.b16 %v8208
    %v9920 = vunpack.c.h.b16 %v8208
    %v9921 = vunpack.c.l.b16 %v8209
    %v9922 = vunpack.c.h.b16 %v8209
    %v9923 = vunpack.c.l.b16 %v8210
    %v9924 = vunpack.c.l.b16 %v8211
    %v9925 = vunpack.c.h.b16 %v8211
    %v9926 = vunpack.c.l.b16 %v8212
    %v9927 = vunpack.c.h.b16 %v8212
    %v9928 = vunpack.c.l.b16 %v8213
    %v9929 = vunpack.c.h.b16 %v8213
    %v9930 = vunpack.c.l.b16 %v8214
    %v9931 = vunpack.c.l.b16 %v8215
    %v9932 = vunpack.c.h.b16 %v8215
    %v9933 = vunpack.c.l.b16 %v8216
    %v9934 = vunpack.c.h.b16 %v8216
    %v9935 = vunpack.c.l.b16 %v8217
    %v9936 = vunpack.c.h.b16 %v8217
    %v9937 = vunpack.c.l.b16 %v8218
    %v9938 = vunpack.c.l.b16 %v8219
    %v9939 = vunpack.c.h.b16 %v8219
    %v9940 = vunpack.c.l.b16 %v8220
    %v9941 = vunpack.c.h.b16 %v8220
    %v9942 = vunpack.c.l.b16 %v8221
    %v9943 = vunpack.c.h.b16 %v8221
    %v9944 = vunpack.c.l.b16 %v8222
    %v9945 = vunpack.c.l.b16 %v8223
    %v9946 = vunpack.c.h.b16 %v8223
    %v9947 = vunpack.c.l.b16 %v8224
    %v9948 = vunpack.c.h.b16 %v8224
    %v9949 = vunpack.c.l.b16 %v8225
    %v9950 = vunpack.c.h.b16 %v8225
    %v9951 = vunpack.c.l.b16 %v8226
    %v9952 = vunpack.c.l.b16 %v8227
    %v9953 = vunpack.c.h.b16 %v8227
    %v9954 = vunpack.c.l.b16 %v8228
    %v9955 = vunpack.c.h.b16 %v8228
    %v9956 = vunpack.c.l.b16 %v8229
    %v9957 = vunpack.c.h.b16 %v8229
    %v9958 = vunpack.c.l.b16 %v8230
    %v9959 = vunpack.c.l.b16 %v8231
    %v9960 = vunpack.c.h.b16 %v8231
    %v9961 = vunpack.c.l.b16 %v8232
    %v9962 = vunpack.c.h.b16 %v8232
    %v9963 = vunpack.c.l.b16 %v8233
    %v9964 = vunpack.c.h.b16 %v8233
    %v9965 = vunpack.c.l.b16 %v8234
    %v9966 = vunpack.c.l.b16 %v8235
    %v9967 = vunpack.c.h.b16 %v8235
    %v9968 = vunpack.c.l.b16 %v8236
    %v9969 = vunpack.c.h.b16 %v8236
    %v9970 = vunpack.c.l.b16 %v8237
    %v9971 = vunpack.c.h.b16 %v8237
    %v9972 = vunpack.c.l.b16 %v8238
    %v9973 = vunpack.c.l.b16 %v8239
    %v9974 = vunpack.c.h.b16 %v8239
    %v9975 = vunpack.c.l.b16 %v8240
    %v9976 = vunpack.c.h.b16 %v8240
    %v9977 = vunpack.c.l.b16 %v8241
    %v9978 = vunpack.c.h.b16 %v8241
    %v9979 = vunpack.c.l.b16 %v8242
    %v9980 = vunpack.c.l.b16 %v8243
    %v9981 = vunpack.c.h.b16 %v8243
    %v9982 = vunpack.c.l.b16 %v8244
    %v9983 = vunpack.c.h.b16 %v8244
    %v9984 = vunpack.c.l.b16 %v8245
    %v9985 = vunpack.c.h.b16 %v8245
    %v9986 = vunpack.c.l.b16 %v8246
    %v9987 = vunpack.c.l.b16 %v8247
    %v9988 = vunpack.c.h.b16 %v8247
    %v9989 = vunpack.c.l.b16 %v8248
    %v9990 = vunpack.c.h.b16 %v8248
    %v9991 = vunpack.c.l.b16 %v8249
    %v9992 = vunpack.c.h.b16 %v8249
    %v9993 = vunpack.c.l.b16 %v8250
    %v9994 = vunpack.c.l.b16 %v8251
    %v9995 = vunpack.c.h.b16 %v8251
    %v9996 = vunpack.c.l.b16 %v8252
    %v9997 = vunpack.c.h.b16 %v8252
    %v9998 = vunpack.c.l.b16 %v8253
    %v9999 = vunpack.c.h.b16 %v8253
    %v10000 = vunpack.c.l.b16 %v8254
    %v10001 = vunpack.c.l.b16 %v8255
    %v10002 = vunpack.c.h.b16 %v8255
    %v10003 = vunpack.c.l.b16 %v8256
    %v10004 = vunpack.c.h.b16 %v8256
    %v10005 = vunpack.c.l.b16 %v8257
    %v10006 = vunpack.c.h.b16 %v8257
    %v10007 = vunpack.c.l.b16 %v8258
    %v10008 = vunpack.c.l.b16 %v8259
    %v10009 = vunpack.c.h.b16 %v8259
    %v10010 = vunpack.c.l.b16 %v8260
    %v10011 = vunpack.c.h.b16 %v8260
    %v10012 = vunpack.c.l.b16 %v8261
    %v10013 = vunpack.c.h.b16 %v8261
    %v10014 = vunpack.c.l.b16 %v8262
    %v10015 = vunpack.c.l.b16 %v8263
    %v10016 = vunpack.c.h.b16 %v8263
    %v10017 = vunpack.c.l.b16 %v8264
    %v10018 = vunpack.c.h.b16 %v8264
    %v10019 = vunpack.c.l.b16 %v8265
    %v10020 = vunpack.c.h.b16 %v8265
    %v10021 = vunpack.c.l.b16 %v8266
    %v10022 = vunpack.c.l.b16 %v8267
    %v10023 = vunpack.c.h.b16 %v8267
    %v10024 = vunpack.c.l.b16 %v8268
    %v10025 = vunpack.c.h.b16 %v8268
    %v10026 = vunpack.c.l.b16 %v8269
    %v10027 = vunpack.c.h.b16 %v8269
    %v10028 = vunpack.c.l.b16 %v8270
    %v10029 = vunpack.c.l.b16 %v8271
    %v10030 = vunpack.c.h.b16 %v8271
    %v10031 = vunpack.c.l.b16 %v8272
    %v10032 = vunpack.c.h.b16 %v8272
    %v10033 = vunpack.c.l.b16 %v8273
    %v10034 = vunpack.c.h.b16 %v8273
    %v10035 = vunpack.c.l.b16 %v8274
    %v10036 = vunpack.c.l.b16 %v8275
    %v10037 = vunpack.c.h.b16 %v8275
    %v10038 = vunpack.c.l.b16 %v8276
    %v10039 = vunpack.c.h.b16 %v8276
    %v10040 = vunpack.c.l.b16 %v8277
    %v10041 = vunpack.c.h.b16 %v8277
    %v10042 = vunpack.c.l.b16 %v8278
    %v10043 = vunpack.c.l.b16 %v8279
    %v10044 = vunpack.c.h.b16 %v8279
    %v10045 = vunpack.c.l.b16 %v8280
    %v10046 = vunpack.c.h.b16 %v8280
    %v10047 = vunpack.c.l.b16 %v8281
    %v10048 = vunpack.c.h.b16 %v8281
    %v10049 = vunpack.c.l.b16 %v8282
    %v10050 = vunpack.c.l.b16 %v8283
    %v10051 = vunpack.c.h.b16 %v8283
    %v10052 = vunpack.c.l.b16 %v8284
    %v10053 = vunpack.c.h.b16 %v8284
    %v10054 = vunpack.c.l.b16 %v8285
    %v10055 = vunpack.c.h.b16 %v8285
    %v10056 = vunpack.c.l.b16 %v8286
    %v10057 = vunpack.c.l.b16 %v8287
    %v10058 = vunpack.c.h.b16 %v8287
    %v10059 = vunpack.c.l.b16 %v8288
    %v10060 = vunpack.c.h.b16 %v8288
    %v10061 = vunpack.c.l.b16 %v8289
    %v10062 = vunpack.c.h.b16 %v8289
    %v10063 = vunpack.c.l.b16 %v8290
    %v10064 = vunpack.c.l.b16 %v8291
    %v10065 = vunpack.c.h.b16 %v8291
    %v10066 = vunpack.c.l.b16 %v8292
    %v10067 = vunpack.c.h.b16 %v8292
    %v10068 = vunpack.c.l.b16 %v8293
    %v10069 = vunpack.c.h.b16 %v8293
    %v10070 = vunpack.c.l.b16 %v8294
    %v10071 = vunpack.c.l.b16 %v8295
    %v10072 = vunpack.c.h.b16 %v8295
    %v10073 = vunpack.c.l.b16 %v8296
    %v10074 = vunpack.c.h.b16 %v8296
    %v10075 = vunpack.c.l.b16 %v8297
    %v10076 = vunpack.c.h.b16 %v8297
    %v10077 = vunpack.c.l.b16 %v8298
    %v10078 = vunpack.c.l.b16 %v8299
    %v10079 = vunpack.c.h.b16 %v8299
    %v10080 = vunpack.c.l.b16 %v8300
    %v10081 = vunpack.c.h.b16 %v8300
    %v10082 = vunpack.c.l.b16 %v8301
    %v10083 = vunpack.c.h.b16 %v8301
    %v10084 = vunpack.c.l.b16 %v8302
    %v10085 = vunpack.c.l.b16 %v8303
    %v10086 = vunpack.c.h.b16 %v8303
    %v10087 = vunpack.c.l.b16 %v8304
    %v10088 = vunpack.c.h.b16 %v8304
    %v10089 = vunpack.c.l.b16 %v8305
    %v10090 = vunpack.c.h.b16 %v8305
    %v10091 = vunpack.c.l.b16 %v8306
    %v10092 = vunpack.c.l.b16 %v8307
    %v10093 = vunpack.c.h.b16 %v8307
    %v10094 = vunpack.c.l.b16 %v8308
    %v10095 = vunpack.c.h.b16 %v8308
    %v10096 = vunpack.c.l.b16 %v8309
    %v10097 = vunpack.c.h.b16 %v8309
    %v10098 = vunpack.c.l.b16 %v8310
    %v10099 = vunpack.c.l.b16 %v8311
    %v10100 = vunpack.c.h.b16 %v8311
    %v10101 = vunpack.c.l.b16 %v8312
    %v10102 = vunpack.c.h.b16 %v8312
    %v10103 = vunpack.c.l.b16 %v8313
    %v10104 = vunpack.c.h.b16 %v8313
    %v10105 = vunpack.c.l.b16 %v8314
    %v10106 = vunpack.c.l.b16 %v8315
    %v10107 = vunpack.c.h.b16 %v8315
    %v10108 = vunpack.c.l.b16 %v8316
    %v10109 = vunpack.c.h.b16 %v8316
    %v10110 = vunpack.c.l.b16 %v8317
    %v10111 = vunpack.c.h.b16 %v8317
    %v10112 = vunpack.c.l.b16 %v8318
    %v10113 = vunpack.c.l.b16 %v8319
    %v10114 = vunpack.c.h.b16 %v8319
    %v10115 = vunpack.c.l.b16 %v8320
    %v10116 = vunpack.c.h.b16 %v8320
    %v10117 = vunpack.c.l.b16 %v8321
    %v10118 = vunpack.c.h.b16 %v8321
    %v10119 = vunpack.c.l.b16 %v8322
    %v10120 = vpack.c.b16 %v9007, %v9000
    %v10121 = vpack.c.b16 %v9008, %v9001
    %v10122 = vpack.c.b16 %v9009, %v9002
    %v10123 = vpack.c.b16 %v9010, %v9003
    %v10124 = vpack.c.b16 %v9011, %v9004
    %v10125 = vpack.c.b16 %v9012, %v9005
    %v10126 = vpack.c.b16 %v9013, %v9006
    %v10127 = vpack.c.b16 %v9021, %v9014
    %v10128 = vpack.c.b16 %v9022, %v9015
    %v10129 = vpack.c.b16 %v9023, %v9016
    %v10130 = vpack.c.b16 %v9024, %v9017
    %v10131 = vpack.c.b16 %v9025, %v9018
    %v10132 = vpack.c.b16 %v9026, %v9019
    %v10133 = vpack.c.b16 %v9027, %v9020
    %v10134 = vpack.c.b16 %v9035, %v9028
    %v10135 = vpack.c.b16 %v9036, %v9029
    %v10136 = vpack.c.b16 %v9037, %v9030
    %v10137 = vpack.c.b16 %v9038, %v9031
    %v10138 = vpack.c.b16 %v9039, %v9032
    %v10139 = vpack.c.b16 %v9040, %v9033
    %v10140 = vpack.c.b16 %v9041, %v9034
    %v10141 = vpack.c.b16 %v9049, %v9042
    %v10142 = vpack.c.b16 %v9050, %v9043
    %v10143 = vpack.c.b16 %v9051, %v9044
    %v10144 = vpack.c.b16 %v9052, %v9045
    %v10145 = vpack.c.b16 %v9053, %v9046
    %v10146 = vpack.c.b16 %v9054, %v9047
    %v10147 = vpack.c.b16 %v9055, %v9048
    %v10148 = vpack.c.b16 %v9063, %v9056
    %v10149 = vpack.c.b16 %v9064, %v9057
    %v10150 = vpack.c.b16 %v9065, %v9058
    %v10151 = vpack.c.b16 %v9066, %v9059
    %v10152 = vpack.c.b16 %v9067, %v9060
    %v10153 = vpack.c.b16 %v9068, %v9061
    %v10154 = vpack.c.b16 %v9069, %v9062
    %v10155 = vpack.c.b16 %v9077, %v9070
    %v10156 = vpack.c.b16 %v9078, %v9071
    %v10157 = vpack.c.b16 %v9079, %v9072
    %v10158 = vpack.c.b16 %v9080, %v9073
    %v10159 = vpack.c.b16 %v9081, %v9074
    %v10160 = vpack.c.b16 %v9082, %v9075
    %v10161 = vpack.c.b16 %v9083, %v9076
    %v10162 = vpack.c.b16 %v9091, %v9084
    %v10163 = vpack.c.b16 %v9092, %v9085
    %v10164 = vpack.c.b16 %v9093, %v9086
    %v10165 = vpack.c.b16 %v9094, %v9087
    %v10166 = vpack.c.b16 %v9095, %v9088
    %v10167 = vpack.c.b16 %v9096, %v9089
    %v10168 = vpack.c.b16 %v9097, %v9090
    %v10169 = vpack.c.b16 %v9105, %v9098
    %v10170 = vpack.c.b16 %v9106, %v9099
    %v10171 = vpack.c.b16 %v9107, %v9100
    %v10172 = vpack.c.b16 %v9108, %v9101
    %v10173 = vpack.c.b16 %v9109, %v9102
    %v10174 = vpack.c.b16 %v9110, %v9103
    %v10175 = vpack.c.b16 %v9111, %v9104
    %v10176 = vpack.c.b16 %v9119, %v9112
    %v10177 = vpack.c.b16 %v9120, %v9113
    %v10178 = vpack.c.b16 %v9121, %v9114
    %v10179 = vpack.c.b16 %v9122, %v9115
    %v10180 = vpack.c.b16 %v9123, %v9116
    %v10181 = vpack.c.b16 %v9124, %v9117
    %v10182 = vpack.c.b16 %v9125, %v9118
    %v10183 = vpack.c.b16 %v9133, %v9126
    %v10184 = vpack.c.b16 %v9134, %v9127
    %v10185 = vpack.c.b16 %v9135, %v9128
    %v10186 = vpack.c.b16 %v9136, %v9129
    %v10187 = vpack.c.b16 %v9137, %v9130
    %v10188 = vpack.c.b16 %v9138, %v9131
    %v10189 = vpack.c.b16 %v9139, %v9132
    %v10190 = vpack.c.b16 %v9147, %v9140
    %v10191 = vpack.c.b16 %v9148, %v9141
    %v10192 = vpack.c.b16 %v9149, %v9142
    %v10193 = vpack.c.b16 %v9150, %v9143
    %v10194 = vpack.c.b16 %v9151, %v9144
    %v10195 = vpack.c.b16 %v9152, %v9145
    %v10196 = vpack.c.b16 %v9153, %v9146
    %v10197 = vpack.c.b16 %v9161, %v9154
    %v10198 = vpack.c.b16 %v9162, %v9155
    %v10199 = vpack.c.b16 %v9163, %v9156
    %v10200 = vpack.c.b16 %v9164, %v9157
    %v10201 = vpack.c.b16 %v9165, %v9158
    %v10202 = vpack.c.b16 %v9166, %v9159
    %v10203 = vpack.c.b16 %v9167, %v9160
    %v10204 = vpack.c.b16 %v9175, %v9168
    %v10205 = vpack.c.b16 %v9176, %v9169
    %v10206 = vpack.c.b16 %v9177, %v9170
    %v10207 = vpack.c.b16 %v9178, %v9171
    %v10208 = vpack.c.b16 %v9179, %v9172
    %v10209 = vpack.c.b16 %v9180, %v9173
    %v10210 = vpack.c.b16 %v9181, %v9174
    %v10211 = vpack.c.b16 %v9189, %v9182
    %v10212 = vpack.c.b16 %v9190, %v9183
    %v10213 = vpack.c.b16 %v9191, %v9184
    %v10214 = vpack.c.b16 %v9192, %v9185
    %v10215 = vpack.c.b16 %v9193, %v9186
    %v10216 = vpack.c.b16 %v9194, %v9187
    %v10217 = vpack.c.b16 %v9195, %v9188
    %v10218 = vpack.c.b16 %v9203, %v9196
    %v10219 = vpack.c.b16 %v9204, %v9197
    %v10220 = vpack.c.b16 %v9205, %v9198
    %v10221 = vpack.c.b16 %v9206, %v9199
    %v10222 = vpack.c.b16 %v9207, %v9200
    %v10223 = vpack.c.b16 %v9208, %v9201
    %v10224 = vpack.c.b16 %v9209, %v9202
    %v10225 = vpack.c.b16 %v9217, %v9210
    %v10226 = vpack.c.b16 %v9218, %v9211
    %v10227 = vpack.c.b16 %v9219, %v9212
    %v10228 = vpack.c.b16 %v9220, %v9213
    %v10229 = vpack.c.b16 %v9221, %v9214
    %v10230 = vpack.c.b16 %v9222, %v9215
    %v10231 = vpack.c.b16 %v9223, %v9216
    %v10232 = vpack.c.b16 %v9231, %v9224
    %v10233 = vpack.c.b16 %v9232, %v9225
    %v10234 = vpack.c.b16 %v9233, %v9226
    %v10235 = vpack.c.b16 %v9234, %v9227
    %v10236 = vpack.c.b16 %v9235, %v9228
    %v10237 = vpack.c.b16 %v9236, %v9229
    %v10238 = vpack.c.b16 %v9237, %v9230
    %v10239 = vpack.c.b16 %v9245, %v9238
    %v10240 = vpack.c.b16 %v9246, %v9239
    %v10241 = vpack.c.b16 %v9247, %v9240
    %v10242 = vpack.c.b16 %v9248, %v9241
    %v10243 = vpack.c.b16 %v9249, %v9242
    %v10244 = vpack.c.b16 %v9250, %v9243
    %v10245 = vpack.c.b16 %v9251, %v9244
    %v10246 = vpack.c.b16 %v9259, %v9252
    %v10247 = vpack.c.b16 %v9260, %v9253
    %v10248 = vpack.c.b16 %v9261, %v9254
    %v10249 = vpack.c.b16 %v9262, %v9255
    %v10250 = vpack.c.b16 %v9263, %v9256
    %v10251 = vpack.c.b16 %v9264, %v9257
    %v10252 = vpack.c.b16 %v9265, %v9258
    %v10253 = vpack.c.b16 %v9273, %v9266
    %v10254 = vpack.c.b16 %v9274, %v9267
    %v10255 = vpack.c.b16 %v9275, %v9268
    %v10256 = vpack.c.b16 %v9276, %v9269
    %v10257 = vpack.c.b16 %v9277, %v9270
    %v10258 = vpack.c.b16 %v9278, %v9271
    %v10259 = vpack.c.b16 %v9279, %v9272
    %v10260 = vpack.c.b16 %v9287, %v9280
    %v10261 = vpack.c.b16 %v9288, %v9281
    %v10262 = vpack.c.b16 %v9289, %v9282
    %v10263 = vpack.c.b16 %v9290, %v9283
    %v10264 = vpack.c.b16 %v9291, %v9284
    %v10265 = vpack.c.b16 %v9292, %v9285
    %v10266 = vpack.c.b16 %v9293, %v9286
    %v10267 = vpack.c.b16 %v9301, %v9294
    %v10268 = vpack.c.b16 %v9302, %v9295
    %v10269 = vpack.c.b16 %v9303, %v9296
    %v10270 = vpack.c.b16 %v9304, %v9297
    %v10271 = vpack.c.b16 %v9305, %v9298
    %v10272 = vpack.c.b16 %v9306, %v9299
    %v10273 = vpack.c.b16 %v9307, %v9300
    %v10274 = vpack.c.b16 %v9315, %v9308
    %v10275 = vpack.c.b16 %v9316, %v9309
    %v10276 = vpack.c.b16 %v9317, %v9310
    %v10277 = vpack.c.b16 %v9318, %v9311
    %v10278 = vpack.c.b16 %v9319, %v9312
    %v10279 = vpack.c.b16 %v9320, %v9313
    %v10280 = vpack.c.b16 %v9321, %v9314
    %v10281 = vpack.c.b16 %v9329, %v9322
    %v10282 = vpack.c.b16 %v9330, %v9323
    %v10283 = vpack.c.b16 %v9331, %v9324
    %v10284 = vpack.c.b16 %v9332, %v9325
    %v10285 = vpack.c.b16 %v9333, %v9326
    %v10286 = vpack.c.b16 %v9334, %v9327
    %v10287 = vpack.c.b16 %v9335, %v9328
    %v10288 = vpack.c.b16 %v9343, %v9336
    %v10289 = vpack.c.b16 %v9344, %v9337
    %v10290 = vpack.c.b16 %v9345, %v9338
    %v10291 = vpack.c.b16 %v9346, %v9339
    %v10292 = vpack.c.b16 %v9347, %v9340
    %v10293 = vpack.c.b16 %v9348, %v9341
    %v10294 = vpack.c.b16 %v9349, %v9342
    %v10295 = vpack.c.b16 %v9357, %v9350
    %v10296 = vpack.c.b16 %v9358, %v9351
    %v10297 = vpack.c.b16 %v9359, %v9352
    %v10298 = vpack.c.b16 %v9360, %v9353
    %v10299 = vpack.c.b16 %v9361, %v9354
    %v10300 = vpack.c.b16 %v9362, %v9355
    %v10301 = vpack.c.b16 %v9363, %v9356
    %v10302 = vpack.c.b16 %v9371, %v9364
    %v10303 = vpack.c.b16 %v9372, %v9365
    %v10304 = vpack.c.b16 %v9373, %v9366
    %v10305 = vpack.c.b16 %v9374, %v9367
    %v10306 = vpack.c.b16 %v9375, %v9368
    %v10307 = vpack.c.b16 %v9376, %v9369
    %v10308 = vpack.c.b16 %v9377, %v9370
    %v10309 = vpack.c.b16 %v9385, %v9378
    %v10310 = vpack.c.b16 %v9386, %v9379
    %v10311 = vpack.c.b16 %v9387, %v9380
    %v10312 = vpack.c.b16 %v9388, %v9381
    %v10313 = vpack.c.b16 %v9389, %v9382
    %v10314 = vpack.c.b16 %v9390, %v9383
    %v10315 = vpack.c.b16 %v9391, %v9384
    %v10316 = vpack.c.b16 %v9399, %v9392
    %v10317 = vpack.c.b16 %v9400, %v9393
    %v10318 = vpack.c.b16 %v9401, %v9394
    %v10319 = vpack.c.b16 %v9402, %v9395
    %v10320 = vpack.c.b16 %v9403, %v9396
    %v10321 = vpack.c.b16 %v9404, %v9397
    %v10322 = vpack.c.b16 %v9405, %v9398
    %v10323 = vpack.c.b16 %v9413, %v9406
    %v10324 = vpack.c.b16 %v9414, %v9407
    %v10325 = vpack.c.b16 %v9415, %v9408
    %v10326 = vpack.c.b16 %v9416, %v9409
    %v10327 = vpack.c.b16 %v9417, %v9410
    %v10328 = vpack.c.b16 %v9418, %v9411
    %v10329 = vpack.c.b16 %v9419, %v9412
    %v10330 = vpack.c.b16 %v9427, %v9420
    %v10331 = vpack.c.b16 %v9428, %v9421
    %v10332 = vpack.c.b16 %v9429, %v9422
    %v10333 = vpack.c.b16 %v9430, %v9423
    %v10334 = vpack.c.b16 %v9431, %v9424
    %v10335 = vpack.c.b16 %v9432, %v9425
    %v10336 = vpack.c.b16 %v9433, %v9426
    %v10337 = vpack.c.b16 %v9441, %v9434
    %v10338 = vpack.c.b16 %v9442, %v9435
    %v10339 = vpack.c.b16 %v9443, %v9436
    %v10340 = vpack.c.b16 %v9444, %v9437
    %v10341 = vpack.c.b16 %v9445, %v9438
    %v10342 = vpack.c.b16 %v9446, %v9439
    %v10343 = vpack.c.b16 %v9447, %v9440
    %v10344 = vpack.c.b16 %v9455, %v9448
    %v10345 = vpack.c.b16 %v9456, %v9449
    %v10346 = vpack.c.b16 %v9457, %v9450
    %v10347 = vpack.c.b16 %v9458, %v9451
    %v10348 = vpack.c.b16 %v9459, %v9452
    %v10349 = vpack.c.b16 %v9460, %v9453
    %v10350 = vpack.c.b16 %v9461, %v9454
    %v10351 = vpack.c.b16 %v9469, %v9462
    %v10352 = vpack.c.b16 %v9470, %v9463
    %v10353 = vpack.c.b16 %v9471, %v9464
    %v10354 = vpack.c.b16 %v9472, %v9465
    %v10355 = vpack.c.b16 %v9473, %v9466
    %v10356 = vpack.c.b16 %v9474, %v9467
    %v10357 = vpack.c.b16 %v9475, %v9468
    %v10358 = vpack.c.b16 %v9483, %v9476
    %v10359 = vpack.c.b16 %v9484, %v9477
    %v10360 = vpack.c.b16 %v9485, %v9478
    %v10361 = vpack.c.b16 %v9486, %v9479
    %v10362 = vpack.c.b16 %v9487, %v9480
    %v10363 = vpack.c.b16 %v9488, %v9481
    %v10364 = vpack.c.b16 %v9489, %v9482
    %v10365 = vpack.c.b16 %v9497, %v9490
    %v10366 = vpack.c.b16 %v9498, %v9491
    %v10367 = vpack.c.b16 %v9499, %v9492
    %v10368 = vpack.c.b16 %v9500, %v9493
    %v10369 = vpack.c.b16 %v9501, %v9494
    %v10370 = vpack.c.b16 %v9502, %v9495
    %v10371 = vpack.c.b16 %v9503, %v9496
    %v10372 = vpack.c.b16 %v9511, %v9504
    %v10373 = vpack.c.b16 %v9512, %v9505
    %v10374 = vpack.c.b16 %v9513, %v9506
    %v10375 = vpack.c.b16 %v9514, %v9507
    %v10376 = vpack.c.b16 %v9515, %v9508
    %v10377 = vpack.c.b16 %v9516, %v9509
    %v10378 = vpack.c.b16 %v9517, %v9510
    %v10379 = vpack.c.b16 %v9525, %v9518
    %v10380 = vpack.c.b16 %v9526, %v9519
    %v10381 = vpack.c.b16 %v9527, %v9520
    %v10382 = vpack.c.b16 %v9528, %v9521
    %v10383 = vpack.c.b16 %v9529, %v9522
    %v10384 = vpack.c.b16 %v9530, %v9523
    %v10385 = vpack.c.b16 %v9531, %v9524
    %v10386 = vpack.c.b16 %v9539, %v9532
    %v10387 = vpack.c.b16 %v9540, %v9533
    %v10388 = vpack.c.b16 %v9541, %v9534
    %v10389 = vpack.c.b16 %v9542, %v9535
    %v10390 = vpack.c.b16 %v9543, %v9536
    %v10391 = vpack.c.b16 %v9544, %v9537
    %v10392 = vpack.c.b16 %v9545, %v9538
    %v10393 = vpack.c.b16 %v9553, %v9546
    %v10394 = vpack.c.b16 %v9554, %v9547
    %v10395 = vpack.c.b16 %v9555, %v9548
    %v10396 = vpack.c.b16 %v9556, %v9549
    %v10397 = vpack.c.b16 %v9557, %v9550
    %v10398 = vpack.c.b16 %v9558, %v9551
    %v10399 = vpack.c.b16 %v9559, %v9552
    %v10400 = vpack.c.b16 %v9567, %v9560
    %v10401 = vpack.c.b16 %v9568, %v9561
    %v10402 = vpack.c.b16 %v9569, %v9562
    %v10403 = vpack.c.b16 %v9570, %v9563
    %v10404 = vpack.c.b16 %v9571, %v9564
    %v10405 = vpack.c.b16 %v9572, %v9565
    %v10406 = vpack.c.b16 %v9573, %v9566
    %v10407 = vpack.c.b16 %v9581, %v9574
    %v10408 = vpack.c.b16 %v9582, %v9575
    %v10409 = vpack.c.b16 %v9583, %v9576
    %v10410 = vpack.c.b16 %v9584, %v9577
    %v10411 = vpack.c.b16 %v9585, %v9578
    %v10412 = vpack.c.b16 %v9586, %v9579
    %v10413 = vpack.c.b16 %v9587, %v9580
    %v10414 = vpack.c.b16 %v9595, %v9588
    %v10415 = vpack.c.b16 %v9596, %v9589
    %v10416 = vpack.c.b16 %v9597, %v9590
    %v10417 = vpack.c.b16 %v9598, %v9591
    %v10418 = vpack.c.b16 %v9599, %v9592
    %v10419 = vpack.c.b16 %v9600, %v9593
    %v10420 = vpack.c.b16 %v9601, %v9594
    %v10421 = vpack.c.b16 %v9609, %v9602
    %v10422 = vpack.c.b16 %v9610, %v9603
    %v10423 = vpack.c.b16 %v9611, %v9604
    %v10424 = vpack.c.b16 %v9612, %v9605
    %v10425 = vpack.c.b16 %v9613, %v9606
    %v10426 = vpack.c.b16 %v9614, %v9607
    %v10427 = vpack.c.b16 %v9615, %v9608
    %v10428 = vpack.c.b16 %v9623, %v9616
    %v10429 = vpack.c.b16 %v9624, %v9617
    %v10430 = vpack.c.b16 %v9625, %v9618
    %v10431 = vpack.c.b16 %v9626, %v9619
    %v10432 = vpack.c.b16 %v9627, %v9620
    %v10433 = vpack.c.b16 %v9628, %v9621
    %v10434 = vpack.c.b16 %v9629, %v9622
    %v10435 = vpack.c.b16 %v9637, %v9630
    %v10436 = vpack.c.b16 %v9638, %v9631
    %v10437 = vpack.c.b16 %v9639, %v9632
    %v10438 = vpack.c.b16 %v9640, %v9633
    %v10439 = vpack.c.b16 %v9641, %v9634
    %v10440 = vpack.c.b16 %v9642, %v9635
    %v10441 = vpack.c.b16 %v9643, %v9636
    %v10442 = vpack.c.b16 %v9651, %v9644
    %v10443 = vpack.c.b16 %v9652, %v9645
    %v10444 = vpack.c.b16 %v9653, %v9646
    %v10445 = vpack.c.b16 %v9654, %v9647
    %v10446 = vpack.c.b16 %v9655, %v9648
    %v10447 = vpack.c.b16 %v9656, %v9649
    %v10448 = vpack.c.b16 %v9657, %v9650
    %v10449 = vpack.c.b16 %v9665, %v9658
    %v10450 = vpack.c.b16 %v9666, %v9659
    %v10451 = vpack.c.b16 %v9667, %v9660
    %v10452 = vpack.c.b16 %v9668, %v9661
    %v10453 = vpack.c.b16 %v9669, %v9662
    %v10454 = vpack.c.b16 %v9670, %v9663
    %v10455 = vpack.c.b16 %v9671, %v9664
    %v10456 = vpack.c.b16 %v9679, %v9672
    %v10457 = vpack.c.b16 %v9680, %v9673
    %v10458 = vpack.c.b16 %v9681, %v9674
    %v10459 = vpack.c.b16 %v9682, %v9675
    %v10460 = vpack.c.b16 %v9683, %v9676
    %v10461 = vpack.c.b16 %v9684, %v9677
    %v10462 = vpack.c.b16 %v9685, %v9678
    %v10463 = vpack.c.b16 %v9693, %v9686
    %v10464 = vpack.c.b16 %v9694, %v9687
    %v10465 = vpack.c.b16 %v9695, %v9688
    %v10466 = vpack.c.b16 %v9696, %v9689
    %v10467 = vpack.c.b16 %v9697, %v9690
    %v10468 = vpack.c.b16 %v9698, %v9691
    %v10469 = vpack.c.b16 %v9699, %v9692
    %v10470 = vpack.c.b16 %v9707, %v9700
    %v10471 = vpack.c.b16 %v9708, %v9701
    %v10472 = vpack.c.b16 %v9709, %v9702
    %v10473 = vpack.c.b16 %v9710, %v9703
    %v10474 = vpack.c.b16 %v9711, %v9704
    %v10475 = vpack.c.b16 %v9712, %v9705
    %v10476 = vpack.c.b16 %v9713, %v9706
    %v10477 = vpack.c.b16 %v9721, %v9714
    %v10478 = vpack.c.b16 %v9722, %v9715
    %v10479 = vpack.c.b16 %v9723, %v9716
    %v10480 = vpack.c.b16 %v9724, %v9717
    %v10481 = vpack.c.b16 %v9725, %v9718
    %v10482 = vpack.c.b16 %v9726, %v9719
    %v10483 = vpack.c.b16 %v9727, %v9720
    %v10484 = vpack.c.b16 %v9735, %v9728
    %v10485 = vpack.c.b16 %v9736, %v9729
    %v10486 = vpack.c.b16 %v9737, %v9730
    %v10487 = vpack.c.b16 %v9738, %v9731
    %v10488 = vpack.c.b16 %v9739, %v9732
    %v10489 = vpack.c.b16 %v9740, %v9733
    %v10490 = vpack.c.b16 %v9741, %v9734
    %v10491 = vpack.c.b16 %v9749, %v9742
    %v10492 = vpack.c.b16 %v9750, %v9743
    %v10493 = vpack.c.b16 %v9751, %v9744
    %v10494 = vpack.c.b16 %v9752, %v9745
    %v10495 = vpack.c.b16 %v9753, %v9746
    %v10496 = vpack.c.b16 %v9754, %v9747
    %v10497 = vpack.c.b16 %v9755, %v9748
    %v10498 = vpack.c.b16 %v9763, %v9756
    %v10499 = vpack.c.b16 %v9764, %v9757
    %v10500 = vpack.c.b16 %v9765, %v9758
    %v10501 = vpack.c.b16 %v9766, %v9759
    %v10502 = vpack.c.b16 %v9767, %v9760
    %v10503 = vpack.c.b16 %v9768, %v9761
    %v10504 = vpack.c.b16 %v9769, %v9762
    %v10505 = vpack.c.b16 %v9777, %v9770
    %v10506 = vpack.c.b16 %v9778, %v9771
    %v10507 = vpack.c.b16 %v9779, %v9772
    %v10508 = vpack.c.b16 %v9780, %v9773
    %v10509 = vpack.c.b16 %v9781, %v9774
    %v10510 = vpack.c.b16 %v9782, %v9775
    %v10511 = vpack.c.b16 %v9783, %v9776
    %v10512 = vpack.c.b16 %v9791, %v9784
    %v10513 = vpack.c.b16 %v9792, %v9785
    %v10514 = vpack.c.b16 %v9793, %v9786
    %v10515 = vpack.c.b16 %v9794, %v9787
    %v10516 = vpack.c.b16 %v9795, %v9788
    %v10517 = vpack.c.b16 %v9796, %v9789
    %v10518 = vpack.c.b16 %v9797, %v9790
    %v10519 = vpack.c.b16 %v9805, %v9798
    %v10520 = vpack.c.b16 %v9806, %v9799
    %v10521 = vpack.c.b16 %v9807, %v9800
    %v10522 = vpack.c.b16 %v9808, %v9801
    %v10523 = vpack.c.b16 %v9809, %v9802
    %v10524 = vpack.c.b16 %v9810, %v9803
    %v10525 = vpack.c.b16 %v9811, %v9804
    %v10526 = vpack.c.b16 %v9819, %v9812
    %v10527 = vpack.c.b16 %v9820, %v9813
    %v10528 = vpack.c.b16 %v9821, %v9814
    %v10529 = vpack.c.b16 %v9822, %v9815
    %v10530 = vpack.c.b16 %v9823, %v9816
    %v10531 = vpack.c.b16 %v9824, %v9817
    %v10532 = vpack.c.b16 %v9825, %v9818
    %v10533 = vpack.c.b16 %v9833, %v9826
    %v10534 = vpack.c.b16 %v9834, %v9827
    %v10535 = vpack.c.b16 %v9835, %v9828
    %v10536 = vpack.c.b16 %v9836, %v9829
    %v10537 = vpack.c.b16 %v9837, %v9830
    %v10538 = vpack.c.b16 %v9838, %v9831
    %v10539 = vpack.c.b16 %v9839, %v9832
    %v10540 = vpack.c.b16 %v9847, %v9840
    %v10541 = vpack.c.b16 %v9848, %v9841
    %v10542 = vpack.c.b16 %v9849, %v9842
    %v10543 = vpack.c.b16 %v9850, %v9843
    %v10544 = vpack.c.b16 %v9851, %v9844
    %v10545 = vpack.c.b16 %v9852, %v9845
    %v10546 = vpack.c.b16 %v9853, %v9846
    %v10547 = vpack.c.b16 %v9861, %v9854
    %v10548 = vpack.c.b16 %v9862, %v9855
    %v10549 = vpack.c.b16 %v9863, %v9856
    %v10550 = vpack.c.b16 %v9864, %v9857
    %v10551 = vpack.c.b16 %v9865, %v9858
    %v10552 = vpack.c.b16 %v9866, %v9859
    %v10553 = vpack.c.b16 %v9867, %v9860
    %v10554 = vpack.c.b16 %v9875, %v9868
    %v10555 = vpack.c.b16 %v9876, %v9869
    %v10556 = vpack.c.b16 %v9877, %v9870
    %v10557 = vpack.c.b16 %v9878, %v9871
    %v10558 = vpack.c.b16 %v9879, %v9872
    %v10559 = vpack.c.b16 %v9880, %v9873
    %v10560 = vpack.c.b16 %v9881, %v9874
    %v10561 = vpack.c.b16 %v9889, %v9882
    %v10562 = vpack.c.b16 %v9890, %v9883
    %v10563 = vpack.c.b16 %v9891, %v9884
    %v10564 = vpack.c.b16 %v9892, %v9885
    %v10565 = vpack.c.b16 %v9893, %v9886
    %v10566 = vpack.c.b16 %v9894, %v9887
    %v10567 = vpack.c.b16 %v9895, %v9888
    %v10568 = vpack.c.b16 %v9903, %v9896
    %v10569 = vpack.c.b16 %v9904, %v9897
    %v10570 = vpack.c.b16 %v9905, %v9898
    %v10571 = vpack.c.b16 %v9906, %v9899
    %v10572 = vpack.c.b16 %v9907, %v9900
    %v10573 = vpack.c.b16 %v9908, %v9901
    %v10574 = vpack.c.b16 %v9909, %v9902
    %v10575 = vpack.c.b16 %v9917, %v9910
    %v10576 = vpack.c.b16 %v9918, %v9911
    %v10577 = vpack.c.b16 %v9919, %v9912
    %v10578 = vpack.c.b16 %v9920, %v9913
    %v10579 = vpack.c.b16 %v9921, %v9914
    %v10580 = vpack.c.b16 %v9922, %v9915
    %v10581 = vpack.c.b16 %v9923, %v9916
    %v10582 = vpack.c.b16 %v9931, %v9924
    %v10583 = vpack.c.b16 %v9932, %v9925
    %v10584 = vpack.c.b16 %v9933, %v9926
    %v10585 = vpack.c.b16 %v9934, %v9927
    %v10586 = vpack.c.b16 %v9935, %v9928
    %v10587 = vpack.c.b16 %v9936, %v9929
    %v10588 = vpack.c.b16 %v9937, %v9930
    %v10589 = vpack.c.b16 %v9945, %v9938
    %v10590 = vpack.c.b16 %v9946, %v9939
    %v10591 = vpack.c.b16 %v9947, %v9940
    %v10592 = vpack.c.b16 %v9948, %v9941
    %v10593 = vpack.c.b16 %v9949, %v9942
    %v10594 = vpack.c.b16 %v9950, %v9943
    %v10595 = vpack.c.b16 %v9951, %v9944
    %v10596 = vpack.c.b16 %v9959, %v9952
    %v10597 = vpack.c.b16 %v9960, %v9953
    %v10598 = vpack.c.b16 %v9961, %v9954
    %v10599 = vpack.c.b16 %v9962, %v9955
    %v10600 = vpack.c.b16 %v9963, %v9956
    %v10601 = vpack.c.b16 %v9964, %v9957
    %v10602 = vpack.c.b16 %v9965, %v9958
    %v10603 = vpack.c.b16 %v9973, %v9966
    %v10604 = vpack.c.b16 %v9974, %v9967
    %v10605 = vpack.c.b16 %v9975, %v9968
    %v10606 = vpack.c.b16 %v9976, %v9969
    %v10607 = vpack.c.b16 %v9977, %v9970
    %v10608 = vpack.c.b16 %v9978, %v9971
    %v10609 = vpack.c.b16 %v9979, %v9972
    %v10610 = vpack.c.b16 %v9987, %v9980
    %v10611 = vpack.c.b16 %v9988, %v9981
    %v10612 = vpack.c.b16 %v9989, %v9982
    %v10613 = vpack.c.b16 %v9990, %v9983
    %v10614 = vpack.c.b16 %v9991, %v9984
    %v10615 = vpack.c.b16 %v9992, %v9985
    %v10616 = vpack.c.b16 %v9993, %v9986
    %v10617 = vpack.c.b16 %v10001, %v9994
    %v10618 = vpack.c.b16 %v10002, %v9995
    %v10619 = vpack.c.b16 %v10003, %v9996
    %v10620 = vpack.c.b16 %v10004, %v9997
    %v10621 = vpack.c.b16 %v10005, %v9998
    %v10622 = vpack.c.b16 %v10006, %v9999
    %v10623 = vpack.c.b16 %v10007, %v10000
    %v10624 = vpack.c.b16 %v10015, %v10008
    %v10625 = vpack.c.b16 %v10016, %v10009
    %v10626 = vpack.c.b16 %v10017, %v10010
    %v10627 = vpack.c.b16 %v10018, %v10011
    %v10628 = vpack.c.b16 %v10019, %v10012
    %v10629 = vpack.c.b16 %v10020, %v10013
    %v10630 = vpack.c.b16 %v10021, %v10014
    %v10631 = vpack.c.b16 %v10029, %v10022
    %v10632 = vpack.c.b16 %v10030, %v10023
    %v10633 = vpack.c.b16 %v10031, %v10024
    %v10634 = vpack.c.b16 %v10032, %v10025
    %v10635 = vpack.c.b16 %v10033, %v10026
    %v10636 = vpack.c.b16 %v10034, %v10027
    %v10637 = vpack.c.b16 %v10035, %v10028
    %v10638 = vpack.c.b16 %v10043, %v10036
    %v10639 = vpack.c.b16 %v10044, %v10037
    %v10640 = vpack.c.b16 %v10045, %v10038
    %v10641 = vpack.c.b16 %v10046, %v10039
    %v10642 = vpack.c.b16 %v10047, %v10040
    %v10643 = vpack.c.b16 %v10048, %v10041
    %v10644 = vpack.c.b16 %v10049, %v10042
    %v10645 = vpack.c.b16 %v10057, %v10050
    %v10646 = vpack.c.b16 %v10058, %v10051
    %v10647 = vpack.c.b16 %v10059, %v10052
    %v10648 = vpack.c.b16 %v10060, %v10053
    %v10649 = vpack.c.b16 %v10061, %v10054
    %v10650 = vpack.c.b16 %v10062, %v10055
    %v10651 = vpack.c.b16 %v10063, %v10056
    %v10652 = vpack.c.b16 %v10071, %v10064
    %v10653 = vpack.c.b16 %v10072, %v10065
    %v10654 = vpack.c.b16 %v10073, %v10066
    %v10655 = vpack.c.b16 %v10074, %v10067
    %v10656 = vpack.c.b16 %v10075, %v10068
    %v10657 = vpack.c.b16 %v10076, %v10069
    %v10658 = vpack.c.b16 %v10077, %v10070
    %v10659 = vpack.c.b16 %v10085, %v10078
    %v10660 = vpack.c.b16 %v10086, %v10079
    %v10661 = vpack.c.b16 %v10087, %v10080
    %v10662 = vpack.c.b16 %v10088, %v10081
    %v10663 = vpack.c.b16 %v10089, %v10082
    %v10664 = vpack.c.b16 %v10090, %v10083
    %v10665 = vpack.c.b16 %v10091, %v10084
    %v10666 = vpack.c.b16 %v10099, %v10092
    %v10667 = vpack.c.b16 %v10100, %v10093
    %v10668 = vpack.c.b16 %v10101, %v10094
    %v10669 = vpack.c.b16 %v10102, %v10095
    %v10670 = vpack.c.b16 %v10103, %v10096
    %v10671 = vpack.c.b16 %v10104, %v10097
    %v10672 = vpack.c.b16 %v10105, %v10098
    %v10673 = vpack.c.b16 %v10113, %v10106
    %v10674 = vpack.c.b16 %v10114, %v10107
    %v10675 = vpack.c.b16 %v10115, %v10108
    %v10676 = vpack.c.b16 %v10116, %v10109
    %v10677 = vpack.c.b16 %v10117, %v10110
    %v10678 = vpack.c.b16 %v10118, %v10111
    %v10679 = vpack.c.b16 %v10119, %v10112
    %11240 = vmatprep.subr.bf16.mxu0 %v10170
    %11241 = vmatpush1.bf16.msra.mxu0 %v10169
    %11242 = vmatprep.subr.bf16.mxu0 %v10163
    %11243 = vmatpush1.bf16.msra.mxu0 %v10162
    %11244 = vmatprep.subr.bf16.mxu0 %v10156
    %11245 = vmatpush1.bf16.msra.mxu0 %v10155
    %11246 = vmatprep.subr.bf16.mxu0 %v10149
    %11247 = vmatpush1.bf16.msra.mxu0 %v10148
    %11248 = vmatprep.subr.bf16.mxu0 %v10142
    %11249 = vmatpush1.bf16.msra.mxu0 %v10141
    %11250 = vmatprep.subr.bf16.mxu0 %v10135
    %11251 = vmatpush1.bf16.msra.mxu0 %v10134
    %11252 = vmatprep.subr.bf16.mxu0 %v10128
    %11253 = vmatpush1.bf16.msra.mxu0 %v10127
    %11254 = vmatprep.subr.bf16.mxu0 %v10121
    %11255 = vmatpush1.bf16.msra.mxu0 %v10120
    %11256 = vmatprep.subr.bf16.mxu0 %v10226
    %11257 = vmatpush2.bf16.msra.mxu0 %v10225
    %11258 = vmatprep.subr.bf16.mxu0 %v10219
    %11259 = vmatpush2.bf16.msra.mxu0 %v10218
    %11260 = vmatprep.subr.bf16.mxu0 %v10212
    %11261 = vmatpush2.bf16.msra.mxu0 %v10211
    %11262 = vmatprep.subr.bf16.mxu0 %v10205
    %11263 = vmatpush2.bf16.msra.mxu0 %v10204
    %11264 = vmatprep.subr.bf16.mxu0 %v10198
    %11265 = vmatpush2.bf16.msra.mxu0 %v10197
    %11266 = vmatprep.subr.bf16.mxu0 %v10191
    %11267 = vmatpush2.bf16.msra.mxu0 %v10190
    %11268 = vmatprep.subr.bf16.mxu0 %v10184
    %11269 = vmatpush2.bf16.msra.mxu0 %v10183
    %11270 = vmatprep.subr.bf16.mxu0 %v10177
    %11271 = vmatpush2.bf16.msra.mxu0 %v10176
    %11272 = vmatprep.mubr.bf16.mxu0 %v7674
    %11273 = vmatmul.mubr.bf16.gmra.mxu0 %v7673
    %v11274 = vpop.f32.mrf.mxu0
    %v11275 = vadd.f32 %v8328, %v11274
    %v11276 = vpop.f32.mrf.mxu0
    %v11277 = vadd.f32 %v8332, %v11276
    %v11278 = vpop.f32.mrf.mxu0
    %v11279 = vpop.f32.mrf.mxu0
    %11280 = vdwg.mxu0
    %11281 = vmatprep.subr.bf16.mxu0 %v10282
    %11282 = vmatpush1.bf16.msra.mxu0 %v10281
    %11283 = vmatprep.subr.bf16.mxu0 %v10275
    %11284 = vmatpush1.bf16.msra.mxu0 %v10274
    %11285 = vmatprep.subr.bf16.mxu0 %v10268
    %11286 = vmatpush1.bf16.msra.mxu0 %v10267
    %11287 = vmatprep.subr.bf16.mxu0 %v10261
    %11288 = vmatpush1.bf16.msra.mxu0 %v10260
    %11289 = vmatprep.subr.bf16.mxu0 %v10254
    %11290 = vmatpush1.bf16.msra.mxu0 %v10253
    %11291 = vmatprep.subr.bf16.mxu0 %v10247
    %11292 = vmatpush1.bf16.msra.mxu0 %v10246
    %11293 = vmatprep.subr.bf16.mxu0 %v10240
    %11294 = vmatpush1.bf16.msra.mxu0 %v10239
    %11295 = vmatprep.subr.bf16.mxu0 %v10233
    %11296 = vmatpush1.bf16.msra.mxu0 %v10232
    %11297 = vmatprep.subr.bf16.mxu0 %v10338
    %11298 = vmatpush2.bf16.msra.mxu0 %v10337
    %11299 = vmatprep.subr.bf16.mxu0 %v10331
    %11300 = vmatpush2.bf16.msra.mxu0 %v10330
    %11301 = vmatprep.subr.bf16.mxu0 %v10324
    %11302 = vmatpush2.bf16.msra.mxu0 %v10323
    %11303 = vmatprep.subr.bf16.mxu0 %v10317
    %11304 = vmatpush2.bf16.msra.mxu0 %v10316
    %11305 = vmatprep.subr.bf16.mxu0 %v10310
    %11306 = vmatpush2.bf16.msra.mxu0 %v10309
    %11307 = vmatprep.subr.bf16.mxu0 %v10303
    %11308 = vmatpush2.bf16.msra.mxu0 %v10302
    %11309 = vmatprep.subr.bf16.mxu0 %v10296
    %11310 = vmatpush2.bf16.msra.mxu0 %v10295
    %11311 = vmatprep.subr.bf16.mxu0 %v10289
    %11312 = vmatpush2.bf16.msra.mxu0 %v10288
    %11313 = vmatprep.mubr.bf16.mxu0 %v7676
    %11314 = vmatmul.mubr.bf16.gmra.mxu0 %v7675
    %v11315 = vpop.f32.mrf.mxu0
    %v11316 = vadd.f32 %v11275, %v11315
    %v11317 = vpop.f32.mrf.mxu0
    %v11318 = vadd.f32 %v11277, %v11317
    %v11319 = vpop.f32.mrf.mxu0
    %v11320 = vpop.f32.mrf.mxu0
    %11321 = vdwg.mxu0
    %11322 = vmatprep.subr.bf16.mxu0 %v10394
    %11323 = vmatpush1.bf16.msra.mxu0 %v10393
    %11324 = vmatprep.subr.bf16.mxu0 %v10387
    %11325 = vmatpush1.bf16.msra.mxu0 %v10386
    %11326 = vmatprep.subr.bf16.mxu0 %v10380
    %11327 = vmatpush1.bf16.msra.mxu0 %v10379
    %11328 = vmatprep.subr.bf16.mxu0 %v10373
    %11329 = vmatpush1.bf16.msra.mxu0 %v10372
    %11330 = vmatprep.subr.bf16.mxu0 %v10366
    %11331 = vmatpush1.bf16.msra.mxu0 %v10365
    %11332 = vmatprep.subr.bf16.mxu0 %v10359
    %11333 = vmatpush1.bf16.msra.mxu0 %v10358
    %11334 = vmatprep.subr.bf16.mxu0 %v10352
    %11335 = vmatpush1.bf16.msra.mxu0 %v10351
    %11336 = vmatprep.subr.bf16.mxu0 %v10345
    %11337 = vmatpush1.bf16.msra.mxu0 %v10344
    %11338 = vmatprep.subr.bf16.mxu0 %v10450
    %11339 = vmatpush2.bf16.msra.mxu0 %v10449
    %11340 = vmatprep.subr.bf16.mxu0 %v10443
    %11341 = vmatpush2.bf16.msra.mxu0 %v10442
    %11342 = vmatprep.subr.bf16.mxu0 %v10436
    %11343 = vmatpush2.bf16.msra.mxu0 %v10435
    %11344 = vmatprep.subr.bf16.mxu0 %v10429
    %11345 = vmatpush2.bf16.msra.mxu0 %v10428
    %11346 = vmatprep.subr.bf16.mxu0 %v10422
    %11347 = vmatpush2.bf16.msra.mxu0 %v10421
    %11348 = vmatprep.subr.bf16.mxu0 %v10415
    %11349 = vmatpush2.bf16.msra.mxu0 %v10414
    %11350 = vmatprep.subr.bf16.mxu0 %v10408
    %11351 = vmatpush2.bf16.msra.mxu0 %v10407
    %11352 = vmatprep.subr.bf16.mxu0 %v10401
    %11353 = vmatpush2.bf16.msra.mxu0 %v10400
    %11354 = vmatprep.mubr.bf16.mxu0 %v7678
    %11355 = vmatmul.mubr.bf16.gmra.mxu0 %v7677
    %v11356 = vpop.f32.mrf.mxu0
    %v11357 = vadd.f32 %v11316, %v11356
    %v11358 = vpop.f32.mrf.mxu0
    %v11359 = vadd.f32 %v11318, %v11358
    %v11360 = vpop.f32.mrf.mxu0
    %v11361 = vpop.f32.mrf.mxu0
    %11362 = vdwg.mxu0
    %11363 = vmatprep.subr.bf16.mxu0 %v10506
    %11364 = vmatpush1.bf16.msra.mxu0 %v10505
    %11365 = vmatprep.subr.bf16.mxu0 %v10499
    %11366 = vmatpush1.bf16.msra.mxu0 %v10498
    %11367 = vmatprep.subr.bf16.mxu0 %v10492
    %11368 = vmatpush1.bf16.msra.mxu0 %v10491
    %11369 = vmatprep.subr.bf16.mxu0 %v10485
    %11370 = vmatpush1.bf16.msra.mxu0 %v10484
    %11371 = vmatprep.subr.bf16.mxu0 %v10478
    %11372 = vmatpush1.bf16.msra.mxu0 %v10477
    %11373 = vmatprep.subr.bf16.mxu0 %v10471
    %11374 = vmatpush1.bf16.msra.mxu0 %v10470
    %11375 = vmatprep.subr.bf16.mxu0 %v10464
    %11376 = vmatpush1.bf16.msra.mxu0 %v10463
    %11377 = vmatprep.subr.bf16.mxu0 %v10457
    %11378 = vmatpush1.bf16.msra.mxu0 %v10456
    %11379 = vmatprep.subr.bf16.mxu0 %v10562
    %11380 = vmatpush2.bf16.msra.mxu0 %v10561
    %11381 = vmatprep.subr.bf16.mxu0 %v10555
    %11382 = vmatpush2.bf16.msra.mxu0 %v10554
    %11383 = vmatprep.subr.bf16.mxu0 %v10548
    %11384 = vmatpush2.bf16.msra.mxu0 %v10547
    %11385 = vmatprep.subr.bf16.mxu0 %v10541
    %11386 = vmatpush2.bf16.msra.mxu0 %v10540
    %11387 = vmatprep.subr.bf16.mxu0 %v10534
    %11388 = vmatpush2.bf16.msra.mxu0 %v10533
    %11389 = vmatprep.subr.bf16.mxu0 %v10527
    %11390 = vmatpush2.bf16.msra.mxu0 %v10526
    %11391 = vmatprep.subr.bf16.mxu0 %v10520
    %11392 = vmatpush2.bf16.msra.mxu0 %v10519
    %11393 = vmatprep.subr.bf16.mxu0 %v10513
    %11394 = vmatpush2.bf16.msra.mxu0 %v10512
    %11395 = vmatprep.mubr.bf16.mxu0 %v7680
    %11396 = vmatmul.mubr.bf16.gmra.mxu0 %v7679
    %v11397 = vpop.f32.mrf.mxu0
    %v11398 = vadd.f32 %v11357, %v11397
    %v11399 = vpop.f32.mrf.mxu0
    %v11400 = vadd.f32 %v11359, %v11399
    %v11401 = vpop.f32.mrf.mxu0
    %v11402 = vpop.f32.mrf.mxu0
    %11403 = vdwg.mxu0
    %11404 = vmatprep.subr.bf16.mxu0 %v10618
    %11405 = vmatpush1.bf16.msra.mxu0 %v10617
    %11406 = vmatprep.subr.bf16.mxu0 %v10611
    %11407 = vmatpush1.bf16.msra.mxu0 %v10610
    %11408 = vmatprep.subr.bf16.mxu0 %v10604
    %11409 = vmatpush1.bf16.msra.mxu0 %v10603
    %11410 = vmatprep.subr.bf16.mxu0 %v10597
    %11411 = vmatpush1.bf16.msra.mxu0 %v10596
    %11412 = vmatprep.subr.bf16.mxu0 %v10590
    %11413 = vmatpush1.bf16.msra.mxu0 %v10589
    %11414 = vmatprep.subr.bf16.mxu0 %v10583
    %11415 = vmatpush1.bf16.msra.mxu0 %v10582
    %11416 = vmatprep.subr.bf16.mxu0 %v10576
    %11417 = vmatpush1.bf16.msra.mxu0 %v10575
    %11418 = vmatprep.subr.bf16.mxu0 %v10569
    %11419 = vmatpush1.bf16.msra.mxu0 %v10568
    %11420 = vmatprep.subr.bf16.mxu0 %v10674
    %11421 = vmatpush2.bf16.msra.mxu0 %v10673
    %11422 = vmatprep.subr.bf16.mxu0 %v10667
    %11423 = vmatpush2.bf16.msra.mxu0 %v10666
    %11424 = vmatprep.subr.bf16.mxu0 %v10660
    %11425 = vmatpush2.bf16.msra.mxu0 %v10659
    %11426 = vmatprep.subr.bf16.mxu0 %v10653
    %11427 = vmatpush2.bf16.msra.mxu0 %v10652
    %11428 = vmatprep.subr.bf16.mxu0 %v10646
    %11429 = vmatpush2.bf16.msra.mxu0 %v10645
    %11430 = vmatprep.subr.bf16.mxu0 %v10639
    %11431 = vmatpush2.bf16.msra.mxu0 %v10638
    %11432 = vmatprep.subr.bf16.mxu0 %v10632
    %11433 = vmatpush2.bf16.msra.mxu0 %v10631
    %11434 = vmatprep.subr.bf16.mxu0 %v10625
    %11435 = vmatpush2.bf16.msra.mxu0 %v10624
    %11436 = vmatprep.mubr.bf16.mxu0 %v7682
    %11437 = vmatmul.mubr.bf16.gmra.mxu0 %v7681
    %v11438 = vpop.f32.mrf.mxu0
    %v11439 = vadd.f32 %v11398, %v11438
    %v11440 = vpop.f32.mrf.mxu0
    %v11441 = vadd.f32 %v11400, %v11440
    %v11442 = vpop.f32.mrf.mxu0
    %v11443 = vpop.f32.mrf.mxu0
    %11444 = vdwg.mxu0
    %11445 = vmatprep.subr.bf16.mxu0 %v10172
    %11446 = vmatpush1.bf16.msra.mxu0 %v10171
    %11447 = vmatprep.subr.bf16.mxu0 %v10165
    %11448 = vmatpush1.bf16.msra.mxu0 %v10164
    %11449 = vmatprep.subr.bf16.mxu0 %v10158
    %11450 = vmatpush1.bf16.msra.mxu0 %v10157
    %11451 = vmatprep.subr.bf16.mxu0 %v10151
    %11452 = vmatpush1.bf16.msra.mxu0 %v10150
    %11453 = vmatprep.subr.bf16.mxu0 %v10144
    %11454 = vmatpush1.bf16.msra.mxu0 %v10143
    %11455 = vmatprep.subr.bf16.mxu0 %v10137
    %11456 = vmatpush1.bf16.msra.mxu0 %v10136
    %11457 = vmatprep.subr.bf16.mxu0 %v10130
    %11458 = vmatpush1.bf16.msra.mxu0 %v10129
    %11459 = vmatprep.subr.bf16.mxu0 %v10123
    %11460 = vmatpush1.bf16.msra.mxu0 %v10122
    %11461 = vmatprep.subr.bf16.mxu0 %v10228
    %11462 = vmatpush2.bf16.msra.mxu0 %v10227
    %11463 = vmatprep.subr.bf16.mxu0 %v10221
    %11464 = vmatpush2.bf16.msra.mxu0 %v10220
    %11465 = vmatprep.subr.bf16.mxu0 %v10214
    %11466 = vmatpush2.bf16.msra.mxu0 %v10213
    %11467 = vmatprep.subr.bf16.mxu0 %v10207
    %11468 = vmatpush2.bf16.msra.mxu0 %v10206
    %11469 = vmatprep.subr.bf16.mxu0 %v10200
    %11470 = vmatpush2.bf16.msra.mxu0 %v10199
    %11471 = vmatprep.subr.bf16.mxu0 %v10193
    %11472 = vmatpush2.bf16.msra.mxu0 %v10192
    %11473 = vmatprep.subr.bf16.mxu0 %v10186
    %11474 = vmatpush2.bf16.msra.mxu0 %v10185
    %11475 = vmatprep.subr.bf16.mxu0 %v10179
    %11476 = vmatpush2.bf16.msra.mxu0 %v10178
    %11477 = vmatprep.mubr.bf16.mxu0 %v7674
    %11478 = vmatmul.mubr.bf16.gmra.mxu0 %v7673
    %v11479 = vpop.f32.mrf.mxu0
    %v11480 = vadd.f32 %v8336, %v11479
    %v11481 = vpop.f32.mrf.mxu0
    %v11482 = vadd.f32 %v8340, %v11481
    %v11483 = vpop.f32.mrf.mxu0
    %v11484 = vpop.f32.mrf.mxu0
    %11485 = vdwg.mxu0
    %11486 = vmatprep.subr.bf16.mxu0 %v10284
    %11487 = vmatpush1.bf16.msra.mxu0 %v10283
    %11488 = vmatprep.subr.bf16.mxu0 %v10277
    %11489 = vmatpush1.bf16.msra.mxu0 %v10276
    %11490 = vmatprep.subr.bf16.mxu0 %v10270
    %11491 = vmatpush1.bf16.msra.mxu0 %v10269
    %11492 = vmatprep.subr.bf16.mxu0 %v10263
    %11493 = vmatpush1.bf16.msra.mxu0 %v10262
    %11494 = vmatprep.subr.bf16.mxu0 %v10256
    %11495 = vmatpush1.bf16.msra.mxu0 %v10255
    %11496 = vmatprep.subr.bf16.mxu0 %v10249
    %11497 = vmatpush1.bf16.msra.mxu0 %v10248
    %11498 = vmatprep.subr.bf16.mxu0 %v10242
    %11499 = vmatpush1.bf16.msra.mxu0 %v10241
    %11500 = vmatprep.subr.bf16.mxu0 %v10235
    %11501 = vmatpush1.bf16.msra.mxu0 %v10234
    %11502 = vmatprep.subr.bf16.mxu0 %v10340
    %11503 = vmatpush2.bf16.msra.mxu0 %v10339
    %11504 = vmatprep.subr.bf16.mxu0 %v10333
    %11505 = vmatpush2.bf16.msra.mxu0 %v10332
    %11506 = vmatprep.subr.bf16.mxu0 %v10326
    %11507 = vmatpush2.bf16.msra.mxu0 %v10325
    %11508 = vmatprep.subr.bf16.mxu0 %v10319
    %11509 = vmatpush2.bf16.msra.mxu0 %v10318
    %11510 = vmatprep.subr.bf16.mxu0 %v10312
    %11511 = vmatpush2.bf16.msra.mxu0 %v10311
    %11512 = vmatprep.subr.bf16.mxu0 %v10305
    %11513 = vmatpush2.bf16.msra.mxu0 %v10304
    %11514 = vmatprep.subr.bf16.mxu0 %v10298
    %11515 = vmatpush2.bf16.msra.mxu0 %v10297
    %11516 = vmatprep.subr.bf16.mxu0 %v10291
    %11517 = vmatpush2.bf16.msra.mxu0 %v10290
    %11518 = vmatprep.mubr.bf16.mxu0 %v7676
    %11519 = vmatmul.mubr.bf16.gmra.mxu0 %v7675
    %v11520 = vpop.f32.mrf.mxu0
    %v11521 = vadd.f32 %v11480, %v11520
    %v11522 = vpop.f32.mrf.mxu0
    %v11523 = vadd.f32 %v11482, %v11522
    %v11524 = vpop.f32.mrf.mxu0
    %v11525 = vpop.f32.mrf.mxu0
    %11526 = vdwg.mxu0
    %11527 = vmatprep.subr.bf16.mxu0 %v10396
    %11528 = vmatpush1.bf16.msra.mxu0 %v10395
    %11529 = vmatprep.subr.bf16.mxu0 %v10389
    %11530 = vmatpush1.bf16.msra.mxu0 %v10388
    %11531 = vmatprep.subr.bf16.mxu0 %v10382
    %11532 = vmatpush1.bf16.msra.mxu0 %v10381
    %11533 = vmatprep.subr.bf16.mxu0 %v10375
    %11534 = vmatpush1.bf16.msra.mxu0 %v10374
    %11535 = vmatprep.subr.bf16.mxu0 %v10368
    %11536 = vmatpush1.bf16.msra.mxu0 %v10367
    %11537 = vmatprep.subr.bf16.mxu0 %v10361
    %11538 = vmatpush1.bf16.msra.mxu0 %v10360
    %11539 = vmatprep.subr.bf16.mxu0 %v10354
    %11540 = vmatpush1.bf16.msra.mxu0 %v10353
    %11541 = vmatprep.subr.bf16.mxu0 %v10347
    %11542 = vmatpush1.bf16.msra.mxu0 %v10346
    %11543 = vmatprep.subr.bf16.mxu0 %v10452
    %11544 = vmatpush2.bf16.msra.mxu0 %v10451
    %11545 = vmatprep.subr.bf16.mxu0 %v10445
    %11546 = vmatpush2.bf16.msra.mxu0 %v10444
    %11547 = vmatprep.subr.bf16.mxu0 %v10438
    %11548 = vmatpush2.bf16.msra.mxu0 %v10437
    %11549 = vmatprep.subr.bf16.mxu0 %v10431
    %11550 = vmatpush2.bf16.msra.mxu0 %v10430
    %11551 = vmatprep.subr.bf16.mxu0 %v10424
    %11552 = vmatpush2.bf16.msra.mxu0 %v10423
    %11553 = vmatprep.subr.bf16.mxu0 %v10417
    %11554 = vmatpush2.bf16.msra.mxu0 %v10416
    %11555 = vmatprep.subr.bf16.mxu0 %v10410
    %11556 = vmatpush2.bf16.msra.mxu0 %v10409
    %11557 = vmatprep.subr.bf16.mxu0 %v10403
    %11558 = vmatpush2.bf16.msra.mxu0 %v10402
    %11559 = vmatprep.mubr.bf16.mxu0 %v7678
    %11560 = vmatmul.mubr.bf16.gmra.mxu0 %v7677
    %v11561 = vpop.f32.mrf.mxu0
    %v11562 = vadd.f32 %v11521, %v11561
    %v11563 = vpop.f32.mrf.mxu0
    %v11564 = vadd.f32 %v11523, %v11563
    %v11565 = vpop.f32.mrf.mxu0
    %v11566 = vpop.f32.mrf.mxu0
    %11567 = vdwg.mxu0
    %11568 = vmatprep.subr.bf16.mxu0 %v10508
    %11569 = vmatpush1.bf16.msra.mxu0 %v10507
    %11570 = vmatprep.subr.bf16.mxu0 %v10501
    %11571 = vmatpush1.bf16.msra.mxu0 %v10500
    %11572 = vmatprep.subr.bf16.mxu0 %v10494
    %11573 = vmatpush1.bf16.msra.mxu0 %v10493
    %11574 = vmatprep.subr.bf16.mxu0 %v10487
    %11575 = vmatpush1.bf16.msra.mxu0 %v10486
    %11576 = vmatprep.subr.bf16.mxu0 %v10480
    %11577 = vmatpush1.bf16.msra.mxu0 %v10479
    %11578 = vmatprep.subr.bf16.mxu0 %v10473
    %11579 = vmatpush1.bf16.msra.mxu0 %v10472
    %11580 = vmatprep.subr.bf16.mxu0 %v10466
    %11581 = vmatpush1.bf16.msra.mxu0 %v10465
    %11582 = vmatprep.subr.bf16.mxu0 %v10459
    %11583 = vmatpush1.bf16.msra.mxu0 %v10458
    %11584 = vmatprep.subr.bf16.mxu0 %v10564
    %11585 = vmatpush2.bf16.msra.mxu0 %v10563
    %11586 = vmatprep.subr.bf16.mxu0 %v10557
    %11587 = vmatpush2.bf16.msra.mxu0 %v10556
    %11588 = vmatprep.subr.bf16.mxu0 %v10550
    %11589 = vmatpush2.bf16.msra.mxu0 %v10549
    %11590 = vmatprep.subr.bf16.mxu0 %v10543
    %11591 = vmatpush2.bf16.msra.mxu0 %v10542
    %11592 = vmatprep.subr.bf16.mxu0 %v10536
    %11593 = vmatpush2.bf16.msra.mxu0 %v10535
    %11594 = vmatprep.subr.bf16.mxu0 %v10529
    %11595 = vmatpush2.bf16.msra.mxu0 %v10528
    %11596 = vmatprep.subr.bf16.mxu0 %v10522
    %11597 = vmatpush2.bf16.msra.mxu0 %v10521
    %11598 = vmatprep.subr.bf16.mxu0 %v10515
    %11599 = vmatpush2.bf16.msra.mxu0 %v10514
    %11600 = vmatprep.mubr.bf16.mxu0 %v7680
    %11601 = vmatmul.mubr.bf16.gmra.mxu0 %v7679
    %v11602 = vpop.f32.mrf.mxu0
    %v11603 = vadd.f32 %v11562, %v11602
    %v11604 = vpop.f32.mrf.mxu0
    %v11605 = vadd.f32 %v11564, %v11604
    %v11606 = vpop.f32.mrf.mxu0
    %v11607 = vpop.f32.mrf.mxu0
    %11608 = vdwg.mxu0
    %11609 = vmatprep.subr.bf16.mxu0 %v10620
    %11610 = vmatpush1.bf16.msra.mxu0 %v10619
    %11611 = vmatprep.subr.bf16.mxu0 %v10613
    %11612 = vmatpush1.bf16.msra.mxu0 %v10612
    %11613 = vmatprep.subr.bf16.mxu0 %v10606
    %11614 = vmatpush1.bf16.msra.mxu0 %v10605
    %11615 = vmatprep.subr.bf16.mxu0 %v10599
    %11616 = vmatpush1.bf16.msra.mxu0 %v10598
    %11617 = vmatprep.subr.bf16.mxu0 %v10592
    %11618 = vmatpush1.bf16.msra.mxu0 %v10591
    %11619 = vmatprep.subr.bf16.mxu0 %v10585
    %11620 = vmatpush1.bf16.msra.mxu0 %v10584
    %11621 = vmatprep.subr.bf16.mxu0 %v10578
    %11622 = vmatpush1.bf16.msra.mxu0 %v10577
    %11623 = vmatprep.subr.bf16.mxu0 %v10571
    %11624 = vmatpush1.bf16.msra.mxu0 %v10570
    %11625 = vmatprep.subr.bf16.mxu0 %v10676
    %11626 = vmatpush2.bf16.msra.mxu0 %v10675
    %11627 = vmatprep.subr.bf16.mxu0 %v10669
    %11628 = vmatpush2.bf16.msra.mxu0 %v10668
    %11629 = vmatprep.subr.bf16.mxu0 %v10662
    %11630 = vmatpush2.bf16.msra.mxu0 %v10661
    %11631 = vmatprep.subr.bf16.mxu0 %v10655
    %11632 = vmatpush2.bf16.msra.mxu0 %v10654
    %11633 = vmatprep.subr.bf16.mxu0 %v10648
    %11634 = vmatpush2.bf16.msra.mxu0 %v10647
    %11635 = vmatprep.subr.bf16.mxu0 %v10641
    %11636 = vmatpush2.bf16.msra.mxu0 %v10640
    %11637 = vmatprep.subr.bf16.mxu0 %v10634
    %11638 = vmatpush2.bf16.msra.mxu0 %v10633
    %11639 = vmatprep.subr.bf16.mxu0 %v10627
    %11640 = vmatpush2.bf16.msra.mxu0 %v10626
    %11641 = vmatprep.mubr.bf16.mxu0 %v7682
    %11642 = vmatmul.mubr.bf16.gmra.mxu0 %v7681
    %v11643 = vpop.f32.mrf.mxu0
    %v11644 = vadd.f32 %v11603, %v11643
    %v11645 = vpop.f32.mrf.mxu0
    %v11646 = vadd.f32 %v11605, %v11645
    %v11647 = vpop.f32.mrf.mxu0
    %v11648 = vpop.f32.mrf.mxu0
    %11649 = vdwg.mxu0
    %11650 = vmatprep.subr.bf16.mxu0 %v10174
    %11651 = vmatpush1.bf16.msra.mxu0 %v10173
    %11652 = vmatprep.subr.bf16.mxu0 %v10167
    %11653 = vmatpush1.bf16.msra.mxu0 %v10166
    %11654 = vmatprep.subr.bf16.mxu0 %v10160
    %11655 = vmatpush1.bf16.msra.mxu0 %v10159
    %11656 = vmatprep.subr.bf16.mxu0 %v10153
    %11657 = vmatpush1.bf16.msra.mxu0 %v10152
    %11658 = vmatprep.subr.bf16.mxu0 %v10146
    %11659 = vmatpush1.bf16.msra.mxu0 %v10145
    %11660 = vmatprep.subr.bf16.mxu0 %v10139
    %11661 = vmatpush1.bf16.msra.mxu0 %v10138
    %11662 = vmatprep.subr.bf16.mxu0 %v10132
    %11663 = vmatpush1.bf16.msra.mxu0 %v10131
    %11664 = vmatprep.subr.bf16.mxu0 %v10125
    %11665 = vmatpush1.bf16.msra.mxu0 %v10124
    %11666 = vmatprep.subr.bf16.mxu0 %v10230
    %11667 = vmatpush2.bf16.msra.mxu0 %v10229
    %11668 = vmatprep.subr.bf16.mxu0 %v10223
    %11669 = vmatpush2.bf16.msra.mxu0 %v10222
    %11670 = vmatprep.subr.bf16.mxu0 %v10216
    %11671 = vmatpush2.bf16.msra.mxu0 %v10215
    %11672 = vmatprep.subr.bf16.mxu0 %v10209
    %11673 = vmatpush2.bf16.msra.mxu0 %v10208
    %11674 = vmatprep.subr.bf16.mxu0 %v10202
    %11675 = vmatpush2.bf16.msra.mxu0 %v10201
    %11676 = vmatprep.subr.bf16.mxu0 %v10195
    %11677 = vmatpush2.bf16.msra.mxu0 %v10194
    %11678 = vmatprep.subr.bf16.mxu0 %v10188
    %11679 = vmatpush2.bf16.msra.mxu0 %v10187
    %11680 = vmatprep.subr.bf16.mxu0 %v10181
    %11681 = vmatpush2.bf16.msra.mxu0 %v10180
    %11682 = vmatprep.mubr.bf16.mxu0 %v7674
    %11683 = vmatmul.mubr.bf16.gmra.mxu0 %v7673
    %v11684 = vpop.f32.mrf.mxu0
    %v11685 = vadd.f32 %v8344, %v11684
    %v11686 = vpop.f32.mrf.mxu0
    %v11687 = vadd.f32 %v8348, %v11686
    %v11688 = vpop.f32.mrf.mxu0
    %v11689 = vpop.f32.mrf.mxu0
    %11690 = vdwg.mxu0
    %11691 = vmatprep.subr.bf16.mxu0 %v10286
    %11692 = vmatpush1.bf16.msra.mxu0 %v10285
    %11693 = vmatprep.subr.bf16.mxu0 %v10279
    %11694 = vmatpush1.bf16.msra.mxu0 %v10278
    %11695 = vmatprep.subr.bf16.mxu0 %v10272
    %11696 = vmatpush1.bf16.msra.mxu0 %v10271
    %11697 = vmatprep.subr.bf16.mxu0 %v10265
    %11698 = vmatpush1.bf16.msra.mxu0 %v10264
    %11699 = vmatprep.subr.bf16.mxu0 %v10258
    %11700 = vmatpush1.bf16.msra.mxu0 %v10257
    %11701 = vmatprep.subr.bf16.mxu0 %v10251
    %11702 = vmatpush1.bf16.msra.mxu0 %v10250
    %11703 = vmatprep.subr.bf16.mxu0 %v10244
    %11704 = vmatpush1.bf16.msra.mxu0 %v10243
    %11705 = vmatprep.subr.bf16.mxu0 %v10237
    %11706 = vmatpush1.bf16.msra.mxu0 %v10236
    %11707 = vmatprep.subr.bf16.mxu0 %v10342
    %11708 = vmatpush2.bf16.msra.mxu0 %v10341
    %11709 = vmatprep.subr.bf16.mxu0 %v10335
    %11710 = vmatpush2.bf16.msra.mxu0 %v10334
    %11711 = vmatprep.subr.bf16.mxu0 %v10328
    %11712 = vmatpush2.bf16.msra.mxu0 %v10327
    %11713 = vmatprep.subr.bf16.mxu0 %v10321
    %11714 = vmatpush2.bf16.msra.mxu0 %v10320
    %11715 = vmatprep.subr.bf16.mxu0 %v10314
    %11716 = vmatpush2.bf16.msra.mxu0 %v10313
    %11717 = vmatprep.subr.bf16.mxu0 %v10307
    %11718 = vmatpush2.bf16.msra.mxu0 %v10306
    %11719 = vmatprep.subr.bf16.mxu0 %v10300
    %11720 = vmatpush2.bf16.msra.mxu0 %v10299
    %11721 = vmatprep.subr.bf16.mxu0 %v10293
    %11722 = vmatpush2.bf16.msra.mxu0 %v10292
    %11723 = vmatprep.mubr.bf16.mxu0 %v7676
    %11724 = vmatmul.mubr.bf16.gmra.mxu0 %v7675
    %v11725 = vpop.f32.mrf.mxu0
    %v11726 = vadd.f32 %v11685, %v11725
    %v11727 = vpop.f32.mrf.mxu0
    %v11728 = vadd.f32 %v11687, %v11727
    %v11729 = vpop.f32.mrf.mxu0
    %v11730 = vpop.f32.mrf.mxu0
    %11731 = vdwg.mxu0
    %11732 = vmatprep.subr.bf16.mxu0 %v10398
    %11733 = vmatpush1.bf16.msra.mxu0 %v10397
    %11734 = vmatprep.subr.bf16.mxu0 %v10391
    %11735 = vmatpush1.bf16.msra.mxu0 %v10390
    %11736 = vmatprep.subr.bf16.mxu0 %v10384
    %11737 = vmatpush1.bf16.msra.mxu0 %v10383
    %11738 = vmatprep.subr.bf16.mxu0 %v10377
    %11739 = vmatpush1.bf16.msra.mxu0 %v10376
    %11740 = vmatprep.subr.bf16.mxu0 %v10370
    %11741 = vmatpush1.bf16.msra.mxu0 %v10369
    %11742 = vmatprep.subr.bf16.mxu0 %v10363
    %11743 = vmatpush1.bf16.msra.mxu0 %v10362
    %11744 = vmatprep.subr.bf16.mxu0 %v10356
    %11745 = vmatpush1.bf16.msra.mxu0 %v10355
    %11746 = vmatprep.subr.bf16.mxu0 %v10349
    %11747 = vmatpush1.bf16.msra.mxu0 %v10348
    %11748 = vmatprep.subr.bf16.mxu0 %v10454
    %11749 = vmatpush2.bf16.msra.mxu0 %v10453
    %11750 = vmatprep.subr.bf16.mxu0 %v10447
    %11751 = vmatpush2.bf16.msra.mxu0 %v10446
    %11752 = vmatprep.subr.bf16.mxu0 %v10440
    %11753 = vmatpush2.bf16.msra.mxu0 %v10439
    %11754 = vmatprep.subr.bf16.mxu0 %v10433
    %11755 = vmatpush2.bf16.msra.mxu0 %v10432
    %11756 = vmatprep.subr.bf16.mxu0 %v10426
    %11757 = vmatpush2.bf16.msra.mxu0 %v10425
    %11758 = vmatprep.subr.bf16.mxu0 %v10419
    %11759 = vmatpush2.bf16.msra.mxu0 %v10418
    %11760 = vmatprep.subr.bf16.mxu0 %v10412
    %11761 = vmatpush2.bf16.msra.mxu0 %v10411
    %11762 = vmatprep.subr.bf16.mxu0 %v10405
    %11763 = vmatpush2.bf16.msra.mxu0 %v10404
    %11764 = vmatprep.mubr.bf16.mxu0 %v7678
    %11765 = vmatmul.mubr.bf16.gmra.mxu0 %v7677
    %v11766 = vpop.f32.mrf.mxu0
    %v11767 = vadd.f32 %v11726, %v11766
    %v11768 = vpop.f32.mrf.mxu0
    %v11769 = vadd.f32 %v11728, %v11768
    %v11770 = vpop.f32.mrf.mxu0
    %v11771 = vpop.f32.mrf.mxu0
    %11772 = vdwg.mxu0
    %11773 = vmatprep.subr.bf16.mxu0 %v10510
    %11774 = vmatpush1.bf16.msra.mxu0 %v10509
    %11775 = vmatprep.subr.bf16.mxu0 %v10503
    %11776 = vmatpush1.bf16.msra.mxu0 %v10502
    %11777 = vmatprep.subr.bf16.mxu0 %v10496
    %11778 = vmatpush1.bf16.msra.mxu0 %v10495
    %11779 = vmatprep.subr.bf16.mxu0 %v10489
    %11780 = vmatpush1.bf16.msra.mxu0 %v10488
    %11781 = vmatprep.subr.bf16.mxu0 %v10482
    %11782 = vmatpush1.bf16.msra.mxu0 %v10481
    %11783 = vmatprep.subr.bf16.mxu0 %v10475
    %11784 = vmatpush1.bf16.msra.mxu0 %v10474
    %11785 = vmatprep.subr.bf16.mxu0 %v10468
    %11786 = vmatpush1.bf16.msra.mxu0 %v10467
    %11787 = vmatprep.subr.bf16.mxu0 %v10461
    %11788 = vmatpush1.bf16.msra.mxu0 %v10460
    %11789 = vmatprep.subr.bf16.mxu0 %v10566
    %11790 = vmatpush2.bf16.msra.mxu0 %v10565
    %11791 = vmatprep.subr.bf16.mxu0 %v10559
    %11792 = vmatpush2.bf16.msra.mxu0 %v10558
    %11793 = vmatprep.subr.bf16.mxu0 %v10552
    %11794 = vmatpush2.bf16.msra.mxu0 %v10551
    %11795 = vmatprep.subr.bf16.mxu0 %v10545
    %11796 = vmatpush2.bf16.msra.mxu0 %v10544
    %11797 = vmatprep.subr.bf16.mxu0 %v10538
    %11798 = vmatpush2.bf16.msra.mxu0 %v10537
    %11799 = vmatprep.subr.bf16.mxu0 %v10531
    %11800 = vmatpush2.bf16.msra.mxu0 %v10530
    %11801 = vmatprep.subr.bf16.mxu0 %v10524
    %11802 = vmatpush2.bf16.msra.mxu0 %v10523
    %11803 = vmatprep.subr.bf16.mxu0 %v10517
    %11804 = vmatpush2.bf16.msra.mxu0 %v10516
    %11805 = vmatprep.mubr.bf16.mxu0 %v7680
    %11806 = vmatmul.mubr.bf16.gmra.mxu0 %v7679
    %v11807 = vpop.f32.mrf.mxu0
    %v11808 = vadd.f32 %v11767, %v11807
    %v11809 = vpop.f32.mrf.mxu0
    %v11810 = vadd.f32 %v11769, %v11809
    %v11811 = vpop.f32.mrf.mxu0
    %v11812 = vpop.f32.mrf.mxu0
    %11813 = vdwg.mxu0
    %11814 = vmatprep.subr.bf16.mxu0 %v10622
    %11815 = vmatpush1.bf16.msra.mxu0 %v10621
    %11816 = vmatprep.subr.bf16.mxu0 %v10615
    %11817 = vmatpush1.bf16.msra.mxu0 %v10614
    %11818 = vmatprep.subr.bf16.mxu0 %v10608
    %11819 = vmatpush1.bf16.msra.mxu0 %v10607
    %11820 = vmatprep.subr.bf16.mxu0 %v10601
    %11821 = vmatpush1.bf16.msra.mxu0 %v10600
    %11822 = vmatprep.subr.bf16.mxu0 %v10594
    %11823 = vmatpush1.bf16.msra.mxu0 %v10593
    %11824 = vmatprep.subr.bf16.mxu0 %v10587
    %11825 = vmatpush1.bf16.msra.mxu0 %v10586
    %11826 = vmatprep.subr.bf16.mxu0 %v10580
    %11827 = vmatpush1.bf16.msra.mxu0 %v10579
    %11828 = vmatprep.subr.bf16.mxu0 %v10573
    %11829 = vmatpush1.bf16.msra.mxu0 %v10572
    %11830 = vmatprep.subr.bf16.mxu0 %v10678
    %11831 = vmatpush2.bf16.msra.mxu0 %v10677
    %11832 = vmatprep.subr.bf16.mxu0 %v10671
    %11833 = vmatpush2.bf16.msra.mxu0 %v10670
    %11834 = vmatprep.subr.bf16.mxu0 %v10664
    %11835 = vmatpush2.bf16.msra.mxu0 %v10663
    %11836 = vmatprep.subr.bf16.mxu0 %v10657
    %11837 = vmatpush2.bf16.msra.mxu0 %v10656
    %11838 = vmatprep.subr.bf16.mxu0 %v10650
    %11839 = vmatpush2.bf16.msra.mxu0 %v10649
    %11840 = vmatprep.subr.bf16.mxu0 %v10643
    %11841 = vmatpush2.bf16.msra.mxu0 %v10642
    %11842 = vmatprep.subr.bf16.mxu0 %v10636
    %11843 = vmatpush2.bf16.msra.mxu0 %v10635
    %11844 = vmatprep.subr.bf16.mxu0 %v10629
    %11845 = vmatpush2.bf16.msra.mxu0 %v10628
    %11846 = vmatprep.mubr.bf16.mxu0 %v7682
    %11847 = vmatmul.mubr.bf16.gmra.mxu0 %v7681
    %v11848 = vpop.f32.mrf.mxu0
    %v11849 = vadd.f32 %v11808, %v11848
    %v11850 = vpop.f32.mrf.mxu0
    %v11851 = vadd.f32 %v11810, %v11850
    %v11852 = vpop.f32.mrf.mxu0
    %v11853 = vpop.f32.mrf.mxu0
    %11854 = vdwg.mxu0
    %11855 = vmatprep.subr.bf16.mxu0 0
    %11856 = vmatpush1.bf16.msra.mxu0 %v10175
    %11857 = vmatprep.subr.bf16.mxu0 0
    %11858 = vmatpush1.bf16.msra.mxu0 %v10168
    %11859 = vmatprep.subr.bf16.mxu0 0
    %11860 = vmatpush1.bf16.msra.mxu0 %v10161
    %11861 = vmatprep.subr.bf16.mxu0 0
    %11862 = vmatpush1.bf16.msra.mxu0 %v10154
    %11863 = vmatprep.subr.bf16.mxu0 0
    %11864 = vmatpush1.bf16.msra.mxu0 %v10147
    %11865 = vmatprep.subr.bf16.mxu0 0
    %11866 = vmatpush1.bf16.msra.mxu0 %v10140
    %11867 = vmatprep.subr.bf16.mxu0 0
    %11868 = vmatpush1.bf16.msra.mxu0 %v10133
    %11869 = vmatprep.subr.bf16.mxu0 0
    %11870 = vmatpush1.bf16.msra.mxu0 %v10126
    %11871 = vmatprep.subr.bf16.mxu0 0
    %11872 = vmatpush2.bf16.msra.mxu0 %v10231
    %11873 = vmatprep.subr.bf16.mxu0 0
    %11874 = vmatpush2.bf16.msra.mxu0 %v10224
    %11875 = vmatprep.subr.bf16.mxu0 0
    %11876 = vmatpush2.bf16.msra.mxu0 %v10217
    %11877 = vmatprep.subr.bf16.mxu0 0
    %11878 = vmatpush2.bf16.msra.mxu0 %v10210
    %11879 = vmatprep.subr.bf16.mxu0 0
    %11880 = vmatpush2.bf16.msra.mxu0 %v10203
    %11881 = vmatprep.subr.bf16.mxu0 0
    %11882 = vmatpush2.bf16.msra.mxu0 %v10196
    %11883 = vmatprep.subr.bf16.mxu0 0
    %11884 = vmatpush2.bf16.msra.mxu0 %v10189
    %11885 = vmatprep.subr.bf16.mxu0 0
    %11886 = vmatpush2.bf16.msra.mxu0 %v10182
    %11887 = vmatprep.mubr.bf16.mxu0 %v7674
    %11888 = vmatmul.mubr.bf16.gmra.mxu0 %v7673
    %v11889 = vpop.f32.mrf.mxu0
    %v11890 = vadd.f32 %v8352, %v11889
    %v11891 = vpop.f32.mrf.mxu0
    %v11892 = vpop.f32.mrf.mxu0
    %v11893 = vpop.f32.mrf.mxu0
    %11894 = vdwg.mxu0
    %11895 = vmatprep.subr.bf16.mxu0 0
    %11896 = vmatpush1.bf16.msra.mxu0 %v10287
    %11897 = vmatprep.subr.bf16.mxu0 0
    %11898 = vmatpush1.bf16.msra.mxu0 %v10280
    %11899 = vmatprep.subr.bf16.mxu0 0
    %11900 = vmatpush1.bf16.msra.mxu0 %v10273
    %11901 = vmatprep.subr.bf16.mxu0 0
    %11902 = vmatpush1.bf16.msra.mxu0 %v10266
    %11903 = vmatprep.subr.bf16.mxu0 0
    %11904 = vmatpush1.bf16.msra.mxu0 %v10259
    %11905 = vmatprep.subr.bf16.mxu0 0
    %11906 = vmatpush1.bf16.msra.mxu0 %v10252
    %11907 = vmatprep.subr.bf16.mxu0 0
    %11908 = vmatpush1.bf16.msra.mxu0 %v10245
    %11909 = vmatprep.subr.bf16.mxu0 0
    %11910 = vmatpush1.bf16.msra.mxu0 %v10238
    %11911 = vmatprep.subr.bf16.mxu0 0
    %11912 = vmatpush2.bf16.msra.mxu0 %v10343
    %11913 = vmatprep.subr.bf16.mxu0 0
    %11914 = vmatpush2.bf16.msra.mxu0 %v10336
    %11915 = vmatprep.subr.bf16.mxu0 0
    %11916 = vmatpush2.bf16.msra.mxu0 %v10329
    %11917 = vmatprep.subr.bf16.mxu0 0
    %11918 = vmatpush2.bf16.msra.mxu0 %v10322
    %11919 = vmatprep.subr.bf16.mxu0 0
    %11920 = vmatpush2.bf16.msra.mxu0 %v10315
    %11921 = vmatprep.subr.bf16.mxu0 0
    %11922 = vmatpush2.bf16.msra.mxu0 %v10308
    %11923 = vmatprep.subr.bf16.mxu0 0
    %11924 = vmatpush2.bf16.msra.mxu0 %v10301
    %11925 = vmatprep.subr.bf16.mxu0 0
    %11926 = vmatpush2.bf16.msra.mxu0 %v10294
    %11927 = vmatprep.mubr.bf16.mxu0 %v7676
    %11928 = vmatmul.mubr.bf16.gmra.mxu0 %v7675
    %v11929 = vpop.f32.mrf.mxu0
    %v11930 = vadd.f32 %v11890, %v11929
    %v11931 = vpop.f32.mrf.mxu0
    %v11932 = vpop.f32.mrf.mxu0
    %v11933 = vpop.f32.mrf.mxu0
    %11934 = vdwg.mxu0
    %11935 = vmatprep.subr.bf16.mxu0 0
    %11936 = vmatpush1.bf16.msra.mxu0 %v10399
    %11937 = vmatprep.subr.bf16.mxu0 0
    %11938 = vmatpush1.bf16.msra.mxu0 %v10392
    %11939 = vmatprep.subr.bf16.mxu0 0
    %11940 = vmatpush1.bf16.msra.mxu0 %v10385
    %11941 = vmatprep.subr.bf16.mxu0 0
    %11942 = vmatpush1.bf16.msra.mxu0 %v10378
    %11943 = vmatprep.subr.bf16.mxu0 0
    %11944 = vmatpush1.bf16.msra.mxu0 %v10371
    %11945 = vmatprep.subr.bf16.mxu0 0
    %11946 = vmatpush1.bf16.msra.mxu0 %v10364
    %11947 = vmatprep.subr.bf16.mxu0 0
    %11948 = vmatpush1.bf16.msra.mxu0 %v10357
    %11949 = vmatprep.subr.bf16.mxu0 0
    %11950 = vmatpush1.bf16.msra.mxu0 %v10350
    %11951 = vmatprep.subr.bf16.mxu0 0
    %11952 = vmatpush2.bf16.msra.mxu0 %v10455
    %11953 = vmatprep.subr.bf16.mxu0 0
    %11954 = vmatpush2.bf16.msra.mxu0 %v10448
    %11955 = vmatprep.subr.bf16.mxu0 0
    %11956 = vmatpush2.bf16.msra.mxu0 %v10441
    %11957 = vmatprep.subr.bf16.mxu0 0
    %11958 = vmatpush2.bf16.msra.mxu0 %v10434
    %11959 = vmatprep.subr.bf16.mxu0 0
    %11960 = vmatpush2.bf16.msra.mxu0 %v10427
    %11961 = vmatprep.subr.bf16.mxu0 0
    %11962 = vmatpush2.bf16.msra.mxu0 %v10420
    %11963 = vmatprep.subr.bf16.mxu0 0
    %11964 = vmatpush2.bf16.msra.mxu0 %v10413
    %11965 = vmatprep.subr.bf16.mxu0 0
    %11966 = vmatpush2.bf16.msra.mxu0 %v10406
    %11967 = vmatprep.mubr.bf16.mxu0 %v7678
    %11968 = vmatmul.mubr.bf16.gmra.mxu0 %v7677
    %v11969 = vpop.f32.mrf.mxu0
    %v11970 = vadd.f32 %v11930, %v11969
    %v11971 = vpop.f32.mrf.mxu0
    %v11972 = vpop.f32.mrf.mxu0
    %v11973 = vpop.f32.mrf.mxu0
    %11974 = vdwg.mxu0
    %11975 = vmatprep.subr.bf16.mxu0 0
    %11976 = vmatpush1.bf16.msra.mxu0 %v10511
    %11977 = vmatprep.subr.bf16.mxu0 0
    %11978 = vmatpush1.bf16.msra.mxu0 %v10504
    %11979 = vmatprep.subr.bf16.mxu0 0
    %11980 = vmatpush1.bf16.msra.mxu0 %v10497
    %11981 = vmatprep.subr.bf16.mxu0 0
    %11982 = vmatpush1.bf16.msra.mxu0 %v10490
    %11983 = vmatprep.subr.bf16.mxu0 0
    %11984 = vmatpush1.bf16.msra.mxu0 %v10483
    %11985 = vmatprep.subr.bf16.mxu0 0
    %11986 = vmatpush1.bf16.msra.mxu0 %v10476
    %11987 = vmatprep.subr.bf16.mxu0 0
    %11988 = vmatpush1.bf16.msra.mxu0 %v10469
    %11989 = vmatprep.subr.bf16.mxu0 0
    %11990 = vmatpush1.bf16.msra.mxu0 %v10462
    %11991 = vmatprep.subr.bf16.mxu0 0
    %11992 = vmatpush2.bf16.msra.mxu0 %v10567
    %11993 = vmatprep.subr.bf16.mxu0 0
    %11994 = vmatpush2.bf16.msra.mxu0 %v10560
    %11995 = vmatprep.subr.bf16.mxu0 0
    %11996 = vmatpush2.bf16.msra.mxu0 %v10553
    %11997 = vmatprep.subr.bf16.mxu0 0
    %11998 = vmatpush2.bf16.msra.mxu0 %v10546
    %11999 = vmatprep.subr.bf16.mxu0 0
    %12000 = vmatpush2.bf16.msra.mxu0 %v10539
    %12001 = vmatprep.subr.bf16.mxu0 0
    %12002 = vmatpush2.bf16.msra.mxu0 %v10532
    %12003 = vmatprep.subr.bf16.mxu0 0
    %12004 = vmatpush2.bf16.msra.mxu0 %v10525
    %12005 = vmatprep.subr.bf16.mxu0 0
    %12006 = vmatpush2.bf16.msra.mxu0 %v10518
    %12007 = vmatprep.mubr.bf16.mxu0 %v7680
    %12008 = vmatmul.mubr.bf16.gmra.mxu0 %v7679
    %v12009 = vpop.f32.mrf.mxu0
    %v12010 = vadd.f32 %v11970, %v12009
    %v12011 = vpop.f32.mrf.mxu0
    %v12012 = vpop.f32.mrf.mxu0
    %v12013 = vpop.f32.mrf.mxu0
    %12014 = vdwg.mxu0
    %12015 = vmatprep.subr.bf16.mxu0 0
    %12016 = vmatpush1.bf16.msra.mxu0 %v10623
    %12017 = vmatprep.subr.bf16.mxu0 0
    %12018 = vmatpush1.bf16.msra.mxu0 %v10616
    %12019 = vmatprep.subr.bf16.mxu0 0
    %12020 = vmatpush1.bf16.msra.mxu0 %v10609
    %12021 = vmatprep.subr.bf16.mxu0 0
    %12022 = vmatpush1.bf16.msra.mxu0 %v10602
    %12023 = vmatprep.subr.bf16.mxu0 0
    %12024 = vmatpush1.bf16.msra.mxu0 %v10595
    %12025 = vmatprep.subr.bf16.mxu0 0
    %12026 = vmatpush1.bf16.msra.mxu0 %v10588
    %12027 = vmatprep.subr.bf16.mxu0 0
    %12028 = vmatpush1.bf16.msra.mxu0 %v10581
    %12029 = vmatprep.subr.bf16.mxu0 0
    %12030 = vmatpush1.bf16.msra.mxu0 %v10574
    %12031 = vmatprep.subr.bf16.mxu0 0
    %12032 = vmatpush2.bf16.msra.mxu0 %v10679
    %12033 = vmatprep.subr.bf16.mxu0 0
    %12034 = vmatpush2.bf16.msra.mxu0 %v10672
    %12035 = vmatprep.subr.bf16.mxu0 0
    %12036 = vmatpush2.bf16.msra.mxu0 %v10665
    %12037 = vmatprep.subr.bf16.mxu0 0
    %12038 = vmatpush2.bf16.msra.mxu0 %v10658
    %12039 = vmatprep.subr.bf16.mxu0 0
    %12040 = vmatpush2.bf16.msra.mxu0 %v10651
    %12041 = vmatprep.subr.bf16.mxu0 0
    %12042 = vmatpush2.bf16.msra.mxu0 %v10644
    %12043 = vmatprep.subr.bf16.mxu0 0
    %12044 = vmatpush2.bf16.msra.mxu0 %v10637
    %12045 = vmatprep.subr.bf16.mxu0 0
    %12046 = vmatpush2.bf16.msra.mxu0 %v10630
    %12047 = vmatprep.mubr.bf16.mxu0 %v7682
    %12048 = vmatmul.mubr.bf16.gmra.mxu0 %v7681
    %v12049 = vpop.f32.mrf.mxu0
    %v12050 = vadd.f32 %v12010, %v12049
    %v12051 = vpop.f32.mrf.mxu0
    %v12052 = vpop.f32.mrf.mxu0
    %v12053 = vpop.f32.mrf.mxu0
    %12054 = vdwg.mxu0
    %v12055 = vxor.u32 %v11439, 2147483648
    %v12056 = vxor.u32 %v11441, 2147483648
    %v12057 = vxor.u32 %v11644, 2147483648
    %v12058 = vxor.u32 %v11646, 2147483648
    %v12059 = vxor.u32 %v11849, 2147483648
    %v12060 = vxor.u32 %v11851, 2147483648
    %v12061 = vxor.u32 %v12050, 2147483648
    %v12062 = vmul.f32 %v12055, 1.442695
    %v12063 = vpow.pop %v12062
    %v12064 = vmul.f32 %v12056, 1.442695
    %v12065 = vpow.pop %v12064
    %v12066 = vmul.f32 %v12057, 1.442695
    %v12067 = vpow.pop %v12066
    %v12068 = vmul.f32 %v12058, 1.442695
    %v12069 = vpow.pop %v12068
    %v12070 = vmul.f32 %v12059, 1.442695
    %v12071 = vpow.pop %v12070
    %v12072 = vmul.f32 %v12060, 1.442695
    %v12073 = vpow.pop %v12072
    %v12074 = vmul.f32 %v12061, 1.442695
    %v12075 = vpow.pop %v12074
    %v12076 = vadd.f32 %v12063, 1.0
    %v12077 = vadd.f32 %v12065, 1.0
    %v12078 = vadd.f32 %v12067, 1.0
    %v12079 = vadd.f32 %v12069, 1.0
    %v12080 = vadd.f32 %v12071, 1.0
    %v12081 = vadd.f32 %v12073, 1.0
    %v12082 = vadd.f32 %v12075, 1.0
    %v12083 = vrcp.pop %v12076
    %v12084 = vmul.f32 1.0, %v12083
    %v12085 = vrcp.pop %v12077
    %v12086 = vmul.f32 1.0, %v12085
    %v12087 = vrcp.pop %v12078
    %v12088 = vmul.f32 1.0, %v12087
    %v12089 = vrcp.pop %v12079
    %v12090 = vmul.f32 1.0, %v12089
    %v12091 = vrcp.pop %v12080
    %v12092 = vmul.f32 1.0, %v12091
    %v12093 = vrcp.pop %v12081
    %v12094 = vmul.f32 1.0, %v12093
    %v12095 = vrcp.pop %v12082
    %v12096 = vmul.f32 1.0, %v12095
    %12097 = vst [vmem:[#allocation17] sm:$0xff] %v12084
    %12098 = vst [vmem:[#allocation17 + $0x8] sm:$0xff] %v12086
    %12099 = vst [vmem:[#allocation17 + $0x10] sm:$0xff] %v12088
    %12100 = vst [vmem:[#allocation17 + $0x18] sm:$0xff] %v12090
    %12101 = vst [vmem:[#allocation17 + $0x20] sm:$0xff] %v12092
    %12102 = vst [vmem:[#allocation17 + $0x28] sm:$0xff] %v12094
    %12103 = vst [vmem:[#allocation17 + $0x30] sm:$0xff] %v12096
    // Predicated region
    $region66: #{tpu_custom_call.1} parent=1 // pred_check
      _
    $region67: #{tpu_custom_call.1} parent=1 // pred_check_branch
      %12105 = sbr.rel (0) target = $region69
    $region68: #{tpu_custom_call.1} parent=1 // pred_region
      %s12107 = ssub.s32 896, 896
      %12108 = vsyncadd [#allocation7], %s12107
      %s12110 = sshll.u32 [#allocation17], 4
      %s12111 = int_to_ptr.vmem [resolvable:$true] %s12110
      %12113 = dma.vmem_to_hbm [thread:$0]  %s12111, 896, %s9, [#allocation7]
    $region69: #{tpu_custom_call.1} parent=1 // pred_fallthru
      _
    // Predicated region
    $region70: #{tpu_custom_call.1} parent=1 // pred_check
      _
    $region71: #{tpu_custom_call.1} parent=1 // pred_check_branch
      %12115 = sbr.rel (0) target = $region73
    $region72: #{tpu_custom_call.1} parent=1 // pred_region
      %12116 = dma.done [#allocation7], 896
    $region73: #{tpu_custom_call.1} parent=1 // pred_fallthru
      _
    %12117 = vsyncpa [#allocation6], 1
    %12118 = vsyncpa [#allocation9], 1
    %12119 = vsyncpa [#allocation12], 1
    %12120 = vsyncpa [#allocation15], 1
    %12121 = vsyncpa [#allocation7], 1
  %12122 = vsyncmov [#allocation4]
  %s12123 = vpop.sfrf %12122
  %p12124 = scmp.eq.s32.totalorder %s12123, 0
  %p12125 = pneg %p12124
  %12127 = shalt.err (%p12125)
  %s12128 = scalar_lea.sflag [#allocation4], 1
  %12129 = vsyncmov %s12128
  %s12130 = vpop.sfrf %12129
  %p12131 = scmp.eq.s32.totalorder %s12130, 0
  %p12132 = pneg %p12131
  %12134 = shalt.err (%p12132)

</llo_original>
